<compile_context>
chip_gen: v5e
topology: v5e:2x2
jax: 0.10.0
libtpu: 0.0.40
codegen_flags: <defaults>
</compile_context>

<pallas_src>
import functools

import jax
import jax.numpy as jnp
from jax.experimental import pallas as pl
from jax.experimental.pallas import tpu as pltpu

_DILATIONS = (6, 12, 18)
_HALO = max(_DILATIONS)   # taps reach +/- 18 pixels
# Interior origin inside the halo plane. Multiple of 32 so the per-step interior store is
# (packed-)sublane aligned for f32 / bf16 / int8 compute dtypes; >= _HALO so every tap
# stays in bounds.
_PAD = 32


# ----------------------------------------------------------------------------
# Fused ASPP kernel.  grid = (N, Cin_chunks); Cin is the reduction axis.
# ----------------------------------------------------------------------------
def _aspp_fused_kernel(x_ref, w1_ref, wd_ref, brb_ref, wf_ref, bias_ref, o_ref,
                       xhalo, acc1, acc6, acc12, acc18,
                       *, H, W, compute_dtype):
    c_idx = pl.program_id(1)
    Cout = o_ref.shape[-1]
    tcin = x_ref.shape[-1]

    @pl.when(c_idx == 0)
    def _init():
        # Zero once per image (megacore-safe: every core hits c == 0 for its images).
        # Only the always-zero halo border survives across Cin chunks; the interior is
        # overwritten below every step.
        xhalo[...] = jnp.zeros_like(xhalo)
        acc1[...] = jnp.zeros_like(acc1)
        acc6[...] = jnp.zeros_like(acc6)
        acc12[...] = jnp.zeros_like(acc12)
        acc18[...] = jnp.zeros_like(acc18)

    # Drop the current Cin chunk into the zero-halo plane, casting to the MXU dtype here
    # (no host-side pad or cast pass over HBM; the halo itself is never DMA'd).
    xhalo[_PAD:_PAD + H, _PAD:_PAD + W, :] = x_ref[0].astype(compute_dtype)

    def window(r0, c0):
        # (H, W, tcin) shifted window flattened to (H*W, tcin) rows for a 2-D MXU matmul.
        return xhalo[r0:r0 + H, c0:c0 + W, :].reshape(H * W, tcin)

    # Shared centre window: 1x1 branch + the centre tap of every dilated branch.
    center = window(_PAD, _PAD)
    acc1[...] += jnp.dot(center, w1_ref[...], preferred_element_type=jnp.float32)

    accs = (acc6, acc12, acc18)
    for bi, d in enumerate(_DILATIONS):
        taps = [center if (kh == 1 and kw == 1)
                else window(_PAD + (kh - 1) * d, _PAD + (kw - 1) * d)
                for kh in range(3) for kw in range(3)]
        if tcin % 128 == 0:
            # Lane-aligned im2col: one deep-K matmul per branch (K = 9*tcin) instead of
            # nine shallow ones -> full MXU depth, one result drain, no per-tap VALU adds.
            im = jnp.concatenate(taps, axis=-1)                       # (H*W, 9*tcin)
            accs[bi][...] += jnp.dot(im, wd_ref[bi].reshape(9 * tcin, Cout),
                                     preferred_element_type=jnp.float32)
        else:
            # Lane-sparse fallback (toy channel counts): per-tap accumulation.
            part = None
            for t, win in enumerate(taps):
                r = jnp.dot(win, wd_ref[bi, t], preferred_element_type=jnp.float32)
                part = r if part is None else part + r
            accs[bi][...] += part

    # Epilogue on the last Cin chunk: per-branch bias + ReLU (BN scale is pre-folded into
    # the weights), project through the branch's slice of the final 1x1 conv (final BN
    # scale pre-folded), add the per-image pool/bias vector, ReLU, single HBM write.
    @pl.when(c_idx == pl.num_programs(1) - 1)
    def _finalize():
        brb = brb_ref[...]                          # (4, Cout) f32 branch BN biases

        def proj(acc, bi):
            y = jnp.maximum(acc[...] + brb[bi:bi + 1], 0.0).astype(compute_dtype)
            return jnp.dot(y, wf_ref[bi], preferred_element_type=jnp.float32)

        fin = proj(acc1, 0) + bias_ref[0]           # pool branch + final BN bias folded in
        fin = fin + proj(acc6, 1)
        fin = fin + proj(acc12, 2)
        fin = fin + proj(acc18, 3)
        o_ref[...] = jnp.maximum(fin, 0.0).reshape(1, H, W, Cout).astype(o_ref.dtype)


# ----------------------------------------------------------------------------
# Host-side, one-time parameter preparation: fold inference BN, stack + cast weights.
# ----------------------------------------------------------------------------
def prepare_aspp_params(p, compute_dtype=jnp.bfloat16):
    cin, cout = p["w1"].shape
    sf = p["sf"].astype(jnp.float32)
    # Branch BN scales fold into the conv weights; biases stay separate (ReLU between).
    w1 = (p["w1"] * p["s1"]).astype(compute_dtype)                          # (Cin, Cout)
    wd = jnp.stack([p["w6"] * p["s6"], p["w12"] * p["s12"], p["w18"] * p["s18"]])
    wd = wd.reshape(3, 9, cin, cout).astype(compute_dtype)                  # (3, 9, Cin, Cout)
    brb = jnp.stack([p["b1"], p["b6"], p["b12"], p["b18"]]).astype(jnp.float32)
    # Final 1x1 conv weight split by concat group, final BN scale folded in.
    wf = p["wf"].astype(jnp.float32)                                        # (5*Cout, Cout)
    wf_br = (wf[:4 * cout].reshape(4, cout, cout) * sf).astype(compute_dtype)
    wf_pool = wf[4 * cout:] * sf                                            # (Cout, Cout) f32
    return dict(w1=w1, wd=wd, brb=brb, wf_br=wf_br, wf_pool=wf_pool,
                wp=p["wp"].astype(jnp.float32), sp=p["sp"].astype(jnp.float32),
                bp=p["bp"].astype(jnp.float32), bf=p["bf"].astype(jnp.float32))


# ----------------------------------------------------------------------------
# ASPP forward: one fused pallas_call; pool branch folded as a per-image bias.
# ----------------------------------------------------------------------------
def aspp_forward(x_nhwc, prep, *, cin_tile=128):
    N, H, W, Cin = x_nhwc.shape
    Cout = prep["w1"].shape[1]
    compute_dtype = prep["w1"].dtype
    Hp = H + _PAD + _HALO
    Wp = W + _PAD + _HALO

    # Cin reduction tile: lane-aligned chunk (128 default keeps v7x's 64 MiB VMEM happy),
    # or the full Cin for toy / lane-sparse shapes.
    if Cin % cin_tile == 0 and cin_tile % 128 == 0:
        tcin = cin_tile
    else:
        tcin = Cin
    n_cin = Cin // tcin

    # Global-average-pool branch: spatially constant and tiny -> plain JAX, folded through
    # its slice of the final conv and the final BN into a per-image bias vector.
    pooled = jnp.mean(x_nhwc.astype(jnp.float32), axis=(1, 2))              # (N, Cin)
    pb = jnp.maximum(jnp.dot(pooled, prep["wp"]) * prep["sp"] + prep["bp"], 0.0)
    bias_n = (jnp.dot(pb, prep["wf_pool"]) + prep["bf"]).reshape(N, 1, Cout)
    bias_n = bias_n.astype(jnp.float32)

    kern = functools.partial(_aspp_fused_kernel, H=H, W=W, compute_dtype=compute_dtype)

    itemsize = jnp.dtype(compute_dtype).itemsize
    flops = 2 * N * H * W * Cin * Cout * 28 + 2 * N * H * W * (4 * Cout) * Cout
    bytes_accessed = (x_nhwc.size * x_nhwc.dtype.itemsize
                      + N * (prep["w1"].size + prep["wd"].size + prep["wf_br"].size) * itemsize
                      + N * H * W * Cout * 4)

    return pl.pallas_call(
        kern,
        out_shape=jax.ShapeDtypeStruct((N, H, W, Cout), jnp.float32),
        grid=(N, n_cin),
        in_specs=[
            pl.BlockSpec((1, H, W, tcin), lambda n, c: (n, 0, 0, c)),      # x chunk (unpadded)
            pl.BlockSpec((tcin, Cout), lambda n, c: (c, 0)),               # 1x1 weights
            pl.BlockSpec((3, 9, tcin, Cout), lambda n, c: (0, 0, c, 0)),   # dilated weights
            pl.BlockSpec((4, Cout), lambda n, c: (0, 0)),                  # branch BN biases
            pl.BlockSpec((4, Cout, Cout), lambda n, c: (0, 0, 0)),         # final-conv slices
            pl.BlockSpec((1, 1, Cout), lambda n, c: (n, 0, 0)),            # pool+final-BN bias
        ],
        out_specs=pl.BlockSpec((1, H, W, Cout), lambda n, c: (n, 0, 0, 0)),
        scratch_shapes=[
            pltpu.VMEM((Hp, Wp, tcin), compute_dtype),    # zero-halo input plane
            pltpu.VMEM((H * W, Cout), jnp.float32),       # per-branch f32 accumulators
            pltpu.VMEM((H * W, Cout), jnp.float32),
            pltpu.VMEM((H * W, Cout), jnp.float32),
            pltpu.VMEM((H * W, Cout), jnp.float32),
        ],
        compiler_params=pltpu.CompilerParams(
            dimension_semantics=("parallel", "arbitrary"),
            # Within physical VMEM on v5e/v6e (128 MiB) and v7x (64 MiB); actual demo
            # usage is far below this.
            vmem_limit_bytes=64 * 1024 * 1024),
        cost_estimate=pl.CostEstimate(flops=int(flops), transcendentals=0,
                                      bytes_accessed=int(bytes_accessed)),
    )(x_nhwc, prep["w1"], prep["wd"], prep["brb"], prep["wf_br"], bias_n)


# ----------------------------------------------------------------------------
# Pure-JAX reference for correctness checking
# ----------------------------------------------------------------------------
def aspp_ref(x_nhwc, p):
    def conv2d(x, w, dil, pad):
        return jax.lax.conv_general_dilated(
            x, w, (1, 1), ((pad, pad), (pad, pad)),
            rhs_dilation=(dil, dil),
            dimension_numbers=("NHWC", "HWIO", "NHWC"))

    def bnrelu(y, s, b):
        return jnp.maximum(y * s + b, 0.0)

    N, H, W, Cin = x_nhwc.shape
    Cout = p["w1"].shape[1]
    x1 = bnrelu(conv2d(x_nhwc, p["w1"].reshape(1, 1, Cin, Cout), 1, 0), p["s1"], p["b1"])
    x6 = bnrelu(conv2d(x_nhwc, p["w6"], 6, 6), p["s6"], p["b6"])
    x12 = bnrelu(conv2d(x_nhwc, p["w12"], 12, 12), p["s12"], p["b12"])
    x18 = bnrelu(conv2d(x_nhwc, p["w18"], 18, 18), p["s18"], p["b18"])
    pooled = jnp.mean(x_nhwc, axis=(1, 2), keepdims=True)
    pb = bnrelu(conv2d(pooled, p["wp"].reshape(1, 1, Cin, Cout), 1, 0), p["sp"], p["bp"])
    pool_up = jnp.broadcast_to(pb, (N, H, W, Cout))
    cat = jnp.concatenate([x1, x6, x12, x18, pool_up], axis=-1)
    return bnrelu(conv2d(cat, p["wf"].reshape(1, 1, 5 * Cout, Cout), 1, 0), p["sf"], p["bf"])


# ----------------------------------------------------------------------------
# Deterministic parameter initialization (synthetic; no checkpoint load)
# ----------------------------------------------------------------------------
def _bn_scale_bias(c, tag):
    i = jnp.arange(c, dtype=jnp.float32)
    gamma = 1.0 + 0.05 * jnp.cos(i + tag)
    beta = 0.02 * jnp.sin(i + tag)
    mean = 0.01 * (i - c / 2.0)
    var = 1.0 + 0.03 * i
    scale = gamma / jnp.sqrt(var + 1e-5)
    bias = beta - mean * scale
    return scale, bias


def init_params(key, cin, cout):
    ks = jax.random.split(key, 6)
    p = {
        "w1": 0.2 * jax.random.normal(ks[0], (cin, cout), jnp.float32),
        "w6": 0.1 * jax.random.normal(ks[1], (3, 3, cin, cout), jnp.float32),
        "w12": 0.1 * jax.random.normal(ks[2], (3, 3, cin, cout), jnp.float32),
        "w18": 0.1 * jax.random.normal(ks[3], (3, 3, cin, cout), jnp.float32),
        "wp": 0.2 * jax.random.normal(ks[4], (cin, cout), jnp.float32),
        "wf": 0.1 * jax.random.normal(ks[5], (5 * cout, cout), jnp.float32),
    }
    p["s1"], p["b1"] = _bn_scale_bias(cout, 0.0)
    p["s6"], p["b6"] = _bn_scale_bias(cout, 1.0)
    p["s12"], p["b12"] = _bn_scale_bias(cout, 2.0)
    p["s18"], p["b18"] = _bn_scale_bias(cout, 3.0)
    p["sp"], p["bp"] = _bn_scale_bias(cout, 4.0)
    p["sf"], p["bf"] = _bn_scale_bias(cout, 5.0)
    return p


if __name__ == "__main__":
    key = jax.random.PRNGKey(0)
    k_x, k_p, k_x2, k_p2 = jax.random.split(key, 4)

    # ---- toy shapes matching the PyTorch module demo (NCHW input) -----------------
    N, C_IN, C_OUT, H, W = 2, 4, 8, 16, 16
    x_nchw = jax.random.normal(k_x, (N, C_IN, H, W), jnp.float32)
    x_nhwc = jnp.transpose(x_nchw, (0, 2, 3, 1))
    params = init_params(k_p, C_IN, C_OUT)
    ref = aspp_ref(x_nhwc, params)

    fwd = jax.jit(aspp_forward)

    # f32 compute path: tight check against the lax reference.
    out_f32 = jax.block_until_ready(fwd(x_nhwc, prepare_aspp_params(params, jnp.float32)))
    assert out_f32.shape == (N, H, W, C_OUT), out_f32.shape
    err = float(jnp.max(jnp.abs(out_f32 - ref)))
    assert err < 2e-3, f"f32 max abs err too large: {err}"

    # bf16 (default) MXU path with f32 accumulation: looser tolerance.
    out_bf = jax.block_until_ready(fwd(x_nhwc, prepare_aspp_params(params)))
    err_bf = float(jnp.max(jnp.abs(out_bf - ref)))
    assert err_bf < 1e-1, f"bf16 max abs err too large: {err_bf}"

    # ---- lane-dense, multi-Cin-chunk path (the layout real ASPP sizes use) --------
    C_IN2, C_OUT2 = 256, 128          # two Cin chunks of 128, 128-lane Cout
    x2 = jax.random.normal(k_x2, (1, H, W, C_IN2), jnp.float32)
    params2 = init_params(k_p2, C_IN2, C_OUT2)
    ref2 = aspp_ref(x2, params2)
    scale2 = float(jnp.max(jnp.abs(ref2))) + 1e-6

    out2 = jax.block_until_ready(fwd(x2, prepare_aspp_params(params2, jnp.float32)))
    rel2 = float(jnp.max(jnp.abs(out2 - ref2))) / scale2
    assert rel2 < 2e-2, f"f32 lane-dense rel err too large: {rel2}"

    out2_bf = jax.block_until_ready(fwd(x2, prepare_aspp_params(params2)))
    rel2_bf = float(jnp.max(jnp.abs(out2_bf - ref2))) / scale2
    assert rel2_bf < 8e-2, f"bf16 lane-dense rel err too large: {rel2_bf}"

    print("KERNEL_OK")
</pallas_src>

<mosaic_0001>
module attributes {stable_mosaic.version = 11 : i64} {
  func.func @_aspp_fused_kernel(%arg0: i32, %arg1: i32, %arg2: memref<1x16x16x4xf32, #tpu.memory_space<vmem>>, %arg3: memref<4x8xf32, #tpu.memory_space<vmem>>, %arg4: memref<3x9x4x8xf32, #tpu.memory_space<vmem>>, %arg5: memref<4x8xf32, #tpu.memory_space<vmem>>, %arg6: memref<4x8x8xf32, #tpu.memory_space<vmem>>, %arg7: memref<1x1x8xf32, #tpu.memory_space<vmem>>, %arg8: memref<1x16x16x8xf32, #tpu.memory_space<vmem>>, %arg9: memref<66x66x4xf32, #tpu.memory_space<vmem>>, %arg10: memref<256x8xf32, #tpu.memory_space<vmem>>, %arg11: memref<256x8xf32, #tpu.memory_space<vmem>>, %arg12: memref<256x8xf32, #tpu.memory_space<vmem>>, %arg13: memref<256x8xf32, #tpu.memory_space<vmem>>) attributes {dimension_semantics = [#tpu.dimension_semantics<parallel>, #tpu.dimension_semantics<arbitrary>], iteration_bounds = array<i64: 2, 1>, scalar_prefetch = 0 : i64, scratch_operands = 5 : i64, tpu.core_type = #tpu.core_type<tc>, window_params = [{transform_indices = @transform_0, window_bounds = array<i64: 1, 16, 16, 4>}, {transform_indices = @transform_1, window_bounds = array<i64: 4, 8>}, {transform_indices = @transform_2, window_bounds = array<i64: 3, 9, 4, 8>}, {pipeline_mode = #tpu.pipeline_mode<synchronous>, transform_indices = @transform_3, window_bounds = array<i64: 4, 8>}, {pipeline_mode = #tpu.pipeline_mode<synchronous>, transform_indices = @transform_4, window_bounds = array<i64: 4, 8, 8>}, {transform_indices = @transform_5, window_bounds = array<i64: 1, 1, 8>}, {transform_indices = @transform_6, window_bounds = array<i64: 1, 16, 16, 8>}]} {
    %c0_i32 = arith.constant 0 : i32
    %0 = arith.cmpi eq, %arg1, %c0_i32 : i32
    %1 = arith.extui %0 : i1 to i32
    %c0_i32_0 = arith.constant 0 : i32
    %2 = arith.cmpi ne, %1, %c0_i32_0 : i32
    scf.if %2 {
      %cst_222 = arith.constant 0.000000e+00 : f32
      %178 = vector.broadcast %cst_222 : f32 to vector<66x66x4xf32>
      %c0_223 = arith.constant 0 : index
      %c0_224 = arith.constant 0 : index
      %c0_225 = arith.constant 0 : index
      %179 = vector.load %arg9[%c0_223, %c0_224, %c0_225] : memref<66x66x4xf32, #tpu.memory_space<vmem>>, vector<66x66x4xf32>
      tpu.vector_store %arg9[%c0_223, %c0_224, %c0_225], %178 {strides = array<i32>} : memref<66x66x4xf32, #tpu.memory_space<vmem>>, vector<66x66x4xf32>,
      %cst_226 = arith.constant 0.000000e+00 : f32
      %180 = vector.broadcast %cst_226 : f32 to vector<256x8xf32>
      %c0_227 = arith.constant 0 : index
      %c0_228 = arith.constant 0 : index
      %181 = vector.load %arg10[%c0_227, %c0_228] : memref<256x8xf32, #tpu.memory_space<vmem>>, vector<256x8xf32>
      tpu.vector_store %arg10[%c0_227, %c0_228], %180 {strides = array<i32>} : memref<256x8xf32, #tpu.memory_space<vmem>>, vector<256x8xf32>,
      %cst_229 = arith.constant 0.000000e+00 : f32
      %182 = vector.broadcast %cst_229 : f32 to vector<256x8xf32>
      %c0_230 = arith.constant 0 : index
      %c0_231 = arith.constant 0 : index
      %183 = vector.load %arg11[%c0_230, %c0_231] : memref<256x8xf32, #tpu.memory_space<vmem>>, vector<256x8xf32>
      tpu.vector_store %arg11[%c0_230, %c0_231], %182 {strides = array<i32>} : memref<256x8xf32, #tpu.memory_space<vmem>>, vector<256x8xf32>,
      %cst_232 = arith.constant 0.000000e+00 : f32
      %184 = vector.broadcast %cst_232 : f32 to vector<256x8xf32>
      %c0_233 = arith.constant 0 : index
      %c0_234 = arith.constant 0 : index
      %185 = vector.load %arg12[%c0_233, %c0_234] : memref<256x8xf32, #tpu.memory_space<vmem>>, vector<256x8xf32>
      tpu.vector_store %arg12[%c0_233, %c0_234], %184 {strides = array<i32>} : memref<256x8xf32, #tpu.memory_space<vmem>>, vector<256x8xf32>,
      %cst_235 = arith.constant 0.000000e+00 : f32
      %186 = vector.broadcast %cst_235 : f32 to vector<256x8xf32>
      %c0_236 = arith.constant 0 : index
      %c0_237 = arith.constant 0 : index
      %187 = vector.load %arg13[%c0_236, %c0_237] : memref<256x8xf32, #tpu.memory_space<vmem>>, vector<256x8xf32>
      tpu.vector_store %arg13[%c0_236, %c0_237], %186 {strides = array<i32>} : memref<256x8xf32, #tpu.memory_space<vmem>>, vector<256x8xf32>,
    } else {
    }
    %c0 = arith.constant 0 : index
    %c0_1 = arith.constant 0 : index
    %c0_2 = arith.constant 0 : index
    %c0_3 = arith.constant 0 : index
    %3 = vector.load %arg2[%c0, %c0_1, %c0_2, %c0_3] : memref<1x16x16x4xf32, #tpu.memory_space<vmem>>, vector<1x16x16x4xf32>
    %4 = vector.shape_cast %3 : vector<1x16x16x4xf32> to vector<16x16x4xf32>
    %c32 = arith.constant 32 : index
    %c32_4 = arith.constant 32 : index
    %c0_5 = arith.constant 0 : index
    %5 = vector.load %arg9[%c32, %c32_4, %c0_5] : memref<66x66x4xf32, #tpu.memory_space<vmem>>, vector<16x16x4xf32>
    tpu.vector_store %arg9[%c32, %c32_4, %c0_5], %4 {strides = array<i32>} : memref<66x66x4xf32, #tpu.memory_space<vmem>>, vector<16x16x4xf32>,
    %c32_6 = arith.constant 32 : index
    %c32_7 = arith.constant 32 : index
    %c0_8 = arith.constant 0 : index
    %6 = vector.load %arg9[%c32_6, %c32_7, %c0_8] : memref<66x66x4xf32, #tpu.memory_space<vmem>>, vector<16x16x4xf32>
    %7 = vector.shape_cast %6 : vector<16x16x4xf32> to vector<256x4xf32>
    %c0_9 = arith.constant 0 : index
    %c0_10 = arith.constant 0 : index
    %8 = vector.load %arg10[%c0_9, %c0_10] : memref<256x8xf32, #tpu.memory_space<vmem>>, vector<256x8xf32>
    %c0_11 = arith.constant 0 : index
    %c0_12 = arith.constant 0 : index
    %9 = vector.load %arg3[%c0_11, %c0_12] : memref<4x8xf32, #tpu.memory_space<vmem>>, vector<4x8xf32>
    %cst = arith.constant dense<0.000000e+00> : vector<256x8xf32>
    %10 = tpu.matmul %7, %9, %cst {dimension_numbers = #tpu.dot_dimension_numbers<[1], [0], [0], [1], [0, 0, 1, 1], [], []>} : vector<256x4xf32>, vector<4x8xf32>, vector<256x8xf32> -> vector<256x8xf32>
    %11 = arith.addf %8, %10 : vector<256x8xf32>
    %c0_13 = arith.constant 0 : index
    %c0_14 = arith.constant 0 : index
    %12 = vector.load %arg10[%c0_13, %c0_14] : memref<256x8xf32, #tpu.memory_space<vmem>>, vector<256x8xf32>
    tpu.vector_store %arg10[%c0_13, %c0_14], %11 {strides = array<i32>} : memref<256x8xf32, #tpu.memory_space<vmem>>, vector<256x8xf32>,
    %c26 = arith.constant 26 : index
    %c26_15 = arith.constant 26 : index
    %c0_16 = arith.constant 0 : index
    %13 = vector.load %arg9[%c26, %c26_15, %c0_16] : memref<66x66x4xf32, #tpu.memory_space<vmem>>, vector<16x16x4xf32>
    %14 = vector.shape_cast %13 : vector<16x16x4xf32> to vector<256x4xf32>
    %c26_17 = arith.constant 26 : index
    %c32_18 = arith.constant 32 : index
    %c0_19 = arith.constant 0 : index
    %15 = vector.load %arg9[%c26_17, %c32_18, %c0_19] : memref<66x66x4xf32, #tpu.memory_space<vmem>>, vector<16x16x4xf32>
    %16 = vector.shape_cast %15 : vector<16x16x4xf32> to vector<256x4xf32>
    %c26_20 = arith.constant 26 : index
    %c38 = arith.constant 38 : index
    %c0_21 = arith.constant 0 : index
    %17 = vector.load %arg9[%c26_20, %c38, %c0_21] : memref<66x66x4xf32, #tpu.memory_space<vmem>>, vector<16x16x4xf32>
    %18 = vector.shape_cast %17 : vector<16x16x4xf32> to vector<256x4xf32>
    %c32_22 = arith.constant 32 : index
    %c26_23 = arith.constant 26 : index
    %c0_24 = arith.constant 0 : index
    %19 = vector.load %arg9[%c32_22, %c26_23, %c0_24] : memref<66x66x4xf32, #tpu.memory_space<vmem>>, vector<16x16x4xf32>
    %20 = vector.shape_cast %19 : vector<16x16x4xf32> to vector<256x4xf32>
    %c32_25 = arith.constant 32 : index
    %c38_26 = arith.constant 38 : index
    %c0_27 = arith.constant 0 : index
    %21 = vector.load %arg9[%c32_25, %c38_26, %c0_27] : memref<66x66x4xf32, #tpu.memory_space<vmem>>, vector<16x16x4xf32>
    %22 = vector.shape_cast %21 : vector<16x16x4xf32> to vector<256x4xf32>
    %c38_28 = arith.constant 38 : index
    %c26_29 = arith.constant 26 : index
    %c0_30 = arith.constant 0 : index
    %23 = vector.load %arg9[%c38_28, %c26_29, %c0_30] : memref<66x66x4xf32, #tpu.memory_space<vmem>>, vector<16x16x4xf32>
    %24 = vector.shape_cast %23 : vector<16x16x4xf32> to vector<256x4xf32>
    %c38_31 = arith.constant 38 : index
    %c32_32 = arith.constant 32 : index
    %c0_33 = arith.constant 0 : index
    %25 = vector.load %arg9[%c38_31, %c32_32, %c0_33] : memref<66x66x4xf32, #tpu.memory_space<vmem>>, vector<16x16x4xf32>
    %26 = vector.shape_cast %25 : vector<16x16x4xf32> to vector<256x4xf32>
    %c38_34 = arith.constant 38 : index
    %c38_35 = arith.constant 38 : index
    %c0_36 = arith.constant 0 : index
    %27 = vector.load %arg9[%c38_34, %c38_35, %c0_36] : memref<66x66x4xf32, #tpu.memory_space<vmem>>, vector<16x16x4xf32>
    %28 = vector.shape_cast %27 : vector<16x16x4xf32> to vector<256x4xf32>
    %c0_37 = arith.constant 0 : index
    %c0_38 = arith.constant 0 : index
    %c0_39 = arith.constant 0 : index
    %c0_40 = arith.constant 0 : index
    %29 = vector.load %arg4[%c0_37, %c0_38, %c0_39, %c0_40] : memref<3x9x4x8xf32, #tpu.memory_space<vmem>>, vector<1x1x4x8xf32>
    %30 = vector.shape_cast %29 : vector<1x1x4x8xf32> to vector<4x8xf32>
    %cst_41 = arith.constant dense<0.000000e+00> : vector<256x8xf32>
    %31 = tpu.matmul %14, %30, %cst_41 {dimension_numbers = #tpu.dot_dimension_numbers<[1], [0], [0], [1], [0, 0, 1, 1], [], []>} : vector<256x4xf32>, vector<4x8xf32>, vector<256x8xf32> -> vector<256x8xf32>
    %c0_42 = arith.constant 0 : index
    %c1 = arith.constant 1 : index
    %c0_43 = arith.constant 0 : index
    %c0_44 = arith.constant 0 : index
    %32 = vector.load %arg4[%c0_42, %c1, %c0_43, %c0_44] : memref<3x9x4x8xf32, #tpu.memory_space<vmem>>, vector<1x1x4x8xf32>
    %33 = vector.shape_cast %32 : vector<1x1x4x8xf32> to vector<4x8xf32>
    %cst_45 = arith.constant dense<0.000000e+00> : vector<256x8xf32>
    %34 = tpu.matmul %16, %33, %cst_45 {dimension_numbers = #tpu.dot_dimension_numbers<[1], [0], [0], [1], [0, 0, 1, 1], [], []>} : vector<256x4xf32>, vector<4x8xf32>, vector<256x8xf32> -> vector<256x8xf32>
    %35 = arith.addf %31, %34 : vector<256x8xf32>
    %c0_46 = arith.constant 0 : index
    %c2 = arith.constant 2 : index
    %c0_47 = arith.constant 0 : index
    %c0_48 = arith.constant 0 : index
    %36 = vector.load %arg4[%c0_46, %c2, %c0_47, %c0_48] : memref<3x9x4x8xf32, #tpu.memory_space<vmem>>, vector<1x1x4x8xf32>
    %37 = vector.shape_cast %36 : vector<1x1x4x8xf32> to vector<4x8xf32>
    %cst_49 = arith.constant dense<0.000000e+00> : vector<256x8xf32>
    %38 = tpu.matmul %18, %37, %cst_49 {dimension_numbers = #tpu.dot_dimension_numbers<[1], [0], [0], [1], [0, 0, 1, 1], [], []>} : vector<256x4xf32>, vector<4x8xf32>, vector<256x8xf32> -> vector<256x8xf32>
    %39 = arith.addf %35, %38 : vector<256x8xf32>
    %c0_50 = arith.constant 0 : index
    %c3 = arith.constant 3 : index
    %c0_51 = arith.constant 0 : index
    %c0_52 = arith.constant 0 : index
    %40 = vector.load %arg4[%c0_50, %c3, %c0_51, %c0_52] : memref<3x9x4x8xf32, #tpu.memory_space<vmem>>, vector<1x1x4x8xf32>
    %41 = vector.shape_cast %40 : vector<1x1x4x8xf32> to vector<4x8xf32>
    %cst_53 = arith.constant dense<0.000000e+00> : vector<256x8xf32>
    %42 = tpu.matmul %20, %41, %cst_53 {dimension_numbers = #tpu.dot_dimension_numbers<[1], [0], [0], [1], [0, 0, 1, 1], [], []>} : vector<256x4xf32>, vector<4x8xf32>, vector<256x8xf32> -> vector<256x8xf32>
    %43 = arith.addf %39, %42 : vector<256x8xf32>
    %c0_54 = arith.constant 0 : index
    %c4 = arith.constant 4 : index
    %c0_55 = arith.constant 0 : index
    %c0_56 = arith.constant 0 : index
    %44 = vector.load %arg4[%c0_54, %c4, %c0_55, %c0_56] : memref<3x9x4x8xf32, #tpu.memory_space<vmem>>, vector<1x1x4x8xf32>
    %45 = vector.shape_cast %44 : vector<1x1x4x8xf32> to vector<4x8xf32>
    %cst_57 = arith.constant dense<0.000000e+00> : vector<256x8xf32>
    %46 = tpu.matmul %7, %45, %cst_57 {dimension_numbers = #tpu.dot_dimension_numbers<[1], [0], [0], [1], [0, 0, 1, 1], [], []>} : vector<256x4xf32>, vector<4x8xf32>, vector<256x8xf32> -> vector<256x8xf32>
    %47 = arith.addf %43, %46 : vector<256x8xf32>
    %c0_58 = arith.constant 0 : index
    %c5 = arith.constant 5 : index
    %c0_59 = arith.constant 0 : index
    %c0_60 = arith.constant 0 : index
    %48 = vector.load %arg4[%c0_58, %c5, %c0_59, %c0_60] : memref<3x9x4x8xf32, #tpu.memory_space<vmem>>, vector<1x1x4x8xf32>
    %49 = vector.shape_cast %48 : vector<1x1x4x8xf32> to vector<4x8xf32>
    %cst_61 = arith.constant dense<0.000000e+00> : vector<256x8xf32>
    %50 = tpu.matmul %22, %49, %cst_61 {dimension_numbers = #tpu.dot_dimension_numbers<[1], [0], [0], [1], [0, 0, 1, 1], [], []>} : vector<256x4xf32>, vector<4x8xf32>, vector<256x8xf32> -> vector<256x8xf32>
    %51 = arith.addf %47, %50 : vector<256x8xf32>
    %c0_62 = arith.constant 0 : index
    %c6 = arith.constant 6 : index
    %c0_63 = arith.constant 0 : index
    %c0_64 = arith.constant 0 : index
    %52 = vector.load %arg4[%c0_62, %c6, %c0_63, %c0_64] : memref<3x9x4x8xf32, #tpu.memory_space<vmem>>, vector<1x1x4x8xf32>
    %53 = vector.shape_cast %52 : vector<1x1x4x8xf32> to vector<4x8xf32>
    %cst_65 = arith.constant dense<0.000000e+00> : vector<256x8xf32>
    %54 = tpu.matmul %24, %53, %cst_65 {dimension_numbers = #tpu.dot_dimension_numbers<[1], [0], [0], [1], [0, 0, 1, 1], [], []>} : vector<256x4xf32>, vector<4x8xf32>, vector<256x8xf32> -> vector<256x8xf32>
    %55 = arith.addf %51, %54 : vector<256x8xf32>
    %c0_66 = arith.constant 0 : index
    %c7 = arith.constant 7 : index
    %c0_67 = arith.constant 0 : index
    %c0_68 = arith.constant 0 : index
    %56 = vector.load %arg4[%c0_66, %c7, %c0_67, %c0_68] : memref<3x9x4x8xf32, #tpu.memory_space<vmem>>, vector<1x1x4x8xf32>
    %57 = vector.shape_cast %56 : vector<1x1x4x8xf32> to vector<4x8xf32>
    %cst_69 = arith.constant dense<0.000000e+00> : vector<256x8xf32>
    %58 = tpu.matmul %26, %57, %cst_69 {dimension_numbers = #tpu.dot_dimension_numbers<[1], [0], [0], [1], [0, 0, 1, 1], [], []>} : vector<256x4xf32>, vector<4x8xf32>, vector<256x8xf32> -> vector<256x8xf32>
    %59 = arith.addf %55, %58 : vector<256x8xf32>
    %c0_70 = arith.constant 0 : index
    %c8 = arith.constant 8 : index
    %c0_71 = arith.constant 0 : index
    %c0_72 = arith.constant 0 : index
    %60 = vector.load %arg4[%c0_70, %c8, %c0_71, %c0_72] : memref<3x9x4x8xf32, #tpu.memory_space<vmem>>, vector<1x1x4x8xf32>
    %61 = vector.shape_cast %60 : vector<1x1x4x8xf32> to vector<4x8xf32>
    %cst_73 = arith.constant dense<0.000000e+00> : vector<256x8xf32>
    %62 = tpu.matmul %28, %61, %cst_73 {dimension_numbers = #tpu.dot_dimension_numbers<[1], [0], [0], [1], [0, 0, 1, 1], [], []>} : vector<256x4xf32>, vector<4x8xf32>, vector<256x8xf32> -> vector<256x8xf32>
    %63 = arith.addf %59, %62 : vector<256x8xf32>
    %c0_74 = arith.constant 0 : index
    %c0_75 = arith.constant 0 : index
    %64 = vector.load %arg11[%c0_74, %c0_75] : memref<256x8xf32, #tpu.memory_space<vmem>>, vector<256x8xf32>
    %65 = arith.addf %64, %63 : vector<256x8xf32>
    %c0_76 = arith.constant 0 : index
    %c0_77 = arith.constant 0 : index
    %66 = vector.load %arg11[%c0_76, %c0_77] : memref<256x8xf32, #tpu.memory_space<vmem>>, vector<256x8xf32>
    tpu.vector_store %arg11[%c0_76, %c0_77], %65 {strides = array<i32>} : memref<256x8xf32, #tpu.memory_space<vmem>>, vector<256x8xf32>,
    %c20 = arith.constant 20 : index
    %c20_78 = arith.constant 20 : index
    %c0_79 = arith.constant 0 : index
    %67 = vector.load %arg9[%c20, %c20_78, %c0_79] : memref<66x66x4xf32, #tpu.memory_space<vmem>>, vector<16x16x4xf32>
    %68 = vector.shape_cast %67 : vector<16x16x4xf32> to vector<256x4xf32>
    %c20_80 = arith.constant 20 : index
    %c32_81 = arith.constant 32 : index
    %c0_82 = arith.constant 0 : index
    %69 = vector.load %arg9[%c20_80, %c32_81, %c0_82] : memref<66x66x4xf32, #tpu.memory_space<vmem>>, vector<16x16x4xf32>
    %70 = vector.shape_cast %69 : vector<16x16x4xf32> to vector<256x4xf32>
    %c20_83 = arith.constant 20 : index
    %c44 = arith.constant 44 : index
    %c0_84 = arith.constant 0 : index
    %71 = vector.load %arg9[%c20_83, %c44, %c0_84] : memref<66x66x4xf32, #tpu.memory_space<vmem>>, vector<16x16x4xf32>
    %72 = vector.shape_cast %71 : vector<16x16x4xf32> to vector<256x4xf32>
    %c32_85 = arith.constant 32 : index
    %c20_86 = arith.constant 20 : index
    %c0_87 = arith.constant 0 : index
    %73 = vector.load %arg9[%c32_85, %c20_86, %c0_87] : memref<66x66x4xf32, #tpu.memory_space<vmem>>, vector<16x16x4xf32>
    %74 = vector.shape_cast %73 : vector<16x16x4xf32> to vector<256x4xf32>
    %c32_88 = arith.constant 32 : index
    %c44_89 = arith.constant 44 : index
    %c0_90 = arith.constant 0 : index
    %75 = vector.load %arg9[%c32_88, %c44_89, %c0_90] : memref<66x66x4xf32, #tpu.memory_space<vmem>>, vector<16x16x4xf32>
    %76 = vector.shape_cast %75 : vector<16x16x4xf32> to vector<256x4xf32>
    %c44_91 = arith.constant 44 : index
    %c20_92 = arith.constant 20 : index
    %c0_93 = arith.constant 0 : index
    %77 = vector.load %arg9[%c44_91, %c20_92, %c0_93] : memref<66x66x4xf32, #tpu.memory_space<vmem>>, vector<16x16x4xf32>
    %78 = vector.shape_cast %77 : vector<16x16x4xf32> to vector<256x4xf32>
    %c44_94 = arith.constant 44 : index
    %c32_95 = arith.constant 32 : index
    %c0_96 = arith.constant 0 : index
    %79 = vector.load %arg9[%c44_94, %c32_95, %c0_96] : memref<66x66x4xf32, #tpu.memory_space<vmem>>, vector<16x16x4xf32>
    %80 = vector.shape_cast %79 : vector<16x16x4xf32> to vector<256x4xf32>
    %c44_97 = arith.constant 44 : index
    %c44_98 = arith.constant 44 : index
    %c0_99 = arith.constant 0 : index
    %81 = vector.load %arg9[%c44_97, %c44_98, %c0_99] : memref<66x66x4xf32, #tpu.memory_space<vmem>>, vector<16x16x4xf32>
    %82 = vector.shape_cast %81 : vector<16x16x4xf32> to vector<256x4xf32>
    %c1_100 = arith.constant 1 : index
    %c0_101 = arith.constant 0 : index
    %c0_102 = arith.constant 0 : index
    %c0_103 = arith.constant 0 : index
    %83 = vector.load %arg4[%c1_100, %c0_101, %c0_102, %c0_103] : memref<3x9x4x8xf32, #tpu.memory_space<vmem>>, vector<1x1x4x8xf32>
    %84 = vector.shape_cast %83 : vector<1x1x4x8xf32> to vector<4x8xf32>
    %cst_104 = arith.constant dense<0.000000e+00> : vector<256x8xf32>
    %85 = tpu.matmul %68, %84, %cst_104 {dimension_numbers = #tpu.dot_dimension_numbers<[1], [0], [0], [1], [0, 0, 1, 1], [], []>} : vector<256x4xf32>, vector<4x8xf32>, vector<256x8xf32> -> vector<256x8xf32>
    %c1_105 = arith.constant 1 : index
    %c1_106 = arith.constant 1 : index
    %c0_107 = arith.constant 0 : index
    %c0_108 = arith.constant 0 : index
    %86 = vector.load %arg4[%c1_105, %c1_106, %c0_107, %c0_108] : memref<3x9x4x8xf32, #tpu.memory_space<vmem>>, vector<1x1x4x8xf32>
    %87 = vector.shape_cast %86 : vector<1x1x4x8xf32> to vector<4x8xf32>
    %cst_109 = arith.constant dense<0.000000e+00> : vector<256x8xf32>
    %88 = tpu.matmul %70, %87, %cst_109 {dimension_numbers = #tpu.dot_dimension_numbers<[1], [0], [0], [1], [0, 0, 1, 1], [], []>} : vector<256x4xf32>, vector<4x8xf32>, vector<256x8xf32> -> vector<256x8xf32>
    %89 = arith.addf %85, %88 : vector<256x8xf32>
    %c1_110 = arith.constant 1 : index
    %c2_111 = arith.constant 2 : index
    %c0_112 = arith.constant 0 : index
    %c0_113 = arith.constant 0 : index
    %90 = vector.load %arg4[%c1_110, %c2_111, %c0_112, %c0_113] : memref<3x9x4x8xf32, #tpu.memory_space<vmem>>, vector<1x1x4x8xf32>
    %91 = vector.shape_cast %90 : vector<1x1x4x8xf32> to vector<4x8xf32>
    %cst_114 = arith.constant dense<0.000000e+00> : vector<256x8xf32>
    %92 = tpu.matmul %72, %91, %cst_114 {dimension_numbers = #tpu.dot_dimension_numbers<[1], [0], [0], [1], [0, 0, 1, 1], [], []>} : vector<256x4xf32>, vector<4x8xf32>, vector<256x8xf32> -> vector<256x8xf32>
    %93 = arith.addf %89, %92 : vector<256x8xf32>
    %c1_115 = arith.constant 1 : index
    %c3_116 = arith.constant 3 : index
    %c0_117 = arith.constant 0 : index
    %c0_118 = arith.constant 0 : index
    %94 = vector.load %arg4[%c1_115, %c3_116, %c0_117, %c0_118] : memref<3x9x4x8xf32, #tpu.memory_space<vmem>>, vector<1x1x4x8xf32>
    %95 = vector.shape_cast %94 : vector<1x1x4x8xf32> to vector<4x8xf32>
    %cst_119 = arith.constant dense<0.000000e+00> : vector<256x8xf32>
    %96 = tpu.matmul %74, %95, %cst_119 {dimension_numbers = #tpu.dot_dimension_numbers<[1], [0], [0], [1], [0, 0, 1, 1], [], []>} : vector<256x4xf32>, vector<4x8xf32>, vector<256x8xf32> -> vector<256x8xf32>
    %97 = arith.addf %93, %96 : vector<256x8xf32>
    %c1_120 = arith.constant 1 : index
    %c4_121 = arith.constant 4 : index
    %c0_122 = arith.constant 0 : index
    %c0_123 = arith.constant 0 : index
    %98 = vector.load %arg4[%c1_120, %c4_121, %c0_122, %c0_123] : memref<3x9x4x8xf32, #tpu.memory_space<vmem>>, vector<1x1x4x8xf32>
    %99 = vector.shape_cast %98 : vector<1x1x4x8xf32> to vector<4x8xf32>
    %cst_124 = arith.constant dense<0.000000e+00> : vector<256x8xf32>
    %100 = tpu.matmul %7, %99, %cst_124 {dimension_numbers = #tpu.dot_dimension_numbers<[1], [0], [0], [1], [0, 0, 1, 1], [], []>} : vector<256x4xf32>, vector<4x8xf32>, vector<256x8xf32> -> vector<256x8xf32>
    %101 = arith.addf %97, %100 : vector<256x8xf32>
    %c1_125 = arith.constant 1 : index
    %c5_126 = arith.constant 5 : index
    %c0_127 = arith.constant 0 : index
    %c0_128 = arith.constant 0 : index
    %102 = vector.load %arg4[%c1_125, %c5_126, %c0_127, %c0_128] : memref<3x9x4x8xf32, #tpu.memory_space<vmem>>, vector<1x1x4x8xf32>
    %103 = vector.shape_cast %102 : vector<1x1x4x8xf32> to vector<4x8xf32>
    %cst_129 = arith.constant dense<0.000000e+00> : vector<256x8xf32>
    %104 = tpu.matmul %76, %103, %cst_129 {dimension_numbers = #tpu.dot_dimension_numbers<[1], [0], [0], [1], [0, 0, 1, 1], [], []>} : vector<256x4xf32>, vector<4x8xf32>, vector<256x8xf32> -> vector<256x8xf32>
    %105 = arith.addf %101, %104 : vector<256x8xf32>
    %c1_130 = arith.constant 1 : index
    %c6_131 = arith.constant 6 : index
    %c0_132 = arith.constant 0 : index
    %c0_133 = arith.constant 0 : index
    %106 = vector.load %arg4[%c1_130, %c6_131, %c0_132, %c0_133] : memref<3x9x4x8xf32, #tpu.memory_space<vmem>>, vector<1x1x4x8xf32>
    %107 = vector.shape_cast %106 : vector<1x1x4x8xf32> to vector<4x8xf32>
    %cst_134 = arith.constant dense<0.000000e+00> : vector<256x8xf32>
    %108 = tpu.matmul %78, %107, %cst_134 {dimension_numbers = #tpu.dot_dimension_numbers<[1], [0], [0], [1], [0, 0, 1, 1], [], []>} : vector<256x4xf32>, vector<4x8xf32>, vector<256x8xf32> -> vector<256x8xf32>
    %109 = arith.addf %105, %108 : vector<256x8xf32>
    %c1_135 = arith.constant 1 : index
    %c7_136 = arith.constant 7 : index
    %c0_137 = arith.constant 0 : index
    %c0_138 = arith.constant 0 : index
    %110 = vector.load %arg4[%c1_135, %c7_136, %c0_137, %c0_138] : memref<3x9x4x8xf32, #tpu.memory_space<vmem>>, vector<1x1x4x8xf32>
    %111 = vector.shape_cast %110 : vector<1x1x4x8xf32> to vector<4x8xf32>
    %cst_139 = arith.constant dense<0.000000e+00> : vector<256x8xf32>
    %112 = tpu.matmul %80, %111, %cst_139 {dimension_numbers = #tpu.dot_dimension_numbers<[1], [0], [0], [1], [0, 0, 1, 1], [], []>} : vector<256x4xf32>, vector<4x8xf32>, vector<256x8xf32> -> vector<256x8xf32>
    %113 = arith.addf %109, %112 : vector<256x8xf32>
    %c1_140 = arith.constant 1 : index
    %c8_141 = arith.constant 8 : index
    %c0_142 = arith.constant 0 : index
    %c0_143 = arith.constant 0 : index
    %114 = vector.load %arg4[%c1_140, %c8_141, %c0_142, %c0_143] : memref<3x9x4x8xf32, #tpu.memory_space<vmem>>, vector<1x1x4x8xf32>
    %115 = vector.shape_cast %114 : vector<1x1x4x8xf32> to vector<4x8xf32>
    %cst_144 = arith.constant dense<0.000000e+00> : vector<256x8xf32>
    %116 = tpu.matmul %82, %115, %cst_144 {dimension_numbers = #tpu.dot_dimension_numbers<[1], [0], [0], [1], [0, 0, 1, 1], [], []>} : vector<256x4xf32>, vector<4x8xf32>, vector<256x8xf32> -> vector<256x8xf32>
    %117 = arith.addf %113, %116 : vector<256x8xf32>
    %c0_145 = arith.constant 0 : index
    %c0_146 = arith.constant 0 : index
    %118 = vector.load %arg12[%c0_145, %c0_146] : memref<256x8xf32, #tpu.memory_space<vmem>>, vector<256x8xf32>
    %119 = arith.addf %118, %117 : vector<256x8xf32>
    %c0_147 = arith.constant 0 : index
    %c0_148 = arith.constant 0 : index
    %120 = vector.load %arg12[%c0_147, %c0_148] : memref<256x8xf32, #tpu.memory_space<vmem>>, vector<256x8xf32>
    tpu.vector_store %arg12[%c0_147, %c0_148], %119 {strides = array<i32>} : memref<256x8xf32, #tpu.memory_space<vmem>>, vector<256x8xf32>,
    %c14 = arith.constant 14 : index
    %c14_149 = arith.constant 14 : index
    %c0_150 = arith.constant 0 : index
    %121 = vector.load %arg9[%c14, %c14_149, %c0_150] : memref<66x66x4xf32, #tpu.memory_space<vmem>>, vector<16x16x4xf32>
    %122 = vector.shape_cast %121 : vector<16x16x4xf32> to vector<256x4xf32>
    %c14_151 = arith.constant 14 : index
    %c32_152 = arith.constant 32 : index
    %c0_153 = arith.constant 0 : index
    %123 = vector.load %arg9[%c14_151, %c32_152, %c0_153] : memref<66x66x4xf32, #tpu.memory_space<vmem>>, vector<16x16x4xf32>
    %124 = vector.shape_cast %123 : vector<16x16x4xf32> to vector<256x4xf32>
    %c14_154 = arith.constant 14 : index
    %c50 = arith.constant 50 : index
    %c0_155 = arith.constant 0 : index
    %125 = vector.load %arg9[%c14_154, %c50, %c0_155] : memref<66x66x4xf32, #tpu.memory_space<vmem>>, vector<16x16x4xf32>
    %126 = vector.shape_cast %125 : vector<16x16x4xf32> to vector<256x4xf32>
    %c32_156 = arith.constant 32 : index
    %c14_157 = arith.constant 14 : index
    %c0_158 = arith.constant 0 : index
    %127 = vector.load %arg9[%c32_156, %c14_157, %c0_158] : memref<66x66x4xf32, #tpu.memory_space<vmem>>, vector<16x16x4xf32>
    %128 = vector.shape_cast %127 : vector<16x16x4xf32> to vector<256x4xf32>
    %c32_159 = arith.constant 32 : index
    %c50_160 = arith.constant 50 : index
    %c0_161 = arith.constant 0 : index
    %129 = vector.load %arg9[%c32_159, %c50_160, %c0_161] : memref<66x66x4xf32, #tpu.memory_space<vmem>>, vector<16x16x4xf32>
    %130 = vector.shape_cast %129 : vector<16x16x4xf32> to vector<256x4xf32>
    %c50_162 = arith.constant 50 : index
    %c14_163 = arith.constant 14 : index
    %c0_164 = arith.constant 0 : index
    %131 = vector.load %arg9[%c50_162, %c14_163, %c0_164] : memref<66x66x4xf32, #tpu.memory_space<vmem>>, vector<16x16x4xf32>
    %132 = vector.shape_cast %131 : vector<16x16x4xf32> to vector<256x4xf32>
    %c50_165 = arith.constant 50 : index
    %c32_166 = arith.constant 32 : index
    %c0_167 = arith.constant 0 : index
    %133 = vector.load %arg9[%c50_165, %c32_166, %c0_167] : memref<66x66x4xf32, #tpu.memory_space<vmem>>, vector<16x16x4xf32>
    %134 = vector.shape_cast %133 : vector<16x16x4xf32> to vector<256x4xf32>
    %c50_168 = arith.constant 50 : index
    %c50_169 = arith.constant 50 : index
    %c0_170 = arith.constant 0 : index
    %135 = vector.load %arg9[%c50_168, %c50_169, %c0_170] : memref<66x66x4xf32, #tpu.memory_space<vmem>>, vector<16x16x4xf32>
    %136 = vector.shape_cast %135 : vector<16x16x4xf32> to vector<256x4xf32>
    %c2_171 = arith.constant 2 : index
    %c0_172 = arith.constant 0 : index
    %c0_173 = arith.constant 0 : index
    %c0_174 = arith.constant 0 : index
    %137 = vector.load %arg4[%c2_171, %c0_172, %c0_173, %c0_174] : memref<3x9x4x8xf32, #tpu.memory_space<vmem>>, vector<1x1x4x8xf32>
    %138 = vector.shape_cast %137 : vector<1x1x4x8xf32> to vector<4x8xf32>
    %cst_175 = arith.constant dense<0.000000e+00> : vector<256x8xf32>
    %139 = tpu.matmul %122, %138, %cst_175 {dimension_numbers = #tpu.dot_dimension_numbers<[1], [0], [0], [1], [0, 0, 1, 1], [], []>} : vector<256x4xf32>, vector<4x8xf32>, vector<256x8xf32> -> vector<256x8xf32>
    %c2_176 = arith.constant 2 : index
    %c1_177 = arith.constant 1 : index
    %c0_178 = arith.constant 0 : index
    %c0_179 = arith.constant 0 : index
    %140 = vector.load %arg4[%c2_176, %c1_177, %c0_178, %c0_179] : memref<3x9x4x8xf32, #tpu.memory_space<vmem>>, vector<1x1x4x8xf32>
    %141 = vector.shape_cast %140 : vector<1x1x4x8xf32> to vector<4x8xf32>
    %cst_180 = arith.constant dense<0.000000e+00> : vector<256x8xf32>
    %142 = tpu.matmul %124, %141, %cst_180 {dimension_numbers = #tpu.dot_dimension_numbers<[1], [0], [0], [1], [0, 0, 1, 1], [], []>} : vector<256x4xf32>, vector<4x8xf32>, vector<256x8xf32> -> vector<256x8xf32>
    %143 = arith.addf %139, %142 : vector<256x8xf32>
    %c2_181 = arith.constant 2 : index
    %c2_182 = arith.constant 2 : index
    %c0_183 = arith.constant 0 : index
    %c0_184 = arith.constant 0 : index
    %144 = vector.load %arg4[%c2_181, %c2_182, %c0_183, %c0_184] : memref<3x9x4x8xf32, #tpu.memory_space<vmem>>, vector<1x1x4x8xf32>
    %145 = vector.shape_cast %144 : vector<1x1x4x8xf32> to vector<4x8xf32>
    %cst_185 = arith.constant dense<0.000000e+00> : vector<256x8xf32>
    %146 = tpu.matmul %126, %145, %cst_185 {dimension_numbers = #tpu.dot_dimension_numbers<[1], [0], [0], [1], [0, 0, 1, 1], [], []>} : vector<256x4xf32>, vector<4x8xf32>, vector<256x8xf32> -> vector<256x8xf32>
    %147 = arith.addf %143, %146 : vector<256x8xf32>
    %c2_186 = arith.constant 2 : index
    %c3_187 = arith.constant 3 : index
    %c0_188 = arith.constant 0 : index
    %c0_189 = arith.constant 0 : index
    %148 = vector.load %arg4[%c2_186, %c3_187, %c0_188, %c0_189] : memref<3x9x4x8xf32, #tpu.memory_space<vmem>>, vector<1x1x4x8xf32>
    %149 = vector.shape_cast %148 : vector<1x1x4x8xf32> to vector<4x8xf32>
    %cst_190 = arith.constant dense<0.000000e+00> : vector<256x8xf32>
    %150 = tpu.matmul %128, %149, %cst_190 {dimension_numbers = #tpu.dot_dimension_numbers<[1], [0], [0], [1], [0, 0, 1, 1], [], []>} : vector<256x4xf32>, vector<4x8xf32>, vector<256x8xf32> -> vector<256x8xf32>
    %151 = arith.addf %147, %150 : vector<256x8xf32>
    %c2_191 = arith.constant 2 : index
    %c4_192 = arith.constant 4 : index
    %c0_193 = arith.constant 0 : index
    %c0_194 = arith.constant 0 : index
    %152 = vector.load %arg4[%c2_191, %c4_192, %c0_193, %c0_194] : memref<3x9x4x8xf32, #tpu.memory_space<vmem>>, vector<1x1x4x8xf32>
    %153 = vector.shape_cast %152 : vector<1x1x4x8xf32> to vector<4x8xf32>
    %cst_195 = arith.constant dense<0.000000e+00> : vector<256x8xf32>
    %154 = tpu.matmul %7, %153, %cst_195 {dimension_numbers = #tpu.dot_dimension_numbers<[1], [0], [0], [1], [0, 0, 1, 1], [], []>} : vector<256x4xf32>, vector<4x8xf32>, vector<256x8xf32> -> vector<256x8xf32>
    %155 = arith.addf %151, %154 : vector<256x8xf32>
    %c2_196 = arith.constant 2 : index
    %c5_197 = arith.constant 5 : index
    %c0_198 = arith.constant 0 : index
    %c0_199 = arith.constant 0 : index
    %156 = vector.load %arg4[%c2_196, %c5_197, %c0_198, %c0_199] : memref<3x9x4x8xf32, #tpu.memory_space<vmem>>, vector<1x1x4x8xf32>
    %157 = vector.shape_cast %156 : vector<1x1x4x8xf32> to vector<4x8xf32>
    %cst_200 = arith.constant dense<0.000000e+00> : vector<256x8xf32>
    %158 = tpu.matmul %130, %157, %cst_200 {dimension_numbers = #tpu.dot_dimension_numbers<[1], [0], [0], [1], [0, 0, 1, 1], [], []>} : vector<256x4xf32>, vector<4x8xf32>, vector<256x8xf32> -> vector<256x8xf32>
    %159 = arith.addf %155, %158 : vector<256x8xf32>
    %c2_201 = arith.constant 2 : index
    %c6_202 = arith.constant 6 : index
    %c0_203 = arith.constant 0 : index
    %c0_204 = arith.constant 0 : index
    %160 = vector.load %arg4[%c2_201, %c6_202, %c0_203, %c0_204] : memref<3x9x4x8xf32, #tpu.memory_space<vmem>>, vector<1x1x4x8xf32>
    %161 = vector.shape_cast %160 : vector<1x1x4x8xf32> to vector<4x8xf32>
    %cst_205 = arith.constant dense<0.000000e+00> : vector<256x8xf32>
    %162 = tpu.matmul %132, %161, %cst_205 {dimension_numbers = #tpu.dot_dimension_numbers<[1], [0], [0], [1], [0, 0, 1, 1], [], []>} : vector<256x4xf32>, vector<4x8xf32>, vector<256x8xf32> -> vector<256x8xf32>
    %163 = arith.addf %159, %162 : vector<256x8xf32>
    %c2_206 = arith.constant 2 : index
    %c7_207 = arith.constant 7 : index
    %c0_208 = arith.constant 0 : index
    %c0_209 = arith.constant 0 : index
    %164 = vector.load %arg4[%c2_206, %c7_207, %c0_208, %c0_209] : memref<3x9x4x8xf32, #tpu.memory_space<vmem>>, vector<1x1x4x8xf32>
    %165 = vector.shape_cast %164 : vector<1x1x4x8xf32> to vector<4x8xf32>
    %cst_210 = arith.constant dense<0.000000e+00> : vector<256x8xf32>
    %166 = tpu.matmul %134, %165, %cst_210 {dimension_numbers = #tpu.dot_dimension_numbers<[1], [0], [0], [1], [0, 0, 1, 1], [], []>} : vector<256x4xf32>, vector<4x8xf32>, vector<256x8xf32> -> vector<256x8xf32>
    %167 = arith.addf %163, %166 : vector<256x8xf32>
    %c2_211 = arith.constant 2 : index
    %c8_212 = arith.constant 8 : index
    %c0_213 = arith.constant 0 : index
    %c0_214 = arith.constant 0 : index
    %168 = vector.load %arg4[%c2_211, %c8_212, %c0_213, %c0_214] : memref<3x9x4x8xf32, #tpu.memory_space<vmem>>, vector<1x1x4x8xf32>
    %169 = vector.shape_cast %168 : vector<1x1x4x8xf32> to vector<4x8xf32>
    %cst_215 = arith.constant dense<0.000000e+00> : vector<256x8xf32>
    %170 = tpu.matmul %136, %169, %cst_215 {dimension_numbers = #tpu.dot_dimension_numbers<[1], [0], [0], [1], [0, 0, 1, 1], [], []>} : vector<256x4xf32>, vector<4x8xf32>, vector<256x8xf32> -> vector<256x8xf32>
    %171 = arith.addf %167, %170 : vector<256x8xf32>
    %c0_216 = arith.constant 0 : index
    %c0_217 = arith.constant 0 : index
    %172 = vector.load %arg13[%c0_216, %c0_217] : memref<256x8xf32, #tpu.memory_space<vmem>>, vector<256x8xf32>
    %173 = arith.addf %172, %171 : vector<256x8xf32>
    %c0_218 = arith.constant 0 : index
    %c0_219 = arith.constant 0 : index
    %174 = vector.load %arg13[%c0_218, %c0_219] : memref<256x8xf32, #tpu.memory_space<vmem>>, vector<256x8xf32>
    tpu.vector_store %arg13[%c0_218, %c0_219], %173 {strides = array<i32>} : memref<256x8xf32, #tpu.memory_space<vmem>>, vector<256x8xf32>,
    %c0_i32_220 = arith.constant 0 : i32
    %175 = arith.cmpi eq, %arg1, %c0_i32_220 : i32
    %176 = arith.extui %175 : i1 to i32
    %c0_i32_221 = arith.constant 0 : i32
    %177 = arith.cmpi ne, %176, %c0_i32_221 : i32
    scf.if %177 {
      %c0_222 = arith.constant 0 : index
      %c0_223 = arith.constant 0 : index
      %178 = vector.load %arg5[%c0_222, %c0_223] : memref<4x8xf32, #tpu.memory_space<vmem>>, vector<4x8xf32>
      %c0_224 = arith.constant 0 : index
      %c0_225 = arith.constant 0 : index
      %179 = vector.load %arg10[%c0_224, %c0_225] : memref<256x8xf32, #tpu.memory_space<vmem>>, vector<256x8xf32>
      %180 = vector.extract_strided_slice %178 {offsets = [0, 0], sizes = [1, 8], strides = [1, 1]} : vector<4x8xf32> to vector<1x8xf32>
      %181 = vector.broadcast %180 : vector<1x8xf32> to vector<256x8xf32>
      %182 = arith.addf %179, %181 : vector<256x8xf32>
      %cst_226 = arith.constant 0.000000e+00 : f32
      %183 = vector.broadcast %cst_226 : f32 to vector<256x8xf32>
      %184 = arith.maximumf %182, %183 : vector<256x8xf32>
      %c0_227 = arith.constant 0 : index
      %c0_228 = arith.constant 0 : index
      %c0_229 = arith.constant 0 : index
      %185 = vector.load %arg6[%c0_227, %c0_228, %c0_229] : memref<4x8x8xf32, #tpu.memory_space<vmem>>, vector<1x8x8xf32>
      %186 = vector.shape_cast %185 : vector<1x8x8xf32> to vector<8x8xf32>
      %cst_230 = arith.constant dense<0.000000e+00> : vector<256x8xf32>
      %187 = tpu.matmul %184, %186, %cst_230 {dimension_numbers = #tpu.dot_dimension_numbers<[1], [0], [0], [1], [0, 0, 1, 1], [], []>} : vector<256x8xf32>, vector<8x8xf32>, vector<256x8xf32> -> vector<256x8xf32>
      %c0_231 = arith.constant 0 : index
      %c0_232 = arith.constant 0 : index
      %c0_233 = arith.constant 0 : index
      %188 = vector.load %arg7[%c0_231, %c0_232, %c0_233] : memref<1x1x8xf32, #tpu.memory_space<vmem>>, vector<1x1x8xf32>
      %189 = vector.shape_cast %188 : vector<1x1x8xf32> to vector<1x8xf32>
      %190 = vector.broadcast %189 : vector<1x8xf32> to vector<256x8xf32>
      %191 = arith.addf %187, %190 : vector<256x8xf32>
      %c0_234 = arith.constant 0 : index
      %c0_235 = arith.constant 0 : index
      %192 = vector.load %arg11[%c0_234, %c0_235] : memref<256x8xf32, #tpu.memory_space<vmem>>, vector<256x8xf32>
      %193 = vector.extract_strided_slice %178 {offsets = [1, 0], sizes = [1, 8], strides = [1, 1]} : vector<4x8xf32> to vector<1x8xf32>
      %194 = vector.broadcast %193 : vector<1x8xf32> to vector<256x8xf32>
      %195 = arith.addf %192, %194 : vector<256x8xf32>
      %cst_236 = arith.constant 0.000000e+00 : f32
      %196 = vector.broadcast %cst_236 : f32 to vector<256x8xf32>
      %197 = arith.maximumf %195, %196 : vector<256x8xf32>
      %c1_237 = arith.constant 1 : index
      %c0_238 = arith.constant 0 : index
      %c0_239 = arith.constant 0 : index
      %198 = vector.load %arg6[%c1_237, %c0_238, %c0_239] : memref<4x8x8xf32, #tpu.memory_space<vmem>>, vector<1x8x8xf32>
      %199 = vector.shape_cast %198 : vector<1x8x8xf32> to vector<8x8xf32>
      %cst_240 = arith.constant dense<0.000000e+00> : vector<256x8xf32>
      %200 = tpu.matmul %197, %199, %cst_240 {dimension_numbers = #tpu.dot_dimension_numbers<[1], [0], [0], [1], [0, 0, 1, 1], [], []>} : vector<256x8xf32>, vector<8x8xf32>, vector<256x8xf32> -> vector<256x8xf32>
      %201 = arith.addf %191, %200 : vector<256x8xf32>
      %c0_241 = arith.constant 0 : index
      %c0_242 = arith.constant 0 : index
      %202 = vector.load %arg12[%c0_241, %c0_242] : memref<256x8xf32, #tpu.memory_space<vmem>>, vector<256x8xf32>
      %203 = vector.extract_strided_slice %178 {offsets = [2, 0], sizes = [1, 8], strides = [1, 1]} : vector<4x8xf32> to vector<1x8xf32>
      %204 = vector.broadcast %203 : vector<1x8xf32> to vector<256x8xf32>
      %205 = arith.addf %202, %204 : vector<256x8xf32>
      %cst_243 = arith.constant 0.000000e+00 : f32
      %206 = vector.broadcast %cst_243 : f32 to vector<256x8xf32>
      %207 = arith.maximumf %205, %206 : vector<256x8xf32>
      %c2_244 = arith.constant 2 : index
      %c0_245 = arith.constant 0 : index
      %c0_246 = arith.constant 0 : index
      %208 = vector.load %arg6[%c2_244, %c0_245, %c0_246] : memref<4x8x8xf32, #tpu.memory_space<vmem>>, vector<1x8x8xf32>
      %209 = vector.shape_cast %208 : vector<1x8x8xf32> to vector<8x8xf32>
      %cst_247 = arith.constant dense<0.000000e+00> : vector<256x8xf32>
      %210 = tpu.matmul %207, %209, %cst_247 {dimension_numbers = #tpu.dot_dimension_numbers<[1], [0], [0], [1], [0, 0, 1, 1], [], []>} : vector<256x8xf32>, vector<8x8xf32>, vector<256x8xf32> -> vector<256x8xf32>
      %211 = arith.addf %201, %210 : vector<256x8xf32>
      %c0_248 = arith.constant 0 : index
      %c0_249 = arith.constant 0 : index
      %212 = vector.load %arg13[%c0_248, %c0_249] : memref<256x8xf32, #tpu.memory_space<vmem>>, vector<256x8xf32>
      %213 = vector.extract_strided_slice %178 {offsets = [3, 0], sizes = [1, 8], strides = [1, 1]} : vector<4x8xf32> to vector<1x8xf32>
      %214 = vector.broadcast %213 : vector<1x8xf32> to vector<256x8xf32>
      %215 = arith.addf %212, %214 : vector<256x8xf32>
      %cst_250 = arith.constant 0.000000e+00 : f32
      %216 = vector.broadcast %cst_250 : f32 to vector<256x8xf32>
      %217 = arith.maximumf %215, %216 : vector<256x8xf32>
      %c3_251 = arith.constant 3 : index
      %c0_252 = arith.constant 0 : index
      %c0_253 = arith.constant 0 : index
      %218 = vector.load %arg6[%c3_251, %c0_252, %c0_253] : memref<4x8x8xf32, #tpu.memory_space<vmem>>, vector<1x8x8xf32>
      %219 = vector.shape_cast %218 : vector<1x8x8xf32> to vector<8x8xf32>
      %cst_254 = arith.constant dense<0.000000e+00> : vector<256x8xf32>
      %220 = tpu.matmul %217, %219, %cst_254 {dimension_numbers = #tpu.dot_dimension_numbers<[1], [0], [0], [1], [0, 0, 1, 1], [], []>} : vector<256x8xf32>, vector<8x8xf32>, vector<256x8xf32> -> vector<256x8xf32>
      %221 = arith.addf %211, %220 : vector<256x8xf32>
      %cst_255 = arith.constant 0.000000e+00 : f32
      %222 = vector.broadcast %cst_255 : f32 to vector<256x8xf32>
      %223 = arith.maximumf %221, %222 : vector<256x8xf32>
      %224 = vector.shape_cast %223 : vector<256x8xf32> to vector<1x16x16x8xf32>
      %c0_256 = arith.constant 0 : index
      %c0_257 = arith.constant 0 : index
      %c0_258 = arith.constant 0 : index
      %c0_259 = arith.constant 0 : index
      %225 = vector.load %arg8[%c0_256, %c0_257, %c0_258, %c0_259] : memref<1x16x16x8xf32, #tpu.memory_space<vmem>>, vector<1x16x16x8xf32>
      tpu.vector_store %arg8[%c0_256, %c0_257, %c0_258, %c0_259], %224 {strides = array<i32>} : memref<1x16x16x8xf32, #tpu.memory_space<vmem>>, vector<1x16x16x8xf32>,
    } else {
    }
    return
  }
  func.func @transform_0(%arg0: i32, %arg1: i32) -> (i32, i32, i32, i32) {
    %c0_i32 = arith.constant 0 : i32
    %c0_i32_0 = arith.constant 0 : i32
    %c0_i32_1 = arith.constant 0 : i32
    return %arg0, %c0_i32, %c0_i32_0, %arg1 : i32, i32, i32, i32
  }
  func.func @transform_1(%arg0: i32, %arg1: i32) -> (i32, i32) {
    %c0_i32 = arith.constant 0 : i32
    %c0_i32_0 = arith.constant 0 : i32
    return %arg1, %c0_i32 : i32, i32
  }
  func.func @transform_2(%arg0: i32, %arg1: i32) -> (i32, i32, i32, i32) {
    %c0_i32 = arith.constant 0 : i32
    %c0_i32_0 = arith.constant 0 : i32
    %c0_i32_1 = arith.constant 0 : i32
    %c0_i32_2 = arith.constant 0 : i32
    return %c0_i32, %c0_i32_0, %arg1, %c0_i32_1 : i32, i32, i32, i32
  }
  func.func @transform_3(%arg0: i32, %arg1: i32) -> (i32, i32) {
    %c0_i32 = arith.constant 0 : i32
    %c0_i32_0 = arith.constant 0 : i32
    %c0_i32_1 = arith.constant 0 : i32
    return %c0_i32, %c0_i32_0 : i32, i32
  }
  func.func @transform_4(%arg0: i32, %arg1: i32) -> (i32, i32, i32) {
    %c0_i32 = arith.constant 0 : i32
    %c0_i32_0 = arith.constant 0 : i32
    %c0_i32_1 = arith.constant 0 : i32
    %c0_i32_2 = arith.constant 0 : i32
    return %c0_i32, %c0_i32_0, %c0_i32_1 : i32, i32, i32
  }
  func.func @transform_5(%arg0: i32, %arg1: i32) -> (i32, i32, i32) {
    %c0_i32 = arith.constant 0 : i32
    %c0_i32_0 = arith.constant 0 : i32
    %c0_i32_1 = arith.constant 0 : i32
    return %arg0, %c0_i32, %c0_i32_0 : i32, i32, i32
  }
  func.func @transform_6(%arg0: i32, %arg1: i32) -> (i32, i32, i32, i32) {
    %c0_i32 = arith.constant 0 : i32
    %c0_i32_0 = arith.constant 0 : i32
    %c0_i32_1 = arith.constant 0 : i32
    %c0_i32_2 = arith.constant 0 : i32
    return %arg0, %c0_i32, %c0_i32_0, %c0_i32_1 : i32, i32, i32, i32
  }
}

</mosaic_0001>

<llo_original>
// kernel: aspp_forward.1
$region0: #{aspp_forward.1}
  #allocation0 [shape = 'u32[]', space=smem, size = 0x4, offset = 0x4, fixed_abs, tag = 'smem constant byte address 0x4 - core index']
  #allocation1 [shape = 'u32[72,128]{1,0:T(1,128)}', space=vmem, size = 0x9000, scoped, tag = 'internal scratch']
  #allocation2 [shape = 'f32[66,66,4]{2,1,0:T(8,128)}', space=vmem, size = 0x252000, scoped, tag = 'scratch operand']
  #allocation3 [shape = 'f32[256,8]{1,0:T(8,128)}', space=vmem, size = 0x20000, scoped, tag = 'scratch operand']
  #allocation4 [shape = 'f32[256,8]{1,0:T(8,128)}', space=vmem, size = 0x20000, scoped, tag = 'scratch operand']
  #allocation5 [shape = 'f32[256,8]{1,0:T(8,128)}', space=vmem, size = 0x20000, scoped, tag = 'scratch operand']
  #allocation6 [shape = 'f32[256,8]{1,0:T(8,128)}', space=vmem, size = 0x20000, scoped, tag = 'scratch operand']
  %s0 = inlined_call_operand.vmem [shape: f32[2,16,16,4], index: 0, kind: input, shape index: {}]
  %s1 = inlined_call_operand.vmem [shape: f32[4,8], index: 1, kind: input, shape index: {}]
  %s2 = inlined_call_operand.vmem [shape: f32[3,9,4,8], index: 2, kind: input, shape index: {}]
  %s3 = inlined_call_operand.vmem [shape: f32[4,8], index: 3, kind: input, shape index: {}]
  %s4 = inlined_call_operand.vmem [shape: f32[4,8,8], index: 4, kind: input, shape index: {}]
  %s5 = inlined_call_operand.vmem [shape: f32[2,1,8], index: 5, kind: input, shape index: {}]
  %s6 = inlined_call_operand.vmem [shape: f32[2,16,16,8], index: 6, kind: output, shape index: {}]
  %s7 = sld [smem:[#allocation0]]
  $region65: #{aspp_forward.1} parent=0
    _
  %s9 = ssub.s32 1, %s7
  %s10 = scalar_select 0, %s9, %s7
  loop: start=0, step=1, limit=4
  $region2: #{aspp_forward.1} parent=0 // loop_pre_header
    _
  $region3: #{aspp_forward.1} parent=0 // loop_header
    %s12 = sphi 0, %s16
    %p13 = scmp.ge.s32.totalorder %s12, 4
    %s19 = sphi 0, %s31
    %s20 = sphi 0, %s27
    %s21 = sphi 0, %s19
    %s22 = sphi 0, %s20
    %s23 = sphi 0, %s21
    %s24 = sphi 0, %s22
    %s36 = sphi 0, %s38
    %s39 = sphi 0, %s36
    %s40 = sphi 0, %s39
    %s56 = sphi 0, %s40
    %s62 = sphi 0, %s64
    %s65 = sphi 0, %s62
    %s66 = sphi 0, %s65
    %s82 = sphi 0, %s66
    %s88 = sphi 0, %s90
    %s91 = sphi 0, %s88
    %s92 = sphi 0, %s91
    %s108 = sphi 0, %s92
    %s112 = sphi 0, %s112
    %s114 = sphi 0, %s112
    %s115 = sphi 0, %s114
    %s129 = sphi 0, %s115
    %s133 = sphi 0, %s133
    %s135 = sphi 0, %s133
    %s136 = sphi 0, %s135
    %s150 = sphi 0, %s136
    %s156 = sphi 0, %s158
    %s159 = sphi 0, %s156
    %s160 = sphi 0, %s159
    %s176 = sphi 0, %s160
    %s182 = sphi 0, %s184
    %s185 = sphi 0, %s182
    %s186 = sphi 0, %s185
    %s202 = sphi 0, %s186
  $region4: #{aspp_forward.1} parent=0 // loop_header_branch
    %15 = sbr.rel (%p13) target = $region8
  $region5: #{aspp_forward.1} parent=0 // loop_body
    %s17 = ssub.s32 %s12, 1
    %s18 = ssub.s32 %s12, 2
    %s25 = sadd.s32 1, %s20
    %p26 = scmp.ge.s32.totalorder %s25, 1
    %s27 = scalar_select %p26, 0, %s25
    %s28 = sadd.s32 1, %s19
    %s29 = scalar_select %p26, %s28, %s19
    %p30 = scmp.ge.s32.totalorder %s29, 2
    %s31 = scalar_select %p30, 0, %s29
    %s32 = ssub.s32 %s19, %s31
    %s33 = ssub.s32 %s20, %s27
    %s34 = sor.u32 %s32, %s33
    %p35 = scmp.eq.s32.totalorder %s34, 0
    %s37 = sadd.s32 %s36, 1
    %s38 = scalar_select %p35, %s36, %s37
    %p41 = pneg %p35
    %p42 = scmp.eq.s32.totalorder %s12, 1
    %p43 = por %p41, %p42
    %p44 = scmp.ne.s32.totalorder %s36, %s39
    %p45 = scmp.eq.s32.totalorder %s12, 0
    %p46 = por %p44, %p45
    %p47 = scmp.ne.s32.totalorder %s36, %s39
    %p48 = scmp.eq.s32.totalorder %s17, 1
    %p49 = por %p47, %p48
    %p50 = scmp.ne.s32.totalorder %s39, %s40
    %p51 = scmp.eq.s32.totalorder %s17, 0
    %p52 = por %p50, %p51
    %p53 = scmp.ne.s32.totalorder %s39, %s40
    %p54 = scmp.eq.s32.totalorder %s18, 1
    %p55 = por %p53, %p54
    %p57 = scmp.ne.s32.totalorder %s40, %s56
    %p58 = scmp.eq.s32.totalorder %s18, 0
    %p59 = por %p57, %p58
    %s60 = ssub.s32 %s20, %s27
    %p61 = scmp.eq.s32.totalorder %s60, 0
    %s63 = sadd.s32 %s62, 1
    %s64 = scalar_select %p61, %s62, %s63
    %p67 = pneg %p61
    %p68 = scmp.eq.s32.totalorder %s12, 1
    %p69 = por %p67, %p68
    %p70 = scmp.ne.s32.totalorder %s62, %s65
    %p71 = scmp.eq.s32.totalorder %s12, 0
    %p72 = por %p70, %p71
    %p73 = scmp.ne.s32.totalorder %s62, %s65
    %p74 = scmp.eq.s32.totalorder %s17, 1
    %p75 = por %p73, %p74
    %p76 = scmp.ne.s32.totalorder %s65, %s66
    %p77 = scmp.eq.s32.totalorder %s17, 0
    %p78 = por %p76, %p77
    %p79 = scmp.ne.s32.totalorder %s65, %s66
    %p80 = scmp.eq.s32.totalorder %s18, 1
    %p81 = por %p79, %p80
    %p83 = scmp.ne.s32.totalorder %s66, %s82
    %p84 = scmp.eq.s32.totalorder %s18, 0
    %p85 = por %p83, %p84
    %s86 = ssub.s32 %s20, %s27
    %p87 = scmp.eq.s32.totalorder %s86, 0
    %s89 = sadd.s32 %s88, 1
    %s90 = scalar_select %p87, %s88, %s89
    %p93 = pneg %p87
    %p94 = scmp.eq.s32.totalorder %s12, 1
    %p95 = por %p93, %p94
    %p96 = scmp.ne.s32.totalorder %s88, %s91
    %p97 = scmp.eq.s32.totalorder %s12, 0
    %p98 = por %p96, %p97
    %p99 = scmp.ne.s32.totalorder %s88, %s91
    %p100 = scmp.eq.s32.totalorder %s17, 1
    %p101 = por %p99, %p100
    %p102 = scmp.ne.s32.totalorder %s91, %s92
    %p103 = scmp.eq.s32.totalorder %s17, 0
    %p104 = por %p102, %p103
    %p105 = scmp.ne.s32.totalorder %s91, %s92
    %p106 = scmp.eq.s32.totalorder %s18, 1
    %p107 = por %p105, %p106
    %p109 = scmp.ne.s32.totalorder %s92, %s108
    %p110 = scmp.eq.s32.totalorder %s18, 0
    %p111 = por %p109, %p110
    %s113 = sadd.s32 %s112, 1
    %p116 = scmp.eq.s32.totalorder %s12, 1
    %p117 = scmp.ne.s32.totalorder %s112, %s114
    %p118 = scmp.eq.s32.totalorder %s12, 0
    %p119 = por %p117, %p118
    %p120 = scmp.ne.s32.totalorder %s112, %s114
    %p121 = scmp.eq.s32.totalorder %s17, 1
    %p122 = por %p120, %p121
    %p123 = scmp.ne.s32.totalorder %s114, %s115
    %p124 = scmp.eq.s32.totalorder %s17, 0
    %p125 = por %p123, %p124
    %p126 = scmp.ne.s32.totalorder %s114, %s115
    %p127 = scmp.eq.s32.totalorder %s18, 1
    %p128 = por %p126, %p127
    %p130 = scmp.ne.s32.totalorder %s115, %s129
    %p131 = scmp.eq.s32.totalorder %s18, 0
    %p132 = por %p130, %p131
    %s134 = sadd.s32 %s133, 1
    %p137 = scmp.eq.s32.totalorder %s12, 1
    %p138 = scmp.ne.s32.totalorder %s133, %s135
    %p139 = scmp.eq.s32.totalorder %s12, 0
    %p140 = por %p138, %p139
    %p141 = scmp.ne.s32.totalorder %s133, %s135
    %p142 = scmp.eq.s32.totalorder %s17, 1
    %p143 = por %p141, %p142
    %p144 = scmp.ne.s32.totalorder %s135, %s136
    %p145 = scmp.eq.s32.totalorder %s17, 0
    %p146 = por %p144, %p145
    %p147 = scmp.ne.s32.totalorder %s135, %s136
    %p148 = scmp.eq.s32.totalorder %s18, 1
    %p149 = por %p147, %p148
    %p151 = scmp.ne.s32.totalorder %s136, %s150
    %p152 = scmp.eq.s32.totalorder %s18, 0
    %p153 = por %p151, %p152
    %s154 = ssub.s32 %s19, %s31
    %p155 = scmp.eq.s32.totalorder %s154, 0
    %s157 = sadd.s32 %s156, 1
    %s158 = scalar_select %p155, %s156, %s157
    %p161 = pneg %p155
    %p162 = scmp.eq.s32.totalorder %s12, 1
    %p163 = por %p161, %p162
    %p164 = scmp.ne.s32.totalorder %s156, %s159
    %p165 = scmp.eq.s32.totalorder %s12, 0
    %p166 = por %p164, %p165
    %p167 = scmp.ne.s32.totalorder %s156, %s159
    %p168 = scmp.eq.s32.totalorder %s17, 1
    %p169 = por %p167, %p168
    %p170 = scmp.ne.s32.totalorder %s159, %s160
    %p171 = scmp.eq.s32.totalorder %s17, 0
    %p172 = por %p170, %p171
    %p173 = scmp.ne.s32.totalorder %s159, %s160
    %p174 = scmp.eq.s32.totalorder %s18, 1
    %p175 = por %p173, %p174
    %p177 = scmp.ne.s32.totalorder %s160, %s176
    %p178 = scmp.eq.s32.totalorder %s18, 0
    %p179 = por %p177, %p178
    %s180 = ssub.s32 %s19, %s31
    %p181 = scmp.eq.s32.totalorder %s180, 0
    %s183 = sadd.s32 %s182, 1
    %s184 = scalar_select %p181, %s182, %s183
    %p187 = pneg %p181
    %p188 = scmp.eq.s32.totalorder %s12, 1
    %p189 = por %p187, %p188
    %p190 = scmp.ne.s32.totalorder %s182, %s185
    %p191 = scmp.eq.s32.totalorder %s12, 0
    %p192 = por %p190, %p191
    %p193 = scmp.ne.s32.totalorder %s182, %s185
    %p194 = scmp.eq.s32.totalorder %s17, 1
    %p195 = por %p193, %p194
    %p196 = scmp.ne.s32.totalorder %s185, %s186
    %p197 = scmp.eq.s32.totalorder %s17, 0
    %p198 = por %p196, %p197
    %p199 = scmp.ne.s32.totalorder %s185, %s186
    %p200 = scmp.eq.s32.totalorder %s18, 1
    %p201 = por %p199, %p200
    %p203 = scmp.ne.s32.totalorder %s186, %s202
    %p204 = scmp.eq.s32.totalorder %s18, 0
    %p205 = por %p203, %p204
    %p206 = scmp.le.s32.totalorder 1, %s12
    %p207 = scmp.lt.s32.totalorder %s12, 3
    %p208 = pnand %p206, %p207
    %p209 = pneg %p208
    // Predicated region
    $region9: #{aspp_forward.1} parent=5 // pred_check
      _
    $region10: #{aspp_forward.1} parent=5 // pred_check_branch
      %211 = sbr.rel (%p208) target = $region12
    $region11: #{aspp_forward.1} parent=5 // pred_region
      %s212 = ssub.s32 %s12, 1
      // Predicated region
      $region13: #{aspp_forward.1} parent=11 // pred_check
        %p213 = pneg %p78
      $region14: #{aspp_forward.1} parent=11 // pred_check_branch
        %215 = sbr.rel (%p213) target = $region16
      $region15: #{aspp_forward.1} parent=11 // pred_region
        %p216 = scmp.lt.s32.totalorder %s22, 0
        %s217 = scalar_select %p216, %s22, 0
        %s218 = smul.addr %s217, 4
        %s219 = scalar_lea.vmem %s1, %s218
      $region16: #{aspp_forward.1} parent=11 // pred_fallthru
        _
      // Predicated region
      $region17: #{aspp_forward.1} parent=11 // pred_check
        %p220 = pneg %p104
      $region18: #{aspp_forward.1} parent=11 // pred_check_branch
        %222 = sbr.rel (%p220) target = $region20
      $region19: #{aspp_forward.1} parent=11 // pred_region
        %p223 = scmp.lt.s32.totalorder %s22, 0
        %s224 = scalar_select %p223, %s22, 0
        %s225 = smul.addr %s224, 4
        %s226 = scalar_lea.vmem %s2, %s225
      $region20: #{aspp_forward.1} parent=11 // pred_fallthru
        _
      // Predicated region
      $region21: #{aspp_forward.1} parent=11 // pred_check
        %p227 = pneg %p125
      $region22: #{aspp_forward.1} parent=11 // pred_check_branch
        %229 = sbr.rel (%p227) target = $region24
      $region23: #{aspp_forward.1} parent=11 // pred_region
        _
      $region24: #{aspp_forward.1} parent=11 // pred_fallthru
        _
      // Predicated region
      $region25: #{aspp_forward.1} parent=11 // pred_check
        %p230 = pneg %p146
      $region26: #{aspp_forward.1} parent=11 // pred_check_branch
        %232 = sbr.rel (%p230) target = $region28
      $region27: #{aspp_forward.1} parent=11 // pred_region
        _
      $region28: #{aspp_forward.1} parent=11 // pred_fallthru
        _
    $region12: #{aspp_forward.1} parent=5 // pred_fallthru
      _
    %p233 = scmp.lt.s32.totalorder %s12, 2
    // Predicated region
    $region29: #{aspp_forward.1} parent=5 // pred_check
      %p234 = pneg %p233
    $region30: #{aspp_forward.1} parent=5 // pred_check_branch
      %236 = sbr.rel (%p234) target = $region32
    $region31: #{aspp_forward.1} parent=5 // pred_region
      // Predicated region
      $region33: #{aspp_forward.1} parent=31 // pred_check
        %p237 = pneg %p46
      $region34: #{aspp_forward.1} parent=31 // pred_check_branch
        %239 = sbr.rel (%p237) target = $region36
      $region35: #{aspp_forward.1} parent=31 // pred_region
        %p240 = scmp.lt.s32.totalorder %s19, 1
        %s241 = scalar_select %p240, %s19, 1
        %p242 = scmp.lt.s32.totalorder %s20, 0
        %s243 = scalar_select %p242, %s20, 0
        %s244 = smul.addr %s241, 32
        %s245 = sadd.s32 %s243, %s244
        %s246 = smul.addr %s245, 8
        %s247 = scalar_lea.vmem %s0, %s246
      $region36: #{aspp_forward.1} parent=31 // pred_fallthru
        _
      // Predicated region
      $region37: #{aspp_forward.1} parent=31 // pred_check
        %p248 = pneg %p166
      $region38: #{aspp_forward.1} parent=31 // pred_check_branch
        %250 = sbr.rel (%p248) target = $region40
      $region39: #{aspp_forward.1} parent=31 // pred_region
        %p251 = scmp.lt.s32.totalorder %s19, 1
        %s252 = scalar_select %p251, %s19, 1
        %s253 = scalar_lea.vmem %s5, %s252
      $region40: #{aspp_forward.1} parent=31 // pred_fallthru
        _
    $region32: #{aspp_forward.1} parent=5 // pred_fallthru
      _
    %p254 = scmp.le.s32.totalorder 1, %s12
    %p255 = scmp.lt.s32.totalorder %s12, 3
    %p256 = pnand %p254, %p255
    %p257 = pneg %p256
    // Predicated region
    $region41: #{aspp_forward.1} parent=5 // pred_check
      _
    $region42: #{aspp_forward.1} parent=5 // pred_check_branch
      %259 = sbr.rel (%p256) target = $region44
    $region43: #{aspp_forward.1} parent=5 // pred_region
      %s260 = ssub.s32 %s12, 1
      %p261 = scmp.lt.s32.totalorder %s21, 1
      %s262 = scalar_select %p261, %s21, 1
      %p263 = scmp.lt.s32.totalorder %s22, 0
      %s264 = scalar_select %p263, %s22, 0
      %s265 = smul.addr %s262, 32
      %s266 = sadd.s32 %s264, %s265
      %s267 = smul.addr %s266, 8
      %s268 = scalar_lea.vmem %s0, %s267
      %p269 = pneg %p52
      %p270 = pneg %p49
      %p271 = scmp.lt.s32.totalorder %s22, 0
      %s272 = scalar_select %p271, %s22, 0
      %s273 = smul.addr %s272, 4
      %s274 = scalar_lea.vmem %s1, %s273
      %p275 = pneg %p78
      %p276 = pneg %p75
      %p277 = scmp.lt.s32.totalorder %s22, 0
      %s278 = scalar_select %p277, %s22, 0
      %s279 = smul.addr %s278, 4
      %s280 = scalar_lea.vmem %s2, %s279
      %p281 = pneg %p104
      %p282 = pneg %p101
      %p283 = pneg %p125
      %p284 = pneg %p122
      %p285 = pneg %p146
      %p286 = pneg %p143
      %p287 = scmp.lt.s32.totalorder %s21, 1
      %s288 = scalar_select %p287, %s21, 1
      %s289 = scalar_lea.vmem %s5, %s288
      %p290 = pneg %p172
      %p291 = pneg %p169
      %p292 = pneg %p198
      %p293 = pneg %p195
      %p294 = scmp.lt.s32.totalorder %s21, 1
      %s295 = scalar_select %p294, %s21, 1
      %s296 = smul.addr %s295, 32
      %s297 = smul.addr %s296, 8
      %s298 = scalar_lea.vmem %s6, %s297
      %p299 = scmp.lt.s32.totalorder %s21, 1
      %s300 = scalar_select %p299, %s21, 1
      %p301 = scmp.lt.s32.totalorder %s22, 0
      %s302 = scalar_select %p301, %s22, 0
      %s303 = smul.addr %s300, 32
      %s304 = sadd.s32 %s302, %s303
      %s305 = smul.addr %s304, 8
      %s306 = scalar_lea.vmem %s0, %s305
      %p307 = scmp.lt.s32.totalorder %s22, 0
      %s308 = scalar_select %p307, %s22, 0
      %s309 = smul.addr %s308, 4
      %s310 = scalar_lea.vmem %s1, %s309
      %p311 = scmp.lt.s32.totalorder %s22, 0
      %s312 = scalar_select %p311, %s22, 0
      %s313 = smul.addr %s312, 4
      %s314 = scalar_lea.vmem %s2, %s313
      %p315 = scmp.lt.s32.totalorder %s21, 1
      %s316 = scalar_select %p315, %s21, 1
      %s317 = scalar_lea.vmem %s5, %s316
      %p318 = scmp.lt.s32.totalorder %s21, 1
      %s319 = scalar_select %p318, %s21, 1
      %s320 = smul.addr %s319, 32
      %s321 = smul.addr %s320, 8
      %s322 = scalar_lea.vmem %s6, %s321
      %p323 = scmp.eq.s32.totalorder %s22, 0
      // Predicated region
      $region45: #{aspp_forward.1} parent=43 // pred_check
        %p324 = pneg %p323
      $region46: #{aspp_forward.1} parent=43 // pred_check_branch
        %326 = sbr.rel (%p324) target = $region48
      $region47: #{aspp_forward.1} parent=43 // pred_region
        %vm327 = vcmask 31744
        %328 = vst.msk [vmem:[#allocation2] sm:$0xff] %vm327, 0.0
        %329 = vst.msk [vmem:[#allocation2 + $0x8] sm:$0xff] %vm327, 0.0
        %330 = vst.msk [vmem:[#allocation2 + $0x10] sm:$0xff] %vm327, 0.0
        %331 = vst.msk [vmem:[#allocation2 + $0x18] sm:$0xff] %vm327, 0.0
        %332 = vst.msk [vmem:[#allocation2 + $0x20] sm:$0xff] %vm327, 0.0
        %333 = vst.msk [vmem:[#allocation2 + $0x28] sm:$0xff] %vm327, 0.0
        %334 = vst.msk [vmem:[#allocation2 + $0x30] sm:$0xff] %vm327, 0.0
        %335 = vst.msk [vmem:[#allocation2 + $0x38] sm:$0xff] %vm327, 0.0
        %vm336 = vcmask 25600
        %337 = vst.msk [vmem:[#allocation2 + $0x40] sm:$0x3] %vm336, 0.0
        %338 = vst.msk [vmem:[#allocation2 + $0x48] sm:$0xff] %vm327, 0.0
        %339 = vst.msk [vmem:[#allocation2 + $0x50] sm:$0xff] %vm327, 0.0
        %340 = vst.msk [vmem:[#allocation2 + $0x58] sm:$0xff] %vm327, 0.0
        %341 = vst.msk [vmem:[#allocation2 + $0x60] sm:$0xff] %vm327, 0.0
        %342 = vst.msk [vmem:[#allocation2 + $0x68] sm:$0xff] %vm327, 0.0
        %343 = vst.msk [vmem:[#allocation2 + $0x70] sm:$0xff] %vm327, 0.0
        %344 = vst.msk [vmem:[#allocation2 + $0x78] sm:$0xff] %vm327, 0.0
        %345 = vst.msk [vmem:[#allocation2 + $0x80] sm:$0xff] %vm327, 0.0
        %346 = vst.msk [vmem:[#allocation2 + $0x88] sm:$0x3] %vm336, 0.0
        %347 = vst.msk [vmem:[#allocation2 + $0x90] sm:$0xff] %vm327, 0.0
        %348 = vst.msk [vmem:[#allocation2 + $0x98] sm:$0xff] %vm327, 0.0
        %349 = vst.msk [vmem:[#allocation2 + $0xa0] sm:$0xff] %vm327, 0.0
        %350 = vst.msk [vmem:[#allocation2 + $0xa8] sm:$0xff] %vm327, 0.0
        %351 = vst.msk [vmem:[#allocation2 + $0xb0] sm:$0xff] %vm327, 0.0
        %352 = vst.msk [vmem:[#allocation2 + $0xb8] sm:$0xff] %vm327, 0.0
        %353 = vst.msk [vmem:[#allocation2 + $0xc0] sm:$0xff] %vm327, 0.0
        %354 = vst.msk [vmem:[#allocation2 + $0xc8] sm:$0xff] %vm327, 0.0
        %355 = vst.msk [vmem:[#allocation2 + $0xd0] sm:$0x3] %vm336, 0.0
        %356 = vst.msk [vmem:[#allocation2 + $0xd8] sm:$0xff] %vm327, 0.0
        %357 = vst.msk [vmem:[#allocation2 + $0xe0] sm:$0xff] %vm327, 0.0
        %358 = vst.msk [vmem:[#allocation2 + $0xe8] sm:$0xff] %vm327, 0.0
        %359 = vst.msk [vmem:[#allocation2 + $0xf0] sm:$0xff] %vm327, 0.0
        %360 = vst.msk [vmem:[#allocation2 + $0xf8] sm:$0xff] %vm327, 0.0
        %361 = vst.msk [vmem:[#allocation2 + $0x100] sm:$0xff] %vm327, 0.0
        %362 = vst.msk [vmem:[#allocation2 + $0x108] sm:$0xff] %vm327, 0.0
        %363 = vst.msk [vmem:[#allocation2 + $0x110] sm:$0xff] %vm327, 0.0
        %364 = vst.msk [vmem:[#allocation2 + $0x118] sm:$0x3] %vm336, 0.0
        %365 = vst.msk [vmem:[#allocation2 + $0x120] sm:$0xff] %vm327, 0.0
        %366 = vst.msk [vmem:[#allocation2 + $0x128] sm:$0xff] %vm327, 0.0
        %367 = vst.msk [vmem:[#allocation2 + $0x130] sm:$0xff] %vm327, 0.0
        %368 = vst.msk [vmem:[#allocation2 + $0x138] sm:$0xff] %vm327, 0.0
        %369 = vst.msk [vmem:[#allocation2 + $0x140] sm:$0xff] %vm327, 0.0
        %370 = vst.msk [vmem:[#allocation2 + $0x148] sm:$0xff] %vm327, 0.0
        %371 = vst.msk [vmem:[#allocation2 + $0x150] sm:$0xff] %vm327, 0.0
        %372 = vst.msk [vmem:[#allocation2 + $0x158] sm:$0xff] %vm327, 0.0
        %373 = vst.msk [vmem:[#allocation2 + $0x160] sm:$0x3] %vm336, 0.0
        %374 = vst.msk [vmem:[#allocation2 + $0x168] sm:$0xff] %vm327, 0.0
        %375 = vst.msk [vmem:[#allocation2 + $0x170] sm:$0xff] %vm327, 0.0
        %376 = vst.msk [vmem:[#allocation2 + $0x178] sm:$0xff] %vm327, 0.0
        %377 = vst.msk [vmem:[#allocation2 + $0x180] sm:$0xff] %vm327, 0.0
        %378 = vst.msk [vmem:[#allocation2 + $0x188] sm:$0xff] %vm327, 0.0
        %379 = vst.msk [vmem:[#allocation2 + $0x190] sm:$0xff] %vm327, 0.0
        %380 = vst.msk [vmem:[#allocation2 + $0x198] sm:$0xff] %vm327, 0.0
        %381 = vst.msk [vmem:[#allocation2 + $0x1a0] sm:$0xff] %vm327, 0.0
        %382 = vst.msk [vmem:[#allocation2 + $0x1a8] sm:$0x3] %vm336, 0.0
        %383 = vst.msk [vmem:[#allocation2 + $0x1b0] sm:$0xff] %vm327, 0.0
        %384 = vst.msk [vmem:[#allocation2 + $0x1b8] sm:$0xff] %vm327, 0.0
        %385 = vst.msk [vmem:[#allocation2 + $0x1c0] sm:$0xff] %vm327, 0.0
        %386 = vst.msk [vmem:[#allocation2 + $0x1c8] sm:$0xff] %vm327, 0.0
        %387 = vst.msk [vmem:[#allocation2 + $0x1d0] sm:$0xff] %vm327, 0.0
        %388 = vst.msk [vmem:[#allocation2 + $0x1d8] sm:$0xff] %vm327, 0.0
        %389 = vst.msk [vmem:[#allocation2 + $0x1e0] sm:$0xff] %vm327, 0.0
        %390 = vst.msk [vmem:[#allocation2 + $0x1e8] sm:$0xff] %vm327, 0.0
        %391 = vst.msk [vmem:[#allocation2 + $0x1f0] sm:$0x3] %vm336, 0.0
        %392 = vst.msk [vmem:[#allocation2 + $0x1f8] sm:$0xff] %vm327, 0.0
        %393 = vst.msk [vmem:[#allocation2 + $0x200] sm:$0xff] %vm327, 0.0
        %394 = vst.msk [vmem:[#allocation2 + $0x208] sm:$0xff] %vm327, 0.0
        %395 = vst.msk [vmem:[#allocation2 + $0x210] sm:$0xff] %vm327, 0.0
        %396 = vst.msk [vmem:[#allocation2 + $0x218] sm:$0xff] %vm327, 0.0
        %397 = vst.msk [vmem:[#allocation2 + $0x220] sm:$0xff] %vm327, 0.0
        %398 = vst.msk [vmem:[#allocation2 + $0x228] sm:$0xff] %vm327, 0.0
        %399 = vst.msk [vmem:[#allocation2 + $0x230] sm:$0xff] %vm327, 0.0
        %400 = vst.msk [vmem:[#allocation2 + $0x238] sm:$0x3] %vm336, 0.0
        %401 = vst.msk [vmem:[#allocation2 + $0x240] sm:$0xff] %vm327, 0.0
        %402 = vst.msk [vmem:[#allocation2 + $0x248] sm:$0xff] %vm327, 0.0
        %403 = vst.msk [vmem:[#allocation2 + $0x250] sm:$0xff] %vm327, 0.0
        %404 = vst.msk [vmem:[#allocation2 + $0x258] sm:$0xff] %vm327, 0.0
        %405 = vst.msk [vmem:[#allocation2 + $0x260] sm:$0xff] %vm327, 0.0
        %406 = vst.msk [vmem:[#allocation2 + $0x268] sm:$0xff] %vm327, 0.0
        %407 = vst.msk [vmem:[#allocation2 + $0x270] sm:$0xff] %vm327, 0.0
        %408 = vst.msk [vmem:[#allocation2 + $0x278] sm:$0xff] %vm327, 0.0
        %409 = vst.msk [vmem:[#allocation2 + $0x280] sm:$0x3] %vm336, 0.0
        %410 = vst.msk [vmem:[#allocation2 + $0x288] sm:$0xff] %vm327, 0.0
        %411 = vst.msk [vmem:[#allocation2 + $0x290] sm:$0xff] %vm327, 0.0
        %412 = vst.msk [vmem:[#allocation2 + $0x298] sm:$0xff] %vm327, 0.0
        %413 = vst.msk [vmem:[#allocation2 + $0x2a0] sm:$0xff] %vm327, 0.0
        %414 = vst.msk [vmem:[#allocation2 + $0x2a8] sm:$0xff] %vm327, 0.0
        %415 = vst.msk [vmem:[#allocation2 + $0x2b0] sm:$0xff] %vm327, 0.0
        %416 = vst.msk [vmem:[#allocation2 + $0x2b8] sm:$0xff] %vm327, 0.0
        %417 = vst.msk [vmem:[#allocation2 + $0x2c0] sm:$0xff] %vm327, 0.0
        %418 = vst.msk [vmem:[#allocation2 + $0x2c8] sm:$0x3] %vm336, 0.0
        %419 = vst.msk [vmem:[#allocation2 + $0x2d0] sm:$0xff] %vm327, 0.0
        %420 = vst.msk [vmem:[#allocation2 + $0x2d8] sm:$0xff] %vm327, 0.0
        %421 = vst.msk [vmem:[#allocation2 + $0x2e0] sm:$0xff] %vm327, 0.0
        %422 = vst.msk [vmem:[#allocation2 + $0x2e8] sm:$0xff] %vm327, 0.0
        %423 = vst.msk [vmem:[#allocation2 + $0x2f0] sm:$0xff] %vm327, 0.0
        %424 = vst.msk [vmem:[#allocation2 + $0x2f8] sm:$0xff] %vm327, 0.0
        %425 = vst.msk [vmem:[#allocation2 + $0x300] sm:$0xff] %vm327, 0.0
        %426 = vst.msk [vmem:[#allocation2 + $0x308] sm:$0xff] %vm327, 0.0
        %427 = vst.msk [vmem:[#allocation2 + $0x310] sm:$0x3] %vm336, 0.0
        %428 = vst.msk [vmem:[#allocation2 + $0x318] sm:$0xff] %vm327, 0.0
        %429 = vst.msk [vmem:[#allocation2 + $0x320] sm:$0xff] %vm327, 0.0
        %430 = vst.msk [vmem:[#allocation2 + $0x328] sm:$0xff] %vm327, 0.0
        %431 = vst.msk [vmem:[#allocation2 + $0x330] sm:$0xff] %vm327, 0.0
        %432 = vst.msk [vmem:[#allocation2 + $0x338] sm:$0xff] %vm327, 0.0
        %433 = vst.msk [vmem:[#allocation2 + $0x340] sm:$0xff] %vm327, 0.0
        %434 = vst.msk [vmem:[#allocation2 + $0x348] sm:$0xff] %vm327, 0.0
        %435 = vst.msk [vmem:[#allocation2 + $0x350] sm:$0xff] %vm327, 0.0
        %436 = vst.msk [vmem:[#allocation2 + $0x358] sm:$0x3] %vm336, 0.0
        %437 = vst.msk [vmem:[#allocation2 + $0x360] sm:$0xff] %vm327, 0.0
        %438 = vst.msk [vmem:[#allocation2 + $0x368] sm:$0xff] %vm327, 0.0
        %439 = vst.msk [vmem:[#allocation2 + $0x370] sm:$0xff] %vm327, 0.0
        %440 = vst.msk [vmem:[#allocation2 + $0x378] sm:$0xff] %vm327, 0.0
        %441 = vst.msk [vmem:[#allocation2 + $0x380] sm:$0xff] %vm327, 0.0
        %442 = vst.msk [vmem:[#allocation2 + $0x388] sm:$0xff] %vm327, 0.0
        %443 = vst.msk [vmem:[#allocation2 + $0x390] sm:$0xff] %vm327, 0.0
        %444 = vst.msk [vmem:[#allocation2 + $0x398] sm:$0xff] %vm327, 0.0
        %445 = vst.msk [vmem:[#allocation2 + $0x3a0] sm:$0x3] %vm336, 0.0
        %446 = vst.msk [vmem:[#allocation2 + $0x3a8] sm:$0xff] %vm327, 0.0
        %447 = vst.msk [vmem:[#allocation2 + $0x3b0] sm:$0xff] %vm327, 0.0
        %448 = vst.msk [vmem:[#allocation2 + $0x3b8] sm:$0xff] %vm327, 0.0
        %449 = vst.msk [vmem:[#allocation2 + $0x3c0] sm:$0xff] %vm327, 0.0
        %450 = vst.msk [vmem:[#allocation2 + $0x3c8] sm:$0xff] %vm327, 0.0
        %451 = vst.msk [vmem:[#allocation2 + $0x3d0] sm:$0xff] %vm327, 0.0
        %452 = vst.msk [vmem:[#allocation2 + $0x3d8] sm:$0xff] %vm327, 0.0
        %453 = vst.msk [vmem:[#allocation2 + $0x3e0] sm:$0xff] %vm327, 0.0
        %454 = vst.msk [vmem:[#allocation2 + $0x3e8] sm:$0x3] %vm336, 0.0
        %455 = vst.msk [vmem:[#allocation2 + $0x3f0] sm:$0xff] %vm327, 0.0
        %456 = vst.msk [vmem:[#allocation2 + $0x3f8] sm:$0xff] %vm327, 0.0
        %457 = vst.msk [vmem:[#allocation2 + $0x400] sm:$0xff] %vm327, 0.0
        %458 = vst.msk [vmem:[#allocation2 + $0x408] sm:$0xff] %vm327, 0.0
        %459 = vst.msk [vmem:[#allocation2 + $0x410] sm:$0xff] %vm327, 0.0
        %460 = vst.msk [vmem:[#allocation2 + $0x418] sm:$0xff] %vm327, 0.0
        %461 = vst.msk [vmem:[#allocation2 + $0x420] sm:$0xff] %vm327, 0.0
        %462 = vst.msk [vmem:[#allocation2 + $0x428] sm:$0xff] %vm327, 0.0
        %463 = vst.msk [vmem:[#allocation2 + $0x430] sm:$0x3] %vm336, 0.0
        %464 = vst.msk [vmem:[#allocation2 + $0x438] sm:$0xff] %vm327, 0.0
        %465 = vst.msk [vmem:[#allocation2 + $0x440] sm:$0xff] %vm327, 0.0
        %466 = vst.msk [vmem:[#allocation2 + $0x448] sm:$0xff] %vm327, 0.0
        %467 = vst.msk [vmem:[#allocation2 + $0x450] sm:$0xff] %vm327, 0.0
        %468 = vst.msk [vmem:[#allocation2 + $0x458] sm:$0xff] %vm327, 0.0
        %469 = vst.msk [vmem:[#allocation2 + $0x460] sm:$0xff] %vm327, 0.0
        %470 = vst.msk [vmem:[#allocation2 + $0x468] sm:$0xff] %vm327, 0.0
        %471 = vst.msk [vmem:[#allocation2 + $0x470] sm:$0xff] %vm327, 0.0
        %472 = vst.msk [vmem:[#allocation2 + $0x478] sm:$0x3] %vm336, 0.0
        %473 = vst.msk [vmem:[#allocation2 + $0x480] sm:$0xff] %vm327, 0.0
        %474 = vst.msk [vmem:[#allocation2 + $0x488] sm:$0xff] %vm327, 0.0
        %475 = vst.msk [vmem:[#allocation2 + $0x490] sm:$0xff] %vm327, 0.0
        %476 = vst.msk [vmem:[#allocation2 + $0x498] sm:$0xff] %vm327, 0.0
        %477 = vst.msk [vmem:[#allocation2 + $0x4a0] sm:$0xff] %vm327, 0.0
        %478 = vst.msk [vmem:[#allocation2 + $0x4a8] sm:$0xff] %vm327, 0.0
        %479 = vst.msk [vmem:[#allocation2 + $0x4b0] sm:$0xff] %vm327, 0.0
        %480 = vst.msk [vmem:[#allocation2 + $0x4b8] sm:$0xff] %vm327, 0.0
        %481 = vst.msk [vmem:[#allocation2 + $0x4c0] sm:$0x3] %vm336, 0.0
        %482 = vst.msk [vmem:[#allocation2 + $0x4c8] sm:$0xff] %vm327, 0.0
        %483 = vst.msk [vmem:[#allocation2 + $0x4d0] sm:$0xff] %vm327, 0.0
        %484 = vst.msk [vmem:[#allocation2 + $0x4d8] sm:$0xff] %vm327, 0.0
        %485 = vst.msk [vmem:[#allocation2 + $0x4e0] sm:$0xff] %vm327, 0.0
        %486 = vst.msk [vmem:[#allocation2 + $0x4e8] sm:$0xff] %vm327, 0.0
        %487 = vst.msk [vmem:[#allocation2 + $0x4f0] sm:$0xff] %vm327, 0.0
        %488 = vst.msk [vmem:[#allocation2 + $0x4f8] sm:$0xff] %vm327, 0.0
        %489 = vst.msk [vmem:[#allocation2 + $0x500] sm:$0xff] %vm327, 0.0
        %490 = vst.msk [vmem:[#allocation2 + $0x508] sm:$0x3] %vm336, 0.0
        %491 = vst.msk [vmem:[#allocation2 + $0x510] sm:$0xff] %vm327, 0.0
        %492 = vst.msk [vmem:[#allocation2 + $0x518] sm:$0xff] %vm327, 0.0
        %493 = vst.msk [vmem:[#allocation2 + $0x520] sm:$0xff] %vm327, 0.0
        %494 = vst.msk [vmem:[#allocation2 + $0x528] sm:$0xff] %vm327, 0.0
        %495 = vst.msk [vmem:[#allocation2 + $0x530] sm:$0xff] %vm327, 0.0
        %496 = vst.msk [vmem:[#allocation2 + $0x538] sm:$0xff] %vm327, 0.0
        %497 = vst.msk [vmem:[#allocation2 + $0x540] sm:$0xff] %vm327, 0.0
        %498 = vst.msk [vmem:[#allocation2 + $0x548] sm:$0xff] %vm327, 0.0
        %499 = vst.msk [vmem:[#allocation2 + $0x550] sm:$0x3] %vm336, 0.0
        %500 = vst.msk [vmem:[#allocation2 + $0x558] sm:$0xff] %vm327, 0.0
        %501 = vst.msk [vmem:[#allocation2 + $0x560] sm:$0xff] %vm327, 0.0
        %502 = vst.msk [vmem:[#allocation2 + $0x568] sm:$0xff] %vm327, 0.0
        %503 = vst.msk [vmem:[#allocation2 + $0x570] sm:$0xff] %vm327, 0.0
        %504 = vst.msk [vmem:[#allocation2 + $0x578] sm:$0xff] %vm327, 0.0
        %505 = vst.msk [vmem:[#allocation2 + $0x580] sm:$0xff] %vm327, 0.0
        %506 = vst.msk [vmem:[#allocation2 + $0x588] sm:$0xff] %vm327, 0.0
        %507 = vst.msk [vmem:[#allocation2 + $0x590] sm:$0xff] %vm327, 0.0
        %508 = vst.msk [vmem:[#allocation2 + $0x598] sm:$0x3] %vm336, 0.0
        %509 = vst.msk [vmem:[#allocation2 + $0x5a0] sm:$0xff] %vm327, 0.0
        %510 = vst.msk [vmem:[#allocation2 + $0x5a8] sm:$0xff] %vm327, 0.0
        %511 = vst.msk [vmem:[#allocation2 + $0x5b0] sm:$0xff] %vm327, 0.0
        %512 = vst.msk [vmem:[#allocation2 + $0x5b8] sm:$0xff] %vm327, 0.0
        %513 = vst.msk [vmem:[#allocation2 + $0x5c0] sm:$0xff] %vm327, 0.0
        %514 = vst.msk [vmem:[#allocation2 + $0x5c8] sm:$0xff] %vm327, 0.0
        %515 = vst.msk [vmem:[#allocation2 + $0x5d0] sm:$0xff] %vm327, 0.0
        %516 = vst.msk [vmem:[#allocation2 + $0x5d8] sm:$0xff] %vm327, 0.0
        %517 = vst.msk [vmem:[#allocation2 + $0x5e0] sm:$0x3] %vm336, 0.0
        %518 = vst.msk [vmem:[#allocation2 + $0x5e8] sm:$0xff] %vm327, 0.0
        %519 = vst.msk [vmem:[#allocation2 + $0x5f0] sm:$0xff] %vm327, 0.0
        %520 = vst.msk [vmem:[#allocation2 + $0x5f8] sm:$0xff] %vm327, 0.0
        %521 = vst.msk [vmem:[#allocation2 + $0x600] sm:$0xff] %vm327, 0.0
        %522 = vst.msk [vmem:[#allocation2 + $0x608] sm:$0xff] %vm327, 0.0
        %523 = vst.msk [vmem:[#allocation2 + $0x610] sm:$0xff] %vm327, 0.0
        %524 = vst.msk [vmem:[#allocation2 + $0x618] sm:$0xff] %vm327, 0.0
        %525 = vst.msk [vmem:[#allocation2 + $0x620] sm:$0xff] %vm327, 0.0
        %526 = vst.msk [vmem:[#allocation2 + $0x628] sm:$0x3] %vm336, 0.0
        %527 = vst.msk [vmem:[#allocation2 + $0x630] sm:$0xff] %vm327, 0.0
        %528 = vst.msk [vmem:[#allocation2 + $0x638] sm:$0xff] %vm327, 0.0
        %529 = vst.msk [vmem:[#allocation2 + $0x640] sm:$0xff] %vm327, 0.0
        %530 = vst.msk [vmem:[#allocation2 + $0x648] sm:$0xff] %vm327, 0.0
        %531 = vst.msk [vmem:[#allocation2 + $0x650] sm:$0xff] %vm327, 0.0
        %532 = vst.msk [vmem:[#allocation2 + $0x658] sm:$0xff] %vm327, 0.0
        %533 = vst.msk [vmem:[#allocation2 + $0x660] sm:$0xff] %vm327, 0.0
        %534 = vst.msk [vmem:[#allocation2 + $0x668] sm:$0xff] %vm327, 0.0
        %535 = vst.msk [vmem:[#allocation2 + $0x670] sm:$0x3] %vm336, 0.0
        %536 = vst.msk [vmem:[#allocation2 + $0x678] sm:$0xff] %vm327, 0.0
        %537 = vst.msk [vmem:[#allocation2 + $0x680] sm:$0xff] %vm327, 0.0
        %538 = vst.msk [vmem:[#allocation2 + $0x688] sm:$0xff] %vm327, 0.0
        %539 = vst.msk [vmem:[#allocation2 + $0x690] sm:$0xff] %vm327, 0.0
        %540 = vst.msk [vmem:[#allocation2 + $0x698] sm:$0xff] %vm327, 0.0
        %541 = vst.msk [vmem:[#allocation2 + $0x6a0] sm:$0xff] %vm327, 0.0
        %542 = vst.msk [vmem:[#allocation2 + $0x6a8] sm:$0xff] %vm327, 0.0
        %543 = vst.msk [vmem:[#allocation2 + $0x6b0] sm:$0xff] %vm327, 0.0
        %544 = vst.msk [vmem:[#allocation2 + $0x6b8] sm:$0x3] %vm336, 0.0
        %545 = vst.msk [vmem:[#allocation2 + $0x6c0] sm:$0xff] %vm327, 0.0
        %546 = vst.msk [vmem:[#allocation2 + $0x6c8] sm:$0xff] %vm327, 0.0
        %547 = vst.msk [vmem:[#allocation2 + $0x6d0] sm:$0xff] %vm327, 0.0
        %548 = vst.msk [vmem:[#allocation2 + $0x6d8] sm:$0xff] %vm327, 0.0
        %549 = vst.msk [vmem:[#allocation2 + $0x6e0] sm:$0xff] %vm327, 0.0
        %550 = vst.msk [vmem:[#allocation2 + $0x6e8] sm:$0xff] %vm327, 0.0
        %551 = vst.msk [vmem:[#allocation2 + $0x6f0] sm:$0xff] %vm327, 0.0
        %552 = vst.msk [vmem:[#allocation2 + $0x6f8] sm:$0xff] %vm327, 0.0
        %553 = vst.msk [vmem:[#allocation2 + $0x700] sm:$0x3] %vm336, 0.0
        %554 = vst.msk [vmem:[#allocation2 + $0x708] sm:$0xff] %vm327, 0.0
        %555 = vst.msk [vmem:[#allocation2 + $0x710] sm:$0xff] %vm327, 0.0
        %556 = vst.msk [vmem:[#allocation2 + $0x718] sm:$0xff] %vm327, 0.0
        %557 = vst.msk [vmem:[#allocation2 + $0x720] sm:$0xff] %vm327, 0.0
        %558 = vst.msk [vmem:[#allocation2 + $0x728] sm:$0xff] %vm327, 0.0
        %559 = vst.msk [vmem:[#allocation2 + $0x730] sm:$0xff] %vm327, 0.0
        %560 = vst.msk [vmem:[#allocation2 + $0x738] sm:$0xff] %vm327, 0.0
        %561 = vst.msk [vmem:[#allocation2 + $0x740] sm:$0xff] %vm327, 0.0
        %562 = vst.msk [vmem:[#allocation2 + $0x748] sm:$0x3] %vm336, 0.0
        %563 = vst.msk [vmem:[#allocation2 + $0x750] sm:$0xff] %vm327, 0.0
        %564 = vst.msk [vmem:[#allocation2 + $0x758] sm:$0xff] %vm327, 0.0
        %565 = vst.msk [vmem:[#allocation2 + $0x760] sm:$0xff] %vm327, 0.0
        %566 = vst.msk [vmem:[#allocation2 + $0x768] sm:$0xff] %vm327, 0.0
        %567 = vst.msk [vmem:[#allocation2 + $0x770] sm:$0xff] %vm327, 0.0
        %568 = vst.msk [vmem:[#allocation2 + $0x778] sm:$0xff] %vm327, 0.0
        %569 = vst.msk [vmem:[#allocation2 + $0x780] sm:$0xff] %vm327, 0.0
        %570 = vst.msk [vmem:[#allocation2 + $0x788] sm:$0xff] %vm327, 0.0
        %571 = vst.msk [vmem:[#allocation2 + $0x790] sm:$0x3] %vm336, 0.0
        %572 = vst.msk [vmem:[#allocation2 + $0x798] sm:$0xff] %vm327, 0.0
        %573 = vst.msk [vmem:[#allocation2 + $0x7a0] sm:$0xff] %vm327, 0.0
        %574 = vst.msk [vmem:[#allocation2 + $0x7a8] sm:$0xff] %vm327, 0.0
        %575 = vst.msk [vmem:[#allocation2 + $0x7b0] sm:$0xff] %vm327, 0.0
        %576 = vst.msk [vmem:[#allocation2 + $0x7b8] sm:$0xff] %vm327, 0.0
        %577 = vst.msk [vmem:[#allocation2 + $0x7c0] sm:$0xff] %vm327, 0.0
        %578 = vst.msk [vmem:[#allocation2 + $0x7c8] sm:$0xff] %vm327, 0.0
        %579 = vst.msk [vmem:[#allocation2 + $0x7d0] sm:$0xff] %vm327, 0.0
        %580 = vst.msk [vmem:[#allocation2 + $0x7d8] sm:$0x3] %vm336, 0.0
        %581 = vst.msk [vmem:[#allocation2 + $0x7e0] sm:$0xff] %vm327, 0.0
        %582 = vst.msk [vmem:[#allocation2 + $0x7e8] sm:$0xff] %vm327, 0.0
        %583 = vst.msk [vmem:[#allocation2 + $0x7f0] sm:$0xff] %vm327, 0.0
        %584 = vst.msk [vmem:[#allocation2 + $0x7f8] sm:$0xff] %vm327, 0.0
        %585 = vst.msk [vmem:[#allocation2 + $0x800] sm:$0xff] %vm327, 0.0
        %586 = vst.msk [vmem:[#allocation2 + $0x808] sm:$0xff] %vm327, 0.0
        %587 = vst.msk [vmem:[#allocation2 + $0x810] sm:$0xff] %vm327, 0.0
        %588 = vst.msk [vmem:[#allocation2 + $0x818] sm:$0xff] %vm327, 0.0
        %589 = vst.msk [vmem:[#allocation2 + $0x820] sm:$0x3] %vm336, 0.0
        %590 = vst.msk [vmem:[#allocation2 + $0x828] sm:$0xff] %vm327, 0.0
        %591 = vst.msk [vmem:[#allocation2 + $0x830] sm:$0xff] %vm327, 0.0
        %592 = vst.msk [vmem:[#allocation2 + $0x838] sm:$0xff] %vm327, 0.0
        %593 = vst.msk [vmem:[#allocation2 + $0x840] sm:$0xff] %vm327, 0.0
        %594 = vst.msk [vmem:[#allocation2 + $0x848] sm:$0xff] %vm327, 0.0
        %595 = vst.msk [vmem:[#allocation2 + $0x850] sm:$0xff] %vm327, 0.0
        %596 = vst.msk [vmem:[#allocation2 + $0x858] sm:$0xff] %vm327, 0.0
        %597 = vst.msk [vmem:[#allocation2 + $0x860] sm:$0xff] %vm327, 0.0
        %598 = vst.msk [vmem:[#allocation2 + $0x868] sm:$0x3] %vm336, 0.0
        %599 = vst.msk [vmem:[#allocation2 + $0x870] sm:$0xff] %vm327, 0.0
        %600 = vst.msk [vmem:[#allocation2 + $0x878] sm:$0xff] %vm327, 0.0
        %601 = vst.msk [vmem:[#allocation2 + $0x880] sm:$0xff] %vm327, 0.0
        %602 = vst.msk [vmem:[#allocation2 + $0x888] sm:$0xff] %vm327, 0.0
        %603 = vst.msk [vmem:[#allocation2 + $0x890] sm:$0xff] %vm327, 0.0
        %604 = vst.msk [vmem:[#allocation2 + $0x898] sm:$0xff] %vm327, 0.0
        %605 = vst.msk [vmem:[#allocation2 + $0x8a0] sm:$0xff] %vm327, 0.0
        %606 = vst.msk [vmem:[#allocation2 + $0x8a8] sm:$0xff] %vm327, 0.0
        %607 = vst.msk [vmem:[#allocation2 + $0x8b0] sm:$0x3] %vm336, 0.0
        %608 = vst.msk [vmem:[#allocation2 + $0x8b8] sm:$0xff] %vm327, 0.0
        %609 = vst.msk [vmem:[#allocation2 + $0x8c0] sm:$0xff] %vm327, 0.0
        %610 = vst.msk [vmem:[#allocation2 + $0x8c8] sm:$0xff] %vm327, 0.0
        %611 = vst.msk [vmem:[#allocation2 + $0x8d0] sm:$0xff] %vm327, 0.0
        %612 = vst.msk [vmem:[#allocation2 + $0x8d8] sm:$0xff] %vm327, 0.0
        %613 = vst.msk [vmem:[#allocation2 + $0x8e0] sm:$0xff] %vm327, 0.0
        %614 = vst.msk [vmem:[#allocation2 + $0x8e8] sm:$0xff] %vm327, 0.0
        %615 = vst.msk [vmem:[#allocation2 + $0x8f0] sm:$0xff] %vm327, 0.0
        %616 = vst.msk [vmem:[#allocation2 + $0x8f8] sm:$0x3] %vm336, 0.0
        %617 = vst.msk [vmem:[#allocation2 + $0x900] sm:$0xff] %vm327, 0.0
        %618 = vst.msk [vmem:[#allocation2 + $0x908] sm:$0xff] %vm327, 0.0
        %619 = vst.msk [vmem:[#allocation2 + $0x910] sm:$0xff] %vm327, 0.0
        %620 = vst.msk [vmem:[#allocation2 + $0x918] sm:$0xff] %vm327, 0.0
        %621 = vst.msk [vmem:[#allocation2 + $0x920] sm:$0xff] %vm327, 0.0
        %622 = vst.msk [vmem:[#allocation2 + $0x928] sm:$0xff] %vm327, 0.0
        %623 = vst.msk [vmem:[#allocation2 + $0x930] sm:$0xff] %vm327, 0.0
        %624 = vst.msk [vmem:[#allocation2 + $0x938] sm:$0xff] %vm327, 0.0
        %625 = vst.msk [vmem:[#allocation2 + $0x940] sm:$0x3] %vm336, 0.0
        %626 = vst.msk [vmem:[#allocation2 + $0x948] sm:$0xff] %vm327, 0.0
        %627 = vst.msk [vmem:[#allocation2 + $0x950] sm:$0xff] %vm327, 0.0
        %628 = vst.msk [vmem:[#allocation2 + $0x958] sm:$0xff] %vm327, 0.0
        %629 = vst.msk [vmem:[#allocation2 + $0x960] sm:$0xff] %vm327, 0.0
        %630 = vst.msk [vmem:[#allocation2 + $0x968] sm:$0xff] %vm327, 0.0
        %631 = vst.msk [vmem:[#allocation2 + $0x970] sm:$0xff] %vm327, 0.0
        %632 = vst.msk [vmem:[#allocation2 + $0x978] sm:$0xff] %vm327, 0.0
        %633 = vst.msk [vmem:[#allocation2 + $0x980] sm:$0xff] %vm327, 0.0
        %634 = vst.msk [vmem:[#allocation2 + $0x988] sm:$0x3] %vm336, 0.0
        %635 = vst.msk [vmem:[#allocation2 + $0x990] sm:$0xff] %vm327, 0.0
        %636 = vst.msk [vmem:[#allocation2 + $0x998] sm:$0xff] %vm327, 0.0
        %637 = vst.msk [vmem:[#allocation2 + $0x9a0] sm:$0xff] %vm327, 0.0
        %638 = vst.msk [vmem:[#allocation2 + $0x9a8] sm:$0xff] %vm327, 0.0
        %639 = vst.msk [vmem:[#allocation2 + $0x9b0] sm:$0xff] %vm327, 0.0
        %640 = vst.msk [vmem:[#allocation2 + $0x9b8] sm:$0xff] %vm327, 0.0
        %641 = vst.msk [vmem:[#allocation2 + $0x9c0] sm:$0xff] %vm327, 0.0
        %642 = vst.msk [vmem:[#allocation2 + $0x9c8] sm:$0xff] %vm327, 0.0
        %643 = vst.msk [vmem:[#allocation2 + $0x9d0] sm:$0x3] %vm336, 0.0
        %644 = vst.msk [vmem:[#allocation2 + $0x9d8] sm:$0xff] %vm327, 0.0
        %645 = vst.msk [vmem:[#allocation2 + $0x9e0] sm:$0xff] %vm327, 0.0
        %646 = vst.msk [vmem:[#allocation2 + $0x9e8] sm:$0xff] %vm327, 0.0
        %647 = vst.msk [vmem:[#allocation2 + $0x9f0] sm:$0xff] %vm327, 0.0
        %648 = vst.msk [vmem:[#allocation2 + $0x9f8] sm:$0xff] %vm327, 0.0
        %649 = vst.msk [vmem:[#allocation2 + $0xa00] sm:$0xff] %vm327, 0.0
        %650 = vst.msk [vmem:[#allocation2 + $0xa08] sm:$0xff] %vm327, 0.0
        %651 = vst.msk [vmem:[#allocation2 + $0xa10] sm:$0xff] %vm327, 0.0
        %652 = vst.msk [vmem:[#allocation2 + $0xa18] sm:$0x3] %vm336, 0.0
        %653 = vst.msk [vmem:[#allocation2 + $0xa20] sm:$0xff] %vm327, 0.0
        %654 = vst.msk [vmem:[#allocation2 + $0xa28] sm:$0xff] %vm327, 0.0
        %655 = vst.msk [vmem:[#allocation2 + $0xa30] sm:$0xff] %vm327, 0.0
        %656 = vst.msk [vmem:[#allocation2 + $0xa38] sm:$0xff] %vm327, 0.0
        %657 = vst.msk [vmem:[#allocation2 + $0xa40] sm:$0xff] %vm327, 0.0
        %658 = vst.msk [vmem:[#allocation2 + $0xa48] sm:$0xff] %vm327, 0.0
        %659 = vst.msk [vmem:[#allocation2 + $0xa50] sm:$0xff] %vm327, 0.0
        %660 = vst.msk [vmem:[#allocation2 + $0xa58] sm:$0xff] %vm327, 0.0
        %661 = vst.msk [vmem:[#allocation2 + $0xa60] sm:$0x3] %vm336, 0.0
        %662 = vst.msk [vmem:[#allocation2 + $0xa68] sm:$0xff] %vm327, 0.0
        %663 = vst.msk [vmem:[#allocation2 + $0xa70] sm:$0xff] %vm327, 0.0
        %664 = vst.msk [vmem:[#allocation2 + $0xa78] sm:$0xff] %vm327, 0.0
        %665 = vst.msk [vmem:[#allocation2 + $0xa80] sm:$0xff] %vm327, 0.0
        %666 = vst.msk [vmem:[#allocation2 + $0xa88] sm:$0xff] %vm327, 0.0
        %667 = vst.msk [vmem:[#allocation2 + $0xa90] sm:$0xff] %vm327, 0.0
        %668 = vst.msk [vmem:[#allocation2 + $0xa98] sm:$0xff] %vm327, 0.0
        %669 = vst.msk [vmem:[#allocation2 + $0xaa0] sm:$0xff] %vm327, 0.0
        %670 = vst.msk [vmem:[#allocation2 + $0xaa8] sm:$0x3] %vm336, 0.0
        %671 = vst.msk [vmem:[#allocation2 + $0xab0] sm:$0xff] %vm327, 0.0
        %672 = vst.msk [vmem:[#allocation2 + $0xab8] sm:$0xff] %vm327, 0.0
        %673 = vst.msk [vmem:[#allocation2 + $0xac0] sm:$0xff] %vm327, 0.0
        %674 = vst.msk [vmem:[#allocation2 + $0xac8] sm:$0xff] %vm327, 0.0
        %675 = vst.msk [vmem:[#allocation2 + $0xad0] sm:$0xff] %vm327, 0.0
        %676 = vst.msk [vmem:[#allocation2 + $0xad8] sm:$0xff] %vm327, 0.0
        %677 = vst.msk [vmem:[#allocation2 + $0xae0] sm:$0xff] %vm327, 0.0
        %678 = vst.msk [vmem:[#allocation2 + $0xae8] sm:$0xff] %vm327, 0.0
        %679 = vst.msk [vmem:[#allocation2 + $0xaf0] sm:$0x3] %vm336, 0.0
        %680 = vst.msk [vmem:[#allocation2 + $0xaf8] sm:$0xff] %vm327, 0.0
        %681 = vst.msk [vmem:[#allocation2 + $0xb00] sm:$0xff] %vm327, 0.0
        %682 = vst.msk [vmem:[#allocation2 + $0xb08] sm:$0xff] %vm327, 0.0
        %683 = vst.msk [vmem:[#allocation2 + $0xb10] sm:$0xff] %vm327, 0.0
        %684 = vst.msk [vmem:[#allocation2 + $0xb18] sm:$0xff] %vm327, 0.0
        %685 = vst.msk [vmem:[#allocation2 + $0xb20] sm:$0xff] %vm327, 0.0
        %686 = vst.msk [vmem:[#allocation2 + $0xb28] sm:$0xff] %vm327, 0.0
        %687 = vst.msk [vmem:[#allocation2 + $0xb30] sm:$0xff] %vm327, 0.0
        %688 = vst.msk [vmem:[#allocation2 + $0xb38] sm:$0x3] %vm336, 0.0
        %689 = vst.msk [vmem:[#allocation2 + $0xb40] sm:$0xff] %vm327, 0.0
        %690 = vst.msk [vmem:[#allocation2 + $0xb48] sm:$0xff] %vm327, 0.0
        %691 = vst.msk [vmem:[#allocation2 + $0xb50] sm:$0xff] %vm327, 0.0
        %692 = vst.msk [vmem:[#allocation2 + $0xb58] sm:$0xff] %vm327, 0.0
        %693 = vst.msk [vmem:[#allocation2 + $0xb60] sm:$0xff] %vm327, 0.0
        %694 = vst.msk [vmem:[#allocation2 + $0xb68] sm:$0xff] %vm327, 0.0
        %695 = vst.msk [vmem:[#allocation2 + $0xb70] sm:$0xff] %vm327, 0.0
        %696 = vst.msk [vmem:[#allocation2 + $0xb78] sm:$0xff] %vm327, 0.0
        %697 = vst.msk [vmem:[#allocation2 + $0xb80] sm:$0x3] %vm336, 0.0
        %698 = vst.msk [vmem:[#allocation2 + $0xb88] sm:$0xff] %vm327, 0.0
        %699 = vst.msk [vmem:[#allocation2 + $0xb90] sm:$0xff] %vm327, 0.0
        %700 = vst.msk [vmem:[#allocation2 + $0xb98] sm:$0xff] %vm327, 0.0
        %701 = vst.msk [vmem:[#allocation2 + $0xba0] sm:$0xff] %vm327, 0.0
        %702 = vst.msk [vmem:[#allocation2 + $0xba8] sm:$0xff] %vm327, 0.0
        %703 = vst.msk [vmem:[#allocation2 + $0xbb0] sm:$0xff] %vm327, 0.0
        %704 = vst.msk [vmem:[#allocation2 + $0xbb8] sm:$0xff] %vm327, 0.0
        %705 = vst.msk [vmem:[#allocation2 + $0xbc0] sm:$0xff] %vm327, 0.0
        %706 = vst.msk [vmem:[#allocation2 + $0xbc8] sm:$0x3] %vm336, 0.0
        %707 = vst.msk [vmem:[#allocation2 + $0xbd0] sm:$0xff] %vm327, 0.0
        %708 = vst.msk [vmem:[#allocation2 + $0xbd8] sm:$0xff] %vm327, 0.0
        %709 = vst.msk [vmem:[#allocation2 + $0xbe0] sm:$0xff] %vm327, 0.0
        %710 = vst.msk [vmem:[#allocation2 + $0xbe8] sm:$0xff] %vm327, 0.0
        %711 = vst.msk [vmem:[#allocation2 + $0xbf0] sm:$0xff] %vm327, 0.0
        %712 = vst.msk [vmem:[#allocation2 + $0xbf8] sm:$0xff] %vm327, 0.0
        %713 = vst.msk [vmem:[#allocation2 + $0xc00] sm:$0xff] %vm327, 0.0
        %714 = vst.msk [vmem:[#allocation2 + $0xc08] sm:$0xff] %vm327, 0.0
        %715 = vst.msk [vmem:[#allocation2 + $0xc10] sm:$0x3] %vm336, 0.0
        %716 = vst.msk [vmem:[#allocation2 + $0xc18] sm:$0xff] %vm327, 0.0
        %717 = vst.msk [vmem:[#allocation2 + $0xc20] sm:$0xff] %vm327, 0.0
        %718 = vst.msk [vmem:[#allocation2 + $0xc28] sm:$0xff] %vm327, 0.0
        %719 = vst.msk [vmem:[#allocation2 + $0xc30] sm:$0xff] %vm327, 0.0
        %720 = vst.msk [vmem:[#allocation2 + $0xc38] sm:$0xff] %vm327, 0.0
        %721 = vst.msk [vmem:[#allocation2 + $0xc40] sm:$0xff] %vm327, 0.0
        %722 = vst.msk [vmem:[#allocation2 + $0xc48] sm:$0xff] %vm327, 0.0
        %723 = vst.msk [vmem:[#allocation2 + $0xc50] sm:$0xff] %vm327, 0.0
        %724 = vst.msk [vmem:[#allocation2 + $0xc58] sm:$0x3] %vm336, 0.0
        %725 = vst.msk [vmem:[#allocation2 + $0xc60] sm:$0xff] %vm327, 0.0
        %726 = vst.msk [vmem:[#allocation2 + $0xc68] sm:$0xff] %vm327, 0.0
        %727 = vst.msk [vmem:[#allocation2 + $0xc70] sm:$0xff] %vm327, 0.0
        %728 = vst.msk [vmem:[#allocation2 + $0xc78] sm:$0xff] %vm327, 0.0
        %729 = vst.msk [vmem:[#allocation2 + $0xc80] sm:$0xff] %vm327, 0.0
        %730 = vst.msk [vmem:[#allocation2 + $0xc88] sm:$0xff] %vm327, 0.0
        %731 = vst.msk [vmem:[#allocation2 + $0xc90] sm:$0xff] %vm327, 0.0
        %732 = vst.msk [vmem:[#allocation2 + $0xc98] sm:$0xff] %vm327, 0.0
        %733 = vst.msk [vmem:[#allocation2 + $0xca0] sm:$0x3] %vm336, 0.0
        %734 = vst.msk [vmem:[#allocation2 + $0xca8] sm:$0xff] %vm327, 0.0
        %735 = vst.msk [vmem:[#allocation2 + $0xcb0] sm:$0xff] %vm327, 0.0
        %736 = vst.msk [vmem:[#allocation2 + $0xcb8] sm:$0xff] %vm327, 0.0
        %737 = vst.msk [vmem:[#allocation2 + $0xcc0] sm:$0xff] %vm327, 0.0
        %738 = vst.msk [vmem:[#allocation2 + $0xcc8] sm:$0xff] %vm327, 0.0
        %739 = vst.msk [vmem:[#allocation2 + $0xcd0] sm:$0xff] %vm327, 0.0
        %740 = vst.msk [vmem:[#allocation2 + $0xcd8] sm:$0xff] %vm327, 0.0
        %741 = vst.msk [vmem:[#allocation2 + $0xce0] sm:$0xff] %vm327, 0.0
        %742 = vst.msk [vmem:[#allocation2 + $0xce8] sm:$0x3] %vm336, 0.0
        %743 = vst.msk [vmem:[#allocation2 + $0xcf0] sm:$0xff] %vm327, 0.0
        %744 = vst.msk [vmem:[#allocation2 + $0xcf8] sm:$0xff] %vm327, 0.0
        %745 = vst.msk [vmem:[#allocation2 + $0xd00] sm:$0xff] %vm327, 0.0
        %746 = vst.msk [vmem:[#allocation2 + $0xd08] sm:$0xff] %vm327, 0.0
        %747 = vst.msk [vmem:[#allocation2 + $0xd10] sm:$0xff] %vm327, 0.0
        %748 = vst.msk [vmem:[#allocation2 + $0xd18] sm:$0xff] %vm327, 0.0
        %749 = vst.msk [vmem:[#allocation2 + $0xd20] sm:$0xff] %vm327, 0.0
        %750 = vst.msk [vmem:[#allocation2 + $0xd28] sm:$0xff] %vm327, 0.0
        %751 = vst.msk [vmem:[#allocation2 + $0xd30] sm:$0x3] %vm336, 0.0
        %752 = vst.msk [vmem:[#allocation2 + $0xd38] sm:$0xff] %vm327, 0.0
        %753 = vst.msk [vmem:[#allocation2 + $0xd40] sm:$0xff] %vm327, 0.0
        %754 = vst.msk [vmem:[#allocation2 + $0xd48] sm:$0xff] %vm327, 0.0
        %755 = vst.msk [vmem:[#allocation2 + $0xd50] sm:$0xff] %vm327, 0.0
        %756 = vst.msk [vmem:[#allocation2 + $0xd58] sm:$0xff] %vm327, 0.0
        %757 = vst.msk [vmem:[#allocation2 + $0xd60] sm:$0xff] %vm327, 0.0
        %758 = vst.msk [vmem:[#allocation2 + $0xd68] sm:$0xff] %vm327, 0.0
        %759 = vst.msk [vmem:[#allocation2 + $0xd70] sm:$0xff] %vm327, 0.0
        %760 = vst.msk [vmem:[#allocation2 + $0xd78] sm:$0x3] %vm336, 0.0
        %761 = vst.msk [vmem:[#allocation2 + $0xd80] sm:$0xff] %vm327, 0.0
        %762 = vst.msk [vmem:[#allocation2 + $0xd88] sm:$0xff] %vm327, 0.0
        %763 = vst.msk [vmem:[#allocation2 + $0xd90] sm:$0xff] %vm327, 0.0
        %764 = vst.msk [vmem:[#allocation2 + $0xd98] sm:$0xff] %vm327, 0.0
        %765 = vst.msk [vmem:[#allocation2 + $0xda0] sm:$0xff] %vm327, 0.0
        %766 = vst.msk [vmem:[#allocation2 + $0xda8] sm:$0xff] %vm327, 0.0
        %767 = vst.msk [vmem:[#allocation2 + $0xdb0] sm:$0xff] %vm327, 0.0
        %768 = vst.msk [vmem:[#allocation2 + $0xdb8] sm:$0xff] %vm327, 0.0
        %769 = vst.msk [vmem:[#allocation2 + $0xdc0] sm:$0x3] %vm336, 0.0
        %770 = vst.msk [vmem:[#allocation2 + $0xdc8] sm:$0xff] %vm327, 0.0
        %771 = vst.msk [vmem:[#allocation2 + $0xdd0] sm:$0xff] %vm327, 0.0
        %772 = vst.msk [vmem:[#allocation2 + $0xdd8] sm:$0xff] %vm327, 0.0
        %773 = vst.msk [vmem:[#allocation2 + $0xde0] sm:$0xff] %vm327, 0.0
        %774 = vst.msk [vmem:[#allocation2 + $0xde8] sm:$0xff] %vm327, 0.0
        %775 = vst.msk [vmem:[#allocation2 + $0xdf0] sm:$0xff] %vm327, 0.0
        %776 = vst.msk [vmem:[#allocation2 + $0xdf8] sm:$0xff] %vm327, 0.0
        %777 = vst.msk [vmem:[#allocation2 + $0xe00] sm:$0xff] %vm327, 0.0
        %778 = vst.msk [vmem:[#allocation2 + $0xe08] sm:$0x3] %vm336, 0.0
        %779 = vst.msk [vmem:[#allocation2 + $0xe10] sm:$0xff] %vm327, 0.0
        %780 = vst.msk [vmem:[#allocation2 + $0xe18] sm:$0xff] %vm327, 0.0
        %781 = vst.msk [vmem:[#allocation2 + $0xe20] sm:$0xff] %vm327, 0.0
        %782 = vst.msk [vmem:[#allocation2 + $0xe28] sm:$0xff] %vm327, 0.0
        %783 = vst.msk [vmem:[#allocation2 + $0xe30] sm:$0xff] %vm327, 0.0
        %784 = vst.msk [vmem:[#allocation2 + $0xe38] sm:$0xff] %vm327, 0.0
        %785 = vst.msk [vmem:[#allocation2 + $0xe40] sm:$0xff] %vm327, 0.0
        %786 = vst.msk [vmem:[#allocation2 + $0xe48] sm:$0xff] %vm327, 0.0
        %787 = vst.msk [vmem:[#allocation2 + $0xe50] sm:$0x3] %vm336, 0.0
        %788 = vst.msk [vmem:[#allocation2 + $0xe58] sm:$0xff] %vm327, 0.0
        %789 = vst.msk [vmem:[#allocation2 + $0xe60] sm:$0xff] %vm327, 0.0
        %790 = vst.msk [vmem:[#allocation2 + $0xe68] sm:$0xff] %vm327, 0.0
        %791 = vst.msk [vmem:[#allocation2 + $0xe70] sm:$0xff] %vm327, 0.0
        %792 = vst.msk [vmem:[#allocation2 + $0xe78] sm:$0xff] %vm327, 0.0
        %793 = vst.msk [vmem:[#allocation2 + $0xe80] sm:$0xff] %vm327, 0.0
        %794 = vst.msk [vmem:[#allocation2 + $0xe88] sm:$0xff] %vm327, 0.0
        %795 = vst.msk [vmem:[#allocation2 + $0xe90] sm:$0xff] %vm327, 0.0
        %796 = vst.msk [vmem:[#allocation2 + $0xe98] sm:$0x3] %vm336, 0.0
        %797 = vst.msk [vmem:[#allocation2 + $0xea0] sm:$0xff] %vm327, 0.0
        %798 = vst.msk [vmem:[#allocation2 + $0xea8] sm:$0xff] %vm327, 0.0
        %799 = vst.msk [vmem:[#allocation2 + $0xeb0] sm:$0xff] %vm327, 0.0
        %800 = vst.msk [vmem:[#allocation2 + $0xeb8] sm:$0xff] %vm327, 0.0
        %801 = vst.msk [vmem:[#allocation2 + $0xec0] sm:$0xff] %vm327, 0.0
        %802 = vst.msk [vmem:[#allocation2 + $0xec8] sm:$0xff] %vm327, 0.0
        %803 = vst.msk [vmem:[#allocation2 + $0xed0] sm:$0xff] %vm327, 0.0
        %804 = vst.msk [vmem:[#allocation2 + $0xed8] sm:$0xff] %vm327, 0.0
        %805 = vst.msk [vmem:[#allocation2 + $0xee0] sm:$0x3] %vm336, 0.0
        %806 = vst.msk [vmem:[#allocation2 + $0xee8] sm:$0xff] %vm327, 0.0
        %807 = vst.msk [vmem:[#allocation2 + $0xef0] sm:$0xff] %vm327, 0.0
        %808 = vst.msk [vmem:[#allocation2 + $0xef8] sm:$0xff] %vm327, 0.0
        %809 = vst.msk [vmem:[#allocation2 + $0xf00] sm:$0xff] %vm327, 0.0
        %810 = vst.msk [vmem:[#allocation2 + $0xf08] sm:$0xff] %vm327, 0.0
        %811 = vst.msk [vmem:[#allocation2 + $0xf10] sm:$0xff] %vm327, 0.0
        %812 = vst.msk [vmem:[#allocation2 + $0xf18] sm:$0xff] %vm327, 0.0
        %813 = vst.msk [vmem:[#allocation2 + $0xf20] sm:$0xff] %vm327, 0.0
        %814 = vst.msk [vmem:[#allocation2 + $0xf28] sm:$0x3] %vm336, 0.0
        %815 = vst.msk [vmem:[#allocation2 + $0xf30] sm:$0xff] %vm327, 0.0
        %816 = vst.msk [vmem:[#allocation2 + $0xf38] sm:$0xff] %vm327, 0.0
        %817 = vst.msk [vmem:[#allocation2 + $0xf40] sm:$0xff] %vm327, 0.0
        %818 = vst.msk [vmem:[#allocation2 + $0xf48] sm:$0xff] %vm327, 0.0
        %819 = vst.msk [vmem:[#allocation2 + $0xf50] sm:$0xff] %vm327, 0.0
        %820 = vst.msk [vmem:[#allocation2 + $0xf58] sm:$0xff] %vm327, 0.0
        %821 = vst.msk [vmem:[#allocation2 + $0xf60] sm:$0xff] %vm327, 0.0
        %822 = vst.msk [vmem:[#allocation2 + $0xf68] sm:$0xff] %vm327, 0.0
        %823 = vst.msk [vmem:[#allocation2 + $0xf70] sm:$0x3] %vm336, 0.0
        %824 = vst.msk [vmem:[#allocation2 + $0xf78] sm:$0xff] %vm327, 0.0
        %825 = vst.msk [vmem:[#allocation2 + $0xf80] sm:$0xff] %vm327, 0.0
        %826 = vst.msk [vmem:[#allocation2 + $0xf88] sm:$0xff] %vm327, 0.0
        %827 = vst.msk [vmem:[#allocation2 + $0xf90] sm:$0xff] %vm327, 0.0
        %828 = vst.msk [vmem:[#allocation2 + $0xf98] sm:$0xff] %vm327, 0.0
        %829 = vst.msk [vmem:[#allocation2 + $0xfa0] sm:$0xff] %vm327, 0.0
        %830 = vst.msk [vmem:[#allocation2 + $0xfa8] sm:$0xff] %vm327, 0.0
        %831 = vst.msk [vmem:[#allocation2 + $0xfb0] sm:$0xff] %vm327, 0.0
        %832 = vst.msk [vmem:[#allocation2 + $0xfb8] sm:$0x3] %vm336, 0.0
        %833 = vst.msk [vmem:[#allocation2 + $0xfc0] sm:$0xff] %vm327, 0.0
        %834 = vst.msk [vmem:[#allocation2 + $0xfc8] sm:$0xff] %vm327, 0.0
        %835 = vst.msk [vmem:[#allocation2 + $0xfd0] sm:$0xff] %vm327, 0.0
        %836 = vst.msk [vmem:[#allocation2 + $0xfd8] sm:$0xff] %vm327, 0.0
        %837 = vst.msk [vmem:[#allocation2 + $0xfe0] sm:$0xff] %vm327, 0.0
        %838 = vst.msk [vmem:[#allocation2 + $0xfe8] sm:$0xff] %vm327, 0.0
        %839 = vst.msk [vmem:[#allocation2 + $0xff0] sm:$0xff] %vm327, 0.0
        %840 = vst.msk [vmem:[#allocation2 + $0xff8] sm:$0xff] %vm327, 0.0
        %841 = vst.msk [vmem:[#allocation2 + $0x1000] sm:$0x3] %vm336, 0.0
        %842 = vst.msk [vmem:[#allocation2 + $0x1008] sm:$0xff] %vm327, 0.0
        %843 = vst.msk [vmem:[#allocation2 + $0x1010] sm:$0xff] %vm327, 0.0
        %844 = vst.msk [vmem:[#allocation2 + $0x1018] sm:$0xff] %vm327, 0.0
        %845 = vst.msk [vmem:[#allocation2 + $0x1020] sm:$0xff] %vm327, 0.0
        %846 = vst.msk [vmem:[#allocation2 + $0x1028] sm:$0xff] %vm327, 0.0
        %847 = vst.msk [vmem:[#allocation2 + $0x1030] sm:$0xff] %vm327, 0.0
        %848 = vst.msk [vmem:[#allocation2 + $0x1038] sm:$0xff] %vm327, 0.0
        %849 = vst.msk [vmem:[#allocation2 + $0x1040] sm:$0xff] %vm327, 0.0
        %850 = vst.msk [vmem:[#allocation2 + $0x1048] sm:$0x3] %vm336, 0.0
        %851 = vst.msk [vmem:[#allocation2 + $0x1050] sm:$0xff] %vm327, 0.0
        %852 = vst.msk [vmem:[#allocation2 + $0x1058] sm:$0xff] %vm327, 0.0
        %853 = vst.msk [vmem:[#allocation2 + $0x1060] sm:$0xff] %vm327, 0.0
        %854 = vst.msk [vmem:[#allocation2 + $0x1068] sm:$0xff] %vm327, 0.0
        %855 = vst.msk [vmem:[#allocation2 + $0x1070] sm:$0xff] %vm327, 0.0
        %856 = vst.msk [vmem:[#allocation2 + $0x1078] sm:$0xff] %vm327, 0.0
        %857 = vst.msk [vmem:[#allocation2 + $0x1080] sm:$0xff] %vm327, 0.0
        %858 = vst.msk [vmem:[#allocation2 + $0x1088] sm:$0xff] %vm327, 0.0
        %859 = vst.msk [vmem:[#allocation2 + $0x1090] sm:$0x3] %vm336, 0.0
        %860 = vst.msk [vmem:[#allocation2 + $0x1098] sm:$0xff] %vm327, 0.0
        %861 = vst.msk [vmem:[#allocation2 + $0x10a0] sm:$0xff] %vm327, 0.0
        %862 = vst.msk [vmem:[#allocation2 + $0x10a8] sm:$0xff] %vm327, 0.0
        %863 = vst.msk [vmem:[#allocation2 + $0x10b0] sm:$0xff] %vm327, 0.0
        %864 = vst.msk [vmem:[#allocation2 + $0x10b8] sm:$0xff] %vm327, 0.0
        %865 = vst.msk [vmem:[#allocation2 + $0x10c0] sm:$0xff] %vm327, 0.0
        %866 = vst.msk [vmem:[#allocation2 + $0x10c8] sm:$0xff] %vm327, 0.0
        %867 = vst.msk [vmem:[#allocation2 + $0x10d0] sm:$0xff] %vm327, 0.0
        %868 = vst.msk [vmem:[#allocation2 + $0x10d8] sm:$0x3] %vm336, 0.0
        %869 = vst.msk [vmem:[#allocation2 + $0x10e0] sm:$0xff] %vm327, 0.0
        %870 = vst.msk [vmem:[#allocation2 + $0x10e8] sm:$0xff] %vm327, 0.0
        %871 = vst.msk [vmem:[#allocation2 + $0x10f0] sm:$0xff] %vm327, 0.0
        %872 = vst.msk [vmem:[#allocation2 + $0x10f8] sm:$0xff] %vm327, 0.0
        %873 = vst.msk [vmem:[#allocation2 + $0x1100] sm:$0xff] %vm327, 0.0
        %874 = vst.msk [vmem:[#allocation2 + $0x1108] sm:$0xff] %vm327, 0.0
        %875 = vst.msk [vmem:[#allocation2 + $0x1110] sm:$0xff] %vm327, 0.0
        %876 = vst.msk [vmem:[#allocation2 + $0x1118] sm:$0xff] %vm327, 0.0
        %877 = vst.msk [vmem:[#allocation2 + $0x1120] sm:$0x3] %vm336, 0.0
        %878 = vst.msk [vmem:[#allocation2 + $0x1128] sm:$0xff] %vm327, 0.0
        %879 = vst.msk [vmem:[#allocation2 + $0x1130] sm:$0xff] %vm327, 0.0
        %880 = vst.msk [vmem:[#allocation2 + $0x1138] sm:$0xff] %vm327, 0.0
        %881 = vst.msk [vmem:[#allocation2 + $0x1140] sm:$0xff] %vm327, 0.0
        %882 = vst.msk [vmem:[#allocation2 + $0x1148] sm:$0xff] %vm327, 0.0
        %883 = vst.msk [vmem:[#allocation2 + $0x1150] sm:$0xff] %vm327, 0.0
        %884 = vst.msk [vmem:[#allocation2 + $0x1158] sm:$0xff] %vm327, 0.0
        %885 = vst.msk [vmem:[#allocation2 + $0x1160] sm:$0xff] %vm327, 0.0
        %886 = vst.msk [vmem:[#allocation2 + $0x1168] sm:$0x3] %vm336, 0.0
        %887 = vst.msk [vmem:[#allocation2 + $0x1170] sm:$0xff] %vm327, 0.0
        %888 = vst.msk [vmem:[#allocation2 + $0x1178] sm:$0xff] %vm327, 0.0
        %889 = vst.msk [vmem:[#allocation2 + $0x1180] sm:$0xff] %vm327, 0.0
        %890 = vst.msk [vmem:[#allocation2 + $0x1188] sm:$0xff] %vm327, 0.0
        %891 = vst.msk [vmem:[#allocation2 + $0x1190] sm:$0xff] %vm327, 0.0
        %892 = vst.msk [vmem:[#allocation2 + $0x1198] sm:$0xff] %vm327, 0.0
        %893 = vst.msk [vmem:[#allocation2 + $0x11a0] sm:$0xff] %vm327, 0.0
        %894 = vst.msk [vmem:[#allocation2 + $0x11a8] sm:$0xff] %vm327, 0.0
        %895 = vst.msk [vmem:[#allocation2 + $0x11b0] sm:$0x3] %vm336, 0.0
        %896 = vst.msk [vmem:[#allocation2 + $0x11b8] sm:$0xff] %vm327, 0.0
        %897 = vst.msk [vmem:[#allocation2 + $0x11c0] sm:$0xff] %vm327, 0.0
        %898 = vst.msk [vmem:[#allocation2 + $0x11c8] sm:$0xff] %vm327, 0.0
        %899 = vst.msk [vmem:[#allocation2 + $0x11d0] sm:$0xff] %vm327, 0.0
        %900 = vst.msk [vmem:[#allocation2 + $0x11d8] sm:$0xff] %vm327, 0.0
        %901 = vst.msk [vmem:[#allocation2 + $0x11e0] sm:$0xff] %vm327, 0.0
        %902 = vst.msk [vmem:[#allocation2 + $0x11e8] sm:$0xff] %vm327, 0.0
        %903 = vst.msk [vmem:[#allocation2 + $0x11f0] sm:$0xff] %vm327, 0.0
        %904 = vst.msk [vmem:[#allocation2 + $0x11f8] sm:$0x3] %vm336, 0.0
        %905 = vst.msk [vmem:[#allocation2 + $0x1200] sm:$0xff] %vm327, 0.0
        %906 = vst.msk [vmem:[#allocation2 + $0x1208] sm:$0xff] %vm327, 0.0
        %907 = vst.msk [vmem:[#allocation2 + $0x1210] sm:$0xff] %vm327, 0.0
        %908 = vst.msk [vmem:[#allocation2 + $0x1218] sm:$0xff] %vm327, 0.0
        %909 = vst.msk [vmem:[#allocation2 + $0x1220] sm:$0xff] %vm327, 0.0
        %910 = vst.msk [vmem:[#allocation2 + $0x1228] sm:$0xff] %vm327, 0.0
        %911 = vst.msk [vmem:[#allocation2 + $0x1230] sm:$0xff] %vm327, 0.0
        %912 = vst.msk [vmem:[#allocation2 + $0x1238] sm:$0xff] %vm327, 0.0
        %913 = vst.msk [vmem:[#allocation2 + $0x1240] sm:$0x3] %vm336, 0.0
        %914 = vst.msk [vmem:[#allocation2 + $0x1248] sm:$0xff] %vm327, 0.0
        %915 = vst.msk [vmem:[#allocation2 + $0x1250] sm:$0xff] %vm327, 0.0
        %916 = vst.msk [vmem:[#allocation2 + $0x1258] sm:$0xff] %vm327, 0.0
        %917 = vst.msk [vmem:[#allocation2 + $0x1260] sm:$0xff] %vm327, 0.0
        %918 = vst.msk [vmem:[#allocation2 + $0x1268] sm:$0xff] %vm327, 0.0
        %919 = vst.msk [vmem:[#allocation2 + $0x1270] sm:$0xff] %vm327, 0.0
        %920 = vst.msk [vmem:[#allocation2 + $0x1278] sm:$0xff] %vm327, 0.0
        %921 = vst.msk [vmem:[#allocation2 + $0x1280] sm:$0xff] %vm327, 0.0
        %922 = vst.msk [vmem:[#allocation2 + $0x1288] sm:$0x3] %vm336, 0.0
        %vm923 = vcmask 64512
        %924 = vst.msk [vmem:[#allocation3] sm:$0xff] %vm923, 0.0
        %925 = vst.msk [vmem:[#allocation3 + $0x8] sm:$0xff] %vm923, 0.0
        %926 = vst.msk [vmem:[#allocation3 + $0x10] sm:$0xff] %vm923, 0.0
        %927 = vst.msk [vmem:[#allocation3 + $0x18] sm:$0xff] %vm923, 0.0
        %928 = vst.msk [vmem:[#allocation3 + $0x20] sm:$0xff] %vm923, 0.0
        %929 = vst.msk [vmem:[#allocation3 + $0x28] sm:$0xff] %vm923, 0.0
        %930 = vst.msk [vmem:[#allocation3 + $0x30] sm:$0xff] %vm923, 0.0
        %931 = vst.msk [vmem:[#allocation3 + $0x38] sm:$0xff] %vm923, 0.0
        %932 = vst.msk [vmem:[#allocation3 + $0x40] sm:$0xff] %vm923, 0.0
        %933 = vst.msk [vmem:[#allocation3 + $0x48] sm:$0xff] %vm923, 0.0
        %934 = vst.msk [vmem:[#allocation3 + $0x50] sm:$0xff] %vm923, 0.0
        %935 = vst.msk [vmem:[#allocation3 + $0x58] sm:$0xff] %vm923, 0.0
        %936 = vst.msk [vmem:[#allocation3 + $0x60] sm:$0xff] %vm923, 0.0
        %937 = vst.msk [vmem:[#allocation3 + $0x68] sm:$0xff] %vm923, 0.0
        %938 = vst.msk [vmem:[#allocation3 + $0x70] sm:$0xff] %vm923, 0.0
        %939 = vst.msk [vmem:[#allocation3 + $0x78] sm:$0xff] %vm923, 0.0
        %940 = vst.msk [vmem:[#allocation3 + $0x80] sm:$0xff] %vm923, 0.0
        %941 = vst.msk [vmem:[#allocation3 + $0x88] sm:$0xff] %vm923, 0.0
        %942 = vst.msk [vmem:[#allocation3 + $0x90] sm:$0xff] %vm923, 0.0
        %943 = vst.msk [vmem:[#allocation3 + $0x98] sm:$0xff] %vm923, 0.0
        %944 = vst.msk [vmem:[#allocation3 + $0xa0] sm:$0xff] %vm923, 0.0
        %945 = vst.msk [vmem:[#allocation3 + $0xa8] sm:$0xff] %vm923, 0.0
        %946 = vst.msk [vmem:[#allocation3 + $0xb0] sm:$0xff] %vm923, 0.0
        %947 = vst.msk [vmem:[#allocation3 + $0xb8] sm:$0xff] %vm923, 0.0
        %948 = vst.msk [vmem:[#allocation3 + $0xc0] sm:$0xff] %vm923, 0.0
        %949 = vst.msk [vmem:[#allocation3 + $0xc8] sm:$0xff] %vm923, 0.0
        %950 = vst.msk [vmem:[#allocation3 + $0xd0] sm:$0xff] %vm923, 0.0
        %951 = vst.msk [vmem:[#allocation3 + $0xd8] sm:$0xff] %vm923, 0.0
        %952 = vst.msk [vmem:[#allocation3 + $0xe0] sm:$0xff] %vm923, 0.0
        %953 = vst.msk [vmem:[#allocation3 + $0xe8] sm:$0xff] %vm923, 0.0
        %954 = vst.msk [vmem:[#allocation3 + $0xf0] sm:$0xff] %vm923, 0.0
        %955 = vst.msk [vmem:[#allocation3 + $0xf8] sm:$0xff] %vm923, 0.0
        %956 = vst.msk [vmem:[#allocation4] sm:$0xff] %vm923, 0.0
        %957 = vst.msk [vmem:[#allocation4 + $0x8] sm:$0xff] %vm923, 0.0
        %958 = vst.msk [vmem:[#allocation4 + $0x10] sm:$0xff] %vm923, 0.0
        %959 = vst.msk [vmem:[#allocation4 + $0x18] sm:$0xff] %vm923, 0.0
        %960 = vst.msk [vmem:[#allocation4 + $0x20] sm:$0xff] %vm923, 0.0
        %961 = vst.msk [vmem:[#allocation4 + $0x28] sm:$0xff] %vm923, 0.0
        %962 = vst.msk [vmem:[#allocation4 + $0x30] sm:$0xff] %vm923, 0.0
        %963 = vst.msk [vmem:[#allocation4 + $0x38] sm:$0xff] %vm923, 0.0
        %964 = vst.msk [vmem:[#allocation4 + $0x40] sm:$0xff] %vm923, 0.0
        %965 = vst.msk [vmem:[#allocation4 + $0x48] sm:$0xff] %vm923, 0.0
        %966 = vst.msk [vmem:[#allocation4 + $0x50] sm:$0xff] %vm923, 0.0
        %967 = vst.msk [vmem:[#allocation4 + $0x58] sm:$0xff] %vm923, 0.0
        %968 = vst.msk [vmem:[#allocation4 + $0x60] sm:$0xff] %vm923, 0.0
        %969 = vst.msk [vmem:[#allocation4 + $0x68] sm:$0xff] %vm923, 0.0
        %970 = vst.msk [vmem:[#allocation4 + $0x70] sm:$0xff] %vm923, 0.0
        %971 = vst.msk [vmem:[#allocation4 + $0x78] sm:$0xff] %vm923, 0.0
        %972 = vst.msk [vmem:[#allocation4 + $0x80] sm:$0xff] %vm923, 0.0
        %973 = vst.msk [vmem:[#allocation4 + $0x88] sm:$0xff] %vm923, 0.0
        %974 = vst.msk [vmem:[#allocation4 + $0x90] sm:$0xff] %vm923, 0.0
        %975 = vst.msk [vmem:[#allocation4 + $0x98] sm:$0xff] %vm923, 0.0
        %976 = vst.msk [vmem:[#allocation4 + $0xa0] sm:$0xff] %vm923, 0.0
        %977 = vst.msk [vmem:[#allocation4 + $0xa8] sm:$0xff] %vm923, 0.0
        %978 = vst.msk [vmem:[#allocation4 + $0xb0] sm:$0xff] %vm923, 0.0
        %979 = vst.msk [vmem:[#allocation4 + $0xb8] sm:$0xff] %vm923, 0.0
        %980 = vst.msk [vmem:[#allocation4 + $0xc0] sm:$0xff] %vm923, 0.0
        %981 = vst.msk [vmem:[#allocation4 + $0xc8] sm:$0xff] %vm923, 0.0
        %982 = vst.msk [vmem:[#allocation4 + $0xd0] sm:$0xff] %vm923, 0.0
        %983 = vst.msk [vmem:[#allocation4 + $0xd8] sm:$0xff] %vm923, 0.0
        %984 = vst.msk [vmem:[#allocation4 + $0xe0] sm:$0xff] %vm923, 0.0
        %985 = vst.msk [vmem:[#allocation4 + $0xe8] sm:$0xff] %vm923, 0.0
        %986 = vst.msk [vmem:[#allocation4 + $0xf0] sm:$0xff] %vm923, 0.0
        %987 = vst.msk [vmem:[#allocation4 + $0xf8] sm:$0xff] %vm923, 0.0
        %988 = vst.msk [vmem:[#allocation5] sm:$0xff] %vm923, 0.0
        %989 = vst.msk [vmem:[#allocation5 + $0x8] sm:$0xff] %vm923, 0.0
        %990 = vst.msk [vmem:[#allocation5 + $0x10] sm:$0xff] %vm923, 0.0
        %991 = vst.msk [vmem:[#allocation5 + $0x18] sm:$0xff] %vm923, 0.0
        %992 = vst.msk [vmem:[#allocation5 + $0x20] sm:$0xff] %vm923, 0.0
        %993 = vst.msk [vmem:[#allocation5 + $0x28] sm:$0xff] %vm923, 0.0
        %994 = vst.msk [vmem:[#allocation5 + $0x30] sm:$0xff] %vm923, 0.0
        %995 = vst.msk [vmem:[#allocation5 + $0x38] sm:$0xff] %vm923, 0.0
        %996 = vst.msk [vmem:[#allocation5 + $0x40] sm:$0xff] %vm923, 0.0
        %997 = vst.msk [vmem:[#allocation5 + $0x48] sm:$0xff] %vm923, 0.0
        %998 = vst.msk [vmem:[#allocation5 + $0x50] sm:$0xff] %vm923, 0.0
        %999 = vst.msk [vmem:[#allocation5 + $0x58] sm:$0xff] %vm923, 0.0
        %1000 = vst.msk [vmem:[#allocation5 + $0x60] sm:$0xff] %vm923, 0.0
        %1001 = vst.msk [vmem:[#allocation5 + $0x68] sm:$0xff] %vm923, 0.0
        %1002 = vst.msk [vmem:[#allocation5 + $0x70] sm:$0xff] %vm923, 0.0
        %1003 = vst.msk [vmem:[#allocation5 + $0x78] sm:$0xff] %vm923, 0.0
        %1004 = vst.msk [vmem:[#allocation5 + $0x80] sm:$0xff] %vm923, 0.0
        %1005 = vst.msk [vmem:[#allocation5 + $0x88] sm:$0xff] %vm923, 0.0
        %1006 = vst.msk [vmem:[#allocation5 + $0x90] sm:$0xff] %vm923, 0.0
        %1007 = vst.msk [vmem:[#allocation5 + $0x98] sm:$0xff] %vm923, 0.0
        %1008 = vst.msk [vmem:[#allocation5 + $0xa0] sm:$0xff] %vm923, 0.0
        %1009 = vst.msk [vmem:[#allocation5 + $0xa8] sm:$0xff] %vm923, 0.0
        %1010 = vst.msk [vmem:[#allocation5 + $0xb0] sm:$0xff] %vm923, 0.0
        %1011 = vst.msk [vmem:[#allocation5 + $0xb8] sm:$0xff] %vm923, 0.0
        %1012 = vst.msk [vmem:[#allocation5 + $0xc0] sm:$0xff] %vm923, 0.0
        %1013 = vst.msk [vmem:[#allocation5 + $0xc8] sm:$0xff] %vm923, 0.0
        %1014 = vst.msk [vmem:[#allocation5 + $0xd0] sm:$0xff] %vm923, 0.0
        %1015 = vst.msk [vmem:[#allocation5 + $0xd8] sm:$0xff] %vm923, 0.0
        %1016 = vst.msk [vmem:[#allocation5 + $0xe0] sm:$0xff] %vm923, 0.0
        %1017 = vst.msk [vmem:[#allocation5 + $0xe8] sm:$0xff] %vm923, 0.0
        %1018 = vst.msk [vmem:[#allocation5 + $0xf0] sm:$0xff] %vm923, 0.0
        %1019 = vst.msk [vmem:[#allocation5 + $0xf8] sm:$0xff] %vm923, 0.0
        %1020 = vst.msk [vmem:[#allocation6] sm:$0xff] %vm923, 0.0
        %1021 = vst.msk [vmem:[#allocation6 + $0x8] sm:$0xff] %vm923, 0.0
        %1022 = vst.msk [vmem:[#allocation6 + $0x10] sm:$0xff] %vm923, 0.0
        %1023 = vst.msk [vmem:[#allocation6 + $0x18] sm:$0xff] %vm923, 0.0
        %1024 = vst.msk [vmem:[#allocation6 + $0x20] sm:$0xff] %vm923, 0.0
        %1025 = vst.msk [vmem:[#allocation6 + $0x28] sm:$0xff] %vm923, 0.0
        %1026 = vst.msk [vmem:[#allocation6 + $0x30] sm:$0xff] %vm923, 0.0
        %1027 = vst.msk [vmem:[#allocation6 + $0x38] sm:$0xff] %vm923, 0.0
        %1028 = vst.msk [vmem:[#allocation6 + $0x40] sm:$0xff] %vm923, 0.0
        %1029 = vst.msk [vmem:[#allocation6 + $0x48] sm:$0xff] %vm923, 0.0
        %1030 = vst.msk [vmem:[#allocation6 + $0x50] sm:$0xff] %vm923, 0.0
        %1031 = vst.msk [vmem:[#allocation6 + $0x58] sm:$0xff] %vm923, 0.0
        %1032 = vst.msk [vmem:[#allocation6 + $0x60] sm:$0xff] %vm923, 0.0
        %1033 = vst.msk [vmem:[#allocation6 + $0x68] sm:$0xff] %vm923, 0.0
        %1034 = vst.msk [vmem:[#allocation6 + $0x70] sm:$0xff] %vm923, 0.0
        %1035 = vst.msk [vmem:[#allocation6 + $0x78] sm:$0xff] %vm923, 0.0
        %1036 = vst.msk [vmem:[#allocation6 + $0x80] sm:$0xff] %vm923, 0.0
        %1037 = vst.msk [vmem:[#allocation6 + $0x88] sm:$0xff] %vm923, 0.0
        %1038 = vst.msk [vmem:[#allocation6 + $0x90] sm:$0xff] %vm923, 0.0
        %1039 = vst.msk [vmem:[#allocation6 + $0x98] sm:$0xff] %vm923, 0.0
        %1040 = vst.msk [vmem:[#allocation6 + $0xa0] sm:$0xff] %vm923, 0.0
        %1041 = vst.msk [vmem:[#allocation6 + $0xa8] sm:$0xff] %vm923, 0.0
        %1042 = vst.msk [vmem:[#allocation6 + $0xb0] sm:$0xff] %vm923, 0.0
        %1043 = vst.msk [vmem:[#allocation6 + $0xb8] sm:$0xff] %vm923, 0.0
        %1044 = vst.msk [vmem:[#allocation6 + $0xc0] sm:$0xff] %vm923, 0.0
        %1045 = vst.msk [vmem:[#allocation6 + $0xc8] sm:$0xff] %vm923, 0.0
        %1046 = vst.msk [vmem:[#allocation6 + $0xd0] sm:$0xff] %vm923, 0.0
        %1047 = vst.msk [vmem:[#allocation6 + $0xd8] sm:$0xff] %vm923, 0.0
        %1048 = vst.msk [vmem:[#allocation6 + $0xe0] sm:$0xff] %vm923, 0.0
        %1049 = vst.msk [vmem:[#allocation6 + $0xe8] sm:$0xff] %vm923, 0.0
        %1050 = vst.msk [vmem:[#allocation6 + $0xf0] sm:$0xff] %vm923, 0.0
        %1051 = vst.msk [vmem:[#allocation6 + $0xf8] sm:$0xff] %vm923, 0.0
      $region48: #{aspp_forward.1} parent=43 // pred_fallthru
        _
      %v1052 = vld [vmem:[%s306] sm:$0xff]
      %v1053 = vld [vmem:[%s306 + $0x8] sm:$0xff]
      %v1054 = vld [vmem:[%s306 + $0x10] sm:$0xff]
      %v1055 = vld [vmem:[%s306 + $0x18] sm:$0xff]
      %v1056 = vld [vmem:[%s306 + $0x20] sm:$0xff]
      %v1057 = vld [vmem:[%s306 + $0x28] sm:$0xff]
      %v1058 = vld [vmem:[%s306 + $0x30] sm:$0xff]
      %v1059 = vld [vmem:[%s306 + $0x38] sm:$0xff]
      %v1060 = vld [vmem:[%s306 + $0x40] sm:$0xff]
      %v1061 = vld [vmem:[%s306 + $0x48] sm:$0xff]
      %v1062 = vld [vmem:[%s306 + $0x50] sm:$0xff]
      %v1063 = vld [vmem:[%s306 + $0x58] sm:$0xff]
      %v1064 = vld [vmem:[%s306 + $0x60] sm:$0xff]
      %v1065 = vld [vmem:[%s306 + $0x68] sm:$0xff]
      %v1066 = vld [vmem:[%s306 + $0x70] sm:$0xff]
      %v1067 = vld [vmem:[%s306 + $0x78] sm:$0xff]
      %v1068 = vld [vmem:[%s306 + $0x80] sm:$0xff]
      %v1069 = vld [vmem:[%s306 + $0x88] sm:$0xff]
      %v1070 = vld [vmem:[%s306 + $0x90] sm:$0xff]
      %v1071 = vld [vmem:[%s306 + $0x98] sm:$0xff]
      %v1072 = vld [vmem:[%s306 + $0xa0] sm:$0xff]
      %v1073 = vld [vmem:[%s306 + $0xa8] sm:$0xff]
      %v1074 = vld [vmem:[%s306 + $0xb0] sm:$0xff]
      %v1075 = vld [vmem:[%s306 + $0xb8] sm:$0xff]
      %v1076 = vld [vmem:[%s306 + $0xc0] sm:$0xff]
      %v1077 = vld [vmem:[%s306 + $0xc8] sm:$0xff]
      %v1078 = vld [vmem:[%s306 + $0xd0] sm:$0xff]
      %v1079 = vld [vmem:[%s306 + $0xd8] sm:$0xff]
      %v1080 = vld [vmem:[%s306 + $0xe0] sm:$0xff]
      %v1081 = vld [vmem:[%s306 + $0xe8] sm:$0xff]
      %v1082 = vld [vmem:[%s306 + $0xf0] sm:$0xff]
      %v1083 = vld [vmem:[%s306 + $0xf8] sm:$0xff]
      %s1084 = scalar_lea.vmem [#allocation2], 2304
      %vm1085 = vcmask 31744
      %1086 = vst.msk [vmem:[%s1084 + $0x20] sm:$0xff] %vm1085, %v1052
      %1087 = vst.msk [vmem:[%s1084 + $0x28] sm:$0xff] %vm1085, %v1053
      %1088 = vst.msk [vmem:[%s1084 + $0x68] sm:$0xff] %vm1085, %v1054
      %1089 = vst.msk [vmem:[%s1084 + $0x70] sm:$0xff] %vm1085, %v1055
      %1090 = vst.msk [vmem:[%s1084 + $0xb0] sm:$0xff] %vm1085, %v1056
      %1091 = vst.msk [vmem:[%s1084 + $0xb8] sm:$0xff] %vm1085, %v1057
      %1092 = vst.msk [vmem:[%s1084 + $0xf8] sm:$0xff] %vm1085, %v1058
      %1093 = vst.msk [vmem:[%s1084 + $0x100] sm:$0xff] %vm1085, %v1059
      %1094 = vst.msk [vmem:[%s1084 + $0x140] sm:$0xff] %vm1085, %v1060
      %1095 = vst.msk [vmem:[%s1084 + $0x148] sm:$0xff] %vm1085, %v1061
      %1096 = vst.msk [vmem:[%s1084 + $0x188] sm:$0xff] %vm1085, %v1062
      %1097 = vst.msk [vmem:[%s1084 + $0x190] sm:$0xff] %vm1085, %v1063
      %1098 = vst.msk [vmem:[%s1084 + $0x1d0] sm:$0xff] %vm1085, %v1064
      %1099 = vst.msk [vmem:[%s1084 + $0x1d8] sm:$0xff] %vm1085, %v1065
      %1100 = vst.msk [vmem:[%s1084 + $0x218] sm:$0xff] %vm1085, %v1066
      %1101 = vst.msk [vmem:[%s1084 + $0x220] sm:$0xff] %vm1085, %v1067
      %1102 = vst.msk [vmem:[%s1084 + $0x260] sm:$0xff] %vm1085, %v1068
      %1103 = vst.msk [vmem:[%s1084 + $0x268] sm:$0xff] %vm1085, %v1069
      %1104 = vst.msk [vmem:[%s1084 + $0x2a8] sm:$0xff] %vm1085, %v1070
      %1105 = vst.msk [vmem:[%s1084 + $0x2b0] sm:$0xff] %vm1085, %v1071
      %1106 = vst.msk [vmem:[%s1084 + $0x2f0] sm:$0xff] %vm1085, %v1072
      %1107 = vst.msk [vmem:[%s1084 + $0x2f8] sm:$0xff] %vm1085, %v1073
      %1108 = vst.msk [vmem:[%s1084 + $0x338] sm:$0xff] %vm1085, %v1074
      %1109 = vst.msk [vmem:[%s1084 + $0x340] sm:$0xff] %vm1085, %v1075
      %1110 = vst.msk [vmem:[%s1084 + $0x380] sm:$0xff] %vm1085, %v1076
      %1111 = vst.msk [vmem:[%s1084 + $0x388] sm:$0xff] %vm1085, %v1077
      %1112 = vst.msk [vmem:[%s1084 + $0x3c8] sm:$0xff] %vm1085, %v1078
      %1113 = vst.msk [vmem:[%s1084 + $0x3d0] sm:$0xff] %vm1085, %v1079
      %1114 = vst.msk [vmem:[%s1084 + $0x410] sm:$0xff] %vm1085, %v1080
      %1115 = vst.msk [vmem:[%s1084 + $0x418] sm:$0xff] %vm1085, %v1081
      %1116 = vst.msk [vmem:[%s1084 + $0x458] sm:$0xff] %vm1085, %v1082
      %1117 = vst.msk [vmem:[%s1084 + $0x460] sm:$0xff] %vm1085, %v1083
      %v1118 = vld [vmem:[%s1084 + $0x20] sm:$0xff]
      %v1119 = vld [vmem:[%s1084 + $0x28] sm:$0xff]
      %v1120 = vld [vmem:[%s1084 + $0x68] sm:$0xff]
      %v1121 = vld [vmem:[%s1084 + $0x70] sm:$0xff]
      %v1122 = vld [vmem:[%s1084 + $0xb0] sm:$0xff]
      %v1123 = vld [vmem:[%s1084 + $0xb8] sm:$0xff]
      %v1124 = vld [vmem:[%s1084 + $0xf8] sm:$0xff]
      %v1125 = vld [vmem:[%s1084 + $0x100] sm:$0xff]
      %v1126 = vld [vmem:[%s1084 + $0x140] sm:$0xff]
      %v1127 = vld [vmem:[%s1084 + $0x148] sm:$0xff]
      %v1128 = vld [vmem:[%s1084 + $0x188] sm:$0xff]
      %v1129 = vld [vmem:[%s1084 + $0x190] sm:$0xff]
      %v1130 = vld [vmem:[%s1084 + $0x1d0] sm:$0xff]
      %v1131 = vld [vmem:[%s1084 + $0x1d8] sm:$0xff]
      %v1132 = vld [vmem:[%s1084 + $0x218] sm:$0xff]
      %v1133 = vld [vmem:[%s1084 + $0x220] sm:$0xff]
      %v1134 = vld [vmem:[%s1084 + $0x260] sm:$0xff]
      %v1135 = vld [vmem:[%s1084 + $0x268] sm:$0xff]
      %v1136 = vld [vmem:[%s1084 + $0x2a8] sm:$0xff]
      %v1137 = vld [vmem:[%s1084 + $0x2b0] sm:$0xff]
      %v1138 = vld [vmem:[%s1084 + $0x2f0] sm:$0xff]
      %v1139 = vld [vmem:[%s1084 + $0x2f8] sm:$0xff]
      %v1140 = vld [vmem:[%s1084 + $0x338] sm:$0xff]
      %v1141 = vld [vmem:[%s1084 + $0x340] sm:$0xff]
      %v1142 = vld [vmem:[%s1084 + $0x380] sm:$0xff]
      %v1143 = vld [vmem:[%s1084 + $0x388] sm:$0xff]
      %v1144 = vld [vmem:[%s1084 + $0x3c8] sm:$0xff]
      %v1145 = vld [vmem:[%s1084 + $0x3d0] sm:$0xff]
      %v1146 = vld [vmem:[%s1084 + $0x410] sm:$0xff]
      %v1147 = vld [vmem:[%s1084 + $0x418] sm:$0xff]
      %v1148 = vld [vmem:[%s1084 + $0x458] sm:$0xff]
      %v1149 = vld [vmem:[%s1084 + $0x460] sm:$0xff]
      %v1150 = vld [vmem:[#allocation3] sm:$0xff]
      %v1151 = vld [vmem:[#allocation3 + $0x8] sm:$0xff]
      %v1152 = vld [vmem:[#allocation3 + $0x10] sm:$0xff]
      %v1153 = vld [vmem:[#allocation3 + $0x18] sm:$0xff]
      %v1154 = vld [vmem:[#allocation3 + $0x20] sm:$0xff]
      %v1155 = vld [vmem:[#allocation3 + $0x28] sm:$0xff]
      %v1156 = vld [vmem:[#allocation3 + $0x30] sm:$0xff]
      %v1157 = vld [vmem:[#allocation3 + $0x38] sm:$0xff]
      %v1158 = vld [vmem:[#allocation3 + $0x40] sm:$0xff]
      %v1159 = vld [vmem:[#allocation3 + $0x48] sm:$0xff]
      %v1160 = vld [vmem:[#allocation3 + $0x50] sm:$0xff]
      %v1161 = vld [vmem:[#allocation3 + $0x58] sm:$0xff]
      %v1162 = vld [vmem:[#allocation3 + $0x60] sm:$0xff]
      %v1163 = vld [vmem:[#allocation3 + $0x68] sm:$0xff]
      %v1164 = vld [vmem:[#allocation3 + $0x70] sm:$0xff]
      %v1165 = vld [vmem:[#allocation3 + $0x78] sm:$0xff]
      %v1166 = vld [vmem:[#allocation3 + $0x80] sm:$0xff]
      %v1167 = vld [vmem:[#allocation3 + $0x88] sm:$0xff]
      %v1168 = vld [vmem:[#allocation3 + $0x90] sm:$0xff]
      %v1169 = vld [vmem:[#allocation3 + $0x98] sm:$0xff]
      %v1170 = vld [vmem:[#allocation3 + $0xa0] sm:$0xff]
      %v1171 = vld [vmem:[#allocation3 + $0xa8] sm:$0xff]
      %v1172 = vld [vmem:[#allocation3 + $0xb0] sm:$0xff]
      %v1173 = vld [vmem:[#allocation3 + $0xb8] sm:$0xff]
      %v1174 = vld [vmem:[#allocation3 + $0xc0] sm:$0xff]
      %v1175 = vld [vmem:[#allocation3 + $0xc8] sm:$0xff]
      %v1176 = vld [vmem:[#allocation3 + $0xd0] sm:$0xff]
      %v1177 = vld [vmem:[#allocation3 + $0xd8] sm:$0xff]
      %v1178 = vld [vmem:[#allocation3 + $0xe0] sm:$0xff]
      %v1179 = vld [vmem:[#allocation3 + $0xe8] sm:$0xff]
      %v1180 = vld [vmem:[#allocation3 + $0xf0] sm:$0xff]
      %v1181 = vld [vmem:[#allocation3 + $0xf8] sm:$0xff]
      %v1182 = vld [vmem:[%s310] sm:$0xf]
      %v1184 = vsel %vm1085, %v1118, 0
      %v1187 = vsel %vm1085, %v1119, 0
      %v1190 = vsel %vm1085, %v1120, 0
      %v1193 = vsel %vm1085, %v1121, 0
      %v1196 = vsel %vm1085, %v1122, 0
      %v1199 = vsel %vm1085, %v1123, 0
      %v1202 = vsel %vm1085, %v1124, 0
      %v1205 = vsel %vm1085, %v1125, 0
      %v1208 = vsel %vm1085, %v1126, 0
      %v1211 = vsel %vm1085, %v1127, 0
      %v1214 = vsel %vm1085, %v1128, 0
      %v1217 = vsel %vm1085, %v1129, 0
      %v1220 = vsel %vm1085, %v1130, 0
      %v1223 = vsel %vm1085, %v1131, 0
      %v1226 = vsel %vm1085, %v1132, 0
      %v1229 = vsel %vm1085, %v1133, 0
      %v1232 = vsel %vm1085, %v1134, 0
      %v1235 = vsel %vm1085, %v1135, 0
      %v1238 = vsel %vm1085, %v1136, 0
      %v1241 = vsel %vm1085, %v1137, 0
      %v1244 = vsel %vm1085, %v1138, 0
      %v1247 = vsel %vm1085, %v1139, 0
      %v1250 = vsel %vm1085, %v1140, 0
      %v1253 = vsel %vm1085, %v1141, 0
      %v1256 = vsel %vm1085, %v1142, 0
      %v1259 = vsel %vm1085, %v1143, 0
      %v1262 = vsel %vm1085, %v1144, 0
      %v1265 = vsel %vm1085, %v1145, 0
      %v1268 = vsel %vm1085, %v1146, 0
      %v1271 = vsel %vm1085, %v1147, 0
      %v1274 = vsel %vm1085, %v1148, 0
      %v1277 = vsel %vm1085, %v1149, 0
      %vm1279 = vcmask 1043456
      %v1281 = vsel %vm1279, %v1182, 0
      %1283 = vmatpush.msra.mxu0 0.0
      %1284 = vmatpush.msra.mxu0 0.0
      %1285 = vmatpush.msra.mxu0 0.0
      %1286 = vmatpush.msra.mxu0 0.0
      %1287 = vmatpush.msra.mxu0 0.0
      %1288 = vmatpush.msra.mxu0 0.0
      %1289 = vmatpush.msra.mxu0 0.0
      %1290 = vmatpush.msra.mxu0 0.0
      %1291 = vmatpush.msra.mxu0 0.0
      %1292 = vmatpush.msra.mxu0 0.0
      %1293 = vmatpush.msra.mxu0 0.0
      %1294 = vmatpush.msra.mxu0 0.0
      %1295 = vmatpush.msra.mxu0 0.0
      %1296 = vmatpush.msra.mxu0 0.0
      %1297 = vmatpush.msra.mxu0 0.0
      %1298 = vmatpush.msra.mxu0 %v1281
      %1299 = vmatmul.f32.gmra.mxu0 %v1184
      %v1300 = vpop.f32.mrf.mxu0
      %v1301 = vadd.f32 0.0, %v1300
      %1302 = vmatmul.f32.gmra.mxu0 %v1187
      %v1303 = vpop.f32.mrf.mxu0
      %v1304 = vadd.f32 0.0, %v1303
      %1305 = vmatmul.f32.gmra.mxu0 %v1190
      %v1306 = vpop.f32.mrf.mxu0
      %v1307 = vadd.f32 0.0, %v1306
      %1308 = vmatmul.f32.gmra.mxu0 %v1193
      %v1309 = vpop.f32.mrf.mxu0
      %v1310 = vadd.f32 0.0, %v1309
      %1311 = vmatmul.f32.gmra.mxu0 %v1196
      %v1312 = vpop.f32.mrf.mxu0
      %v1313 = vadd.f32 0.0, %v1312
      %1314 = vmatmul.f32.gmra.mxu0 %v1199
      %v1315 = vpop.f32.mrf.mxu0
      %v1316 = vadd.f32 0.0, %v1315
      %1317 = vmatmul.f32.gmra.mxu0 %v1202
      %v1318 = vpop.f32.mrf.mxu0
      %v1319 = vadd.f32 0.0, %v1318
      %1320 = vmatmul.f32.gmra.mxu0 %v1205
      %v1321 = vpop.f32.mrf.mxu0
      %v1322 = vadd.f32 0.0, %v1321
      %1323 = vmatmul.f32.gmra.mxu0 %v1208
      %v1324 = vpop.f32.mrf.mxu0
      %v1325 = vadd.f32 0.0, %v1324
      %1326 = vmatmul.f32.gmra.mxu0 %v1211
      %v1327 = vpop.f32.mrf.mxu0
      %v1328 = vadd.f32 0.0, %v1327
      %1329 = vmatmul.f32.gmra.mxu0 %v1214
      %v1330 = vpop.f32.mrf.mxu0
      %v1331 = vadd.f32 0.0, %v1330
      %1332 = vmatmul.f32.gmra.mxu0 %v1217
      %v1333 = vpop.f32.mrf.mxu0
      %v1334 = vadd.f32 0.0, %v1333
      %1335 = vmatmul.f32.gmra.mxu0 %v1220
      %v1336 = vpop.f32.mrf.mxu0
      %v1337 = vadd.f32 0.0, %v1336
      %1338 = vmatmul.f32.gmra.mxu0 %v1223
      %v1339 = vpop.f32.mrf.mxu0
      %v1340 = vadd.f32 0.0, %v1339
      %1341 = vmatmul.f32.gmra.mxu0 %v1226
      %v1342 = vpop.f32.mrf.mxu0
      %v1343 = vadd.f32 0.0, %v1342
      %1344 = vmatmul.f32.gmra.mxu0 %v1229
      %v1345 = vpop.f32.mrf.mxu0
      %v1346 = vadd.f32 0.0, %v1345
      %1347 = vmatmul.f32.gmra.mxu0 %v1232
      %v1348 = vpop.f32.mrf.mxu0
      %v1349 = vadd.f32 0.0, %v1348
      %1350 = vmatmul.f32.gmra.mxu0 %v1235
      %v1351 = vpop.f32.mrf.mxu0
      %v1352 = vadd.f32 0.0, %v1351
      %1353 = vmatmul.f32.gmra.mxu0 %v1238
      %v1354 = vpop.f32.mrf.mxu0
      %v1355 = vadd.f32 0.0, %v1354
      %1356 = vmatmul.f32.gmra.mxu0 %v1241
      %v1357 = vpop.f32.mrf.mxu0
      %v1358 = vadd.f32 0.0, %v1357
      %1359 = vmatmul.f32.gmra.mxu0 %v1244
      %v1360 = vpop.f32.mrf.mxu0
      %v1361 = vadd.f32 0.0, %v1360
      %1362 = vmatmul.f32.gmra.mxu0 %v1247
      %v1363 = vpop.f32.mrf.mxu0
      %v1364 = vadd.f32 0.0, %v1363
      %1365 = vmatmul.f32.gmra.mxu0 %v1250
      %v1366 = vpop.f32.mrf.mxu0
      %v1367 = vadd.f32 0.0, %v1366
      %1368 = vmatmul.f32.gmra.mxu0 %v1253
      %v1369 = vpop.f32.mrf.mxu0
      %v1370 = vadd.f32 0.0, %v1369
      %1371 = vmatmul.f32.gmra.mxu0 %v1256
      %v1372 = vpop.f32.mrf.mxu0
      %v1373 = vadd.f32 0.0, %v1372
      %1374 = vmatmul.f32.gmra.mxu0 %v1259
      %v1375 = vpop.f32.mrf.mxu0
      %v1376 = vadd.f32 0.0, %v1375
      %1377 = vmatmul.f32.gmra.mxu0 %v1262
      %v1378 = vpop.f32.mrf.mxu0
      %v1379 = vadd.f32 0.0, %v1378
      %1380 = vmatmul.f32.gmra.mxu0 %v1265
      %v1381 = vpop.f32.mrf.mxu0
      %v1382 = vadd.f32 0.0, %v1381
      %1383 = vmatmul.f32.gmra.mxu0 %v1268
      %v1384 = vpop.f32.mrf.mxu0
      %v1385 = vadd.f32 0.0, %v1384
      %1386 = vmatmul.f32.gmra.mxu0 %v1271
      %v1387 = vpop.f32.mrf.mxu0
      %v1388 = vadd.f32 0.0, %v1387
      %1389 = vmatmul.f32.gmra.mxu0 %v1274
      %v1390 = vpop.f32.mrf.mxu0
      %v1391 = vadd.f32 0.0, %v1390
      %1392 = vmatmul.f32.gmra.mxu0 %v1277
      %v1393 = vpop.f32.mrf.mxu0
      %v1394 = vadd.f32 0.0, %v1393
      %1395 = vdwg.mxu0
      %v1396 = vadd.f32 %v1150, %v1301
      %v1397 = vadd.f32 %v1151, %v1304
      %v1398 = vadd.f32 %v1152, %v1307
      %v1399 = vadd.f32 %v1153, %v1310
      %v1400 = vadd.f32 %v1154, %v1313
      %v1401 = vadd.f32 %v1155, %v1316
      %v1402 = vadd.f32 %v1156, %v1319
      %v1403 = vadd.f32 %v1157, %v1322
      %v1404 = vadd.f32 %v1158, %v1325
      %v1405 = vadd.f32 %v1159, %v1328
      %v1406 = vadd.f32 %v1160, %v1331
      %v1407 = vadd.f32 %v1161, %v1334
      %v1408 = vadd.f32 %v1162, %v1337
      %v1409 = vadd.f32 %v1163, %v1340
      %v1410 = vadd.f32 %v1164, %v1343
      %v1411 = vadd.f32 %v1165, %v1346
      %v1412 = vadd.f32 %v1166, %v1349
      %v1413 = vadd.f32 %v1167, %v1352
      %v1414 = vadd.f32 %v1168, %v1355
      %v1415 = vadd.f32 %v1169, %v1358
      %v1416 = vadd.f32 %v1170, %v1361
      %v1417 = vadd.f32 %v1171, %v1364
      %v1418 = vadd.f32 %v1172, %v1367
      %v1419 = vadd.f32 %v1173, %v1370
      %v1420 = vadd.f32 %v1174, %v1373
      %v1421 = vadd.f32 %v1175, %v1376
      %v1422 = vadd.f32 %v1176, %v1379
      %v1423 = vadd.f32 %v1177, %v1382
      %v1424 = vadd.f32 %v1178, %v1385
      %v1425 = vadd.f32 %v1179, %v1388
      %v1426 = vadd.f32 %v1180, %v1391
      %v1427 = vadd.f32 %v1181, %v1394
      %vm1428 = vcmask 64512
      %1429 = vst.msk [vmem:[#allocation3] sm:$0xff] %vm1428, %v1396
      %1430 = vst.msk [vmem:[#allocation3 + $0x8] sm:$0xff] %vm1428, %v1397
      %1431 = vst.msk [vmem:[#allocation3 + $0x10] sm:$0xff] %vm1428, %v1398
      %1432 = vst.msk [vmem:[#allocation3 + $0x18] sm:$0xff] %vm1428, %v1399
      %1433 = vst.msk [vmem:[#allocation3 + $0x20] sm:$0xff] %vm1428, %v1400
      %1434 = vst.msk [vmem:[#allocation3 + $0x28] sm:$0xff] %vm1428, %v1401
      %1435 = vst.msk [vmem:[#allocation3 + $0x30] sm:$0xff] %vm1428, %v1402
      %1436 = vst.msk [vmem:[#allocation3 + $0x38] sm:$0xff] %vm1428, %v1403
      %1437 = vst.msk [vmem:[#allocation3 + $0x40] sm:$0xff] %vm1428, %v1404
      %1438 = vst.msk [vmem:[#allocation3 + $0x48] sm:$0xff] %vm1428, %v1405
      %1439 = vst.msk [vmem:[#allocation3 + $0x50] sm:$0xff] %vm1428, %v1406
      %1440 = vst.msk [vmem:[#allocation3 + $0x58] sm:$0xff] %vm1428, %v1407
      %1441 = vst.msk [vmem:[#allocation3 + $0x60] sm:$0xff] %vm1428, %v1408
      %1442 = vst.msk [vmem:[#allocation3 + $0x68] sm:$0xff] %vm1428, %v1409
      %1443 = vst.msk [vmem:[#allocation3 + $0x70] sm:$0xff] %vm1428, %v1410
      %1444 = vst.msk [vmem:[#allocation3 + $0x78] sm:$0xff] %vm1428, %v1411
      %1445 = vst.msk [vmem:[#allocation3 + $0x80] sm:$0xff] %vm1428, %v1412
      %1446 = vst.msk [vmem:[#allocation3 + $0x88] sm:$0xff] %vm1428, %v1413
      %1447 = vst.msk [vmem:[#allocation3 + $0x90] sm:$0xff] %vm1428, %v1414
      %1448 = vst.msk [vmem:[#allocation3 + $0x98] sm:$0xff] %vm1428, %v1415
      %1449 = vst.msk [vmem:[#allocation3 + $0xa0] sm:$0xff] %vm1428, %v1416
      %1450 = vst.msk [vmem:[#allocation3 + $0xa8] sm:$0xff] %vm1428, %v1417
      %1451 = vst.msk [vmem:[#allocation3 + $0xb0] sm:$0xff] %vm1428, %v1418
      %1452 = vst.msk [vmem:[#allocation3 + $0xb8] sm:$0xff] %vm1428, %v1419
      %1453 = vst.msk [vmem:[#allocation3 + $0xc0] sm:$0xff] %vm1428, %v1420
      %1454 = vst.msk [vmem:[#allocation3 + $0xc8] sm:$0xff] %vm1428, %v1421
      %1455 = vst.msk [vmem:[#allocation3 + $0xd0] sm:$0xff] %vm1428, %v1422
      %1456 = vst.msk [vmem:[#allocation3 + $0xd8] sm:$0xff] %vm1428, %v1423
      %1457 = vst.msk [vmem:[#allocation3 + $0xe0] sm:$0xff] %vm1428, %v1424
      %1458 = vst.msk [vmem:[#allocation3 + $0xe8] sm:$0xff] %vm1428, %v1425
      %1459 = vst.msk [vmem:[#allocation3 + $0xf0] sm:$0xff] %vm1428, %v1426
      %1460 = vst.msk [vmem:[#allocation3 + $0xf8] sm:$0xff] %vm1428, %v1427
      %s1461 = scalar_lea.vmem [#allocation2], 1872
      %v1462 = vld [vmem:[%s1461 + $0x1a] sm:$0xff]
      %v1463 = vld [vmem:[%s1461 + $0x22] sm:$0xff]
      %v1464 = vld [vmem:[%s1461 + $0x62] sm:$0xff]
      %v1465 = vld [vmem:[%s1461 + $0x6a] sm:$0xff]
      %v1466 = vld [vmem:[%s1461 + $0xaa] sm:$0xff]
      %v1467 = vld [vmem:[%s1461 + $0xb2] sm:$0xff]
      %v1468 = vld [vmem:[%s1461 + $0xf2] sm:$0xff]
      %v1469 = vld [vmem:[%s1461 + $0xfa] sm:$0xff]
      %v1470 = vld [vmem:[%s1461 + $0x13a] sm:$0xff]
      %v1471 = vld [vmem:[%s1461 + $0x142] sm:$0xff]
      %v1472 = vld [vmem:[%s1461 + $0x182] sm:$0xff]
      %v1473 = vld [vmem:[%s1461 + $0x18a] sm:$0xff]
      %v1474 = vld [vmem:[%s1461 + $0x1ca] sm:$0xff]
      %v1475 = vld [vmem:[%s1461 + $0x1d2] sm:$0xff]
      %v1476 = vld [vmem:[%s1461 + $0x212] sm:$0xff]
      %v1477 = vld [vmem:[%s1461 + $0x21a] sm:$0xff]
      %v1478 = vld [vmem:[%s1461 + $0x25a] sm:$0xff]
      %v1479 = vld [vmem:[%s1461 + $0x262] sm:$0xff]
      %v1480 = vld [vmem:[%s1461 + $0x2a2] sm:$0xff]
      %v1481 = vld [vmem:[%s1461 + $0x2aa] sm:$0xff]
      %v1482 = vld [vmem:[%s1461 + $0x2ea] sm:$0xff]
      %v1483 = vld [vmem:[%s1461 + $0x2f2] sm:$0xff]
      %v1484 = vld [vmem:[%s1461 + $0x332] sm:$0xff]
      %v1485 = vld [vmem:[%s1461 + $0x33a] sm:$0xff]
      %v1486 = vld [vmem:[%s1461 + $0x37a] sm:$0xff]
      %v1487 = vld [vmem:[%s1461 + $0x382] sm:$0xff]
      %v1488 = vld [vmem:[%s1461 + $0x3c2] sm:$0xff]
      %v1489 = vld [vmem:[%s1461 + $0x3ca] sm:$0xff]
      %v1490 = vld [vmem:[%s1461 + $0x40a] sm:$0xff]
      %v1491 = vld [vmem:[%s1461 + $0x412] sm:$0xff]
      %v1492 = vld [vmem:[%s1461 + $0x452] sm:$0xff]
      %v1493 = vld [vmem:[%s1461 + $0x45a] sm:$0xff]
      %v1494 = vld [vmem:[%s1461 + $0x20] sm:$0xff]
      %v1495 = vld [vmem:[%s1461 + $0x28] sm:$0xff]
      %v1496 = vld [vmem:[%s1461 + $0x68] sm:$0xff]
      %v1497 = vld [vmem:[%s1461 + $0x70] sm:$0xff]
      %v1498 = vld [vmem:[%s1461 + $0xb0] sm:$0xff]
      %v1499 = vld [vmem:[%s1461 + $0xb8] sm:$0xff]
      %v1500 = vld [vmem:[%s1461 + $0xf8] sm:$0xff]
      %v1501 = vld [vmem:[%s1461 + $0x100] sm:$0xff]
      %v1502 = vld [vmem:[%s1461 + $0x140] sm:$0xff]
      %v1503 = vld [vmem:[%s1461 + $0x148] sm:$0xff]
      %v1504 = vld [vmem:[%s1461 + $0x188] sm:$0xff]
      %v1505 = vld [vmem:[%s1461 + $0x190] sm:$0xff]
      %v1506 = vld [vmem:[%s1461 + $0x1d0] sm:$0xff]
      %v1507 = vld [vmem:[%s1461 + $0x1d8] sm:$0xff]
      %v1508 = vld [vmem:[%s1461 + $0x218] sm:$0xff]
      %v1509 = vld [vmem:[%s1461 + $0x220] sm:$0xff]
      %v1510 = vld [vmem:[%s1461 + $0x260] sm:$0xff]
      %v1511 = vld [vmem:[%s1461 + $0x268] sm:$0xff]
      %v1512 = vld [vmem:[%s1461 + $0x2a8] sm:$0xff]
      %v1513 = vld [vmem:[%s1461 + $0x2b0] sm:$0xff]
      %v1514 = vld [vmem:[%s1461 + $0x2f0] sm:$0xff]
      %v1515 = vld [vmem:[%s1461 + $0x2f8] sm:$0xff]
      %v1516 = vld [vmem:[%s1461 + $0x338] sm:$0xff]
      %v1517 = vld [vmem:[%s1461 + $0x340] sm:$0xff]
      %v1518 = vld [vmem:[%s1461 + $0x380] sm:$0xff]
      %v1519 = vld [vmem:[%s1461 + $0x388] sm:$0xff]
      %v1520 = vld [vmem:[%s1461 + $0x3c8] sm:$0xff]
      %v1521 = vld [vmem:[%s1461 + $0x3d0] sm:$0xff]
      %v1522 = vld [vmem:[%s1461 + $0x410] sm:$0xff]
      %v1523 = vld [vmem:[%s1461 + $0x418] sm:$0xff]
      %v1524 = vld [vmem:[%s1461 + $0x458] sm:$0xff]
      %v1525 = vld [vmem:[%s1461 + $0x460] sm:$0xff]
      %v1526 = vld [vmem:[%s1461 + $0x26] sm:$0xff]
      %v1527 = vld [vmem:[%s1461 + $0x2e] sm:$0xff]
      %v1528 = vld [vmem:[%s1461 + $0x6e] sm:$0xff]
      %v1529 = vld [vmem:[%s1461 + $0x76] sm:$0xff]
      %v1530 = vld [vmem:[%s1461 + $0xb6] sm:$0xff]
      %v1531 = vld [vmem:[%s1461 + $0xbe] sm:$0xff]
      %v1532 = vld [vmem:[%s1461 + $0xfe] sm:$0xff]
      %v1533 = vld [vmem:[%s1461 + $0x106] sm:$0xff]
      %v1534 = vld [vmem:[%s1461 + $0x146] sm:$0xff]
      %v1535 = vld [vmem:[%s1461 + $0x14e] sm:$0xff]
      %v1536 = vld [vmem:[%s1461 + $0x18e] sm:$0xff]
      %v1537 = vld [vmem:[%s1461 + $0x196] sm:$0xff]
      %v1538 = vld [vmem:[%s1461 + $0x1d6] sm:$0xff]
      %v1539 = vld [vmem:[%s1461 + $0x1de] sm:$0xff]
      %v1540 = vld [vmem:[%s1461 + $0x21e] sm:$0xff]
      %v1541 = vld [vmem:[%s1461 + $0x226] sm:$0xff]
      %v1542 = vld [vmem:[%s1461 + $0x266] sm:$0xff]
      %v1543 = vld [vmem:[%s1461 + $0x26e] sm:$0xff]
      %v1544 = vld [vmem:[%s1461 + $0x2ae] sm:$0xff]
      %v1545 = vld [vmem:[%s1461 + $0x2b6] sm:$0xff]
      %v1546 = vld [vmem:[%s1461 + $0x2f6] sm:$0xff]
      %v1547 = vld [vmem:[%s1461 + $0x2fe] sm:$0xff]
      %v1548 = vld [vmem:[%s1461 + $0x33e] sm:$0xff]
      %v1549 = vld [vmem:[%s1461 + $0x346] sm:$0xff]
      %v1550 = vld [vmem:[%s1461 + $0x386] sm:$0xff]
      %v1551 = vld [vmem:[%s1461 + $0x38e] sm:$0xff]
      %v1552 = vld [vmem:[%s1461 + $0x3ce] sm:$0xff]
      %v1553 = vld [vmem:[%s1461 + $0x3d6] sm:$0xff]
      %v1554 = vld [vmem:[%s1461 + $0x416] sm:$0xff]
      %v1555 = vld [vmem:[%s1461 + $0x41e] sm:$0xff]
      %v1556 = vld [vmem:[%s1461 + $0x45e] sm:$0xff]
      %v1557 = vld [vmem:[%s1461 + $0x466] sm:$0xff]
      %v1558 = vld [vmem:[%s1084 + $0x1a] sm:$0xff]
      %v1559 = vld [vmem:[%s1084 + $0x22] sm:$0xff]
      %v1560 = vld [vmem:[%s1084 + $0x62] sm:$0xff]
      %v1561 = vld [vmem:[%s1084 + $0x6a] sm:$0xff]
      %v1562 = vld [vmem:[%s1084 + $0xaa] sm:$0xff]
      %v1563 = vld [vmem:[%s1084 + $0xb2] sm:$0xff]
      %v1564 = vld [vmem:[%s1084 + $0xf2] sm:$0xff]
      %v1565 = vld [vmem:[%s1084 + $0xfa] sm:$0xff]
      %v1566 = vld [vmem:[%s1084 + $0x13a] sm:$0xff]
      %v1567 = vld [vmem:[%s1084 + $0x142] sm:$0xff]
      %v1568 = vld [vmem:[%s1084 + $0x182] sm:$0xff]
      %v1569 = vld [vmem:[%s1084 + $0x18a] sm:$0xff]
      %v1570 = vld [vmem:[%s1084 + $0x1ca] sm:$0xff]
      %v1571 = vld [vmem:[%s1084 + $0x1d2] sm:$0xff]
      %v1572 = vld [vmem:[%s1084 + $0x212] sm:$0xff]
      %v1573 = vld [vmem:[%s1084 + $0x21a] sm:$0xff]
      %v1574 = vld [vmem:[%s1084 + $0x25a] sm:$0xff]
      %v1575 = vld [vmem:[%s1084 + $0x262] sm:$0xff]
      %v1576 = vld [vmem:[%s1084 + $0x2a2] sm:$0xff]
      %v1577 = vld [vmem:[%s1084 + $0x2aa] sm:$0xff]
      %v1578 = vld [vmem:[%s1084 + $0x2ea] sm:$0xff]
      %v1579 = vld [vmem:[%s1084 + $0x2f2] sm:$0xff]
      %v1580 = vld [vmem:[%s1084 + $0x332] sm:$0xff]
      %v1581 = vld [vmem:[%s1084 + $0x33a] sm:$0xff]
      %v1582 = vld [vmem:[%s1084 + $0x37a] sm:$0xff]
      %v1583 = vld [vmem:[%s1084 + $0x382] sm:$0xff]
      %v1584 = vld [vmem:[%s1084 + $0x3c2] sm:$0xff]
      %v1585 = vld [vmem:[%s1084 + $0x3ca] sm:$0xff]
      %v1586 = vld [vmem:[%s1084 + $0x40a] sm:$0xff]
      %v1587 = vld [vmem:[%s1084 + $0x412] sm:$0xff]
      %v1588 = vld [vmem:[%s1084 + $0x452] sm:$0xff]
      %v1589 = vld [vmem:[%s1084 + $0x45a] sm:$0xff]
      %v1590 = vld [vmem:[%s1084 + $0x26] sm:$0xff]
      %v1591 = vld [vmem:[%s1084 + $0x2e] sm:$0xff]
      %v1592 = vld [vmem:[%s1084 + $0x6e] sm:$0xff]
      %v1593 = vld [vmem:[%s1084 + $0x76] sm:$0xff]
      %v1594 = vld [vmem:[%s1084 + $0xb6] sm:$0xff]
      %v1595 = vld [vmem:[%s1084 + $0xbe] sm:$0xff]
      %v1596 = vld [vmem:[%s1084 + $0xfe] sm:$0xff]
      %v1597 = vld [vmem:[%s1084 + $0x106] sm:$0xff]
      %v1598 = vld [vmem:[%s1084 + $0x146] sm:$0xff]
      %v1599 = vld [vmem:[%s1084 + $0x14e] sm:$0xff]
      %v1600 = vld [vmem:[%s1084 + $0x18e] sm:$0xff]
      %v1601 = vld [vmem:[%s1084 + $0x196] sm:$0xff]
      %v1602 = vld [vmem:[%s1084 + $0x1d6] sm:$0xff]
      %v1603 = vld [vmem:[%s1084 + $0x1de] sm:$0xff]
      %v1604 = vld [vmem:[%s1084 + $0x21e] sm:$0xff]
      %v1605 = vld [vmem:[%s1084 + $0x226] sm:$0xff]
      %v1606 = vld [vmem:[%s1084 + $0x266] sm:$0xff]
      %v1607 = vld [vmem:[%s1084 + $0x26e] sm:$0xff]
      %v1608 = vld [vmem:[%s1084 + $0x2ae] sm:$0xff]
      %v1609 = vld [vmem:[%s1084 + $0x2b6] sm:$0xff]
      %v1610 = vld [vmem:[%s1084 + $0x2f6] sm:$0xff]
      %v1611 = vld [vmem:[%s1084 + $0x2fe] sm:$0xff]
      %v1612 = vld [vmem:[%s1084 + $0x33e] sm:$0xff]
      %v1613 = vld [vmem:[%s1084 + $0x346] sm:$0xff]
      %v1614 = vld [vmem:[%s1084 + $0x386] sm:$0xff]
      %v1615 = vld [vmem:[%s1084 + $0x38e] sm:$0xff]
      %v1616 = vld [vmem:[%s1084 + $0x3ce] sm:$0xff]
      %v1617 = vld [vmem:[%s1084 + $0x3d6] sm:$0xff]
      %v1618 = vld [vmem:[%s1084 + $0x416] sm:$0xff]
      %v1619 = vld [vmem:[%s1084 + $0x41e] sm:$0xff]
      %v1620 = vld [vmem:[%s1084 + $0x45e] sm:$0xff]
      %v1621 = vld [vmem:[%s1084 + $0x466] sm:$0xff]
      %s1622 = scalar_lea.vmem [#allocation2], 2736
      %v1623 = vld [vmem:[%s1622 + $0x1a] sm:$0xff]
      %v1624 = vld [vmem:[%s1622 + $0x22] sm:$0xff]
      %v1625 = vld [vmem:[%s1622 + $0x62] sm:$0xff]
      %v1626 = vld [vmem:[%s1622 + $0x6a] sm:$0xff]
      %v1627 = vld [vmem:[%s1622 + $0xaa] sm:$0xff]
      %v1628 = vld [vmem:[%s1622 + $0xb2] sm:$0xff]
      %v1629 = vld [vmem:[%s1622 + $0xf2] sm:$0xff]
      %v1630 = vld [vmem:[%s1622 + $0xfa] sm:$0xff]
      %v1631 = vld [vmem:[%s1622 + $0x13a] sm:$0xff]
      %v1632 = vld [vmem:[%s1622 + $0x142] sm:$0xff]
      %v1633 = vld [vmem:[%s1622 + $0x182] sm:$0xff]
      %v1634 = vld [vmem:[%s1622 + $0x18a] sm:$0xff]
      %v1635 = vld [vmem:[%s1622 + $0x1ca] sm:$0xff]
      %v1636 = vld [vmem:[%s1622 + $0x1d2] sm:$0xff]
      %v1637 = vld [vmem:[%s1622 + $0x212] sm:$0xff]
      %v1638 = vld [vmem:[%s1622 + $0x21a] sm:$0xff]
      %v1639 = vld [vmem:[%s1622 + $0x25a] sm:$0xff]
      %v1640 = vld [vmem:[%s1622 + $0x262] sm:$0xff]
      %v1641 = vld [vmem:[%s1622 + $0x2a2] sm:$0xff]
      %v1642 = vld [vmem:[%s1622 + $0x2aa] sm:$0xff]
      %v1643 = vld [vmem:[%s1622 + $0x2ea] sm:$0xff]
      %v1644 = vld [vmem:[%s1622 + $0x2f2] sm:$0xff]
      %v1645 = vld [vmem:[%s1622 + $0x332] sm:$0xff]
      %v1646 = vld [vmem:[%s1622 + $0x33a] sm:$0xff]
      %v1647 = vld [vmem:[%s1622 + $0x37a] sm:$0xff]
      %v1648 = vld [vmem:[%s1622 + $0x382] sm:$0xff]
      %v1649 = vld [vmem:[%s1622 + $0x3c2] sm:$0xff]
      %v1650 = vld [vmem:[%s1622 + $0x3ca] sm:$0xff]
      %v1651 = vld [vmem:[%s1622 + $0x40a] sm:$0xff]
      %v1652 = vld [vmem:[%s1622 + $0x412] sm:$0xff]
      %v1653 = vld [vmem:[%s1622 + $0x452] sm:$0xff]
      %v1654 = vld [vmem:[%s1622 + $0x45a] sm:$0xff]
      %v1655 = vld [vmem:[%s1622 + $0x20] sm:$0xff]
      %v1656 = vld [vmem:[%s1622 + $0x28] sm:$0xff]
      %v1657 = vld [vmem:[%s1622 + $0x68] sm:$0xff]
      %v1658 = vld [vmem:[%s1622 + $0x70] sm:$0xff]
      %v1659 = vld [vmem:[%s1622 + $0xb0] sm:$0xff]
      %v1660 = vld [vmem:[%s1622 + $0xb8] sm:$0xff]
      %v1661 = vld [vmem:[%s1622 + $0xf8] sm:$0xff]
      %v1662 = vld [vmem:[%s1622 + $0x100] sm:$0xff]
      %v1663 = vld [vmem:[%s1622 + $0x140] sm:$0xff]
      %v1664 = vld [vmem:[%s1622 + $0x148] sm:$0xff]
      %v1665 = vld [vmem:[%s1622 + $0x188] sm:$0xff]
      %v1666 = vld [vmem:[%s1622 + $0x190] sm:$0xff]
      %v1667 = vld [vmem:[%s1622 + $0x1d0] sm:$0xff]
      %v1668 = vld [vmem:[%s1622 + $0x1d8] sm:$0xff]
      %v1669 = vld [vmem:[%s1622 + $0x218] sm:$0xff]
      %v1670 = vld [vmem:[%s1622 + $0x220] sm:$0xff]
      %v1671 = vld [vmem:[%s1622 + $0x260] sm:$0xff]
      %v1672 = vld [vmem:[%s1622 + $0x268] sm:$0xff]
      %v1673 = vld [vmem:[%s1622 + $0x2a8] sm:$0xff]
      %v1674 = vld [vmem:[%s1622 + $0x2b0] sm:$0xff]
      %v1675 = vld [vmem:[%s1622 + $0x2f0] sm:$0xff]
      %v1676 = vld [vmem:[%s1622 + $0x2f8] sm:$0xff]
      %v1677 = vld [vmem:[%s1622 + $0x338] sm:$0xff]
      %v1678 = vld [vmem:[%s1622 + $0x340] sm:$0xff]
      %v1679 = vld [vmem:[%s1622 + $0x380] sm:$0xff]
      %v1680 = vld [vmem:[%s1622 + $0x388] sm:$0xff]
      %v1681 = vld [vmem:[%s1622 + $0x3c8] sm:$0xff]
      %v1682 = vld [vmem:[%s1622 + $0x3d0] sm:$0xff]
      %v1683 = vld [vmem:[%s1622 + $0x410] sm:$0xff]
      %v1684 = vld [vmem:[%s1622 + $0x418] sm:$0xff]
      %v1685 = vld [vmem:[%s1622 + $0x458] sm:$0xff]
      %v1686 = vld [vmem:[%s1622 + $0x460] sm:$0xff]
      %v1687 = vld [vmem:[%s1622 + $0x26] sm:$0xff]
      %v1688 = vld [vmem:[%s1622 + $0x2e] sm:$0xff]
      %v1689 = vld [vmem:[%s1622 + $0x6e] sm:$0xff]
      %v1690 = vld [vmem:[%s1622 + $0x76] sm:$0xff]
      %v1691 = vld [vmem:[%s1622 + $0xb6] sm:$0xff]
      %v1692 = vld [vmem:[%s1622 + $0xbe] sm:$0xff]
      %v1693 = vld [vmem:[%s1622 + $0xfe] sm:$0xff]
      %v1694 = vld [vmem:[%s1622 + $0x106] sm:$0xff]
      %v1695 = vld [vmem:[%s1622 + $0x146] sm:$0xff]
      %v1696 = vld [vmem:[%s1622 + $0x14e] sm:$0xff]
      %v1697 = vld [vmem:[%s1622 + $0x18e] sm:$0xff]
      %v1698 = vld [vmem:[%s1622 + $0x196] sm:$0xff]
      %v1699 = vld [vmem:[%s1622 + $0x1d6] sm:$0xff]
      %v1700 = vld [vmem:[%s1622 + $0x1de] sm:$0xff]
      %v1701 = vld [vmem:[%s1622 + $0x21e] sm:$0xff]
      %v1702 = vld [vmem:[%s1622 + $0x226] sm:$0xff]
      %v1703 = vld [vmem:[%s1622 + $0x266] sm:$0xff]
      %v1704 = vld [vmem:[%s1622 + $0x26e] sm:$0xff]
      %v1705 = vld [vmem:[%s1622 + $0x2ae] sm:$0xff]
      %v1706 = vld [vmem:[%s1622 + $0x2b6] sm:$0xff]
      %v1707 = vld [vmem:[%s1622 + $0x2f6] sm:$0xff]
      %v1708 = vld [vmem:[%s1622 + $0x2fe] sm:$0xff]
      %v1709 = vld [vmem:[%s1622 + $0x33e] sm:$0xff]
      %v1710 = vld [vmem:[%s1622 + $0x346] sm:$0xff]
      %v1711 = vld [vmem:[%s1622 + $0x386] sm:$0xff]
      %v1712 = vld [vmem:[%s1622 + $0x38e] sm:$0xff]
      %v1713 = vld [vmem:[%s1622 + $0x3ce] sm:$0xff]
      %v1714 = vld [vmem:[%s1622 + $0x3d6] sm:$0xff]
      %v1715 = vld [vmem:[%s1622 + $0x416] sm:$0xff]
      %v1716 = vld [vmem:[%s1622 + $0x41e] sm:$0xff]
      %v1717 = vld [vmem:[%s1622 + $0x45e] sm:$0xff]
      %v1718 = vld [vmem:[%s1622 + $0x466] sm:$0xff]
      %v1719 = vld [vmem:[%s314] sm:$0xf]
      %s1720 = scalar_lea.vmem %s314, 4
      %v1721 = vld [vmem:[%s1720] sm:$0xf]
      %v1723 = vsel %vm1085, %v1494, 0
      %v1726 = vsel %vm1085, %v1495, 0
      %v1729 = vsel %vm1085, %v1496, 0
      %v1732 = vsel %vm1085, %v1497, 0
      %v1735 = vsel %vm1085, %v1498, 0
      %v1738 = vsel %vm1085, %v1499, 0
      %v1741 = vsel %vm1085, %v1500, 0
      %v1744 = vsel %vm1085, %v1501, 0
      %v1747 = vsel %vm1085, %v1502, 0
      %v1750 = vsel %vm1085, %v1503, 0
      %v1753 = vsel %vm1085, %v1504, 0
      %v1756 = vsel %vm1085, %v1505, 0
      %v1759 = vsel %vm1085, %v1506, 0
      %v1762 = vsel %vm1085, %v1507, 0
      %v1765 = vsel %vm1085, %v1508, 0
      %v1768 = vsel %vm1085, %v1509, 0
      %v1771 = vsel %vm1085, %v1510, 0
      %v1774 = vsel %vm1085, %v1511, 0
      %v1777 = vsel %vm1085, %v1512, 0
      %v1780 = vsel %vm1085, %v1513, 0
      %v1783 = vsel %vm1085, %v1514, 0
      %v1786 = vsel %vm1085, %v1515, 0
      %v1789 = vsel %vm1085, %v1516, 0
      %v1792 = vsel %vm1085, %v1517, 0
      %v1795 = vsel %vm1085, %v1518, 0
      %v1798 = vsel %vm1085, %v1519, 0
      %v1801 = vsel %vm1085, %v1520, 0
      %v1804 = vsel %vm1085, %v1521, 0
      %v1807 = vsel %vm1085, %v1522, 0
      %v1810 = vsel %vm1085, %v1523, 0
      %v1813 = vsel %vm1085, %v1524, 0
      %v1816 = vsel %vm1085, %v1525, 0
      %v1819 = vsel %vm1279, %v1721, 0
      %1821 = vmatpush.msra.mxu0 0.0
      %1822 = vmatpush.msra.mxu0 0.0
      %1823 = vmatpush.msra.mxu0 0.0
      %1824 = vmatpush.msra.mxu0 0.0
      %1825 = vmatpush.msra.mxu0 0.0
      %1826 = vmatpush.msra.mxu0 0.0
      %1827 = vmatpush.msra.mxu0 0.0
      %1828 = vmatpush.msra.mxu0 0.0
      %1829 = vmatpush.msra.mxu0 0.0
      %1830 = vmatpush.msra.mxu0 0.0
      %1831 = vmatpush.msra.mxu0 0.0
      %1832 = vmatpush.msra.mxu0 0.0
      %1833 = vmatpush.msra.mxu0 0.0
      %1834 = vmatpush.msra.mxu0 0.0
      %1835 = vmatpush.msra.mxu0 0.0
      %1836 = vmatpush.msra.mxu0 %v1819
      %1837 = vmatmul.f32.gmra.mxu0 %v1723
      %v1838 = vpop.f32.mrf.mxu0
      %v1839 = vadd.f32 0.0, %v1838
      %1840 = vmatmul.f32.gmra.mxu0 %v1726
      %v1841 = vpop.f32.mrf.mxu0
      %v1842 = vadd.f32 0.0, %v1841
      %1843 = vmatmul.f32.gmra.mxu0 %v1729
      %v1844 = vpop.f32.mrf.mxu0
      %v1845 = vadd.f32 0.0, %v1844
      %1846 = vmatmul.f32.gmra.mxu0 %v1732
      %v1847 = vpop.f32.mrf.mxu0
      %v1848 = vadd.f32 0.0, %v1847
      %1849 = vmatmul.f32.gmra.mxu0 %v1735
      %v1850 = vpop.f32.mrf.mxu0
      %v1851 = vadd.f32 0.0, %v1850
      %1852 = vmatmul.f32.gmra.mxu0 %v1738
      %v1853 = vpop.f32.mrf.mxu0
      %v1854 = vadd.f32 0.0, %v1853
      %1855 = vmatmul.f32.gmra.mxu0 %v1741
      %v1856 = vpop.f32.mrf.mxu0
      %v1857 = vadd.f32 0.0, %v1856
      %1858 = vmatmul.f32.gmra.mxu0 %v1744
      %v1859 = vpop.f32.mrf.mxu0
      %v1860 = vadd.f32 0.0, %v1859
      %1861 = vmatmul.f32.gmra.mxu0 %v1747
      %v1862 = vpop.f32.mrf.mxu0
      %v1863 = vadd.f32 0.0, %v1862
      %1864 = vmatmul.f32.gmra.mxu0 %v1750
      %v1865 = vpop.f32.mrf.mxu0
      %v1866 = vadd.f32 0.0, %v1865
      %1867 = vmatmul.f32.gmra.mxu0 %v1753
      %v1868 = vpop.f32.mrf.mxu0
      %v1869 = vadd.f32 0.0, %v1868
      %1870 = vmatmul.f32.gmra.mxu0 %v1756
      %v1871 = vpop.f32.mrf.mxu0
      %v1872 = vadd.f32 0.0, %v1871
      %1873 = vmatmul.f32.gmra.mxu0 %v1759
      %v1874 = vpop.f32.mrf.mxu0
      %v1875 = vadd.f32 0.0, %v1874
      %1876 = vmatmul.f32.gmra.mxu0 %v1762
      %v1877 = vpop.f32.mrf.mxu0
      %v1878 = vadd.f32 0.0, %v1877
      %1879 = vmatmul.f32.gmra.mxu0 %v1765
      %v1880 = vpop.f32.mrf.mxu0
      %v1881 = vadd.f32 0.0, %v1880
      %1882 = vmatmul.f32.gmra.mxu0 %v1768
      %v1883 = vpop.f32.mrf.mxu0
      %v1884 = vadd.f32 0.0, %v1883
      %1885 = vmatmul.f32.gmra.mxu0 %v1771
      %v1886 = vpop.f32.mrf.mxu0
      %v1887 = vadd.f32 0.0, %v1886
      %1888 = vmatmul.f32.gmra.mxu0 %v1774
      %v1889 = vpop.f32.mrf.mxu0
      %v1890 = vadd.f32 0.0, %v1889
      %1891 = vmatmul.f32.gmra.mxu0 %v1777
      %v1892 = vpop.f32.mrf.mxu0
      %v1893 = vadd.f32 0.0, %v1892
      %1894 = vmatmul.f32.gmra.mxu0 %v1780
      %v1895 = vpop.f32.mrf.mxu0
      %v1896 = vadd.f32 0.0, %v1895
      %1897 = vmatmul.f32.gmra.mxu0 %v1783
      %v1898 = vpop.f32.mrf.mxu0
      %v1899 = vadd.f32 0.0, %v1898
      %1900 = vmatmul.f32.gmra.mxu0 %v1786
      %v1901 = vpop.f32.mrf.mxu0
      %v1902 = vadd.f32 0.0, %v1901
      %1903 = vmatmul.f32.gmra.mxu0 %v1789
      %v1904 = vpop.f32.mrf.mxu0
      %v1905 = vadd.f32 0.0, %v1904
      %1906 = vmatmul.f32.gmra.mxu0 %v1792
      %v1907 = vpop.f32.mrf.mxu0
      %v1908 = vadd.f32 0.0, %v1907
      %1909 = vmatmul.f32.gmra.mxu0 %v1795
      %v1910 = vpop.f32.mrf.mxu0
      %v1911 = vadd.f32 0.0, %v1910
      %1912 = vmatmul.f32.gmra.mxu0 %v1798
      %v1913 = vpop.f32.mrf.mxu0
      %v1914 = vadd.f32 0.0, %v1913
      %1915 = vmatmul.f32.gmra.mxu0 %v1801
      %v1916 = vpop.f32.mrf.mxu0
      %v1917 = vadd.f32 0.0, %v1916
      %1918 = vmatmul.f32.gmra.mxu0 %v1804
      %v1919 = vpop.f32.mrf.mxu0
      %v1920 = vadd.f32 0.0, %v1919
      %1921 = vmatmul.f32.gmra.mxu0 %v1807
      %v1922 = vpop.f32.mrf.mxu0
      %v1923 = vadd.f32 0.0, %v1922
      %1924 = vmatmul.f32.gmra.mxu0 %v1810
      %v1925 = vpop.f32.mrf.mxu0
      %v1926 = vadd.f32 0.0, %v1925
      %1927 = vmatmul.f32.gmra.mxu0 %v1813
      %v1928 = vpop.f32.mrf.mxu0
      %v1929 = vadd.f32 0.0, %v1928
      %1930 = vmatmul.f32.gmra.mxu0 %v1816
      %v1931 = vpop.f32.mrf.mxu0
      %v1932 = vadd.f32 0.0, %v1931
      %1933 = vdwg.mxu0
      %v1935 = vsel %vm1085, %v1462, 0
      %v1938 = vsel %vm1085, %v1463, 0
      %v1941 = vsel %vm1085, %v1464, 0
      %v1944 = vsel %vm1085, %v1465, 0
      %v1947 = vsel %vm1085, %v1466, 0
      %v1950 = vsel %vm1085, %v1467, 0
      %v1953 = vsel %vm1085, %v1468, 0
      %v1956 = vsel %vm1085, %v1469, 0
      %v1959 = vsel %vm1085, %v1470, 0
      %v1962 = vsel %vm1085, %v1471, 0
      %v1965 = vsel %vm1085, %v1472, 0
      %v1968 = vsel %vm1085, %v1473, 0
      %v1971 = vsel %vm1085, %v1474, 0
      %v1974 = vsel %vm1085, %v1475, 0
      %v1977 = vsel %vm1085, %v1476, 0
      %v1980 = vsel %vm1085, %v1477, 0
      %v1983 = vsel %vm1085, %v1478, 0
      %v1986 = vsel %vm1085, %v1479, 0
      %v1989 = vsel %vm1085, %v1480, 0
      %v1992 = vsel %vm1085, %v1481, 0
      %v1995 = vsel %vm1085, %v1482, 0
      %v1998 = vsel %vm1085, %v1483, 0
      %v2001 = vsel %vm1085, %v1484, 0
      %v2004 = vsel %vm1085, %v1485, 0
      %v2007 = vsel %vm1085, %v1486, 0
      %v2010 = vsel %vm1085, %v1487, 0
      %v2013 = vsel %vm1085, %v1488, 0
      %v2016 = vsel %vm1085, %v1489, 0
      %v2019 = vsel %vm1085, %v1490, 0
      %v2022 = vsel %vm1085, %v1491, 0
      %v2025 = vsel %vm1085, %v1492, 0
      %v2028 = vsel %vm1085, %v1493, 0
      %v2031 = vsel %vm1279, %v1719, 0
      %2033 = vmatpush.msra.mxu0 0.0
      %2034 = vmatpush.msra.mxu0 0.0
      %2035 = vmatpush.msra.mxu0 0.0
      %2036 = vmatpush.msra.mxu0 0.0
      %2037 = vmatpush.msra.mxu0 0.0
      %2038 = vmatpush.msra.mxu0 0.0
      %2039 = vmatpush.msra.mxu0 0.0
      %2040 = vmatpush.msra.mxu0 0.0
      %2041 = vmatpush.msra.mxu0 0.0
      %2042 = vmatpush.msra.mxu0 0.0
      %2043 = vmatpush.msra.mxu0 0.0
      %2044 = vmatpush.msra.mxu0 0.0
      %2045 = vmatpush.msra.mxu0 0.0
      %2046 = vmatpush.msra.mxu0 0.0
      %2047 = vmatpush.msra.mxu0 0.0
      %2048 = vmatpush.msra.mxu0 %v2031
      %2049 = vmatmul.f32.gmra.mxu0 %v1935
      %v2050 = vpop.f32.mrf.mxu0
      %v2051 = vadd.f32 %v1839, %v2050
      %2052 = vmatmul.f32.gmra.mxu0 %v1938
      %v2053 = vpop.f32.mrf.mxu0
      %v2054 = vadd.f32 %v1842, %v2053
      %2055 = vmatmul.f32.gmra.mxu0 %v1941
      %v2056 = vpop.f32.mrf.mxu0
      %v2057 = vadd.f32 %v1845, %v2056
      %2058 = vmatmul.f32.gmra.mxu0 %v1944
      %v2059 = vpop.f32.mrf.mxu0
      %v2060 = vadd.f32 %v1848, %v2059
      %2061 = vmatmul.f32.gmra.mxu0 %v1947
      %v2062 = vpop.f32.mrf.mxu0
      %v2063 = vadd.f32 %v1851, %v2062
      %2064 = vmatmul.f32.gmra.mxu0 %v1950
      %v2065 = vpop.f32.mrf.mxu0
      %v2066 = vadd.f32 %v1854, %v2065
      %2067 = vmatmul.f32.gmra.mxu0 %v1953
      %v2068 = vpop.f32.mrf.mxu0
      %v2069 = vadd.f32 %v1857, %v2068
      %2070 = vmatmul.f32.gmra.mxu0 %v1956
      %v2071 = vpop.f32.mrf.mxu0
      %v2072 = vadd.f32 %v1860, %v2071
      %2073 = vmatmul.f32.gmra.mxu0 %v1959
      %v2074 = vpop.f32.mrf.mxu0
      %v2075 = vadd.f32 %v1863, %v2074
      %2076 = vmatmul.f32.gmra.mxu0 %v1962
      %v2077 = vpop.f32.mrf.mxu0
      %v2078 = vadd.f32 %v1866, %v2077
      %2079 = vmatmul.f32.gmra.mxu0 %v1965
      %v2080 = vpop.f32.mrf.mxu0
      %v2081 = vadd.f32 %v1869, %v2080
      %2082 = vmatmul.f32.gmra.mxu0 %v1968
      %v2083 = vpop.f32.mrf.mxu0
      %v2084 = vadd.f32 %v1872, %v2083
      %2085 = vmatmul.f32.gmra.mxu0 %v1971
      %v2086 = vpop.f32.mrf.mxu0
      %v2087 = vadd.f32 %v1875, %v2086
      %2088 = vmatmul.f32.gmra.mxu0 %v1974
      %v2089 = vpop.f32.mrf.mxu0
      %v2090 = vadd.f32 %v1878, %v2089
      %2091 = vmatmul.f32.gmra.mxu0 %v1977
      %v2092 = vpop.f32.mrf.mxu0
      %v2093 = vadd.f32 %v1881, %v2092
      %2094 = vmatmul.f32.gmra.mxu0 %v1980
      %v2095 = vpop.f32.mrf.mxu0
      %v2096 = vadd.f32 %v1884, %v2095
      %2097 = vmatmul.f32.gmra.mxu0 %v1983
      %v2098 = vpop.f32.mrf.mxu0
      %v2099 = vadd.f32 %v1887, %v2098
      %2100 = vmatmul.f32.gmra.mxu0 %v1986
      %v2101 = vpop.f32.mrf.mxu0
      %v2102 = vadd.f32 %v1890, %v2101
      %2103 = vmatmul.f32.gmra.mxu0 %v1989
      %v2104 = vpop.f32.mrf.mxu0
      %v2105 = vadd.f32 %v1893, %v2104
      %2106 = vmatmul.f32.gmra.mxu0 %v1992
      %v2107 = vpop.f32.mrf.mxu0
      %v2108 = vadd.f32 %v1896, %v2107
      %2109 = vmatmul.f32.gmra.mxu0 %v1995
      %v2110 = vpop.f32.mrf.mxu0
      %v2111 = vadd.f32 %v1899, %v2110
      %2112 = vmatmul.f32.gmra.mxu0 %v1998
      %v2113 = vpop.f32.mrf.mxu0
      %v2114 = vadd.f32 %v1902, %v2113
      %2115 = vmatmul.f32.gmra.mxu0 %v2001
      %v2116 = vpop.f32.mrf.mxu0
      %v2117 = vadd.f32 %v1905, %v2116
      %2118 = vmatmul.f32.gmra.mxu0 %v2004
      %v2119 = vpop.f32.mrf.mxu0
      %v2120 = vadd.f32 %v1908, %v2119
      %2121 = vmatmul.f32.gmra.mxu0 %v2007
      %v2122 = vpop.f32.mrf.mxu0
      %v2123 = vadd.f32 %v1911, %v2122
      %2124 = vmatmul.f32.gmra.mxu0 %v2010
      %v2125 = vpop.f32.mrf.mxu0
      %v2126 = vadd.f32 %v1914, %v2125
      %2127 = vmatmul.f32.gmra.mxu0 %v2013
      %v2128 = vpop.f32.mrf.mxu0
      %v2129 = vadd.f32 %v1917, %v2128
      %2130 = vmatmul.f32.gmra.mxu0 %v2016
      %v2131 = vpop.f32.mrf.mxu0
      %v2132 = vadd.f32 %v1920, %v2131
      %2133 = vmatmul.f32.gmra.mxu0 %v2019
      %v2134 = vpop.f32.mrf.mxu0
      %v2135 = vadd.f32 %v1923, %v2134
      %2136 = vmatmul.f32.gmra.mxu0 %v2022
      %v2137 = vpop.f32.mrf.mxu0
      %v2138 = vadd.f32 %v1926, %v2137
      %2139 = vmatmul.f32.gmra.mxu0 %v2025
      %v2140 = vpop.f32.mrf.mxu0
      %v2141 = vadd.f32 %v1929, %v2140
      %2142 = vmatmul.f32.gmra.mxu0 %v2028
      %v2143 = vpop.f32.mrf.mxu0
      %v2144 = vadd.f32 %v1932, %v2143
      %2145 = vdwg.mxu0
      %s2146 = scalar_lea.vmem %s314, 8
      %v2147 = vld [vmem:[%s2146] sm:$0xf]
      %v2149 = vsel %vm1085, %v1526, 0
      %v2152 = vsel %vm1085, %v1527, 0
      %v2155 = vsel %vm1085, %v1528, 0
      %v2158 = vsel %vm1085, %v1529, 0
      %v2161 = vsel %vm1085, %v1530, 0
      %v2164 = vsel %vm1085, %v1531, 0
      %v2167 = vsel %vm1085, %v1532, 0
      %v2170 = vsel %vm1085, %v1533, 0
      %v2173 = vsel %vm1085, %v1534, 0
      %v2176 = vsel %vm1085, %v1535, 0
      %v2179 = vsel %vm1085, %v1536, 0
      %v2182 = vsel %vm1085, %v1537, 0
      %v2185 = vsel %vm1085, %v1538, 0
      %v2188 = vsel %vm1085, %v1539, 0
      %v2191 = vsel %vm1085, %v1540, 0
      %v2194 = vsel %vm1085, %v1541, 0
      %v2197 = vsel %vm1085, %v1542, 0
      %v2200 = vsel %vm1085, %v1543, 0
      %v2203 = vsel %vm1085, %v1544, 0
      %v2206 = vsel %vm1085, %v1545, 0
      %v2209 = vsel %vm1085, %v1546, 0
      %v2212 = vsel %vm1085, %v1547, 0
      %v2215 = vsel %vm1085, %v1548, 0
      %v2218 = vsel %vm1085, %v1549, 0
      %v2221 = vsel %vm1085, %v1550, 0
      %v2224 = vsel %vm1085, %v1551, 0
      %v2227 = vsel %vm1085, %v1552, 0
      %v2230 = vsel %vm1085, %v1553, 0
      %v2233 = vsel %vm1085, %v1554, 0
      %v2236 = vsel %vm1085, %v1555, 0
      %v2239 = vsel %vm1085, %v1556, 0
      %v2242 = vsel %vm1085, %v1557, 0
      %v2245 = vsel %vm1279, %v2147, 0
      %2247 = vmatpush.msra.mxu0 0.0
      %2248 = vmatpush.msra.mxu0 0.0
      %2249 = vmatpush.msra.mxu0 0.0
      %2250 = vmatpush.msra.mxu0 0.0
      %2251 = vmatpush.msra.mxu0 0.0
      %2252 = vmatpush.msra.mxu0 0.0
      %2253 = vmatpush.msra.mxu0 0.0
      %2254 = vmatpush.msra.mxu0 0.0
      %2255 = vmatpush.msra.mxu0 0.0
      %2256 = vmatpush.msra.mxu0 0.0
      %2257 = vmatpush.msra.mxu0 0.0
      %2258 = vmatpush.msra.mxu0 0.0
      %2259 = vmatpush.msra.mxu0 0.0
      %2260 = vmatpush.msra.mxu0 0.0
      %2261 = vmatpush.msra.mxu0 0.0
      %2262 = vmatpush.msra.mxu0 %v2245
      %2263 = vmatmul.f32.gmra.mxu0 %v2149
      %v2264 = vpop.f32.mrf.mxu0
      %v2265 = vadd.f32 0.0, %v2264
      %2266 = vmatmul.f32.gmra.mxu0 %v2152
      %v2267 = vpop.f32.mrf.mxu0
      %v2268 = vadd.f32 0.0, %v2267
      %2269 = vmatmul.f32.gmra.mxu0 %v2155
      %v2270 = vpop.f32.mrf.mxu0
      %v2271 = vadd.f32 0.0, %v2270
      %2272 = vmatmul.f32.gmra.mxu0 %v2158
      %v2273 = vpop.f32.mrf.mxu0
      %v2274 = vadd.f32 0.0, %v2273
      %2275 = vmatmul.f32.gmra.mxu0 %v2161
      %v2276 = vpop.f32.mrf.mxu0
      %v2277 = vadd.f32 0.0, %v2276
      %2278 = vmatmul.f32.gmra.mxu0 %v2164
      %v2279 = vpop.f32.mrf.mxu0
      %v2280 = vadd.f32 0.0, %v2279
      %2281 = vmatmul.f32.gmra.mxu0 %v2167
      %v2282 = vpop.f32.mrf.mxu0
      %v2283 = vadd.f32 0.0, %v2282
      %2284 = vmatmul.f32.gmra.mxu0 %v2170
      %v2285 = vpop.f32.mrf.mxu0
      %v2286 = vadd.f32 0.0, %v2285
      %2287 = vmatmul.f32.gmra.mxu0 %v2173
      %v2288 = vpop.f32.mrf.mxu0
      %v2289 = vadd.f32 0.0, %v2288
      %2290 = vmatmul.f32.gmra.mxu0 %v2176
      %v2291 = vpop.f32.mrf.mxu0
      %v2292 = vadd.f32 0.0, %v2291
      %2293 = vmatmul.f32.gmra.mxu0 %v2179
      %v2294 = vpop.f32.mrf.mxu0
      %v2295 = vadd.f32 0.0, %v2294
      %2296 = vmatmul.f32.gmra.mxu0 %v2182
      %v2297 = vpop.f32.mrf.mxu0
      %v2298 = vadd.f32 0.0, %v2297
      %2299 = vmatmul.f32.gmra.mxu0 %v2185
      %v2300 = vpop.f32.mrf.mxu0
      %v2301 = vadd.f32 0.0, %v2300
      %2302 = vmatmul.f32.gmra.mxu0 %v2188
      %v2303 = vpop.f32.mrf.mxu0
      %v2304 = vadd.f32 0.0, %v2303
      %2305 = vmatmul.f32.gmra.mxu0 %v2191
      %v2306 = vpop.f32.mrf.mxu0
      %v2307 = vadd.f32 0.0, %v2306
      %2308 = vmatmul.f32.gmra.mxu0 %v2194
      %v2309 = vpop.f32.mrf.mxu0
      %v2310 = vadd.f32 0.0, %v2309
      %2311 = vmatmul.f32.gmra.mxu0 %v2197
      %v2312 = vpop.f32.mrf.mxu0
      %v2313 = vadd.f32 0.0, %v2312
      %2314 = vmatmul.f32.gmra.mxu0 %v2200
      %v2315 = vpop.f32.mrf.mxu0
      %v2316 = vadd.f32 0.0, %v2315
      %2317 = vmatmul.f32.gmra.mxu0 %v2203
      %v2318 = vpop.f32.mrf.mxu0
      %v2319 = vadd.f32 0.0, %v2318
      %2320 = vmatmul.f32.gmra.mxu0 %v2206
      %v2321 = vpop.f32.mrf.mxu0
      %v2322 = vadd.f32 0.0, %v2321
      %2323 = vmatmul.f32.gmra.mxu0 %v2209
      %v2324 = vpop.f32.mrf.mxu0
      %v2325 = vadd.f32 0.0, %v2324
      %2326 = vmatmul.f32.gmra.mxu0 %v2212
      %v2327 = vpop.f32.mrf.mxu0
      %v2328 = vadd.f32 0.0, %v2327
      %2329 = vmatmul.f32.gmra.mxu0 %v2215
      %v2330 = vpop.f32.mrf.mxu0
      %v2331 = vadd.f32 0.0, %v2330
      %2332 = vmatmul.f32.gmra.mxu0 %v2218
      %v2333 = vpop.f32.mrf.mxu0
      %v2334 = vadd.f32 0.0, %v2333
      %2335 = vmatmul.f32.gmra.mxu0 %v2221
      %v2336 = vpop.f32.mrf.mxu0
      %v2337 = vadd.f32 0.0, %v2336
      %2338 = vmatmul.f32.gmra.mxu0 %v2224
      %v2339 = vpop.f32.mrf.mxu0
      %v2340 = vadd.f32 0.0, %v2339
      %2341 = vmatmul.f32.gmra.mxu0 %v2227
      %v2342 = vpop.f32.mrf.mxu0
      %v2343 = vadd.f32 0.0, %v2342
      %2344 = vmatmul.f32.gmra.mxu0 %v2230
      %v2345 = vpop.f32.mrf.mxu0
      %v2346 = vadd.f32 0.0, %v2345
      %2347 = vmatmul.f32.gmra.mxu0 %v2233
      %v2348 = vpop.f32.mrf.mxu0
      %v2349 = vadd.f32 0.0, %v2348
      %2350 = vmatmul.f32.gmra.mxu0 %v2236
      %v2351 = vpop.f32.mrf.mxu0
      %v2352 = vadd.f32 0.0, %v2351
      %2353 = vmatmul.f32.gmra.mxu0 %v2239
      %v2354 = vpop.f32.mrf.mxu0
      %v2355 = vadd.f32 0.0, %v2354
      %2356 = vmatmul.f32.gmra.mxu0 %v2242
      %v2357 = vpop.f32.mrf.mxu0
      %v2358 = vadd.f32 0.0, %v2357
      %2359 = vdwg.mxu0
      %v2360 = vadd.f32 %v2051, %v2265
      %v2361 = vadd.f32 %v2054, %v2268
      %v2362 = vadd.f32 %v2057, %v2271
      %v2363 = vadd.f32 %v2060, %v2274
      %v2364 = vadd.f32 %v2063, %v2277
      %v2365 = vadd.f32 %v2066, %v2280
      %v2366 = vadd.f32 %v2069, %v2283
      %v2367 = vadd.f32 %v2072, %v2286
      %v2368 = vadd.f32 %v2075, %v2289
      %v2369 = vadd.f32 %v2078, %v2292
      %v2370 = vadd.f32 %v2081, %v2295
      %v2371 = vadd.f32 %v2084, %v2298
      %v2372 = vadd.f32 %v2087, %v2301
      %v2373 = vadd.f32 %v2090, %v2304
      %v2374 = vadd.f32 %v2093, %v2307
      %v2375 = vadd.f32 %v2096, %v2310
      %v2376 = vadd.f32 %v2099, %v2313
      %v2377 = vadd.f32 %v2102, %v2316
      %v2378 = vadd.f32 %v2105, %v2319
      %v2379 = vadd.f32 %v2108, %v2322
      %v2380 = vadd.f32 %v2111, %v2325
      %v2381 = vadd.f32 %v2114, %v2328
      %v2382 = vadd.f32 %v2117, %v2331
      %v2383 = vadd.f32 %v2120, %v2334
      %v2384 = vadd.f32 %v2123, %v2337
      %v2385 = vadd.f32 %v2126, %v2340
      %v2386 = vadd.f32 %v2129, %v2343
      %v2387 = vadd.f32 %v2132, %v2346
      %v2388 = vadd.f32 %v2135, %v2349
      %v2389 = vadd.f32 %v2138, %v2352
      %v2390 = vadd.f32 %v2141, %v2355
      %v2391 = vadd.f32 %v2144, %v2358
      %s2392 = scalar_lea.vmem %s314, 12
      %v2393 = vld [vmem:[%s2392] sm:$0xf]
      %v2395 = vsel %vm1085, %v1558, 0
      %v2398 = vsel %vm1085, %v1559, 0
      %v2401 = vsel %vm1085, %v1560, 0
      %v2404 = vsel %vm1085, %v1561, 0
      %v2407 = vsel %vm1085, %v1562, 0
      %v2410 = vsel %vm1085, %v1563, 0
      %v2413 = vsel %vm1085, %v1564, 0
      %v2416 = vsel %vm1085, %v1565, 0
      %v2419 = vsel %vm1085, %v1566, 0
      %v2422 = vsel %vm1085, %v1567, 0
      %v2425 = vsel %vm1085, %v1568, 0
      %v2428 = vsel %vm1085, %v1569, 0
      %v2431 = vsel %vm1085, %v1570, 0
      %v2434 = vsel %vm1085, %v1571, 0
      %v2437 = vsel %vm1085, %v1572, 0
      %v2440 = vsel %vm1085, %v1573, 0
      %v2443 = vsel %vm1085, %v1574, 0
      %v2446 = vsel %vm1085, %v1575, 0
      %v2449 = vsel %vm1085, %v1576, 0
      %v2452 = vsel %vm1085, %v1577, 0
      %v2455 = vsel %vm1085, %v1578, 0
      %v2458 = vsel %vm1085, %v1579, 0
      %v2461 = vsel %vm1085, %v1580, 0
      %v2464 = vsel %vm1085, %v1581, 0
      %v2467 = vsel %vm1085, %v1582, 0
      %v2470 = vsel %vm1085, %v1583, 0
      %v2473 = vsel %vm1085, %v1584, 0
      %v2476 = vsel %vm1085, %v1585, 0
      %v2479 = vsel %vm1085, %v1586, 0
      %v2482 = vsel %vm1085, %v1587, 0
      %v2485 = vsel %vm1085, %v1588, 0
      %v2488 = vsel %vm1085, %v1589, 0
      %v2491 = vsel %vm1279, %v2393, 0
      %2493 = vmatpush.msra.mxu0 0.0
      %2494 = vmatpush.msra.mxu0 0.0
      %2495 = vmatpush.msra.mxu0 0.0
      %2496 = vmatpush.msra.mxu0 0.0
      %2497 = vmatpush.msra.mxu0 0.0
      %2498 = vmatpush.msra.mxu0 0.0
      %2499 = vmatpush.msra.mxu0 0.0
      %2500 = vmatpush.msra.mxu0 0.0
      %2501 = vmatpush.msra.mxu0 0.0
      %2502 = vmatpush.msra.mxu0 0.0
      %2503 = vmatpush.msra.mxu0 0.0
      %2504 = vmatpush.msra.mxu0 0.0
      %2505 = vmatpush.msra.mxu0 0.0
      %2506 = vmatpush.msra.mxu0 0.0
      %2507 = vmatpush.msra.mxu0 0.0
      %2508 = vmatpush.msra.mxu0 %v2491
      %2509 = vmatmul.f32.gmra.mxu0 %v2395
      %v2510 = vpop.f32.mrf.mxu0
      %v2511 = vadd.f32 0.0, %v2510
      %2512 = vmatmul.f32.gmra.mxu0 %v2398
      %v2513 = vpop.f32.mrf.mxu0
      %v2514 = vadd.f32 0.0, %v2513
      %2515 = vmatmul.f32.gmra.mxu0 %v2401
      %v2516 = vpop.f32.mrf.mxu0
      %v2517 = vadd.f32 0.0, %v2516
      %2518 = vmatmul.f32.gmra.mxu0 %v2404
      %v2519 = vpop.f32.mrf.mxu0
      %v2520 = vadd.f32 0.0, %v2519
      %2521 = vmatmul.f32.gmra.mxu0 %v2407
      %v2522 = vpop.f32.mrf.mxu0
      %v2523 = vadd.f32 0.0, %v2522
      %2524 = vmatmul.f32.gmra.mxu0 %v2410
      %v2525 = vpop.f32.mrf.mxu0
      %v2526 = vadd.f32 0.0, %v2525
      %2527 = vmatmul.f32.gmra.mxu0 %v2413
      %v2528 = vpop.f32.mrf.mxu0
      %v2529 = vadd.f32 0.0, %v2528
      %2530 = vmatmul.f32.gmra.mxu0 %v2416
      %v2531 = vpop.f32.mrf.mxu0
      %v2532 = vadd.f32 0.0, %v2531
      %2533 = vmatmul.f32.gmra.mxu0 %v2419
      %v2534 = vpop.f32.mrf.mxu0
      %v2535 = vadd.f32 0.0, %v2534
      %2536 = vmatmul.f32.gmra.mxu0 %v2422
      %v2537 = vpop.f32.mrf.mxu0
      %v2538 = vadd.f32 0.0, %v2537
      %2539 = vmatmul.f32.gmra.mxu0 %v2425
      %v2540 = vpop.f32.mrf.mxu0
      %v2541 = vadd.f32 0.0, %v2540
      %2542 = vmatmul.f32.gmra.mxu0 %v2428
      %v2543 = vpop.f32.mrf.mxu0
      %v2544 = vadd.f32 0.0, %v2543
      %2545 = vmatmul.f32.gmra.mxu0 %v2431
      %v2546 = vpop.f32.mrf.mxu0
      %v2547 = vadd.f32 0.0, %v2546
      %2548 = vmatmul.f32.gmra.mxu0 %v2434
      %v2549 = vpop.f32.mrf.mxu0
      %v2550 = vadd.f32 0.0, %v2549
      %2551 = vmatmul.f32.gmra.mxu0 %v2437
      %v2552 = vpop.f32.mrf.mxu0
      %v2553 = vadd.f32 0.0, %v2552
      %2554 = vmatmul.f32.gmra.mxu0 %v2440
      %v2555 = vpop.f32.mrf.mxu0
      %v2556 = vadd.f32 0.0, %v2555
      %2557 = vmatmul.f32.gmra.mxu0 %v2443
      %v2558 = vpop.f32.mrf.mxu0
      %v2559 = vadd.f32 0.0, %v2558
      %2560 = vmatmul.f32.gmra.mxu0 %v2446
      %v2561 = vpop.f32.mrf.mxu0
      %v2562 = vadd.f32 0.0, %v2561
      %2563 = vmatmul.f32.gmra.mxu0 %v2449
      %v2564 = vpop.f32.mrf.mxu0
      %v2565 = vadd.f32 0.0, %v2564
      %2566 = vmatmul.f32.gmra.mxu0 %v2452
      %v2567 = vpop.f32.mrf.mxu0
      %v2568 = vadd.f32 0.0, %v2567
      %2569 = vmatmul.f32.gmra.mxu0 %v2455
      %v2570 = vpop.f32.mrf.mxu0
      %v2571 = vadd.f32 0.0, %v2570
      %2572 = vmatmul.f32.gmra.mxu0 %v2458
      %v2573 = vpop.f32.mrf.mxu0
      %v2574 = vadd.f32 0.0, %v2573
      %2575 = vmatmul.f32.gmra.mxu0 %v2461
      %v2576 = vpop.f32.mrf.mxu0
      %v2577 = vadd.f32 0.0, %v2576
      %2578 = vmatmul.f32.gmra.mxu0 %v2464
      %v2579 = vpop.f32.mrf.mxu0
      %v2580 = vadd.f32 0.0, %v2579
      %2581 = vmatmul.f32.gmra.mxu0 %v2467
      %v2582 = vpop.f32.mrf.mxu0
      %v2583 = vadd.f32 0.0, %v2582
      %2584 = vmatmul.f32.gmra.mxu0 %v2470
      %v2585 = vpop.f32.mrf.mxu0
      %v2586 = vadd.f32 0.0, %v2585
      %2587 = vmatmul.f32.gmra.mxu0 %v2473
      %v2588 = vpop.f32.mrf.mxu0
      %v2589 = vadd.f32 0.0, %v2588
      %2590 = vmatmul.f32.gmra.mxu0 %v2476
      %v2591 = vpop.f32.mrf.mxu0
      %v2592 = vadd.f32 0.0, %v2591
      %2593 = vmatmul.f32.gmra.mxu0 %v2479
      %v2594 = vpop.f32.mrf.mxu0
      %v2595 = vadd.f32 0.0, %v2594
      %2596 = vmatmul.f32.gmra.mxu0 %v2482
      %v2597 = vpop.f32.mrf.mxu0
      %v2598 = vadd.f32 0.0, %v2597
      %2599 = vmatmul.f32.gmra.mxu0 %v2485
      %v2600 = vpop.f32.mrf.mxu0
      %v2601 = vadd.f32 0.0, %v2600
      %2602 = vmatmul.f32.gmra.mxu0 %v2488
      %v2603 = vpop.f32.mrf.mxu0
      %v2604 = vadd.f32 0.0, %v2603
      %2605 = vdwg.mxu0
      %v2606 = vadd.f32 %v2360, %v2511
      %v2607 = vadd.f32 %v2361, %v2514
      %v2608 = vadd.f32 %v2362, %v2517
      %v2609 = vadd.f32 %v2363, %v2520
      %v2610 = vadd.f32 %v2364, %v2523
      %v2611 = vadd.f32 %v2365, %v2526
      %v2612 = vadd.f32 %v2366, %v2529
      %v2613 = vadd.f32 %v2367, %v2532
      %v2614 = vadd.f32 %v2368, %v2535
      %v2615 = vadd.f32 %v2369, %v2538
      %v2616 = vadd.f32 %v2370, %v2541
      %v2617 = vadd.f32 %v2371, %v2544
      %v2618 = vadd.f32 %v2372, %v2547
      %v2619 = vadd.f32 %v2373, %v2550
      %v2620 = vadd.f32 %v2374, %v2553
      %v2621 = vadd.f32 %v2375, %v2556
      %v2622 = vadd.f32 %v2376, %v2559
      %v2623 = vadd.f32 %v2377, %v2562
      %v2624 = vadd.f32 %v2378, %v2565
      %v2625 = vadd.f32 %v2379, %v2568
      %v2626 = vadd.f32 %v2380, %v2571
      %v2627 = vadd.f32 %v2381, %v2574
      %v2628 = vadd.f32 %v2382, %v2577
      %v2629 = vadd.f32 %v2383, %v2580
      %v2630 = vadd.f32 %v2384, %v2583
      %v2631 = vadd.f32 %v2385, %v2586
      %v2632 = vadd.f32 %v2386, %v2589
      %v2633 = vadd.f32 %v2387, %v2592
      %v2634 = vadd.f32 %v2388, %v2595
      %v2635 = vadd.f32 %v2389, %v2598
      %v2636 = vadd.f32 %v2390, %v2601
      %v2637 = vadd.f32 %v2391, %v2604
      %s2638 = scalar_lea.vmem %s314, 16
      %v2639 = vld [vmem:[%s2638] sm:$0xf]
      %v2641 = vsel %vm1279, %v2639, 0
      %2643 = vmatpush.msra.mxu0 0.0
      %2644 = vmatpush.msra.mxu0 0.0
      %2645 = vmatpush.msra.mxu0 0.0
      %2646 = vmatpush.msra.mxu0 0.0
      %2647 = vmatpush.msra.mxu0 0.0
      %2648 = vmatpush.msra.mxu0 0.0
      %2649 = vmatpush.msra.mxu0 0.0
      %2650 = vmatpush.msra.mxu0 0.0
      %2651 = vmatpush.msra.mxu0 0.0
      %2652 = vmatpush.msra.mxu0 0.0
      %2653 = vmatpush.msra.mxu0 0.0
      %2654 = vmatpush.msra.mxu0 0.0
      %2655 = vmatpush.msra.mxu0 0.0
      %2656 = vmatpush.msra.mxu0 0.0
      %2657 = vmatpush.msra.mxu0 0.0
      %2658 = vmatpush.msra.mxu0 %v2641
      %2659 = vmatmul.f32.gmra.mxu0 %v1184
      %v2660 = vpop.f32.mrf.mxu0
      %v2661 = vadd.f32 0.0, %v2660
      %2662 = vmatmul.f32.gmra.mxu0 %v1187
      %v2663 = vpop.f32.mrf.mxu0
      %v2664 = vadd.f32 0.0, %v2663
      %2665 = vmatmul.f32.gmra.mxu0 %v1190
      %v2666 = vpop.f32.mrf.mxu0
      %v2667 = vadd.f32 0.0, %v2666
      %2668 = vmatmul.f32.gmra.mxu0 %v1193
      %v2669 = vpop.f32.mrf.mxu0
      %v2670 = vadd.f32 0.0, %v2669
      %2671 = vmatmul.f32.gmra.mxu0 %v1196
      %v2672 = vpop.f32.mrf.mxu0
      %v2673 = vadd.f32 0.0, %v2672
      %2674 = vmatmul.f32.gmra.mxu0 %v1199
      %v2675 = vpop.f32.mrf.mxu0
      %v2676 = vadd.f32 0.0, %v2675
      %2677 = vmatmul.f32.gmra.mxu0 %v1202
      %v2678 = vpop.f32.mrf.mxu0
      %v2679 = vadd.f32 0.0, %v2678
      %2680 = vmatmul.f32.gmra.mxu0 %v1205
      %v2681 = vpop.f32.mrf.mxu0
      %v2682 = vadd.f32 0.0, %v2681
      %2683 = vmatmul.f32.gmra.mxu0 %v1208
      %v2684 = vpop.f32.mrf.mxu0
      %v2685 = vadd.f32 0.0, %v2684
      %2686 = vmatmul.f32.gmra.mxu0 %v1211
      %v2687 = vpop.f32.mrf.mxu0
      %v2688 = vadd.f32 0.0, %v2687
      %2689 = vmatmul.f32.gmra.mxu0 %v1214
      %v2690 = vpop.f32.mrf.mxu0
      %v2691 = vadd.f32 0.0, %v2690
      %2692 = vmatmul.f32.gmra.mxu0 %v1217
      %v2693 = vpop.f32.mrf.mxu0
      %v2694 = vadd.f32 0.0, %v2693
      %2695 = vmatmul.f32.gmra.mxu0 %v1220
      %v2696 = vpop.f32.mrf.mxu0
      %v2697 = vadd.f32 0.0, %v2696
      %2698 = vmatmul.f32.gmra.mxu0 %v1223
      %v2699 = vpop.f32.mrf.mxu0
      %v2700 = vadd.f32 0.0, %v2699
      %2701 = vmatmul.f32.gmra.mxu0 %v1226
      %v2702 = vpop.f32.mrf.mxu0
      %v2703 = vadd.f32 0.0, %v2702
      %2704 = vmatmul.f32.gmra.mxu0 %v1229
      %v2705 = vpop.f32.mrf.mxu0
      %v2706 = vadd.f32 0.0, %v2705
      %2707 = vmatmul.f32.gmra.mxu0 %v1232
      %v2708 = vpop.f32.mrf.mxu0
      %v2709 = vadd.f32 0.0, %v2708
      %2710 = vmatmul.f32.gmra.mxu0 %v1235
      %v2711 = vpop.f32.mrf.mxu0
      %v2712 = vadd.f32 0.0, %v2711
      %2713 = vmatmul.f32.gmra.mxu0 %v1238
      %v2714 = vpop.f32.mrf.mxu0
      %v2715 = vadd.f32 0.0, %v2714
      %2716 = vmatmul.f32.gmra.mxu0 %v1241
      %v2717 = vpop.f32.mrf.mxu0
      %v2718 = vadd.f32 0.0, %v2717
      %2719 = vmatmul.f32.gmra.mxu0 %v1244
      %v2720 = vpop.f32.mrf.mxu0
      %v2721 = vadd.f32 0.0, %v2720
      %2722 = vmatmul.f32.gmra.mxu0 %v1247
      %v2723 = vpop.f32.mrf.mxu0
      %v2724 = vadd.f32 0.0, %v2723
      %2725 = vmatmul.f32.gmra.mxu0 %v1250
      %v2726 = vpop.f32.mrf.mxu0
      %v2727 = vadd.f32 0.0, %v2726
      %2728 = vmatmul.f32.gmra.mxu0 %v1253
      %v2729 = vpop.f32.mrf.mxu0
      %v2730 = vadd.f32 0.0, %v2729
      %2731 = vmatmul.f32.gmra.mxu0 %v1256
      %v2732 = vpop.f32.mrf.mxu0
      %v2733 = vadd.f32 0.0, %v2732
      %2734 = vmatmul.f32.gmra.mxu0 %v1259
      %v2735 = vpop.f32.mrf.mxu0
      %v2736 = vadd.f32 0.0, %v2735
      %2737 = vmatmul.f32.gmra.mxu0 %v1262
      %v2738 = vpop.f32.mrf.mxu0
      %v2739 = vadd.f32 0.0, %v2738
      %2740 = vmatmul.f32.gmra.mxu0 %v1265
      %v2741 = vpop.f32.mrf.mxu0
      %v2742 = vadd.f32 0.0, %v2741
      %2743 = vmatmul.f32.gmra.mxu0 %v1268
      %v2744 = vpop.f32.mrf.mxu0
      %v2745 = vadd.f32 0.0, %v2744
      %2746 = vmatmul.f32.gmra.mxu0 %v1271
      %v2747 = vpop.f32.mrf.mxu0
      %v2748 = vadd.f32 0.0, %v2747
      %2749 = vmatmul.f32.gmra.mxu0 %v1274
      %v2750 = vpop.f32.mrf.mxu0
      %v2751 = vadd.f32 0.0, %v2750
      %2752 = vmatmul.f32.gmra.mxu0 %v1277
      %v2753 = vpop.f32.mrf.mxu0
      %v2754 = vadd.f32 0.0, %v2753
      %2755 = vdwg.mxu0
      %v2756 = vadd.f32 %v2606, %v2661
      %v2757 = vadd.f32 %v2607, %v2664
      %v2758 = vadd.f32 %v2608, %v2667
      %v2759 = vadd.f32 %v2609, %v2670
      %v2760 = vadd.f32 %v2610, %v2673
      %v2761 = vadd.f32 %v2611, %v2676
      %v2762 = vadd.f32 %v2612, %v2679
      %v2763 = vadd.f32 %v2613, %v2682
      %v2764 = vadd.f32 %v2614, %v2685
      %v2765 = vadd.f32 %v2615, %v2688
      %v2766 = vadd.f32 %v2616, %v2691
      %v2767 = vadd.f32 %v2617, %v2694
      %v2768 = vadd.f32 %v2618, %v2697
      %v2769 = vadd.f32 %v2619, %v2700
      %v2770 = vadd.f32 %v2620, %v2703
      %v2771 = vadd.f32 %v2621, %v2706
      %v2772 = vadd.f32 %v2622, %v2709
      %v2773 = vadd.f32 %v2623, %v2712
      %v2774 = vadd.f32 %v2624, %v2715
      %v2775 = vadd.f32 %v2625, %v2718
      %v2776 = vadd.f32 %v2626, %v2721
      %v2777 = vadd.f32 %v2627, %v2724
      %v2778 = vadd.f32 %v2628, %v2727
      %v2779 = vadd.f32 %v2629, %v2730
      %v2780 = vadd.f32 %v2630, %v2733
      %v2781 = vadd.f32 %v2631, %v2736
      %v2782 = vadd.f32 %v2632, %v2739
      %v2783 = vadd.f32 %v2633, %v2742
      %v2784 = vadd.f32 %v2634, %v2745
      %v2785 = vadd.f32 %v2635, %v2748
      %v2786 = vadd.f32 %v2636, %v2751
      %v2787 = vadd.f32 %v2637, %v2754
      %s2788 = scalar_lea.vmem %s314, 20
      %v2789 = vld [vmem:[%s2788] sm:$0xf]
      %v2791 = vsel %vm1085, %v1590, 0
      %v2794 = vsel %vm1085, %v1591, 0
      %v2797 = vsel %vm1085, %v1592, 0
      %v2800 = vsel %vm1085, %v1593, 0
      %v2803 = vsel %vm1085, %v1594, 0
      %v2806 = vsel %vm1085, %v1595, 0
      %v2809 = vsel %vm1085, %v1596, 0
      %v2812 = vsel %vm1085, %v1597, 0
      %v2815 = vsel %vm1085, %v1598, 0
      %v2818 = vsel %vm1085, %v1599, 0
      %v2821 = vsel %vm1085, %v1600, 0
      %v2824 = vsel %vm1085, %v1601, 0
      %v2827 = vsel %vm1085, %v1602, 0
      %v2830 = vsel %vm1085, %v1603, 0
      %v2833 = vsel %vm1085, %v1604, 0
      %v2836 = vsel %vm1085, %v1605, 0
      %v2839 = vsel %vm1085, %v1606, 0
      %v2842 = vsel %vm1085, %v1607, 0
      %v2845 = vsel %vm1085, %v1608, 0
      %v2848 = vsel %vm1085, %v1609, 0
      %v2851 = vsel %vm1085, %v1610, 0
      %v2854 = vsel %vm1085, %v1611, 0
      %v2857 = vsel %vm1085, %v1612, 0
      %v2860 = vsel %vm1085, %v1613, 0
      %v2863 = vsel %vm1085, %v1614, 0
      %v2866 = vsel %vm1085, %v1615, 0
      %v2869 = vsel %vm1085, %v1616, 0
      %v2872 = vsel %vm1085, %v1617, 0
      %v2875 = vsel %vm1085, %v1618, 0
      %v2878 = vsel %vm1085, %v1619, 0
      %v2881 = vsel %vm1085, %v1620, 0
      %v2884 = vsel %vm1085, %v1621, 0
      %v2887 = vsel %vm1279, %v2789, 0
      %2889 = vmatpush.msra.mxu0 0.0
      %2890 = vmatpush.msra.mxu0 0.0
      %2891 = vmatpush.msra.mxu0 0.0
      %2892 = vmatpush.msra.mxu0 0.0
      %2893 = vmatpush.msra.mxu0 0.0
      %2894 = vmatpush.msra.mxu0 0.0
      %2895 = vmatpush.msra.mxu0 0.0
      %2896 = vmatpush.msra.mxu0 0.0
      %2897 = vmatpush.msra.mxu0 0.0
      %2898 = vmatpush.msra.mxu0 0.0
      %2899 = vmatpush.msra.mxu0 0.0
      %2900 = vmatpush.msra.mxu0 0.0
      %2901 = vmatpush.msra.mxu0 0.0
      %2902 = vmatpush.msra.mxu0 0.0
      %2903 = vmatpush.msra.mxu0 0.0
      %2904 = vmatpush.msra.mxu0 %v2887
      %2905 = vmatmul.f32.gmra.mxu0 %v2791
      %v2906 = vpop.f32.mrf.mxu0
      %v2907 = vadd.f32 0.0, %v2906
      %2908 = vmatmul.f32.gmra.mxu0 %v2794
      %v2909 = vpop.f32.mrf.mxu0
      %v2910 = vadd.f32 0.0, %v2909
      %2911 = vmatmul.f32.gmra.mxu0 %v2797
      %v2912 = vpop.f32.mrf.mxu0
      %v2913 = vadd.f32 0.0, %v2912
      %2914 = vmatmul.f32.gmra.mxu0 %v2800
      %v2915 = vpop.f32.mrf.mxu0
      %v2916 = vadd.f32 0.0, %v2915
      %2917 = vmatmul.f32.gmra.mxu0 %v2803
      %v2918 = vpop.f32.mrf.mxu0
      %v2919 = vadd.f32 0.0, %v2918
      %2920 = vmatmul.f32.gmra.mxu0 %v2806
      %v2921 = vpop.f32.mrf.mxu0
      %v2922 = vadd.f32 0.0, %v2921
      %2923 = vmatmul.f32.gmra.mxu0 %v2809
      %v2924 = vpop.f32.mrf.mxu0
      %v2925 = vadd.f32 0.0, %v2924
      %2926 = vmatmul.f32.gmra.mxu0 %v2812
      %v2927 = vpop.f32.mrf.mxu0
      %v2928 = vadd.f32 0.0, %v2927
      %2929 = vmatmul.f32.gmra.mxu0 %v2815
      %v2930 = vpop.f32.mrf.mxu0
      %v2931 = vadd.f32 0.0, %v2930
      %2932 = vmatmul.f32.gmra.mxu0 %v2818
      %v2933 = vpop.f32.mrf.mxu0
      %v2934 = vadd.f32 0.0, %v2933
      %2935 = vmatmul.f32.gmra.mxu0 %v2821
      %v2936 = vpop.f32.mrf.mxu0
      %v2937 = vadd.f32 0.0, %v2936
      %2938 = vmatmul.f32.gmra.mxu0 %v2824
      %v2939 = vpop.f32.mrf.mxu0
      %v2940 = vadd.f32 0.0, %v2939
      %2941 = vmatmul.f32.gmra.mxu0 %v2827
      %v2942 = vpop.f32.mrf.mxu0
      %v2943 = vadd.f32 0.0, %v2942
      %2944 = vmatmul.f32.gmra.mxu0 %v2830
      %v2945 = vpop.f32.mrf.mxu0
      %v2946 = vadd.f32 0.0, %v2945
      %2947 = vmatmul.f32.gmra.mxu0 %v2833
      %v2948 = vpop.f32.mrf.mxu0
      %v2949 = vadd.f32 0.0, %v2948
      %2950 = vmatmul.f32.gmra.mxu0 %v2836
      %v2951 = vpop.f32.mrf.mxu0
      %v2952 = vadd.f32 0.0, %v2951
      %2953 = vmatmul.f32.gmra.mxu0 %v2839
      %v2954 = vpop.f32.mrf.mxu0
      %v2955 = vadd.f32 0.0, %v2954
      %2956 = vmatmul.f32.gmra.mxu0 %v2842
      %v2957 = vpop.f32.mrf.mxu0
      %v2958 = vadd.f32 0.0, %v2957
      %2959 = vmatmul.f32.gmra.mxu0 %v2845
      %v2960 = vpop.f32.mrf.mxu0
      %v2961 = vadd.f32 0.0, %v2960
      %2962 = vmatmul.f32.gmra.mxu0 %v2848
      %v2963 = vpop.f32.mrf.mxu0
      %v2964 = vadd.f32 0.0, %v2963
      %2965 = vmatmul.f32.gmra.mxu0 %v2851
      %v2966 = vpop.f32.mrf.mxu0
      %v2967 = vadd.f32 0.0, %v2966
      %2968 = vmatmul.f32.gmra.mxu0 %v2854
      %v2969 = vpop.f32.mrf.mxu0
      %v2970 = vadd.f32 0.0, %v2969
      %2971 = vmatmul.f32.gmra.mxu0 %v2857
      %v2972 = vpop.f32.mrf.mxu0
      %v2973 = vadd.f32 0.0, %v2972
      %2974 = vmatmul.f32.gmra.mxu0 %v2860
      %v2975 = vpop.f32.mrf.mxu0
      %v2976 = vadd.f32 0.0, %v2975
      %2977 = vmatmul.f32.gmra.mxu0 %v2863
      %v2978 = vpop.f32.mrf.mxu0
      %v2979 = vadd.f32 0.0, %v2978
      %2980 = vmatmul.f32.gmra.mxu0 %v2866
      %v2981 = vpop.f32.mrf.mxu0
      %v2982 = vadd.f32 0.0, %v2981
      %2983 = vmatmul.f32.gmra.mxu0 %v2869
      %v2984 = vpop.f32.mrf.mxu0
      %v2985 = vadd.f32 0.0, %v2984
      %2986 = vmatmul.f32.gmra.mxu0 %v2872
      %v2987 = vpop.f32.mrf.mxu0
      %v2988 = vadd.f32 0.0, %v2987
      %2989 = vmatmul.f32.gmra.mxu0 %v2875
      %v2990 = vpop.f32.mrf.mxu0
      %v2991 = vadd.f32 0.0, %v2990
      %2992 = vmatmul.f32.gmra.mxu0 %v2878
      %v2993 = vpop.f32.mrf.mxu0
      %v2994 = vadd.f32 0.0, %v2993
      %2995 = vmatmul.f32.gmra.mxu0 %v2881
      %v2996 = vpop.f32.mrf.mxu0
      %v2997 = vadd.f32 0.0, %v2996
      %2998 = vmatmul.f32.gmra.mxu0 %v2884
      %v2999 = vpop.f32.mrf.mxu0
      %v3000 = vadd.f32 0.0, %v2999
      %3001 = vdwg.mxu0
      %v3002 = vadd.f32 %v2756, %v2907
      %v3003 = vadd.f32 %v2757, %v2910
      %v3004 = vadd.f32 %v2758, %v2913
      %v3005 = vadd.f32 %v2759, %v2916
      %v3006 = vadd.f32 %v2760, %v2919
      %v3007 = vadd.f32 %v2761, %v2922
      %v3008 = vadd.f32 %v2762, %v2925
      %v3009 = vadd.f32 %v2763, %v2928
      %v3010 = vadd.f32 %v2764, %v2931
      %v3011 = vadd.f32 %v2765, %v2934
      %v3012 = vadd.f32 %v2766, %v2937
      %v3013 = vadd.f32 %v2767, %v2940
      %v3014 = vadd.f32 %v2768, %v2943
      %v3015 = vadd.f32 %v2769, %v2946
      %v3016 = vadd.f32 %v2770, %v2949
      %v3017 = vadd.f32 %v2771, %v2952
      %v3018 = vadd.f32 %v2772, %v2955
      %v3019 = vadd.f32 %v2773, %v2958
      %v3020 = vadd.f32 %v2774, %v2961
      %v3021 = vadd.f32 %v2775, %v2964
      %v3022 = vadd.f32 %v2776, %v2967
      %v3023 = vadd.f32 %v2777, %v2970
      %v3024 = vadd.f32 %v2778, %v2973
      %v3025 = vadd.f32 %v2779, %v2976
      %v3026 = vadd.f32 %v2780, %v2979
      %v3027 = vadd.f32 %v2781, %v2982
      %v3028 = vadd.f32 %v2782, %v2985
      %v3029 = vadd.f32 %v2783, %v2988
      %v3030 = vadd.f32 %v2784, %v2991
      %v3031 = vadd.f32 %v2785, %v2994
      %v3032 = vadd.f32 %v2786, %v2997
      %v3033 = vadd.f32 %v2787, %v3000
      %s3034 = scalar_lea.vmem %s314, 24
      %v3035 = vld [vmem:[%s3034] sm:$0xf]
      %v3037 = vsel %vm1085, %v1623, 0
      %v3040 = vsel %vm1085, %v1624, 0
      %v3043 = vsel %vm1085, %v1625, 0
      %v3046 = vsel %vm1085, %v1626, 0
      %v3049 = vsel %vm1085, %v1627, 0
      %v3052 = vsel %vm1085, %v1628, 0
      %v3055 = vsel %vm1085, %v1629, 0
      %v3058 = vsel %vm1085, %v1630, 0
      %v3061 = vsel %vm1085, %v1631, 0
      %v3064 = vsel %vm1085, %v1632, 0
      %v3067 = vsel %vm1085, %v1633, 0
      %v3070 = vsel %vm1085, %v1634, 0
      %v3073 = vsel %vm1085, %v1635, 0
      %v3076 = vsel %vm1085, %v1636, 0
      %v3079 = vsel %vm1085, %v1637, 0
      %v3082 = vsel %vm1085, %v1638, 0
      %v3085 = vsel %vm1085, %v1639, 0
      %v3088 = vsel %vm1085, %v1640, 0
      %v3091 = vsel %vm1085, %v1641, 0
      %v3094 = vsel %vm1085, %v1642, 0
      %v3097 = vsel %vm1085, %v1643, 0
      %v3100 = vsel %vm1085, %v1644, 0
      %v3103 = vsel %vm1085, %v1645, 0
      %v3106 = vsel %vm1085, %v1646, 0
      %v3109 = vsel %vm1085, %v1647, 0
      %v3112 = vsel %vm1085, %v1648, 0
      %v3115 = vsel %vm1085, %v1649, 0
      %v3118 = vsel %vm1085, %v1650, 0
      %v3121 = vsel %vm1085, %v1651, 0
      %v3124 = vsel %vm1085, %v1652, 0
      %v3127 = vsel %vm1085, %v1653, 0
      %v3130 = vsel %vm1085, %v1654, 0
      %v3133 = vsel %vm1279, %v3035, 0
      %3135 = vmatpush.msra.mxu0 0.0
      %3136 = vmatpush.msra.mxu0 0.0
      %3137 = vmatpush.msra.mxu0 0.0
      %3138 = vmatpush.msra.mxu0 0.0
      %3139 = vmatpush.msra.mxu0 0.0
      %3140 = vmatpush.msra.mxu0 0.0
      %3141 = vmatpush.msra.mxu0 0.0
      %3142 = vmatpush.msra.mxu0 0.0
      %3143 = vmatpush.msra.mxu0 0.0
      %3144 = vmatpush.msra.mxu0 0.0
      %3145 = vmatpush.msra.mxu0 0.0
      %3146 = vmatpush.msra.mxu0 0.0
      %3147 = vmatpush.msra.mxu0 0.0
      %3148 = vmatpush.msra.mxu0 0.0
      %3149 = vmatpush.msra.mxu0 0.0
      %3150 = vmatpush.msra.mxu0 %v3133
      %3151 = vmatmul.f32.gmra.mxu0 %v3037
      %v3152 = vpop.f32.mrf.mxu0
      %v3153 = vadd.f32 0.0, %v3152
      %3154 = vmatmul.f32.gmra.mxu0 %v3040
      %v3155 = vpop.f32.mrf.mxu0
      %v3156 = vadd.f32 0.0, %v3155
      %3157 = vmatmul.f32.gmra.mxu0 %v3043
      %v3158 = vpop.f32.mrf.mxu0
      %v3159 = vadd.f32 0.0, %v3158
      %3160 = vmatmul.f32.gmra.mxu0 %v3046
      %v3161 = vpop.f32.mrf.mxu0
      %v3162 = vadd.f32 0.0, %v3161
      %3163 = vmatmul.f32.gmra.mxu0 %v3049
      %v3164 = vpop.f32.mrf.mxu0
      %v3165 = vadd.f32 0.0, %v3164
      %3166 = vmatmul.f32.gmra.mxu0 %v3052
      %v3167 = vpop.f32.mrf.mxu0
      %v3168 = vadd.f32 0.0, %v3167
      %3169 = vmatmul.f32.gmra.mxu0 %v3055
      %v3170 = vpop.f32.mrf.mxu0
      %v3171 = vadd.f32 0.0, %v3170
      %3172 = vmatmul.f32.gmra.mxu0 %v3058
      %v3173 = vpop.f32.mrf.mxu0
      %v3174 = vadd.f32 0.0, %v3173
      %3175 = vmatmul.f32.gmra.mxu0 %v3061
      %v3176 = vpop.f32.mrf.mxu0
      %v3177 = vadd.f32 0.0, %v3176
      %3178 = vmatmul.f32.gmra.mxu0 %v3064
      %v3179 = vpop.f32.mrf.mxu0
      %v3180 = vadd.f32 0.0, %v3179
      %3181 = vmatmul.f32.gmra.mxu0 %v3067
      %v3182 = vpop.f32.mrf.mxu0
      %v3183 = vadd.f32 0.0, %v3182
      %3184 = vmatmul.f32.gmra.mxu0 %v3070
      %v3185 = vpop.f32.mrf.mxu0
      %v3186 = vadd.f32 0.0, %v3185
      %3187 = vmatmul.f32.gmra.mxu0 %v3073
      %v3188 = vpop.f32.mrf.mxu0
      %v3189 = vadd.f32 0.0, %v3188
      %3190 = vmatmul.f32.gmra.mxu0 %v3076
      %v3191 = vpop.f32.mrf.mxu0
      %v3192 = vadd.f32 0.0, %v3191
      %3193 = vmatmul.f32.gmra.mxu0 %v3079
      %v3194 = vpop.f32.mrf.mxu0
      %v3195 = vadd.f32 0.0, %v3194
      %3196 = vmatmul.f32.gmra.mxu0 %v3082
      %v3197 = vpop.f32.mrf.mxu0
      %v3198 = vadd.f32 0.0, %v3197
      %3199 = vmatmul.f32.gmra.mxu0 %v3085
      %v3200 = vpop.f32.mrf.mxu0
      %v3201 = vadd.f32 0.0, %v3200
      %3202 = vmatmul.f32.gmra.mxu0 %v3088
      %v3203 = vpop.f32.mrf.mxu0
      %v3204 = vadd.f32 0.0, %v3203
      %3205 = vmatmul.f32.gmra.mxu0 %v3091
      %v3206 = vpop.f32.mrf.mxu0
      %v3207 = vadd.f32 0.0, %v3206
      %3208 = vmatmul.f32.gmra.mxu0 %v3094
      %v3209 = vpop.f32.mrf.mxu0
      %v3210 = vadd.f32 0.0, %v3209
      %3211 = vmatmul.f32.gmra.mxu0 %v3097
      %v3212 = vpop.f32.mrf.mxu0
      %v3213 = vadd.f32 0.0, %v3212
      %3214 = vmatmul.f32.gmra.mxu0 %v3100
      %v3215 = vpop.f32.mrf.mxu0
      %v3216 = vadd.f32 0.0, %v3215
      %3217 = vmatmul.f32.gmra.mxu0 %v3103
      %v3218 = vpop.f32.mrf.mxu0
      %v3219 = vadd.f32 0.0, %v3218
      %3220 = vmatmul.f32.gmra.mxu0 %v3106
      %v3221 = vpop.f32.mrf.mxu0
      %v3222 = vadd.f32 0.0, %v3221
      %3223 = vmatmul.f32.gmra.mxu0 %v3109
      %v3224 = vpop.f32.mrf.mxu0
      %v3225 = vadd.f32 0.0, %v3224
      %3226 = vmatmul.f32.gmra.mxu0 %v3112
      %v3227 = vpop.f32.mrf.mxu0
      %v3228 = vadd.f32 0.0, %v3227
      %3229 = vmatmul.f32.gmra.mxu0 %v3115
      %v3230 = vpop.f32.mrf.mxu0
      %v3231 = vadd.f32 0.0, %v3230
      %3232 = vmatmul.f32.gmra.mxu0 %v3118
      %v3233 = vpop.f32.mrf.mxu0
      %v3234 = vadd.f32 0.0, %v3233
      %3235 = vmatmul.f32.gmra.mxu0 %v3121
      %v3236 = vpop.f32.mrf.mxu0
      %v3237 = vadd.f32 0.0, %v3236
      %3238 = vmatmul.f32.gmra.mxu0 %v3124
      %v3239 = vpop.f32.mrf.mxu0
      %v3240 = vadd.f32 0.0, %v3239
      %3241 = vmatmul.f32.gmra.mxu0 %v3127
      %v3242 = vpop.f32.mrf.mxu0
      %v3243 = vadd.f32 0.0, %v3242
      %3244 = vmatmul.f32.gmra.mxu0 %v3130
      %v3245 = vpop.f32.mrf.mxu0
      %v3246 = vadd.f32 0.0, %v3245
      %3247 = vdwg.mxu0
      %v3248 = vadd.f32 %v3002, %v3153
      %v3249 = vadd.f32 %v3003, %v3156
      %v3250 = vadd.f32 %v3004, %v3159
      %v3251 = vadd.f32 %v3005, %v3162
      %v3252 = vadd.f32 %v3006, %v3165
      %v3253 = vadd.f32 %v3007, %v3168
      %v3254 = vadd.f32 %v3008, %v3171
      %v3255 = vadd.f32 %v3009, %v3174
      %v3256 = vadd.f32 %v3010, %v3177
      %v3257 = vadd.f32 %v3011, %v3180
      %v3258 = vadd.f32 %v3012, %v3183
      %v3259 = vadd.f32 %v3013, %v3186
      %v3260 = vadd.f32 %v3014, %v3189
      %v3261 = vadd.f32 %v3015, %v3192
      %v3262 = vadd.f32 %v3016, %v3195
      %v3263 = vadd.f32 %v3017, %v3198
      %v3264 = vadd.f32 %v3018, %v3201
      %v3265 = vadd.f32 %v3019, %v3204
      %v3266 = vadd.f32 %v3020, %v3207
      %v3267 = vadd.f32 %v3021, %v3210
      %v3268 = vadd.f32 %v3022, %v3213
      %v3269 = vadd.f32 %v3023, %v3216
      %v3270 = vadd.f32 %v3024, %v3219
      %v3271 = vadd.f32 %v3025, %v3222
      %v3272 = vadd.f32 %v3026, %v3225
      %v3273 = vadd.f32 %v3027, %v3228
      %v3274 = vadd.f32 %v3028, %v3231
      %v3275 = vadd.f32 %v3029, %v3234
      %v3276 = vadd.f32 %v3030, %v3237
      %v3277 = vadd.f32 %v3031, %v3240
      %v3278 = vadd.f32 %v3032, %v3243
      %v3279 = vadd.f32 %v3033, %v3246
      %s3280 = scalar_lea.vmem %s314, 28
      %v3281 = vld [vmem:[%s3280] sm:$0xf]
      %v3283 = vsel %vm1085, %v1655, 0
      %v3286 = vsel %vm1085, %v1656, 0
      %v3289 = vsel %vm1085, %v1657, 0
      %v3292 = vsel %vm1085, %v1658, 0
      %v3295 = vsel %vm1085, %v1659, 0
      %v3298 = vsel %vm1085, %v1660, 0
      %v3301 = vsel %vm1085, %v1661, 0
      %v3304 = vsel %vm1085, %v1662, 0
      %v3307 = vsel %vm1085, %v1663, 0
      %v3310 = vsel %vm1085, %v1664, 0
      %v3313 = vsel %vm1085, %v1665, 0
      %v3316 = vsel %vm1085, %v1666, 0
      %v3319 = vsel %vm1085, %v1667, 0
      %v3322 = vsel %vm1085, %v1668, 0
      %v3325 = vsel %vm1085, %v1669, 0
      %v3328 = vsel %vm1085, %v1670, 0
      %v3331 = vsel %vm1085, %v1671, 0
      %v3334 = vsel %vm1085, %v1672, 0
      %v3337 = vsel %vm1085, %v1673, 0
      %v3340 = vsel %vm1085, %v1674, 0
      %v3343 = vsel %vm1085, %v1675, 0
      %v3346 = vsel %vm1085, %v1676, 0
      %v3349 = vsel %vm1085, %v1677, 0
      %v3352 = vsel %vm1085, %v1678, 0
      %v3355 = vsel %vm1085, %v1679, 0
      %v3358 = vsel %vm1085, %v1680, 0
      %v3361 = vsel %vm1085, %v1681, 0
      %v3364 = vsel %vm1085, %v1682, 0
      %v3367 = vsel %vm1085, %v1683, 0
      %v3370 = vsel %vm1085, %v1684, 0
      %v3373 = vsel %vm1085, %v1685, 0
      %v3376 = vsel %vm1085, %v1686, 0
      %v3379 = vsel %vm1279, %v3281, 0
      %3381 = vmatpush.msra.mxu0 0.0
      %3382 = vmatpush.msra.mxu0 0.0
      %3383 = vmatpush.msra.mxu0 0.0
      %3384 = vmatpush.msra.mxu0 0.0
      %3385 = vmatpush.msra.mxu0 0.0
      %3386 = vmatpush.msra.mxu0 0.0
      %3387 = vmatpush.msra.mxu0 0.0
      %3388 = vmatpush.msra.mxu0 0.0
      %3389 = vmatpush.msra.mxu0 0.0
      %3390 = vmatpush.msra.mxu0 0.0
      %3391 = vmatpush.msra.mxu0 0.0
      %3392 = vmatpush.msra.mxu0 0.0
      %3393 = vmatpush.msra.mxu0 0.0
      %3394 = vmatpush.msra.mxu0 0.0
      %3395 = vmatpush.msra.mxu0 0.0
      %3396 = vmatpush.msra.mxu0 %v3379
      %3397 = vmatmul.f32.gmra.mxu0 %v3283
      %v3398 = vpop.f32.mrf.mxu0
      %v3399 = vadd.f32 0.0, %v3398
      %3400 = vmatmul.f32.gmra.mxu0 %v3286
      %v3401 = vpop.f32.mrf.mxu0
      %v3402 = vadd.f32 0.0, %v3401
      %3403 = vmatmul.f32.gmra.mxu0 %v3289
      %v3404 = vpop.f32.mrf.mxu0
      %v3405 = vadd.f32 0.0, %v3404
      %3406 = vmatmul.f32.gmra.mxu0 %v3292
      %v3407 = vpop.f32.mrf.mxu0
      %v3408 = vadd.f32 0.0, %v3407
      %3409 = vmatmul.f32.gmra.mxu0 %v3295
      %v3410 = vpop.f32.mrf.mxu0
      %v3411 = vadd.f32 0.0, %v3410
      %3412 = vmatmul.f32.gmra.mxu0 %v3298
      %v3413 = vpop.f32.mrf.mxu0
      %v3414 = vadd.f32 0.0, %v3413
      %3415 = vmatmul.f32.gmra.mxu0 %v3301
      %v3416 = vpop.f32.mrf.mxu0
      %v3417 = vadd.f32 0.0, %v3416
      %3418 = vmatmul.f32.gmra.mxu0 %v3304
      %v3419 = vpop.f32.mrf.mxu0
      %v3420 = vadd.f32 0.0, %v3419
      %3421 = vmatmul.f32.gmra.mxu0 %v3307
      %v3422 = vpop.f32.mrf.mxu0
      %v3423 = vadd.f32 0.0, %v3422
      %3424 = vmatmul.f32.gmra.mxu0 %v3310
      %v3425 = vpop.f32.mrf.mxu0
      %v3426 = vadd.f32 0.0, %v3425
      %3427 = vmatmul.f32.gmra.mxu0 %v3313
      %v3428 = vpop.f32.mrf.mxu0
      %v3429 = vadd.f32 0.0, %v3428
      %3430 = vmatmul.f32.gmra.mxu0 %v3316
      %v3431 = vpop.f32.mrf.mxu0
      %v3432 = vadd.f32 0.0, %v3431
      %3433 = vmatmul.f32.gmra.mxu0 %v3319
      %v3434 = vpop.f32.mrf.mxu0
      %v3435 = vadd.f32 0.0, %v3434
      %3436 = vmatmul.f32.gmra.mxu0 %v3322
      %v3437 = vpop.f32.mrf.mxu0
      %v3438 = vadd.f32 0.0, %v3437
      %3439 = vmatmul.f32.gmra.mxu0 %v3325
      %v3440 = vpop.f32.mrf.mxu0
      %v3441 = vadd.f32 0.0, %v3440
      %3442 = vmatmul.f32.gmra.mxu0 %v3328
      %v3443 = vpop.f32.mrf.mxu0
      %v3444 = vadd.f32 0.0, %v3443
      %3445 = vmatmul.f32.gmra.mxu0 %v3331
      %v3446 = vpop.f32.mrf.mxu0
      %v3447 = vadd.f32 0.0, %v3446
      %3448 = vmatmul.f32.gmra.mxu0 %v3334
      %v3449 = vpop.f32.mrf.mxu0
      %v3450 = vadd.f32 0.0, %v3449
      %3451 = vmatmul.f32.gmra.mxu0 %v3337
      %v3452 = vpop.f32.mrf.mxu0
      %v3453 = vadd.f32 0.0, %v3452
      %3454 = vmatmul.f32.gmra.mxu0 %v3340
      %v3455 = vpop.f32.mrf.mxu0
      %v3456 = vadd.f32 0.0, %v3455
      %3457 = vmatmul.f32.gmra.mxu0 %v3343
      %v3458 = vpop.f32.mrf.mxu0
      %v3459 = vadd.f32 0.0, %v3458
      %3460 = vmatmul.f32.gmra.mxu0 %v3346
      %v3461 = vpop.f32.mrf.mxu0
      %v3462 = vadd.f32 0.0, %v3461
      %3463 = vmatmul.f32.gmra.mxu0 %v3349
      %v3464 = vpop.f32.mrf.mxu0
      %v3465 = vadd.f32 0.0, %v3464
      %3466 = vmatmul.f32.gmra.mxu0 %v3352
      %v3467 = vpop.f32.mrf.mxu0
      %v3468 = vadd.f32 0.0, %v3467
      %3469 = vmatmul.f32.gmra.mxu0 %v3355
      %v3470 = vpop.f32.mrf.mxu0
      %v3471 = vadd.f32 0.0, %v3470
      %3472 = vmatmul.f32.gmra.mxu0 %v3358
      %v3473 = vpop.f32.mrf.mxu0
      %v3474 = vadd.f32 0.0, %v3473
      %3475 = vmatmul.f32.gmra.mxu0 %v3361
      %v3476 = vpop.f32.mrf.mxu0
      %v3477 = vadd.f32 0.0, %v3476
      %3478 = vmatmul.f32.gmra.mxu0 %v3364
      %v3479 = vpop.f32.mrf.mxu0
      %v3480 = vadd.f32 0.0, %v3479
      %3481 = vmatmul.f32.gmra.mxu0 %v3367
      %v3482 = vpop.f32.mrf.mxu0
      %v3483 = vadd.f32 0.0, %v3482
      %3484 = vmatmul.f32.gmra.mxu0 %v3370
      %v3485 = vpop.f32.mrf.mxu0
      %v3486 = vadd.f32 0.0, %v3485
      %3487 = vmatmul.f32.gmra.mxu0 %v3373
      %v3488 = vpop.f32.mrf.mxu0
      %v3489 = vadd.f32 0.0, %v3488
      %3490 = vmatmul.f32.gmra.mxu0 %v3376
      %v3491 = vpop.f32.mrf.mxu0
      %v3492 = vadd.f32 0.0, %v3491
      %3493 = vdwg.mxu0
      %v3494 = vadd.f32 %v3248, %v3399
      %v3495 = vadd.f32 %v3249, %v3402
      %v3496 = vadd.f32 %v3250, %v3405
      %v3497 = vadd.f32 %v3251, %v3408
      %v3498 = vadd.f32 %v3252, %v3411
      %v3499 = vadd.f32 %v3253, %v3414
      %v3500 = vadd.f32 %v3254, %v3417
      %v3501 = vadd.f32 %v3255, %v3420
      %v3502 = vadd.f32 %v3256, %v3423
      %v3503 = vadd.f32 %v3257, %v3426
      %v3504 = vadd.f32 %v3258, %v3429
      %v3505 = vadd.f32 %v3259, %v3432
      %v3506 = vadd.f32 %v3260, %v3435
      %v3507 = vadd.f32 %v3261, %v3438
      %v3508 = vadd.f32 %v3262, %v3441
      %v3509 = vadd.f32 %v3263, %v3444
      %v3510 = vadd.f32 %v3264, %v3447
      %v3511 = vadd.f32 %v3265, %v3450
      %v3512 = vadd.f32 %v3266, %v3453
      %v3513 = vadd.f32 %v3267, %v3456
      %v3514 = vadd.f32 %v3268, %v3459
      %v3515 = vadd.f32 %v3269, %v3462
      %v3516 = vadd.f32 %v3270, %v3465
      %v3517 = vadd.f32 %v3271, %v3468
      %v3518 = vadd.f32 %v3272, %v3471
      %v3519 = vadd.f32 %v3273, %v3474
      %v3520 = vadd.f32 %v3274, %v3477
      %v3521 = vadd.f32 %v3275, %v3480
      %v3522 = vadd.f32 %v3276, %v3483
      %v3523 = vadd.f32 %v3277, %v3486
      %v3524 = vadd.f32 %v3278, %v3489
      %v3525 = vadd.f32 %v3279, %v3492
      %s3526 = scalar_lea.vmem %s314, 32
      %v3527 = vld [vmem:[%s3526] sm:$0xf]
      %v3529 = vsel %vm1085, %v1687, 0
      %v3532 = vsel %vm1085, %v1688, 0
      %v3535 = vsel %vm1085, %v1689, 0
      %v3538 = vsel %vm1085, %v1690, 0
      %v3541 = vsel %vm1085, %v1691, 0
      %v3544 = vsel %vm1085, %v1692, 0
      %v3547 = vsel %vm1085, %v1693, 0
      %v3550 = vsel %vm1085, %v1694, 0
      %v3553 = vsel %vm1085, %v1695, 0
      %v3556 = vsel %vm1085, %v1696, 0
      %v3559 = vsel %vm1085, %v1697, 0
      %v3562 = vsel %vm1085, %v1698, 0
      %v3565 = vsel %vm1085, %v1699, 0
      %v3568 = vsel %vm1085, %v1700, 0
      %v3571 = vsel %vm1085, %v1701, 0
      %v3574 = vsel %vm1085, %v1702, 0
      %v3577 = vsel %vm1085, %v1703, 0
      %v3580 = vsel %vm1085, %v1704, 0
      %v3583 = vsel %vm1085, %v1705, 0
      %v3586 = vsel %vm1085, %v1706, 0
      %v3589 = vsel %vm1085, %v1707, 0
      %v3592 = vsel %vm1085, %v1708, 0
      %v3595 = vsel %vm1085, %v1709, 0
      %v3598 = vsel %vm1085, %v1710, 0
      %v3601 = vsel %vm1085, %v1711, 0
      %v3604 = vsel %vm1085, %v1712, 0
      %v3607 = vsel %vm1085, %v1713, 0
      %v3610 = vsel %vm1085, %v1714, 0
      %v3613 = vsel %vm1085, %v1715, 0
      %v3616 = vsel %vm1085, %v1716, 0
      %v3619 = vsel %vm1085, %v1717, 0
      %v3622 = vsel %vm1085, %v1718, 0
      %v3625 = vsel %vm1279, %v3527, 0
      %3627 = vmatpush.msra.mxu0 0.0
      %3628 = vmatpush.msra.mxu0 0.0
      %3629 = vmatpush.msra.mxu0 0.0
      %3630 = vmatpush.msra.mxu0 0.0
      %3631 = vmatpush.msra.mxu0 0.0
      %3632 = vmatpush.msra.mxu0 0.0
      %3633 = vmatpush.msra.mxu0 0.0
      %3634 = vmatpush.msra.mxu0 0.0
      %3635 = vmatpush.msra.mxu0 0.0
      %3636 = vmatpush.msra.mxu0 0.0
      %3637 = vmatpush.msra.mxu0 0.0
      %3638 = vmatpush.msra.mxu0 0.0
      %3639 = vmatpush.msra.mxu0 0.0
      %3640 = vmatpush.msra.mxu0 0.0
      %3641 = vmatpush.msra.mxu0 0.0
      %3642 = vmatpush.msra.mxu0 %v3625
      %3643 = vmatmul.f32.gmra.mxu0 %v3529
      %v3644 = vpop.f32.mrf.mxu0
      %v3645 = vadd.f32 0.0, %v3644
      %3646 = vmatmul.f32.gmra.mxu0 %v3532
      %v3647 = vpop.f32.mrf.mxu0
      %v3648 = vadd.f32 0.0, %v3647
      %3649 = vmatmul.f32.gmra.mxu0 %v3535
      %v3650 = vpop.f32.mrf.mxu0
      %v3651 = vadd.f32 0.0, %v3650
      %3652 = vmatmul.f32.gmra.mxu0 %v3538
      %v3653 = vpop.f32.mrf.mxu0
      %v3654 = vadd.f32 0.0, %v3653
      %3655 = vmatmul.f32.gmra.mxu0 %v3541
      %v3656 = vpop.f32.mrf.mxu0
      %v3657 = vadd.f32 0.0, %v3656
      %3658 = vmatmul.f32.gmra.mxu0 %v3544
      %v3659 = vpop.f32.mrf.mxu0
      %v3660 = vadd.f32 0.0, %v3659
      %3661 = vmatmul.f32.gmra.mxu0 %v3547
      %v3662 = vpop.f32.mrf.mxu0
      %v3663 = vadd.f32 0.0, %v3662
      %3664 = vmatmul.f32.gmra.mxu0 %v3550
      %v3665 = vpop.f32.mrf.mxu0
      %v3666 = vadd.f32 0.0, %v3665
      %3667 = vmatmul.f32.gmra.mxu0 %v3553
      %v3668 = vpop.f32.mrf.mxu0
      %v3669 = vadd.f32 0.0, %v3668
      %3670 = vmatmul.f32.gmra.mxu0 %v3556
      %v3671 = vpop.f32.mrf.mxu0
      %v3672 = vadd.f32 0.0, %v3671
      %3673 = vmatmul.f32.gmra.mxu0 %v3559
      %v3674 = vpop.f32.mrf.mxu0
      %v3675 = vadd.f32 0.0, %v3674
      %3676 = vmatmul.f32.gmra.mxu0 %v3562
      %v3677 = vpop.f32.mrf.mxu0
      %v3678 = vadd.f32 0.0, %v3677
      %3679 = vmatmul.f32.gmra.mxu0 %v3565
      %v3680 = vpop.f32.mrf.mxu0
      %v3681 = vadd.f32 0.0, %v3680
      %3682 = vmatmul.f32.gmra.mxu0 %v3568
      %v3683 = vpop.f32.mrf.mxu0
      %v3684 = vadd.f32 0.0, %v3683
      %3685 = vmatmul.f32.gmra.mxu0 %v3571
      %v3686 = vpop.f32.mrf.mxu0
      %v3687 = vadd.f32 0.0, %v3686
      %3688 = vmatmul.f32.gmra.mxu0 %v3574
      %v3689 = vpop.f32.mrf.mxu0
      %v3690 = vadd.f32 0.0, %v3689
      %3691 = vmatmul.f32.gmra.mxu0 %v3577
      %v3692 = vpop.f32.mrf.mxu0
      %v3693 = vadd.f32 0.0, %v3692
      %3694 = vmatmul.f32.gmra.mxu0 %v3580
      %v3695 = vpop.f32.mrf.mxu0
      %v3696 = vadd.f32 0.0, %v3695
      %3697 = vmatmul.f32.gmra.mxu0 %v3583
      %v3698 = vpop.f32.mrf.mxu0
      %v3699 = vadd.f32 0.0, %v3698
      %3700 = vmatmul.f32.gmra.mxu0 %v3586
      %v3701 = vpop.f32.mrf.mxu0
      %v3702 = vadd.f32 0.0, %v3701
      %3703 = vmatmul.f32.gmra.mxu0 %v3589
      %v3704 = vpop.f32.mrf.mxu0
      %v3705 = vadd.f32 0.0, %v3704
      %3706 = vmatmul.f32.gmra.mxu0 %v3592
      %v3707 = vpop.f32.mrf.mxu0
      %v3708 = vadd.f32 0.0, %v3707
      %3709 = vmatmul.f32.gmra.mxu0 %v3595
      %v3710 = vpop.f32.mrf.mxu0
      %v3711 = vadd.f32 0.0, %v3710
      %3712 = vmatmul.f32.gmra.mxu0 %v3598
      %v3713 = vpop.f32.mrf.mxu0
      %v3714 = vadd.f32 0.0, %v3713
      %3715 = vmatmul.f32.gmra.mxu0 %v3601
      %v3716 = vpop.f32.mrf.mxu0
      %v3717 = vadd.f32 0.0, %v3716
      %3718 = vmatmul.f32.gmra.mxu0 %v3604
      %v3719 = vpop.f32.mrf.mxu0
      %v3720 = vadd.f32 0.0, %v3719
      %3721 = vmatmul.f32.gmra.mxu0 %v3607
      %v3722 = vpop.f32.mrf.mxu0
      %v3723 = vadd.f32 0.0, %v3722
      %3724 = vmatmul.f32.gmra.mxu0 %v3610
      %v3725 = vpop.f32.mrf.mxu0
      %v3726 = vadd.f32 0.0, %v3725
      %3727 = vmatmul.f32.gmra.mxu0 %v3613
      %v3728 = vpop.f32.mrf.mxu0
      %v3729 = vadd.f32 0.0, %v3728
      %3730 = vmatmul.f32.gmra.mxu0 %v3616
      %v3731 = vpop.f32.mrf.mxu0
      %v3732 = vadd.f32 0.0, %v3731
      %3733 = vmatmul.f32.gmra.mxu0 %v3619
      %v3734 = vpop.f32.mrf.mxu0
      %v3735 = vadd.f32 0.0, %v3734
      %3736 = vmatmul.f32.gmra.mxu0 %v3622
      %v3737 = vpop.f32.mrf.mxu0
      %v3738 = vadd.f32 0.0, %v3737
      %3739 = vdwg.mxu0
      %v3740 = vadd.f32 %v3494, %v3645
      %v3741 = vadd.f32 %v3495, %v3648
      %v3742 = vadd.f32 %v3496, %v3651
      %v3743 = vadd.f32 %v3497, %v3654
      %v3744 = vadd.f32 %v3498, %v3657
      %v3745 = vadd.f32 %v3499, %v3660
      %v3746 = vadd.f32 %v3500, %v3663
      %v3747 = vadd.f32 %v3501, %v3666
      %v3748 = vadd.f32 %v3502, %v3669
      %v3749 = vadd.f32 %v3503, %v3672
      %v3750 = vadd.f32 %v3504, %v3675
      %v3751 = vadd.f32 %v3505, %v3678
      %v3752 = vadd.f32 %v3506, %v3681
      %v3753 = vadd.f32 %v3507, %v3684
      %v3754 = vadd.f32 %v3508, %v3687
      %v3755 = vadd.f32 %v3509, %v3690
      %v3756 = vadd.f32 %v3510, %v3693
      %v3757 = vadd.f32 %v3511, %v3696
      %v3758 = vadd.f32 %v3512, %v3699
      %v3759 = vadd.f32 %v3513, %v3702
      %v3760 = vadd.f32 %v3514, %v3705
      %v3761 = vadd.f32 %v3515, %v3708
      %v3762 = vadd.f32 %v3516, %v3711
      %v3763 = vadd.f32 %v3517, %v3714
      %v3764 = vadd.f32 %v3518, %v3717
      %v3765 = vadd.f32 %v3519, %v3720
      %v3766 = vadd.f32 %v3520, %v3723
      %v3767 = vadd.f32 %v3521, %v3726
      %v3768 = vadd.f32 %v3522, %v3729
      %v3769 = vadd.f32 %v3523, %v3732
      %v3770 = vadd.f32 %v3524, %v3735
      %v3771 = vadd.f32 %v3525, %v3738
      %v3772 = vld [vmem:[#allocation4] sm:$0xff]
      %v3773 = vld [vmem:[#allocation4 + $0x8] sm:$0xff]
      %v3774 = vld [vmem:[#allocation4 + $0x10] sm:$0xff]
      %v3775 = vld [vmem:[#allocation4 + $0x18] sm:$0xff]
      %v3776 = vld [vmem:[#allocation4 + $0x20] sm:$0xff]
      %v3777 = vld [vmem:[#allocation4 + $0x28] sm:$0xff]
      %v3778 = vld [vmem:[#allocation4 + $0x30] sm:$0xff]
      %v3779 = vld [vmem:[#allocation4 + $0x38] sm:$0xff]
      %v3780 = vld [vmem:[#allocation4 + $0x40] sm:$0xff]
      %v3781 = vld [vmem:[#allocation4 + $0x48] sm:$0xff]
      %v3782 = vld [vmem:[#allocation4 + $0x50] sm:$0xff]
      %v3783 = vld [vmem:[#allocation4 + $0x58] sm:$0xff]
      %v3784 = vld [vmem:[#allocation4 + $0x60] sm:$0xff]
      %v3785 = vld [vmem:[#allocation4 + $0x68] sm:$0xff]
      %v3786 = vld [vmem:[#allocation4 + $0x70] sm:$0xff]
      %v3787 = vld [vmem:[#allocation4 + $0x78] sm:$0xff]
      %v3788 = vld [vmem:[#allocation4 + $0x80] sm:$0xff]
      %v3789 = vld [vmem:[#allocation4 + $0x88] sm:$0xff]
      %v3790 = vld [vmem:[#allocation4 + $0x90] sm:$0xff]
      %v3791 = vld [vmem:[#allocation4 + $0x98] sm:$0xff]
      %v3792 = vld [vmem:[#allocation4 + $0xa0] sm:$0xff]
      %v3793 = vld [vmem:[#allocation4 + $0xa8] sm:$0xff]
      %v3794 = vld [vmem:[#allocation4 + $0xb0] sm:$0xff]
      %v3795 = vld [vmem:[#allocation4 + $0xb8] sm:$0xff]
      %v3796 = vld [vmem:[#allocation4 + $0xc0] sm:$0xff]
      %v3797 = vld [vmem:[#allocation4 + $0xc8] sm:$0xff]
      %v3798 = vld [vmem:[#allocation4 + $0xd0] sm:$0xff]
      %v3799 = vld [vmem:[#allocation4 + $0xd8] sm:$0xff]
      %v3800 = vld [vmem:[#allocation4 + $0xe0] sm:$0xff]
      %v3801 = vld [vmem:[#allocation4 + $0xe8] sm:$0xff]
      %v3802 = vld [vmem:[#allocation4 + $0xf0] sm:$0xff]
      %v3803 = vld [vmem:[#allocation4 + $0xf8] sm:$0xff]
      %v3804 = vadd.f32 %v3772, %v3740
      %v3805 = vadd.f32 %v3773, %v3741
      %v3806 = vadd.f32 %v3774, %v3742
      %v3807 = vadd.f32 %v3775, %v3743
      %v3808 = vadd.f32 %v3776, %v3744
      %v3809 = vadd.f32 %v3777, %v3745
      %v3810 = vadd.f32 %v3778, %v3746
      %v3811 = vadd.f32 %v3779, %v3747
      %v3812 = vadd.f32 %v3780, %v3748
      %v3813 = vadd.f32 %v3781, %v3749
      %v3814 = vadd.f32 %v3782, %v3750
      %v3815 = vadd.f32 %v3783, %v3751
      %v3816 = vadd.f32 %v3784, %v3752
      %v3817 = vadd.f32 %v3785, %v3753
      %v3818 = vadd.f32 %v3786, %v3754
      %v3819 = vadd.f32 %v3787, %v3755
      %v3820 = vadd.f32 %v3788, %v3756
      %v3821 = vadd.f32 %v3789, %v3757
      %v3822 = vadd.f32 %v3790, %v3758
      %v3823 = vadd.f32 %v3791, %v3759
      %v3824 = vadd.f32 %v3792, %v3760
      %v3825 = vadd.f32 %v3793, %v3761
      %v3826 = vadd.f32 %v3794, %v3762
      %v3827 = vadd.f32 %v3795, %v3763
      %v3828 = vadd.f32 %v3796, %v3764
      %v3829 = vadd.f32 %v3797, %v3765
      %v3830 = vadd.f32 %v3798, %v3766
      %v3831 = vadd.f32 %v3799, %v3767
      %v3832 = vadd.f32 %v3800, %v3768
      %v3833 = vadd.f32 %v3801, %v3769
      %v3834 = vadd.f32 %v3802, %v3770
      %v3835 = vadd.f32 %v3803, %v3771
      %3836 = vst.msk [vmem:[#allocation4] sm:$0xff] %vm1428, %v3804
      %3837 = vst.msk [vmem:[#allocation4 + $0x8] sm:$0xff] %vm1428, %v3805
      %3838 = vst.msk [vmem:[#allocation4 + $0x10] sm:$0xff] %vm1428, %v3806
      %3839 = vst.msk [vmem:[#allocation4 + $0x18] sm:$0xff] %vm1428, %v3807
      %3840 = vst.msk [vmem:[#allocation4 + $0x20] sm:$0xff] %vm1428, %v3808
      %3841 = vst.msk [vmem:[#allocation4 + $0x28] sm:$0xff] %vm1428, %v3809
      %3842 = vst.msk [vmem:[#allocation4 + $0x30] sm:$0xff] %vm1428, %v3810
      %3843 = vst.msk [vmem:[#allocation4 + $0x38] sm:$0xff] %vm1428, %v3811
      %3844 = vst.msk [vmem:[#allocation4 + $0x40] sm:$0xff] %vm1428, %v3812
      %3845 = vst.msk [vmem:[#allocation4 + $0x48] sm:$0xff] %vm1428, %v3813
      %3846 = vst.msk [vmem:[#allocation4 + $0x50] sm:$0xff] %vm1428, %v3814
      %3847 = vst.msk [vmem:[#allocation4 + $0x58] sm:$0xff] %vm1428, %v3815
      %3848 = vst.msk [vmem:[#allocation4 + $0x60] sm:$0xff] %vm1428, %v3816
      %3849 = vst.msk [vmem:[#allocation4 + $0x68] sm:$0xff] %vm1428, %v3817
      %3850 = vst.msk [vmem:[#allocation4 + $0x70] sm:$0xff] %vm1428, %v3818
      %3851 = vst.msk [vmem:[#allocation4 + $0x78] sm:$0xff] %vm1428, %v3819
      %3852 = vst.msk [vmem:[#allocation4 + $0x80] sm:$0xff] %vm1428, %v3820
      %3853 = vst.msk [vmem:[#allocation4 + $0x88] sm:$0xff] %vm1428, %v3821
      %3854 = vst.msk [vmem:[#allocation4 + $0x90] sm:$0xff] %vm1428, %v3822
      %3855 = vst.msk [vmem:[#allocation4 + $0x98] sm:$0xff] %vm1428, %v3823
      %3856 = vst.msk [vmem:[#allocation4 + $0xa0] sm:$0xff] %vm1428, %v3824
      %3857 = vst.msk [vmem:[#allocation4 + $0xa8] sm:$0xff] %vm1428, %v3825
      %3858 = vst.msk [vmem:[#allocation4 + $0xb0] sm:$0xff] %vm1428, %v3826
      %3859 = vst.msk [vmem:[#allocation4 + $0xb8] sm:$0xff] %vm1428, %v3827
      %3860 = vst.msk [vmem:[#allocation4 + $0xc0] sm:$0xff] %vm1428, %v3828
      %3861 = vst.msk [vmem:[#allocation4 + $0xc8] sm:$0xff] %vm1428, %v3829
      %3862 = vst.msk [vmem:[#allocation4 + $0xd0] sm:$0xff] %vm1428, %v3830
      %3863 = vst.msk [vmem:[#allocation4 + $0xd8] sm:$0xff] %vm1428, %v3831
      %3864 = vst.msk [vmem:[#allocation4 + $0xe0] sm:$0xff] %vm1428, %v3832
      %3865 = vst.msk [vmem:[#allocation4 + $0xe8] sm:$0xff] %vm1428, %v3833
      %3866 = vst.msk [vmem:[#allocation4 + $0xf0] sm:$0xff] %vm1428, %v3834
      %3867 = vst.msk [vmem:[#allocation4 + $0xf8] sm:$0xff] %vm1428, %v3835
      %s3868 = scalar_lea.vmem [#allocation2], 1440
      %v3869 = vld [vmem:[%s3868 + $0x14] sm:$0xff]
      %v3870 = vld [vmem:[%s3868 + $0x1c] sm:$0xff]
      %v3871 = vld [vmem:[%s3868 + $0x5c] sm:$0xff]
      %v3872 = vld [vmem:[%s3868 + $0x64] sm:$0xff]
      %v3873 = vld [vmem:[%s3868 + $0xa4] sm:$0xff]
      %v3874 = vld [vmem:[%s3868 + $0xac] sm:$0xff]
      %v3875 = vld [vmem:[%s3868 + $0xec] sm:$0xff]
      %v3876 = vld [vmem:[%s3868 + $0xf4] sm:$0xff]
      %v3877 = vld [vmem:[%s3868 + $0x134] sm:$0xff]
      %v3878 = vld [vmem:[%s3868 + $0x13c] sm:$0xff]
      %v3879 = vld [vmem:[%s3868 + $0x17c] sm:$0xff]
      %v3880 = vld [vmem:[%s3868 + $0x184] sm:$0xff]
      %v3881 = vld [vmem:[%s3868 + $0x1c4] sm:$0xff]
      %v3882 = vld [vmem:[%s3868 + $0x1cc] sm:$0xff]
      %v3883 = vld [vmem:[%s3868 + $0x20c] sm:$0xff]
      %v3884 = vld [vmem:[%s3868 + $0x214] sm:$0xff]
      %v3885 = vld [vmem:[%s3868 + $0x254] sm:$0xff]
      %v3886 = vld [vmem:[%s3868 + $0x25c] sm:$0xff]
      %v3887 = vld [vmem:[%s3868 + $0x29c] sm:$0xff]
      %v3888 = vld [vmem:[%s3868 + $0x2a4] sm:$0xff]
      %v3889 = vld [vmem:[%s3868 + $0x2e4] sm:$0xff]
      %v3890 = vld [vmem:[%s3868 + $0x2ec] sm:$0xff]
      %v3891 = vld [vmem:[%s3868 + $0x32c] sm:$0xff]
      %v3892 = vld [vmem:[%s3868 + $0x334] sm:$0xff]
      %v3893 = vld [vmem:[%s3868 + $0x374] sm:$0xff]
      %v3894 = vld [vmem:[%s3868 + $0x37c] sm:$0xff]
      %v3895 = vld [vmem:[%s3868 + $0x3bc] sm:$0xff]
      %v3896 = vld [vmem:[%s3868 + $0x3c4] sm:$0xff]
      %v3897 = vld [vmem:[%s3868 + $0x404] sm:$0xff]
      %v3898 = vld [vmem:[%s3868 + $0x40c] sm:$0xff]
      %v3899 = vld [vmem:[%s3868 + $0x44c] sm:$0xff]
      %v3900 = vld [vmem:[%s3868 + $0x454] sm:$0xff]
      %v3901 = vld [vmem:[%s3868 + $0x20] sm:$0xff]
      %v3902 = vld [vmem:[%s3868 + $0x28] sm:$0xff]
      %v3903 = vld [vmem:[%s3868 + $0x68] sm:$0xff]
      %v3904 = vld [vmem:[%s3868 + $0x70] sm:$0xff]
      %v3905 = vld [vmem:[%s3868 + $0xb0] sm:$0xff]
      %v3906 = vld [vmem:[%s3868 + $0xb8] sm:$0xff]
      %v3907 = vld [vmem:[%s3868 + $0xf8] sm:$0xff]
      %v3908 = vld [vmem:[%s3868 + $0x100] sm:$0xff]
      %v3909 = vld [vmem:[%s3868 + $0x140] sm:$0xff]
      %v3910 = vld [vmem:[%s3868 + $0x148] sm:$0xff]
      %v3911 = vld [vmem:[%s3868 + $0x188] sm:$0xff]
      %v3912 = vld [vmem:[%s3868 + $0x190] sm:$0xff]
      %v3913 = vld [vmem:[%s3868 + $0x1d0] sm:$0xff]
      %v3914 = vld [vmem:[%s3868 + $0x1d8] sm:$0xff]
      %v3915 = vld [vmem:[%s3868 + $0x218] sm:$0xff]
      %v3916 = vld [vmem:[%s3868 + $0x220] sm:$0xff]
      %v3917 = vld [vmem:[%s3868 + $0x260] sm:$0xff]
      %v3918 = vld [vmem:[%s3868 + $0x268] sm:$0xff]
      %v3919 = vld [vmem:[%s3868 + $0x2a8] sm:$0xff]
      %v3920 = vld [vmem:[%s3868 + $0x2b0] sm:$0xff]
      %v3921 = vld [vmem:[%s3868 + $0x2f0] sm:$0xff]
      %v3922 = vld [vmem:[%s3868 + $0x2f8] sm:$0xff]
      %v3923 = vld [vmem:[%s3868 + $0x338] sm:$0xff]
      %v3924 = vld [vmem:[%s3868 + $0x340] sm:$0xff]
      %v3925 = vld [vmem:[%s3868 + $0x380] sm:$0xff]
      %v3926 = vld [vmem:[%s3868 + $0x388] sm:$0xff]
      %v3927 = vld [vmem:[%s3868 + $0x3c8] sm:$0xff]
      %v3928 = vld [vmem:[%s3868 + $0x3d0] sm:$0xff]
      %v3929 = vld [vmem:[%s3868 + $0x410] sm:$0xff]
      %v3930 = vld [vmem:[%s3868 + $0x418] sm:$0xff]
      %v3931 = vld [vmem:[%s3868 + $0x458] sm:$0xff]
      %v3932 = vld [vmem:[%s3868 + $0x460] sm:$0xff]
      %v3933 = vld [vmem:[%s3868 + $0x2c] sm:$0xff]
      %v3934 = vld [vmem:[%s3868 + $0x34] sm:$0xff]
      %v3935 = vld [vmem:[%s3868 + $0x74] sm:$0xff]
      %v3936 = vld [vmem:[%s3868 + $0x7c] sm:$0xff]
      %v3937 = vld [vmem:[%s3868 + $0xbc] sm:$0xff]
      %v3938 = vld [vmem:[%s3868 + $0xc4] sm:$0xff]
      %v3939 = vld [vmem:[%s3868 + $0x104] sm:$0xff]
      %v3940 = vld [vmem:[%s3868 + $0x10c] sm:$0xff]
      %v3941 = vld [vmem:[%s3868 + $0x14c] sm:$0xff]
      %v3942 = vld [vmem:[%s3868 + $0x154] sm:$0xff]
      %v3943 = vld [vmem:[%s3868 + $0x194] sm:$0xff]
      %v3944 = vld [vmem:[%s3868 + $0x19c] sm:$0xff]
      %v3945 = vld [vmem:[%s3868 + $0x1dc] sm:$0xff]
      %v3946 = vld [vmem:[%s3868 + $0x1e4] sm:$0xff]
      %v3947 = vld [vmem:[%s3868 + $0x224] sm:$0xff]
      %v3948 = vld [vmem:[%s3868 + $0x22c] sm:$0xff]
      %v3949 = vld [vmem:[%s3868 + $0x26c] sm:$0xff]
      %v3950 = vld [vmem:[%s3868 + $0x274] sm:$0xff]
      %v3951 = vld [vmem:[%s3868 + $0x2b4] sm:$0xff]
      %v3952 = vld [vmem:[%s3868 + $0x2bc] sm:$0xff]
      %v3953 = vld [vmem:[%s3868 + $0x2fc] sm:$0xff]
      %v3954 = vld [vmem:[%s3868 + $0x304] sm:$0xff]
      %v3955 = vld [vmem:[%s3868 + $0x344] sm:$0xff]
      %v3956 = vld [vmem:[%s3868 + $0x34c] sm:$0xff]
      %v3957 = vld [vmem:[%s3868 + $0x38c] sm:$0xff]
      %v3958 = vld [vmem:[%s3868 + $0x394] sm:$0xff]
      %v3959 = vld [vmem:[%s3868 + $0x3d4] sm:$0xff]
      %v3960 = vld [vmem:[%s3868 + $0x3dc] sm:$0xff]
      %v3961 = vld [vmem:[%s3868 + $0x41c] sm:$0xff]
      %v3962 = vld [vmem:[%s3868 + $0x424] sm:$0xff]
      %v3963 = vld [vmem:[%s3868 + $0x464] sm:$0xff]
      %v3964 = vld [vmem:[%s3868 + $0x46c] sm:$0xff]
      %v3965 = vld [vmem:[%s1084 + $0x14] sm:$0xff]
      %v3966 = vld [vmem:[%s1084 + $0x1c] sm:$0xff]
      %v3967 = vld [vmem:[%s1084 + $0x5c] sm:$0xff]
      %v3968 = vld [vmem:[%s1084 + $0x64] sm:$0xff]
      %v3969 = vld [vmem:[%s1084 + $0xa4] sm:$0xff]
      %v3970 = vld [vmem:[%s1084 + $0xac] sm:$0xff]
      %v3971 = vld [vmem:[%s1084 + $0xec] sm:$0xff]
      %v3972 = vld [vmem:[%s1084 + $0xf4] sm:$0xff]
      %v3973 = vld [vmem:[%s1084 + $0x134] sm:$0xff]
      %v3974 = vld [vmem:[%s1084 + $0x13c] sm:$0xff]
      %v3975 = vld [vmem:[%s1084 + $0x17c] sm:$0xff]
      %v3976 = vld [vmem:[%s1084 + $0x184] sm:$0xff]
      %v3977 = vld [vmem:[%s1084 + $0x1c4] sm:$0xff]
      %v3978 = vld [vmem:[%s1084 + $0x1cc] sm:$0xff]
      %v3979 = vld [vmem:[%s1084 + $0x20c] sm:$0xff]
      %v3980 = vld [vmem:[%s1084 + $0x214] sm:$0xff]
      %v3981 = vld [vmem:[%s1084 + $0x254] sm:$0xff]
      %v3982 = vld [vmem:[%s1084 + $0x25c] sm:$0xff]
      %v3983 = vld [vmem:[%s1084 + $0x29c] sm:$0xff]
      %v3984 = vld [vmem:[%s1084 + $0x2a4] sm:$0xff]
      %v3985 = vld [vmem:[%s1084 + $0x2e4] sm:$0xff]
      %v3986 = vld [vmem:[%s1084 + $0x2ec] sm:$0xff]
      %v3987 = vld [vmem:[%s1084 + $0x32c] sm:$0xff]
      %v3988 = vld [vmem:[%s1084 + $0x334] sm:$0xff]
      %v3989 = vld [vmem:[%s1084 + $0x374] sm:$0xff]
      %v3990 = vld [vmem:[%s1084 + $0x37c] sm:$0xff]
      %v3991 = vld [vmem:[%s1084 + $0x3bc] sm:$0xff]
      %v3992 = vld [vmem:[%s1084 + $0x3c4] sm:$0xff]
      %v3993 = vld [vmem:[%s1084 + $0x404] sm:$0xff]
      %v3994 = vld [vmem:[%s1084 + $0x40c] sm:$0xff]
      %v3995 = vld [vmem:[%s1084 + $0x44c] sm:$0xff]
      %v3996 = vld [vmem:[%s1084 + $0x454] sm:$0xff]
      %v3997 = vld [vmem:[%s1084 + $0x2c] sm:$0xff]
      %v3998 = vld [vmem:[%s1084 + $0x34] sm:$0xff]
      %v3999 = vld [vmem:[%s1084 + $0x74] sm:$0xff]
      %v4000 = vld [vmem:[%s1084 + $0x7c] sm:$0xff]
      %v4001 = vld [vmem:[%s1084 + $0xbc] sm:$0xff]
      %v4002 = vld [vmem:[%s1084 + $0xc4] sm:$0xff]
      %v4003 = vld [vmem:[%s1084 + $0x104] sm:$0xff]
      %v4004 = vld [vmem:[%s1084 + $0x10c] sm:$0xff]
      %v4005 = vld [vmem:[%s1084 + $0x14c] sm:$0xff]
      %v4006 = vld [vmem:[%s1084 + $0x154] sm:$0xff]
      %v4007 = vld [vmem:[%s1084 + $0x194] sm:$0xff]
      %v4008 = vld [vmem:[%s1084 + $0x19c] sm:$0xff]
      %v4009 = vld [vmem:[%s1084 + $0x1dc] sm:$0xff]
      %v4010 = vld [vmem:[%s1084 + $0x1e4] sm:$0xff]
      %v4011 = vld [vmem:[%s1084 + $0x224] sm:$0xff]
      %v4012 = vld [vmem:[%s1084 + $0x22c] sm:$0xff]
      %v4013 = vld [vmem:[%s1084 + $0x26c] sm:$0xff]
      %v4014 = vld [vmem:[%s1084 + $0x274] sm:$0xff]
      %v4015 = vld [vmem:[%s1084 + $0x2b4] sm:$0xff]
      %v4016 = vld [vmem:[%s1084 + $0x2bc] sm:$0xff]
      %v4017 = vld [vmem:[%s1084 + $0x2fc] sm:$0xff]
      %v4018 = vld [vmem:[%s1084 + $0x304] sm:$0xff]
      %v4019 = vld [vmem:[%s1084 + $0x344] sm:$0xff]
      %v4020 = vld [vmem:[%s1084 + $0x34c] sm:$0xff]
      %v4021 = vld [vmem:[%s1084 + $0x38c] sm:$0xff]
      %v4022 = vld [vmem:[%s1084 + $0x394] sm:$0xff]
      %v4023 = vld [vmem:[%s1084 + $0x3d4] sm:$0xff]
      %v4024 = vld [vmem:[%s1084 + $0x3dc] sm:$0xff]
      %v4025 = vld [vmem:[%s1084 + $0x41c] sm:$0xff]
      %v4026 = vld [vmem:[%s1084 + $0x424] sm:$0xff]
      %v4027 = vld [vmem:[%s1084 + $0x464] sm:$0xff]
      %v4028 = vld [vmem:[%s1084 + $0x46c] sm:$0xff]
      %s4029 = scalar_lea.vmem [#allocation2], 3168
      %v4030 = vld [vmem:[%s4029 + $0x14] sm:$0xff]
      %v4031 = vld [vmem:[%s4029 + $0x1c] sm:$0xff]
      %v4032 = vld [vmem:[%s4029 + $0x5c] sm:$0xff]
      %v4033 = vld [vmem:[%s4029 + $0x64] sm:$0xff]
      %v4034 = vld [vmem:[%s4029 + $0xa4] sm:$0xff]
      %v4035 = vld [vmem:[%s4029 + $0xac] sm:$0xff]
      %v4036 = vld [vmem:[%s4029 + $0xec] sm:$0xff]
      %v4037 = vld [vmem:[%s4029 + $0xf4] sm:$0xff]
      %v4038 = vld [vmem:[%s4029 + $0x134] sm:$0xff]
      %v4039 = vld [vmem:[%s4029 + $0x13c] sm:$0xff]
      %v4040 = vld [vmem:[%s4029 + $0x17c] sm:$0xff]
      %v4041 = vld [vmem:[%s4029 + $0x184] sm:$0xff]
      %v4042 = vld [vmem:[%s4029 + $0x1c4] sm:$0xff]
      %v4043 = vld [vmem:[%s4029 + $0x1cc] sm:$0xff]
      %v4044 = vld [vmem:[%s4029 + $0x20c] sm:$0xff]
      %v4045 = vld [vmem:[%s4029 + $0x214] sm:$0xff]
      %v4046 = vld [vmem:[%s4029 + $0x254] sm:$0xff]
      %v4047 = vld [vmem:[%s4029 + $0x25c] sm:$0xff]
      %v4048 = vld [vmem:[%s4029 + $0x29c] sm:$0xff]
      %v4049 = vld [vmem:[%s4029 + $0x2a4] sm:$0xff]
      %v4050 = vld [vmem:[%s4029 + $0x2e4] sm:$0xff]
      %v4051 = vld [vmem:[%s4029 + $0x2ec] sm:$0xff]
      %v4052 = vld [vmem:[%s4029 + $0x32c] sm:$0xff]
      %v4053 = vld [vmem:[%s4029 + $0x334] sm:$0xff]
      %v4054 = vld [vmem:[%s4029 + $0x374] sm:$0xff]
      %v4055 = vld [vmem:[%s4029 + $0x37c] sm:$0xff]
      %v4056 = vld [vmem:[%s4029 + $0x3bc] sm:$0xff]
      %v4057 = vld [vmem:[%s4029 + $0x3c4] sm:$0xff]
      %v4058 = vld [vmem:[%s4029 + $0x404] sm:$0xff]
      %v4059 = vld [vmem:[%s4029 + $0x40c] sm:$0xff]
      %v4060 = vld [vmem:[%s4029 + $0x44c] sm:$0xff]
      %v4061 = vld [vmem:[%s4029 + $0x454] sm:$0xff]
      %v4062 = vld [vmem:[%s4029 + $0x20] sm:$0xff]
      %v4063 = vld [vmem:[%s4029 + $0x28] sm:$0xff]
      %v4064 = vld [vmem:[%s4029 + $0x68] sm:$0xff]
      %v4065 = vld [vmem:[%s4029 + $0x70] sm:$0xff]
      %v4066 = vld [vmem:[%s4029 + $0xb0] sm:$0xff]
      %v4067 = vld [vmem:[%s4029 + $0xb8] sm:$0xff]
      %v4068 = vld [vmem:[%s4029 + $0xf8] sm:$0xff]
      %v4069 = vld [vmem:[%s4029 + $0x100] sm:$0xff]
      %v4070 = vld [vmem:[%s4029 + $0x140] sm:$0xff]
      %v4071 = vld [vmem:[%s4029 + $0x148] sm:$0xff]
      %v4072 = vld [vmem:[%s4029 + $0x188] sm:$0xff]
      %v4073 = vld [vmem:[%s4029 + $0x190] sm:$0xff]
      %v4074 = vld [vmem:[%s4029 + $0x1d0] sm:$0xff]
      %v4075 = vld [vmem:[%s4029 + $0x1d8] sm:$0xff]
      %v4076 = vld [vmem:[%s4029 + $0x218] sm:$0xff]
      %v4077 = vld [vmem:[%s4029 + $0x220] sm:$0xff]
      %v4078 = vld [vmem:[%s4029 + $0x260] sm:$0xff]
      %v4079 = vld [vmem:[%s4029 + $0x268] sm:$0xff]
      %v4080 = vld [vmem:[%s4029 + $0x2a8] sm:$0xff]
      %v4081 = vld [vmem:[%s4029 + $0x2b0] sm:$0xff]
      %v4082 = vld [vmem:[%s4029 + $0x2f0] sm:$0xff]
      %v4083 = vld [vmem:[%s4029 + $0x2f8] sm:$0xff]
      %v4084 = vld [vmem:[%s4029 + $0x338] sm:$0xff]
      %v4085 = vld [vmem:[%s4029 + $0x340] sm:$0xff]
      %v4086 = vld [vmem:[%s4029 + $0x380] sm:$0xff]
      %v4087 = vld [vmem:[%s4029 + $0x388] sm:$0xff]
      %v4088 = vld [vmem:[%s4029 + $0x3c8] sm:$0xff]
      %v4089 = vld [vmem:[%s4029 + $0x3d0] sm:$0xff]
      %v4090 = vld [vmem:[%s4029 + $0x410] sm:$0xff]
      %v4091 = vld [vmem:[%s4029 + $0x418] sm:$0xff]
      %v4092 = vld [vmem:[%s4029 + $0x458] sm:$0xff]
      %v4093 = vld [vmem:[%s4029 + $0x460] sm:$0xff]
      %v4094 = vld [vmem:[%s4029 + $0x2c] sm:$0xff]
      %v4095 = vld [vmem:[%s4029 + $0x34] sm:$0xff]
      %v4096 = vld [vmem:[%s4029 + $0x74] sm:$0xff]
      %v4097 = vld [vmem:[%s4029 + $0x7c] sm:$0xff]
      %v4098 = vld [vmem:[%s4029 + $0xbc] sm:$0xff]
      %v4099 = vld [vmem:[%s4029 + $0xc4] sm:$0xff]
      %v4100 = vld [vmem:[%s4029 + $0x104] sm:$0xff]
      %v4101 = vld [vmem:[%s4029 + $0x10c] sm:$0xff]
      %v4102 = vld [vmem:[%s4029 + $0x14c] sm:$0xff]
      %v4103 = vld [vmem:[%s4029 + $0x154] sm:$0xff]
      %v4104 = vld [vmem:[%s4029 + $0x194] sm:$0xff]
      %v4105 = vld [vmem:[%s4029 + $0x19c] sm:$0xff]
      %v4106 = vld [vmem:[%s4029 + $0x1dc] sm:$0xff]
      %v4107 = vld [vmem:[%s4029 + $0x1e4] sm:$0xff]
      %v4108 = vld [vmem:[%s4029 + $0x224] sm:$0xff]
      %v4109 = vld [vmem:[%s4029 + $0x22c] sm:$0xff]
      %v4110 = vld [vmem:[%s4029 + $0x26c] sm:$0xff]
      %v4111 = vld [vmem:[%s4029 + $0x274] sm:$0xff]
      %v4112 = vld [vmem:[%s4029 + $0x2b4] sm:$0xff]
      %v4113 = vld [vmem:[%s4029 + $0x2bc] sm:$0xff]
      %v4114 = vld [vmem:[%s4029 + $0x2fc] sm:$0xff]
      %v4115 = vld [vmem:[%s4029 + $0x304] sm:$0xff]
      %v4116 = vld [vmem:[%s4029 + $0x344] sm:$0xff]
      %v4117 = vld [vmem:[%s4029 + $0x34c] sm:$0xff]
      %v4118 = vld [vmem:[%s4029 + $0x38c] sm:$0xff]
      %v4119 = vld [vmem:[%s4029 + $0x394] sm:$0xff]
      %v4120 = vld [vmem:[%s4029 + $0x3d4] sm:$0xff]
      %v4121 = vld [vmem:[%s4029 + $0x3dc] sm:$0xff]
      %v4122 = vld [vmem:[%s4029 + $0x41c] sm:$0xff]
      %v4123 = vld [vmem:[%s4029 + $0x424] sm:$0xff]
      %v4124 = vld [vmem:[%s4029 + $0x464] sm:$0xff]
      %v4125 = vld [vmem:[%s4029 + $0x46c] sm:$0xff]
      %s4126 = scalar_lea.vmem %s314, 36
      %v4127 = vld [vmem:[%s4126] sm:$0xf]
      %s4128 = scalar_lea.vmem %s314, 40
      %v4129 = vld [vmem:[%s4128] sm:$0xf]
      %v4131 = vsel %vm1085, %v3901, 0
      %v4134 = vsel %vm1085, %v3902, 0
      %v4137 = vsel %vm1085, %v3903, 0
      %v4140 = vsel %vm1085, %v3904, 0
      %v4143 = vsel %vm1085, %v3905, 0
      %v4146 = vsel %vm1085, %v3906, 0
      %v4149 = vsel %vm1085, %v3907, 0
      %v4152 = vsel %vm1085, %v3908, 0
      %v4155 = vsel %vm1085, %v3909, 0
      %v4158 = vsel %vm1085, %v3910, 0
      %v4161 = vsel %vm1085, %v3911, 0
      %v4164 = vsel %vm1085, %v3912, 0
      %v4167 = vsel %vm1085, %v3913, 0
      %v4170 = vsel %vm1085, %v3914, 0
      %v4173 = vsel %vm1085, %v3915, 0
      %v4176 = vsel %vm1085, %v3916, 0
      %v4179 = vsel %vm1085, %v3917, 0
      %v4182 = vsel %vm1085, %v3918, 0
      %v4185 = vsel %vm1085, %v3919, 0
      %v4188 = vsel %vm1085, %v3920, 0
      %v4191 = vsel %vm1085, %v3921, 0
      %v4194 = vsel %vm1085, %v3922, 0
      %v4197 = vsel %vm1085, %v3923, 0
      %v4200 = vsel %vm1085, %v3924, 0
      %v4203 = vsel %vm1085, %v3925, 0
      %v4206 = vsel %vm1085, %v3926, 0
      %v4209 = vsel %vm1085, %v3927, 0
      %v4212 = vsel %vm1085, %v3928, 0
      %v4215 = vsel %vm1085, %v3929, 0
      %v4218 = vsel %vm1085, %v3930, 0
      %v4221 = vsel %vm1085, %v3931, 0
      %v4224 = vsel %vm1085, %v3932, 0
      %v4227 = vsel %vm1279, %v4129, 0
      %4229 = vmatpush.msra.mxu0 0.0
      %4230 = vmatpush.msra.mxu0 0.0
      %4231 = vmatpush.msra.mxu0 0.0
      %4232 = vmatpush.msra.mxu0 0.0
      %4233 = vmatpush.msra.mxu0 0.0
      %4234 = vmatpush.msra.mxu0 0.0
      %4235 = vmatpush.msra.mxu0 0.0
      %4236 = vmatpush.msra.mxu0 0.0
      %4237 = vmatpush.msra.mxu0 0.0
      %4238 = vmatpush.msra.mxu0 0.0
      %4239 = vmatpush.msra.mxu0 0.0
      %4240 = vmatpush.msra.mxu0 0.0
      %4241 = vmatpush.msra.mxu0 0.0
      %4242 = vmatpush.msra.mxu0 0.0
      %4243 = vmatpush.msra.mxu0 0.0
      %4244 = vmatpush.msra.mxu0 %v4227
      %4245 = vmatmul.f32.gmra.mxu0 %v4131
      %v4246 = vpop.f32.mrf.mxu0
      %v4247 = vadd.f32 0.0, %v4246
      %4248 = vmatmul.f32.gmra.mxu0 %v4134
      %v4249 = vpop.f32.mrf.mxu0
      %v4250 = vadd.f32 0.0, %v4249
      %4251 = vmatmul.f32.gmra.mxu0 %v4137
      %v4252 = vpop.f32.mrf.mxu0
      %v4253 = vadd.f32 0.0, %v4252
      %4254 = vmatmul.f32.gmra.mxu0 %v4140
      %v4255 = vpop.f32.mrf.mxu0
      %v4256 = vadd.f32 0.0, %v4255
      %4257 = vmatmul.f32.gmra.mxu0 %v4143
      %v4258 = vpop.f32.mrf.mxu0
      %v4259 = vadd.f32 0.0, %v4258
      %4260 = vmatmul.f32.gmra.mxu0 %v4146
      %v4261 = vpop.f32.mrf.mxu0
      %v4262 = vadd.f32 0.0, %v4261
      %4263 = vmatmul.f32.gmra.mxu0 %v4149
      %v4264 = vpop.f32.mrf.mxu0
      %v4265 = vadd.f32 0.0, %v4264
      %4266 = vmatmul.f32.gmra.mxu0 %v4152
      %v4267 = vpop.f32.mrf.mxu0
      %v4268 = vadd.f32 0.0, %v4267
      %4269 = vmatmul.f32.gmra.mxu0 %v4155
      %v4270 = vpop.f32.mrf.mxu0
      %v4271 = vadd.f32 0.0, %v4270
      %4272 = vmatmul.f32.gmra.mxu0 %v4158
      %v4273 = vpop.f32.mrf.mxu0
      %v4274 = vadd.f32 0.0, %v4273
      %4275 = vmatmul.f32.gmra.mxu0 %v4161
      %v4276 = vpop.f32.mrf.mxu0
      %v4277 = vadd.f32 0.0, %v4276
      %4278 = vmatmul.f32.gmra.mxu0 %v4164
      %v4279 = vpop.f32.mrf.mxu0
      %v4280 = vadd.f32 0.0, %v4279
      %4281 = vmatmul.f32.gmra.mxu0 %v4167
      %v4282 = vpop.f32.mrf.mxu0
      %v4283 = vadd.f32 0.0, %v4282
      %4284 = vmatmul.f32.gmra.mxu0 %v4170
      %v4285 = vpop.f32.mrf.mxu0
      %v4286 = vadd.f32 0.0, %v4285
      %4287 = vmatmul.f32.gmra.mxu0 %v4173
      %v4288 = vpop.f32.mrf.mxu0
      %v4289 = vadd.f32 0.0, %v4288
      %4290 = vmatmul.f32.gmra.mxu0 %v4176
      %v4291 = vpop.f32.mrf.mxu0
      %v4292 = vadd.f32 0.0, %v4291
      %4293 = vmatmul.f32.gmra.mxu0 %v4179
      %v4294 = vpop.f32.mrf.mxu0
      %v4295 = vadd.f32 0.0, %v4294
      %4296 = vmatmul.f32.gmra.mxu0 %v4182
      %v4297 = vpop.f32.mrf.mxu0
      %v4298 = vadd.f32 0.0, %v4297
      %4299 = vmatmul.f32.gmra.mxu0 %v4185
      %v4300 = vpop.f32.mrf.mxu0
      %v4301 = vadd.f32 0.0, %v4300
      %4302 = vmatmul.f32.gmra.mxu0 %v4188
      %v4303 = vpop.f32.mrf.mxu0
      %v4304 = vadd.f32 0.0, %v4303
      %4305 = vmatmul.f32.gmra.mxu0 %v4191
      %v4306 = vpop.f32.mrf.mxu0
      %v4307 = vadd.f32 0.0, %v4306
      %4308 = vmatmul.f32.gmra.mxu0 %v4194
      %v4309 = vpop.f32.mrf.mxu0
      %v4310 = vadd.f32 0.0, %v4309
      %4311 = vmatmul.f32.gmra.mxu0 %v4197
      %v4312 = vpop.f32.mrf.mxu0
      %v4313 = vadd.f32 0.0, %v4312
      %4314 = vmatmul.f32.gmra.mxu0 %v4200
      %v4315 = vpop.f32.mrf.mxu0
      %v4316 = vadd.f32 0.0, %v4315
      %4317 = vmatmul.f32.gmra.mxu0 %v4203
      %v4318 = vpop.f32.mrf.mxu0
      %v4319 = vadd.f32 0.0, %v4318
      %4320 = vmatmul.f32.gmra.mxu0 %v4206
      %v4321 = vpop.f32.mrf.mxu0
      %v4322 = vadd.f32 0.0, %v4321
      %4323 = vmatmul.f32.gmra.mxu0 %v4209
      %v4324 = vpop.f32.mrf.mxu0
      %v4325 = vadd.f32 0.0, %v4324
      %4326 = vmatmul.f32.gmra.mxu0 %v4212
      %v4327 = vpop.f32.mrf.mxu0
      %v4328 = vadd.f32 0.0, %v4327
      %4329 = vmatmul.f32.gmra.mxu0 %v4215
      %v4330 = vpop.f32.mrf.mxu0
      %v4331 = vadd.f32 0.0, %v4330
      %4332 = vmatmul.f32.gmra.mxu0 %v4218
      %v4333 = vpop.f32.mrf.mxu0
      %v4334 = vadd.f32 0.0, %v4333
      %4335 = vmatmul.f32.gmra.mxu0 %v4221
      %v4336 = vpop.f32.mrf.mxu0
      %v4337 = vadd.f32 0.0, %v4336
      %4338 = vmatmul.f32.gmra.mxu0 %v4224
      %v4339 = vpop.f32.mrf.mxu0
      %v4340 = vadd.f32 0.0, %v4339
      %4341 = vdwg.mxu0
      %v4343 = vsel %vm1085, %v3869, 0
      %v4346 = vsel %vm1085, %v3870, 0
      %v4349 = vsel %vm1085, %v3871, 0
      %v4352 = vsel %vm1085, %v3872, 0
      %v4355 = vsel %vm1085, %v3873, 0
      %v4358 = vsel %vm1085, %v3874, 0
      %v4361 = vsel %vm1085, %v3875, 0
      %v4364 = vsel %vm1085, %v3876, 0
      %v4367 = vsel %vm1085, %v3877, 0
      %v4370 = vsel %vm1085, %v3878, 0
      %v4373 = vsel %vm1085, %v3879, 0
      %v4376 = vsel %vm1085, %v3880, 0
      %v4379 = vsel %vm1085, %v3881, 0
      %v4382 = vsel %vm1085, %v3882, 0
      %v4385 = vsel %vm1085, %v3883, 0
      %v4388 = vsel %vm1085, %v3884, 0
      %v4391 = vsel %vm1085, %v3885, 0
      %v4394 = vsel %vm1085, %v3886, 0
      %v4397 = vsel %vm1085, %v3887, 0
      %v4400 = vsel %vm1085, %v3888, 0
      %v4403 = vsel %vm1085, %v3889, 0
      %v4406 = vsel %vm1085, %v3890, 0
      %v4409 = vsel %vm1085, %v3891, 0
      %v4412 = vsel %vm1085, %v3892, 0
      %v4415 = vsel %vm1085, %v3893, 0
      %v4418 = vsel %vm1085, %v3894, 0
      %v4421 = vsel %vm1085, %v3895, 0
      %v4424 = vsel %vm1085, %v3896, 0
      %v4427 = vsel %vm1085, %v3897, 0
      %v4430 = vsel %vm1085, %v3898, 0
      %v4433 = vsel %vm1085, %v3899, 0
      %v4436 = vsel %vm1085, %v3900, 0
      %v4439 = vsel %vm1279, %v4127, 0
      %4441 = vmatpush.msra.mxu0 0.0
      %4442 = vmatpush.msra.mxu0 0.0
      %4443 = vmatpush.msra.mxu0 0.0
      %4444 = vmatpush.msra.mxu0 0.0
      %4445 = vmatpush.msra.mxu0 0.0
      %4446 = vmatpush.msra.mxu0 0.0
      %4447 = vmatpush.msra.mxu0 0.0
      %4448 = vmatpush.msra.mxu0 0.0
      %4449 = vmatpush.msra.mxu0 0.0
      %4450 = vmatpush.msra.mxu0 0.0
      %4451 = vmatpush.msra.mxu0 0.0
      %4452 = vmatpush.msra.mxu0 0.0
      %4453 = vmatpush.msra.mxu0 0.0
      %4454 = vmatpush.msra.mxu0 0.0
      %4455 = vmatpush.msra.mxu0 0.0
      %4456 = vmatpush.msra.mxu0 %v4439
      %4457 = vmatmul.f32.gmra.mxu0 %v4343
      %v4458 = vpop.f32.mrf.mxu0
      %v4459 = vadd.f32 %v4247, %v4458
      %4460 = vmatmul.f32.gmra.mxu0 %v4346
      %v4461 = vpop.f32.mrf.mxu0
      %v4462 = vadd.f32 %v4250, %v4461
      %4463 = vmatmul.f32.gmra.mxu0 %v4349
      %v4464 = vpop.f32.mrf.mxu0
      %v4465 = vadd.f32 %v4253, %v4464
      %4466 = vmatmul.f32.gmra.mxu0 %v4352
      %v4467 = vpop.f32.mrf.mxu0
      %v4468 = vadd.f32 %v4256, %v4467
      %4469 = vmatmul.f32.gmra.mxu0 %v4355
      %v4470 = vpop.f32.mrf.mxu0
      %v4471 = vadd.f32 %v4259, %v4470
      %4472 = vmatmul.f32.gmra.mxu0 %v4358
      %v4473 = vpop.f32.mrf.mxu0
      %v4474 = vadd.f32 %v4262, %v4473
      %4475 = vmatmul.f32.gmra.mxu0 %v4361
      %v4476 = vpop.f32.mrf.mxu0
      %v4477 = vadd.f32 %v4265, %v4476
      %4478 = vmatmul.f32.gmra.mxu0 %v4364
      %v4479 = vpop.f32.mrf.mxu0
      %v4480 = vadd.f32 %v4268, %v4479
      %4481 = vmatmul.f32.gmra.mxu0 %v4367
      %v4482 = vpop.f32.mrf.mxu0
      %v4483 = vadd.f32 %v4271, %v4482
      %4484 = vmatmul.f32.gmra.mxu0 %v4370
      %v4485 = vpop.f32.mrf.mxu0
      %v4486 = vadd.f32 %v4274, %v4485
      %4487 = vmatmul.f32.gmra.mxu0 %v4373
      %v4488 = vpop.f32.mrf.mxu0
      %v4489 = vadd.f32 %v4277, %v4488
      %4490 = vmatmul.f32.gmra.mxu0 %v4376
      %v4491 = vpop.f32.mrf.mxu0
      %v4492 = vadd.f32 %v4280, %v4491
      %4493 = vmatmul.f32.gmra.mxu0 %v4379
      %v4494 = vpop.f32.mrf.mxu0
      %v4495 = vadd.f32 %v4283, %v4494
      %4496 = vmatmul.f32.gmra.mxu0 %v4382
      %v4497 = vpop.f32.mrf.mxu0
      %v4498 = vadd.f32 %v4286, %v4497
      %4499 = vmatmul.f32.gmra.mxu0 %v4385
      %v4500 = vpop.f32.mrf.mxu0
      %v4501 = vadd.f32 %v4289, %v4500
      %4502 = vmatmul.f32.gmra.mxu0 %v4388
      %v4503 = vpop.f32.mrf.mxu0
      %v4504 = vadd.f32 %v4292, %v4503
      %4505 = vmatmul.f32.gmra.mxu0 %v4391
      %v4506 = vpop.f32.mrf.mxu0
      %v4507 = vadd.f32 %v4295, %v4506
      %4508 = vmatmul.f32.gmra.mxu0 %v4394
      %v4509 = vpop.f32.mrf.mxu0
      %v4510 = vadd.f32 %v4298, %v4509
      %4511 = vmatmul.f32.gmra.mxu0 %v4397
      %v4512 = vpop.f32.mrf.mxu0
      %v4513 = vadd.f32 %v4301, %v4512
      %4514 = vmatmul.f32.gmra.mxu0 %v4400
      %v4515 = vpop.f32.mrf.mxu0
      %v4516 = vadd.f32 %v4304, %v4515
      %4517 = vmatmul.f32.gmra.mxu0 %v4403
      %v4518 = vpop.f32.mrf.mxu0
      %v4519 = vadd.f32 %v4307, %v4518
      %4520 = vmatmul.f32.gmra.mxu0 %v4406
      %v4521 = vpop.f32.mrf.mxu0
      %v4522 = vadd.f32 %v4310, %v4521
      %4523 = vmatmul.f32.gmra.mxu0 %v4409
      %v4524 = vpop.f32.mrf.mxu0
      %v4525 = vadd.f32 %v4313, %v4524
      %4526 = vmatmul.f32.gmra.mxu0 %v4412
      %v4527 = vpop.f32.mrf.mxu0
      %v4528 = vadd.f32 %v4316, %v4527
      %4529 = vmatmul.f32.gmra.mxu0 %v4415
      %v4530 = vpop.f32.mrf.mxu0
      %v4531 = vadd.f32 %v4319, %v4530
      %4532 = vmatmul.f32.gmra.mxu0 %v4418
      %v4533 = vpop.f32.mrf.mxu0
      %v4534 = vadd.f32 %v4322, %v4533
      %4535 = vmatmul.f32.gmra.mxu0 %v4421
      %v4536 = vpop.f32.mrf.mxu0
      %v4537 = vadd.f32 %v4325, %v4536
      %4538 = vmatmul.f32.gmra.mxu0 %v4424
      %v4539 = vpop.f32.mrf.mxu0
      %v4540 = vadd.f32 %v4328, %v4539
      %4541 = vmatmul.f32.gmra.mxu0 %v4427
      %v4542 = vpop.f32.mrf.mxu0
      %v4543 = vadd.f32 %v4331, %v4542
      %4544 = vmatmul.f32.gmra.mxu0 %v4430
      %v4545 = vpop.f32.mrf.mxu0
      %v4546 = vadd.f32 %v4334, %v4545
      %4547 = vmatmul.f32.gmra.mxu0 %v4433
      %v4548 = vpop.f32.mrf.mxu0
      %v4549 = vadd.f32 %v4337, %v4548
      %4550 = vmatmul.f32.gmra.mxu0 %v4436
      %v4551 = vpop.f32.mrf.mxu0
      %v4552 = vadd.f32 %v4340, %v4551
      %4553 = vdwg.mxu0
      %s4554 = scalar_lea.vmem %s314, 44
      %v4555 = vld [vmem:[%s4554] sm:$0xf]
      %v4557 = vsel %vm1085, %v3933, 0
      %v4560 = vsel %vm1085, %v3934, 0
      %v4563 = vsel %vm1085, %v3935, 0
      %v4566 = vsel %vm1085, %v3936, 0
      %v4569 = vsel %vm1085, %v3937, 0
      %v4572 = vsel %vm1085, %v3938, 0
      %v4575 = vsel %vm1085, %v3939, 0
      %v4578 = vsel %vm1085, %v3940, 0
      %v4581 = vsel %vm1085, %v3941, 0
      %v4584 = vsel %vm1085, %v3942, 0
      %v4587 = vsel %vm1085, %v3943, 0
      %v4590 = vsel %vm1085, %v3944, 0
      %v4593 = vsel %vm1085, %v3945, 0
      %v4596 = vsel %vm1085, %v3946, 0
      %v4599 = vsel %vm1085, %v3947, 0
      %v4602 = vsel %vm1085, %v3948, 0
      %v4605 = vsel %vm1085, %v3949, 0
      %v4608 = vsel %vm1085, %v3950, 0
      %v4611 = vsel %vm1085, %v3951, 0
      %v4614 = vsel %vm1085, %v3952, 0
      %v4617 = vsel %vm1085, %v3953, 0
      %v4620 = vsel %vm1085, %v3954, 0
      %v4623 = vsel %vm1085, %v3955, 0
      %v4626 = vsel %vm1085, %v3956, 0
      %v4629 = vsel %vm1085, %v3957, 0
      %v4632 = vsel %vm1085, %v3958, 0
      %v4635 = vsel %vm1085, %v3959, 0
      %v4638 = vsel %vm1085, %v3960, 0
      %v4641 = vsel %vm1085, %v3961, 0
      %v4644 = vsel %vm1085, %v3962, 0
      %v4647 = vsel %vm1085, %v3963, 0
      %v4650 = vsel %vm1085, %v3964, 0
      %v4653 = vsel %vm1279, %v4555, 0
      %4655 = vmatpush.msra.mxu0 0.0
      %4656 = vmatpush.msra.mxu0 0.0
      %4657 = vmatpush.msra.mxu0 0.0
      %4658 = vmatpush.msra.mxu0 0.0
      %4659 = vmatpush.msra.mxu0 0.0
      %4660 = vmatpush.msra.mxu0 0.0
      %4661 = vmatpush.msra.mxu0 0.0
      %4662 = vmatpush.msra.mxu0 0.0
      %4663 = vmatpush.msra.mxu0 0.0
      %4664 = vmatpush.msra.mxu0 0.0
      %4665 = vmatpush.msra.mxu0 0.0
      %4666 = vmatpush.msra.mxu0 0.0
      %4667 = vmatpush.msra.mxu0 0.0
      %4668 = vmatpush.msra.mxu0 0.0
      %4669 = vmatpush.msra.mxu0 0.0
      %4670 = vmatpush.msra.mxu0 %v4653
      %4671 = vmatmul.f32.gmra.mxu0 %v4557
      %v4672 = vpop.f32.mrf.mxu0
      %v4673 = vadd.f32 0.0, %v4672
      %4674 = vmatmul.f32.gmra.mxu0 %v4560
      %v4675 = vpop.f32.mrf.mxu0
      %v4676 = vadd.f32 0.0, %v4675
      %4677 = vmatmul.f32.gmra.mxu0 %v4563
      %v4678 = vpop.f32.mrf.mxu0
      %v4679 = vadd.f32 0.0, %v4678
      %4680 = vmatmul.f32.gmra.mxu0 %v4566
      %v4681 = vpop.f32.mrf.mxu0
      %v4682 = vadd.f32 0.0, %v4681
      %4683 = vmatmul.f32.gmra.mxu0 %v4569
      %v4684 = vpop.f32.mrf.mxu0
      %v4685 = vadd.f32 0.0, %v4684
      %4686 = vmatmul.f32.gmra.mxu0 %v4572
      %v4687 = vpop.f32.mrf.mxu0
      %v4688 = vadd.f32 0.0, %v4687
      %4689 = vmatmul.f32.gmra.mxu0 %v4575
      %v4690 = vpop.f32.mrf.mxu0
      %v4691 = vadd.f32 0.0, %v4690
      %4692 = vmatmul.f32.gmra.mxu0 %v4578
      %v4693 = vpop.f32.mrf.mxu0
      %v4694 = vadd.f32 0.0, %v4693
      %4695 = vmatmul.f32.gmra.mxu0 %v4581
      %v4696 = vpop.f32.mrf.mxu0
      %v4697 = vadd.f32 0.0, %v4696
      %4698 = vmatmul.f32.gmra.mxu0 %v4584
      %v4699 = vpop.f32.mrf.mxu0
      %v4700 = vadd.f32 0.0, %v4699
      %4701 = vmatmul.f32.gmra.mxu0 %v4587
      %v4702 = vpop.f32.mrf.mxu0
      %v4703 = vadd.f32 0.0, %v4702
      %4704 = vmatmul.f32.gmra.mxu0 %v4590
      %v4705 = vpop.f32.mrf.mxu0
      %v4706 = vadd.f32 0.0, %v4705
      %4707 = vmatmul.f32.gmra.mxu0 %v4593
      %v4708 = vpop.f32.mrf.mxu0
      %v4709 = vadd.f32 0.0, %v4708
      %4710 = vmatmul.f32.gmra.mxu0 %v4596
      %v4711 = vpop.f32.mrf.mxu0
      %v4712 = vadd.f32 0.0, %v4711
      %4713 = vmatmul.f32.gmra.mxu0 %v4599
      %v4714 = vpop.f32.mrf.mxu0
      %v4715 = vadd.f32 0.0, %v4714
      %4716 = vmatmul.f32.gmra.mxu0 %v4602
      %v4717 = vpop.f32.mrf.mxu0
      %v4718 = vadd.f32 0.0, %v4717
      %4719 = vmatmul.f32.gmra.mxu0 %v4605
      %v4720 = vpop.f32.mrf.mxu0
      %v4721 = vadd.f32 0.0, %v4720
      %4722 = vmatmul.f32.gmra.mxu0 %v4608
      %v4723 = vpop.f32.mrf.mxu0
      %v4724 = vadd.f32 0.0, %v4723
      %4725 = vmatmul.f32.gmra.mxu0 %v4611
      %v4726 = vpop.f32.mrf.mxu0
      %v4727 = vadd.f32 0.0, %v4726
      %4728 = vmatmul.f32.gmra.mxu0 %v4614
      %v4729 = vpop.f32.mrf.mxu0
      %v4730 = vadd.f32 0.0, %v4729
      %4731 = vmatmul.f32.gmra.mxu0 %v4617
      %v4732 = vpop.f32.mrf.mxu0
      %v4733 = vadd.f32 0.0, %v4732
      %4734 = vmatmul.f32.gmra.mxu0 %v4620
      %v4735 = vpop.f32.mrf.mxu0
      %v4736 = vadd.f32 0.0, %v4735
      %4737 = vmatmul.f32.gmra.mxu0 %v4623
      %v4738 = vpop.f32.mrf.mxu0
      %v4739 = vadd.f32 0.0, %v4738
      %4740 = vmatmul.f32.gmra.mxu0 %v4626
      %v4741 = vpop.f32.mrf.mxu0
      %v4742 = vadd.f32 0.0, %v4741
      %4743 = vmatmul.f32.gmra.mxu0 %v4629
      %v4744 = vpop.f32.mrf.mxu0
      %v4745 = vadd.f32 0.0, %v4744
      %4746 = vmatmul.f32.gmra.mxu0 %v4632
      %v4747 = vpop.f32.mrf.mxu0
      %v4748 = vadd.f32 0.0, %v4747
      %4749 = vmatmul.f32.gmra.mxu0 %v4635
      %v4750 = vpop.f32.mrf.mxu0
      %v4751 = vadd.f32 0.0, %v4750
      %4752 = vmatmul.f32.gmra.mxu0 %v4638
      %v4753 = vpop.f32.mrf.mxu0
      %v4754 = vadd.f32 0.0, %v4753
      %4755 = vmatmul.f32.gmra.mxu0 %v4641
      %v4756 = vpop.f32.mrf.mxu0
      %v4757 = vadd.f32 0.0, %v4756
      %4758 = vmatmul.f32.gmra.mxu0 %v4644
      %v4759 = vpop.f32.mrf.mxu0
      %v4760 = vadd.f32 0.0, %v4759
      %4761 = vmatmul.f32.gmra.mxu0 %v4647
      %v4762 = vpop.f32.mrf.mxu0
      %v4763 = vadd.f32 0.0, %v4762
      %4764 = vmatmul.f32.gmra.mxu0 %v4650
      %v4765 = vpop.f32.mrf.mxu0
      %v4766 = vadd.f32 0.0, %v4765
      %4767 = vdwg.mxu0
      %v4768 = vadd.f32 %v4459, %v4673
      %v4769 = vadd.f32 %v4462, %v4676
      %v4770 = vadd.f32 %v4465, %v4679
      %v4771 = vadd.f32 %v4468, %v4682
      %v4772 = vadd.f32 %v4471, %v4685
      %v4773 = vadd.f32 %v4474, %v4688
      %v4774 = vadd.f32 %v4477, %v4691
      %v4775 = vadd.f32 %v4480, %v4694
      %v4776 = vadd.f32 %v4483, %v4697
      %v4777 = vadd.f32 %v4486, %v4700
      %v4778 = vadd.f32 %v4489, %v4703
      %v4779 = vadd.f32 %v4492, %v4706
      %v4780 = vadd.f32 %v4495, %v4709
      %v4781 = vadd.f32 %v4498, %v4712
      %v4782 = vadd.f32 %v4501, %v4715
      %v4783 = vadd.f32 %v4504, %v4718
      %v4784 = vadd.f32 %v4507, %v4721
      %v4785 = vadd.f32 %v4510, %v4724
      %v4786 = vadd.f32 %v4513, %v4727
      %v4787 = vadd.f32 %v4516, %v4730
      %v4788 = vadd.f32 %v4519, %v4733
      %v4789 = vadd.f32 %v4522, %v4736
      %v4790 = vadd.f32 %v4525, %v4739
      %v4791 = vadd.f32 %v4528, %v4742
      %v4792 = vadd.f32 %v4531, %v4745
      %v4793 = vadd.f32 %v4534, %v4748
      %v4794 = vadd.f32 %v4537, %v4751
      %v4795 = vadd.f32 %v4540, %v4754
      %v4796 = vadd.f32 %v4543, %v4757
      %v4797 = vadd.f32 %v4546, %v4760
      %v4798 = vadd.f32 %v4549, %v4763
      %v4799 = vadd.f32 %v4552, %v4766
      %s4800 = scalar_lea.vmem %s314, 48
      %v4801 = vld [vmem:[%s4800] sm:$0xf]
      %v4803 = vsel %vm1085, %v3965, 0
      %v4806 = vsel %vm1085, %v3966, 0
      %v4809 = vsel %vm1085, %v3967, 0
      %v4812 = vsel %vm1085, %v3968, 0
      %v4815 = vsel %vm1085, %v3969, 0
      %v4818 = vsel %vm1085, %v3970, 0
      %v4821 = vsel %vm1085, %v3971, 0
      %v4824 = vsel %vm1085, %v3972, 0
      %v4827 = vsel %vm1085, %v3973, 0
      %v4830 = vsel %vm1085, %v3974, 0
      %v4833 = vsel %vm1085, %v3975, 0
      %v4836 = vsel %vm1085, %v3976, 0
      %v4839 = vsel %vm1085, %v3977, 0
      %v4842 = vsel %vm1085, %v3978, 0
      %v4845 = vsel %vm1085, %v3979, 0
      %v4848 = vsel %vm1085, %v3980, 0
      %v4851 = vsel %vm1085, %v3981, 0
      %v4854 = vsel %vm1085, %v3982, 0
      %v4857 = vsel %vm1085, %v3983, 0
      %v4860 = vsel %vm1085, %v3984, 0
      %v4863 = vsel %vm1085, %v3985, 0
      %v4866 = vsel %vm1085, %v3986, 0
      %v4869 = vsel %vm1085, %v3987, 0
      %v4872 = vsel %vm1085, %v3988, 0
      %v4875 = vsel %vm1085, %v3989, 0
      %v4878 = vsel %vm1085, %v3990, 0
      %v4881 = vsel %vm1085, %v3991, 0
      %v4884 = vsel %vm1085, %v3992, 0
      %v4887 = vsel %vm1085, %v3993, 0
      %v4890 = vsel %vm1085, %v3994, 0
      %v4893 = vsel %vm1085, %v3995, 0
      %v4896 = vsel %vm1085, %v3996, 0
      %v4899 = vsel %vm1279, %v4801, 0
      %4901 = vmatpush.msra.mxu0 0.0
      %4902 = vmatpush.msra.mxu0 0.0
      %4903 = vmatpush.msra.mxu0 0.0
      %4904 = vmatpush.msra.mxu0 0.0
      %4905 = vmatpush.msra.mxu0 0.0
      %4906 = vmatpush.msra.mxu0 0.0
      %4907 = vmatpush.msra.mxu0 0.0
      %4908 = vmatpush.msra.mxu0 0.0
      %4909 = vmatpush.msra.mxu0 0.0
      %4910 = vmatpush.msra.mxu0 0.0
      %4911 = vmatpush.msra.mxu0 0.0
      %4912 = vmatpush.msra.mxu0 0.0
      %4913 = vmatpush.msra.mxu0 0.0
      %4914 = vmatpush.msra.mxu0 0.0
      %4915 = vmatpush.msra.mxu0 0.0
      %4916 = vmatpush.msra.mxu0 %v4899
      %4917 = vmatmul.f32.gmra.mxu0 %v4803
      %v4918 = vpop.f32.mrf.mxu0
      %v4919 = vadd.f32 0.0, %v4918
      %4920 = vmatmul.f32.gmra.mxu0 %v4806
      %v4921 = vpop.f32.mrf.mxu0
      %v4922 = vadd.f32 0.0, %v4921
      %4923 = vmatmul.f32.gmra.mxu0 %v4809
      %v4924 = vpop.f32.mrf.mxu0
      %v4925 = vadd.f32 0.0, %v4924
      %4926 = vmatmul.f32.gmra.mxu0 %v4812
      %v4927 = vpop.f32.mrf.mxu0
      %v4928 = vadd.f32 0.0, %v4927
      %4929 = vmatmul.f32.gmra.mxu0 %v4815
      %v4930 = vpop.f32.mrf.mxu0
      %v4931 = vadd.f32 0.0, %v4930
      %4932 = vmatmul.f32.gmra.mxu0 %v4818
      %v4933 = vpop.f32.mrf.mxu0
      %v4934 = vadd.f32 0.0, %v4933
      %4935 = vmatmul.f32.gmra.mxu0 %v4821
      %v4936 = vpop.f32.mrf.mxu0
      %v4937 = vadd.f32 0.0, %v4936
      %4938 = vmatmul.f32.gmra.mxu0 %v4824
      %v4939 = vpop.f32.mrf.mxu0
      %v4940 = vadd.f32 0.0, %v4939
      %4941 = vmatmul.f32.gmra.mxu0 %v4827
      %v4942 = vpop.f32.mrf.mxu0
      %v4943 = vadd.f32 0.0, %v4942
      %4944 = vmatmul.f32.gmra.mxu0 %v4830
      %v4945 = vpop.f32.mrf.mxu0
      %v4946 = vadd.f32 0.0, %v4945
      %4947 = vmatmul.f32.gmra.mxu0 %v4833
      %v4948 = vpop.f32.mrf.mxu0
      %v4949 = vadd.f32 0.0, %v4948
      %4950 = vmatmul.f32.gmra.mxu0 %v4836
      %v4951 = vpop.f32.mrf.mxu0
      %v4952 = vadd.f32 0.0, %v4951
      %4953 = vmatmul.f32.gmra.mxu0 %v4839
      %v4954 = vpop.f32.mrf.mxu0
      %v4955 = vadd.f32 0.0, %v4954
      %4956 = vmatmul.f32.gmra.mxu0 %v4842
      %v4957 = vpop.f32.mrf.mxu0
      %v4958 = vadd.f32 0.0, %v4957
      %4959 = vmatmul.f32.gmra.mxu0 %v4845
      %v4960 = vpop.f32.mrf.mxu0
      %v4961 = vadd.f32 0.0, %v4960
      %4962 = vmatmul.f32.gmra.mxu0 %v4848
      %v4963 = vpop.f32.mrf.mxu0
      %v4964 = vadd.f32 0.0, %v4963
      %4965 = vmatmul.f32.gmra.mxu0 %v4851
      %v4966 = vpop.f32.mrf.mxu0
      %v4967 = vadd.f32 0.0, %v4966
      %4968 = vmatmul.f32.gmra.mxu0 %v4854
      %v4969 = vpop.f32.mrf.mxu0
      %v4970 = vadd.f32 0.0, %v4969
      %4971 = vmatmul.f32.gmra.mxu0 %v4857
      %v4972 = vpop.f32.mrf.mxu0
      %v4973 = vadd.f32 0.0, %v4972
      %4974 = vmatmul.f32.gmra.mxu0 %v4860
      %v4975 = vpop.f32.mrf.mxu0
      %v4976 = vadd.f32 0.0, %v4975
      %4977 = vmatmul.f32.gmra.mxu0 %v4863
      %v4978 = vpop.f32.mrf.mxu0
      %v4979 = vadd.f32 0.0, %v4978
      %4980 = vmatmul.f32.gmra.mxu0 %v4866
      %v4981 = vpop.f32.mrf.mxu0
      %v4982 = vadd.f32 0.0, %v4981
      %4983 = vmatmul.f32.gmra.mxu0 %v4869
      %v4984 = vpop.f32.mrf.mxu0
      %v4985 = vadd.f32 0.0, %v4984
      %4986 = vmatmul.f32.gmra.mxu0 %v4872
      %v4987 = vpop.f32.mrf.mxu0
      %v4988 = vadd.f32 0.0, %v4987
      %4989 = vmatmul.f32.gmra.mxu0 %v4875
      %v4990 = vpop.f32.mrf.mxu0
      %v4991 = vadd.f32 0.0, %v4990
      %4992 = vmatmul.f32.gmra.mxu0 %v4878
      %v4993 = vpop.f32.mrf.mxu0
      %v4994 = vadd.f32 0.0, %v4993
      %4995 = vmatmul.f32.gmra.mxu0 %v4881
      %v4996 = vpop.f32.mrf.mxu0
      %v4997 = vadd.f32 0.0, %v4996
      %4998 = vmatmul.f32.gmra.mxu0 %v4884
      %v4999 = vpop.f32.mrf.mxu0
      %v5000 = vadd.f32 0.0, %v4999
      %5001 = vmatmul.f32.gmra.mxu0 %v4887
      %v5002 = vpop.f32.mrf.mxu0
      %v5003 = vadd.f32 0.0, %v5002
      %5004 = vmatmul.f32.gmra.mxu0 %v4890
      %v5005 = vpop.f32.mrf.mxu0
      %v5006 = vadd.f32 0.0, %v5005
      %5007 = vmatmul.f32.gmra.mxu0 %v4893
      %v5008 = vpop.f32.mrf.mxu0
      %v5009 = vadd.f32 0.0, %v5008
      %5010 = vmatmul.f32.gmra.mxu0 %v4896
      %v5011 = vpop.f32.mrf.mxu0
      %v5012 = vadd.f32 0.0, %v5011
      %5013 = vdwg.mxu0
      %v5014 = vadd.f32 %v4768, %v4919
      %v5015 = vadd.f32 %v4769, %v4922
      %v5016 = vadd.f32 %v4770, %v4925
      %v5017 = vadd.f32 %v4771, %v4928
      %v5018 = vadd.f32 %v4772, %v4931
      %v5019 = vadd.f32 %v4773, %v4934
      %v5020 = vadd.f32 %v4774, %v4937
      %v5021 = vadd.f32 %v4775, %v4940
      %v5022 = vadd.f32 %v4776, %v4943
      %v5023 = vadd.f32 %v4777, %v4946
      %v5024 = vadd.f32 %v4778, %v4949
      %v5025 = vadd.f32 %v4779, %v4952
      %v5026 = vadd.f32 %v4780, %v4955
      %v5027 = vadd.f32 %v4781, %v4958
      %v5028 = vadd.f32 %v4782, %v4961
      %v5029 = vadd.f32 %v4783, %v4964
      %v5030 = vadd.f32 %v4784, %v4967
      %v5031 = vadd.f32 %v4785, %v4970
      %v5032 = vadd.f32 %v4786, %v4973
      %v5033 = vadd.f32 %v4787, %v4976
      %v5034 = vadd.f32 %v4788, %v4979
      %v5035 = vadd.f32 %v4789, %v4982
      %v5036 = vadd.f32 %v4790, %v4985
      %v5037 = vadd.f32 %v4791, %v4988
      %v5038 = vadd.f32 %v4792, %v4991
      %v5039 = vadd.f32 %v4793, %v4994
      %v5040 = vadd.f32 %v4794, %v4997
      %v5041 = vadd.f32 %v4795, %v5000
      %v5042 = vadd.f32 %v4796, %v5003
      %v5043 = vadd.f32 %v4797, %v5006
      %v5044 = vadd.f32 %v4798, %v5009
      %v5045 = vadd.f32 %v4799, %v5012
      %s5046 = scalar_lea.vmem %s314, 52
      %v5047 = vld [vmem:[%s5046] sm:$0xf]
      %v5049 = vsel %vm1279, %v5047, 0
      %5051 = vmatpush.msra.mxu0 0.0
      %5052 = vmatpush.msra.mxu0 0.0
      %5053 = vmatpush.msra.mxu0 0.0
      %5054 = vmatpush.msra.mxu0 0.0
      %5055 = vmatpush.msra.mxu0 0.0
      %5056 = vmatpush.msra.mxu0 0.0
      %5057 = vmatpush.msra.mxu0 0.0
      %5058 = vmatpush.msra.mxu0 0.0
      %5059 = vmatpush.msra.mxu0 0.0
      %5060 = vmatpush.msra.mxu0 0.0
      %5061 = vmatpush.msra.mxu0 0.0
      %5062 = vmatpush.msra.mxu0 0.0
      %5063 = vmatpush.msra.mxu0 0.0
      %5064 = vmatpush.msra.mxu0 0.0
      %5065 = vmatpush.msra.mxu0 0.0
      %5066 = vmatpush.msra.mxu0 %v5049
      %5067 = vmatmul.f32.gmra.mxu0 %v1184
      %v5068 = vpop.f32.mrf.mxu0
      %v5069 = vadd.f32 0.0, %v5068
      %5070 = vmatmul.f32.gmra.mxu0 %v1187
      %v5071 = vpop.f32.mrf.mxu0
      %v5072 = vadd.f32 0.0, %v5071
      %5073 = vmatmul.f32.gmra.mxu0 %v1190
      %v5074 = vpop.f32.mrf.mxu0
      %v5075 = vadd.f32 0.0, %v5074
      %5076 = vmatmul.f32.gmra.mxu0 %v1193
      %v5077 = vpop.f32.mrf.mxu0
      %v5078 = vadd.f32 0.0, %v5077
      %5079 = vmatmul.f32.gmra.mxu0 %v1196
      %v5080 = vpop.f32.mrf.mxu0
      %v5081 = vadd.f32 0.0, %v5080
      %5082 = vmatmul.f32.gmra.mxu0 %v1199
      %v5083 = vpop.f32.mrf.mxu0
      %v5084 = vadd.f32 0.0, %v5083
      %5085 = vmatmul.f32.gmra.mxu0 %v1202
      %v5086 = vpop.f32.mrf.mxu0
      %v5087 = vadd.f32 0.0, %v5086
      %5088 = vmatmul.f32.gmra.mxu0 %v1205
      %v5089 = vpop.f32.mrf.mxu0
      %v5090 = vadd.f32 0.0, %v5089
      %5091 = vmatmul.f32.gmra.mxu0 %v1208
      %v5092 = vpop.f32.mrf.mxu0
      %v5093 = vadd.f32 0.0, %v5092
      %5094 = vmatmul.f32.gmra.mxu0 %v1211
      %v5095 = vpop.f32.mrf.mxu0
      %v5096 = vadd.f32 0.0, %v5095
      %5097 = vmatmul.f32.gmra.mxu0 %v1214
      %v5098 = vpop.f32.mrf.mxu0
      %v5099 = vadd.f32 0.0, %v5098
      %5100 = vmatmul.f32.gmra.mxu0 %v1217
      %v5101 = vpop.f32.mrf.mxu0
      %v5102 = vadd.f32 0.0, %v5101
      %5103 = vmatmul.f32.gmra.mxu0 %v1220
      %v5104 = vpop.f32.mrf.mxu0
      %v5105 = vadd.f32 0.0, %v5104
      %5106 = vmatmul.f32.gmra.mxu0 %v1223
      %v5107 = vpop.f32.mrf.mxu0
      %v5108 = vadd.f32 0.0, %v5107
      %5109 = vmatmul.f32.gmra.mxu0 %v1226
      %v5110 = vpop.f32.mrf.mxu0
      %v5111 = vadd.f32 0.0, %v5110
      %5112 = vmatmul.f32.gmra.mxu0 %v1229
      %v5113 = vpop.f32.mrf.mxu0
      %v5114 = vadd.f32 0.0, %v5113
      %5115 = vmatmul.f32.gmra.mxu0 %v1232
      %v5116 = vpop.f32.mrf.mxu0
      %v5117 = vadd.f32 0.0, %v5116
      %5118 = vmatmul.f32.gmra.mxu0 %v1235
      %v5119 = vpop.f32.mrf.mxu0
      %v5120 = vadd.f32 0.0, %v5119
      %5121 = vmatmul.f32.gmra.mxu0 %v1238
      %v5122 = vpop.f32.mrf.mxu0
      %v5123 = vadd.f32 0.0, %v5122
      %5124 = vmatmul.f32.gmra.mxu0 %v1241
      %v5125 = vpop.f32.mrf.mxu0
      %v5126 = vadd.f32 0.0, %v5125
      %5127 = vmatmul.f32.gmra.mxu0 %v1244
      %v5128 = vpop.f32.mrf.mxu0
      %v5129 = vadd.f32 0.0, %v5128
      %5130 = vmatmul.f32.gmra.mxu0 %v1247
      %v5131 = vpop.f32.mrf.mxu0
      %v5132 = vadd.f32 0.0, %v5131
      %5133 = vmatmul.f32.gmra.mxu0 %v1250
      %v5134 = vpop.f32.mrf.mxu0
      %v5135 = vadd.f32 0.0, %v5134
      %5136 = vmatmul.f32.gmra.mxu0 %v1253
      %v5137 = vpop.f32.mrf.mxu0
      %v5138 = vadd.f32 0.0, %v5137
      %5139 = vmatmul.f32.gmra.mxu0 %v1256
      %v5140 = vpop.f32.mrf.mxu0
      %v5141 = vadd.f32 0.0, %v5140
      %5142 = vmatmul.f32.gmra.mxu0 %v1259
      %v5143 = vpop.f32.mrf.mxu0
      %v5144 = vadd.f32 0.0, %v5143
      %5145 = vmatmul.f32.gmra.mxu0 %v1262
      %v5146 = vpop.f32.mrf.mxu0
      %v5147 = vadd.f32 0.0, %v5146
      %5148 = vmatmul.f32.gmra.mxu0 %v1265
      %v5149 = vpop.f32.mrf.mxu0
      %v5150 = vadd.f32 0.0, %v5149
      %5151 = vmatmul.f32.gmra.mxu0 %v1268
      %v5152 = vpop.f32.mrf.mxu0
      %v5153 = vadd.f32 0.0, %v5152
      %5154 = vmatmul.f32.gmra.mxu0 %v1271
      %v5155 = vpop.f32.mrf.mxu0
      %v5156 = vadd.f32 0.0, %v5155
      %5157 = vmatmul.f32.gmra.mxu0 %v1274
      %v5158 = vpop.f32.mrf.mxu0
      %v5159 = vadd.f32 0.0, %v5158
      %5160 = vmatmul.f32.gmra.mxu0 %v1277
      %v5161 = vpop.f32.mrf.mxu0
      %v5162 = vadd.f32 0.0, %v5161
      %5163 = vdwg.mxu0
      %v5164 = vadd.f32 %v5014, %v5069
      %v5165 = vadd.f32 %v5015, %v5072
      %v5166 = vadd.f32 %v5016, %v5075
      %v5167 = vadd.f32 %v5017, %v5078
      %v5168 = vadd.f32 %v5018, %v5081
      %v5169 = vadd.f32 %v5019, %v5084
      %v5170 = vadd.f32 %v5020, %v5087
      %v5171 = vadd.f32 %v5021, %v5090
      %v5172 = vadd.f32 %v5022, %v5093
      %v5173 = vadd.f32 %v5023, %v5096
      %v5174 = vadd.f32 %v5024, %v5099
      %v5175 = vadd.f32 %v5025, %v5102
      %v5176 = vadd.f32 %v5026, %v5105
      %v5177 = vadd.f32 %v5027, %v5108
      %v5178 = vadd.f32 %v5028, %v5111
      %v5179 = vadd.f32 %v5029, %v5114
      %v5180 = vadd.f32 %v5030, %v5117
      %v5181 = vadd.f32 %v5031, %v5120
      %v5182 = vadd.f32 %v5032, %v5123
      %v5183 = vadd.f32 %v5033, %v5126
      %v5184 = vadd.f32 %v5034, %v5129
      %v5185 = vadd.f32 %v5035, %v5132
      %v5186 = vadd.f32 %v5036, %v5135
      %v5187 = vadd.f32 %v5037, %v5138
      %v5188 = vadd.f32 %v5038, %v5141
      %v5189 = vadd.f32 %v5039, %v5144
      %v5190 = vadd.f32 %v5040, %v5147
      %v5191 = vadd.f32 %v5041, %v5150
      %v5192 = vadd.f32 %v5042, %v5153
      %v5193 = vadd.f32 %v5043, %v5156
      %v5194 = vadd.f32 %v5044, %v5159
      %v5195 = vadd.f32 %v5045, %v5162
      %s5196 = scalar_lea.vmem %s314, 56
      %v5197 = vld [vmem:[%s5196] sm:$0xf]
      %v5199 = vsel %vm1085, %v3997, 0
      %v5202 = vsel %vm1085, %v3998, 0
      %v5205 = vsel %vm1085, %v3999, 0
      %v5208 = vsel %vm1085, %v4000, 0
      %v5211 = vsel %vm1085, %v4001, 0
      %v5214 = vsel %vm1085, %v4002, 0
      %v5217 = vsel %vm1085, %v4003, 0
      %v5220 = vsel %vm1085, %v4004, 0
      %v5223 = vsel %vm1085, %v4005, 0
      %v5226 = vsel %vm1085, %v4006, 0
      %v5229 = vsel %vm1085, %v4007, 0
      %v5232 = vsel %vm1085, %v4008, 0
      %v5235 = vsel %vm1085, %v4009, 0
      %v5238 = vsel %vm1085, %v4010, 0
      %v5241 = vsel %vm1085, %v4011, 0
      %v5244 = vsel %vm1085, %v4012, 0
      %v5247 = vsel %vm1085, %v4013, 0
      %v5250 = vsel %vm1085, %v4014, 0
      %v5253 = vsel %vm1085, %v4015, 0
      %v5256 = vsel %vm1085, %v4016, 0
      %v5259 = vsel %vm1085, %v4017, 0
      %v5262 = vsel %vm1085, %v4018, 0
      %v5265 = vsel %vm1085, %v4019, 0
      %v5268 = vsel %vm1085, %v4020, 0
      %v5271 = vsel %vm1085, %v4021, 0
      %v5274 = vsel %vm1085, %v4022, 0
      %v5277 = vsel %vm1085, %v4023, 0
      %v5280 = vsel %vm1085, %v4024, 0
      %v5283 = vsel %vm1085, %v4025, 0
      %v5286 = vsel %vm1085, %v4026, 0
      %v5289 = vsel %vm1085, %v4027, 0
      %v5292 = vsel %vm1085, %v4028, 0
      %v5295 = vsel %vm1279, %v5197, 0
      %5297 = vmatpush.msra.mxu0 0.0
      %5298 = vmatpush.msra.mxu0 0.0
      %5299 = vmatpush.msra.mxu0 0.0
      %5300 = vmatpush.msra.mxu0 0.0
      %5301 = vmatpush.msra.mxu0 0.0
      %5302 = vmatpush.msra.mxu0 0.0
      %5303 = vmatpush.msra.mxu0 0.0
      %5304 = vmatpush.msra.mxu0 0.0
      %5305 = vmatpush.msra.mxu0 0.0
      %5306 = vmatpush.msra.mxu0 0.0
      %5307 = vmatpush.msra.mxu0 0.0
      %5308 = vmatpush.msra.mxu0 0.0
      %5309 = vmatpush.msra.mxu0 0.0
      %5310 = vmatpush.msra.mxu0 0.0
      %5311 = vmatpush.msra.mxu0 0.0
      %5312 = vmatpush.msra.mxu0 %v5295
      %5313 = vmatmul.f32.gmra.mxu0 %v5199
      %v5314 = vpop.f32.mrf.mxu0
      %v5315 = vadd.f32 0.0, %v5314
      %5316 = vmatmul.f32.gmra.mxu0 %v5202
      %v5317 = vpop.f32.mrf.mxu0
      %v5318 = vadd.f32 0.0, %v5317
      %5319 = vmatmul.f32.gmra.mxu0 %v5205
      %v5320 = vpop.f32.mrf.mxu0
      %v5321 = vadd.f32 0.0, %v5320
      %5322 = vmatmul.f32.gmra.mxu0 %v5208
      %v5323 = vpop.f32.mrf.mxu0
      %v5324 = vadd.f32 0.0, %v5323
      %5325 = vmatmul.f32.gmra.mxu0 %v5211
      %v5326 = vpop.f32.mrf.mxu0
      %v5327 = vadd.f32 0.0, %v5326
      %5328 = vmatmul.f32.gmra.mxu0 %v5214
      %v5329 = vpop.f32.mrf.mxu0
      %v5330 = vadd.f32 0.0, %v5329
      %5331 = vmatmul.f32.gmra.mxu0 %v5217
      %v5332 = vpop.f32.mrf.mxu0
      %v5333 = vadd.f32 0.0, %v5332
      %5334 = vmatmul.f32.gmra.mxu0 %v5220
      %v5335 = vpop.f32.mrf.mxu0
      %v5336 = vadd.f32 0.0, %v5335
      %5337 = vmatmul.f32.gmra.mxu0 %v5223
      %v5338 = vpop.f32.mrf.mxu0
      %v5339 = vadd.f32 0.0, %v5338
      %5340 = vmatmul.f32.gmra.mxu0 %v5226
      %v5341 = vpop.f32.mrf.mxu0
      %v5342 = vadd.f32 0.0, %v5341
      %5343 = vmatmul.f32.gmra.mxu0 %v5229
      %v5344 = vpop.f32.mrf.mxu0
      %v5345 = vadd.f32 0.0, %v5344
      %5346 = vmatmul.f32.gmra.mxu0 %v5232
      %v5347 = vpop.f32.mrf.mxu0
      %v5348 = vadd.f32 0.0, %v5347
      %5349 = vmatmul.f32.gmra.mxu0 %v5235
      %v5350 = vpop.f32.mrf.mxu0
      %v5351 = vadd.f32 0.0, %v5350
      %5352 = vmatmul.f32.gmra.mxu0 %v5238
      %v5353 = vpop.f32.mrf.mxu0
      %v5354 = vadd.f32 0.0, %v5353
      %5355 = vmatmul.f32.gmra.mxu0 %v5241
      %v5356 = vpop.f32.mrf.mxu0
      %v5357 = vadd.f32 0.0, %v5356
      %5358 = vmatmul.f32.gmra.mxu0 %v5244
      %v5359 = vpop.f32.mrf.mxu0
      %v5360 = vadd.f32 0.0, %v5359
      %5361 = vmatmul.f32.gmra.mxu0 %v5247
      %v5362 = vpop.f32.mrf.mxu0
      %v5363 = vadd.f32 0.0, %v5362
      %5364 = vmatmul.f32.gmra.mxu0 %v5250
      %v5365 = vpop.f32.mrf.mxu0
      %v5366 = vadd.f32 0.0, %v5365
      %5367 = vmatmul.f32.gmra.mxu0 %v5253
      %v5368 = vpop.f32.mrf.mxu0
      %v5369 = vadd.f32 0.0, %v5368
      %5370 = vmatmul.f32.gmra.mxu0 %v5256
      %v5371 = vpop.f32.mrf.mxu0
      %v5372 = vadd.f32 0.0, %v5371
      %5373 = vmatmul.f32.gmra.mxu0 %v5259
      %v5374 = vpop.f32.mrf.mxu0
      %v5375 = vadd.f32 0.0, %v5374
      %5376 = vmatmul.f32.gmra.mxu0 %v5262
      %v5377 = vpop.f32.mrf.mxu0
      %v5378 = vadd.f32 0.0, %v5377
      %5379 = vmatmul.f32.gmra.mxu0 %v5265
      %v5380 = vpop.f32.mrf.mxu0
      %v5381 = vadd.f32 0.0, %v5380
      %5382 = vmatmul.f32.gmra.mxu0 %v5268
      %v5383 = vpop.f32.mrf.mxu0
      %v5384 = vadd.f32 0.0, %v5383
      %5385 = vmatmul.f32.gmra.mxu0 %v5271
      %v5386 = vpop.f32.mrf.mxu0
      %v5387 = vadd.f32 0.0, %v5386
      %5388 = vmatmul.f32.gmra.mxu0 %v5274
      %v5389 = vpop.f32.mrf.mxu0
      %v5390 = vadd.f32 0.0, %v5389
      %5391 = vmatmul.f32.gmra.mxu0 %v5277
      %v5392 = vpop.f32.mrf.mxu0
      %v5393 = vadd.f32 0.0, %v5392
      %5394 = vmatmul.f32.gmra.mxu0 %v5280
      %v5395 = vpop.f32.mrf.mxu0
      %v5396 = vadd.f32 0.0, %v5395
      %5397 = vmatmul.f32.gmra.mxu0 %v5283
      %v5398 = vpop.f32.mrf.mxu0
      %v5399 = vadd.f32 0.0, %v5398
      %5400 = vmatmul.f32.gmra.mxu0 %v5286
      %v5401 = vpop.f32.mrf.mxu0
      %v5402 = vadd.f32 0.0, %v5401
      %5403 = vmatmul.f32.gmra.mxu0 %v5289
      %v5404 = vpop.f32.mrf.mxu0
      %v5405 = vadd.f32 0.0, %v5404
      %5406 = vmatmul.f32.gmra.mxu0 %v5292
      %v5407 = vpop.f32.mrf.mxu0
      %v5408 = vadd.f32 0.0, %v5407
      %5409 = vdwg.mxu0
      %v5410 = vadd.f32 %v5164, %v5315
      %v5411 = vadd.f32 %v5165, %v5318
      %v5412 = vadd.f32 %v5166, %v5321
      %v5413 = vadd.f32 %v5167, %v5324
      %v5414 = vadd.f32 %v5168, %v5327
      %v5415 = vadd.f32 %v5169, %v5330
      %v5416 = vadd.f32 %v5170, %v5333
      %v5417 = vadd.f32 %v5171, %v5336
      %v5418 = vadd.f32 %v5172, %v5339
      %v5419 = vadd.f32 %v5173, %v5342
      %v5420 = vadd.f32 %v5174, %v5345
      %v5421 = vadd.f32 %v5175, %v5348
      %v5422 = vadd.f32 %v5176, %v5351
      %v5423 = vadd.f32 %v5177, %v5354
      %v5424 = vadd.f32 %v5178, %v5357
      %v5425 = vadd.f32 %v5179, %v5360
      %v5426 = vadd.f32 %v5180, %v5363
      %v5427 = vadd.f32 %v5181, %v5366
      %v5428 = vadd.f32 %v5182, %v5369
      %v5429 = vadd.f32 %v5183, %v5372
      %v5430 = vadd.f32 %v5184, %v5375
      %v5431 = vadd.f32 %v5185, %v5378
      %v5432 = vadd.f32 %v5186, %v5381
      %v5433 = vadd.f32 %v5187, %v5384
      %v5434 = vadd.f32 %v5188, %v5387
      %v5435 = vadd.f32 %v5189, %v5390
      %v5436 = vadd.f32 %v5190, %v5393
      %v5437 = vadd.f32 %v5191, %v5396
      %v5438 = vadd.f32 %v5192, %v5399
      %v5439 = vadd.f32 %v5193, %v5402
      %v5440 = vadd.f32 %v5194, %v5405
      %v5441 = vadd.f32 %v5195, %v5408
      %s5442 = scalar_lea.vmem %s314, 60
      %v5443 = vld [vmem:[%s5442] sm:$0xf]
      %v5445 = vsel %vm1085, %v4030, 0
      %v5448 = vsel %vm1085, %v4031, 0
      %v5451 = vsel %vm1085, %v4032, 0
      %v5454 = vsel %vm1085, %v4033, 0
      %v5457 = vsel %vm1085, %v4034, 0
      %v5460 = vsel %vm1085, %v4035, 0
      %v5463 = vsel %vm1085, %v4036, 0
      %v5466 = vsel %vm1085, %v4037, 0
      %v5469 = vsel %vm1085, %v4038, 0
      %v5472 = vsel %vm1085, %v4039, 0
      %v5475 = vsel %vm1085, %v4040, 0
      %v5478 = vsel %vm1085, %v4041, 0
      %v5481 = vsel %vm1085, %v4042, 0
      %v5484 = vsel %vm1085, %v4043, 0
      %v5487 = vsel %vm1085, %v4044, 0
      %v5490 = vsel %vm1085, %v4045, 0
      %v5493 = vsel %vm1085, %v4046, 0
      %v5496 = vsel %vm1085, %v4047, 0
      %v5499 = vsel %vm1085, %v4048, 0
      %v5502 = vsel %vm1085, %v4049, 0
      %v5505 = vsel %vm1085, %v4050, 0
      %v5508 = vsel %vm1085, %v4051, 0
      %v5511 = vsel %vm1085, %v4052, 0
      %v5514 = vsel %vm1085, %v4053, 0
      %v5517 = vsel %vm1085, %v4054, 0
      %v5520 = vsel %vm1085, %v4055, 0
      %v5523 = vsel %vm1085, %v4056, 0
      %v5526 = vsel %vm1085, %v4057, 0
      %v5529 = vsel %vm1085, %v4058, 0
      %v5532 = vsel %vm1085, %v4059, 0
      %v5535 = vsel %vm1085, %v4060, 0
      %v5538 = vsel %vm1085, %v4061, 0
      %v5541 = vsel %vm1279, %v5443, 0
      %5543 = vmatpush.msra.mxu0 0.0
      %5544 = vmatpush.msra.mxu0 0.0
      %5545 = vmatpush.msra.mxu0 0.0
      %5546 = vmatpush.msra.mxu0 0.0
      %5547 = vmatpush.msra.mxu0 0.0
      %5548 = vmatpush.msra.mxu0 0.0
      %5549 = vmatpush.msra.mxu0 0.0
      %5550 = vmatpush.msra.mxu0 0.0
      %5551 = vmatpush.msra.mxu0 0.0
      %5552 = vmatpush.msra.mxu0 0.0
      %5553 = vmatpush.msra.mxu0 0.0
      %5554 = vmatpush.msra.mxu0 0.0
      %5555 = vmatpush.msra.mxu0 0.0
      %5556 = vmatpush.msra.mxu0 0.0
      %5557 = vmatpush.msra.mxu0 0.0
      %5558 = vmatpush.msra.mxu0 %v5541
      %5559 = vmatmul.f32.gmra.mxu0 %v5445
      %v5560 = vpop.f32.mrf.mxu0
      %v5561 = vadd.f32 0.0, %v5560
      %5562 = vmatmul.f32.gmra.mxu0 %v5448
      %v5563 = vpop.f32.mrf.mxu0
      %v5564 = vadd.f32 0.0, %v5563
      %5565 = vmatmul.f32.gmra.mxu0 %v5451
      %v5566 = vpop.f32.mrf.mxu0
      %v5567 = vadd.f32 0.0, %v5566
      %5568 = vmatmul.f32.gmra.mxu0 %v5454
      %v5569 = vpop.f32.mrf.mxu0
      %v5570 = vadd.f32 0.0, %v5569
      %5571 = vmatmul.f32.gmra.mxu0 %v5457
      %v5572 = vpop.f32.mrf.mxu0
      %v5573 = vadd.f32 0.0, %v5572
      %5574 = vmatmul.f32.gmra.mxu0 %v5460
      %v5575 = vpop.f32.mrf.mxu0
      %v5576 = vadd.f32 0.0, %v5575
      %5577 = vmatmul.f32.gmra.mxu0 %v5463
      %v5578 = vpop.f32.mrf.mxu0
      %v5579 = vadd.f32 0.0, %v5578
      %5580 = vmatmul.f32.gmra.mxu0 %v5466
      %v5581 = vpop.f32.mrf.mxu0
      %v5582 = vadd.f32 0.0, %v5581
      %5583 = vmatmul.f32.gmra.mxu0 %v5469
      %v5584 = vpop.f32.mrf.mxu0
      %v5585 = vadd.f32 0.0, %v5584
      %5586 = vmatmul.f32.gmra.mxu0 %v5472
      %v5587 = vpop.f32.mrf.mxu0
      %v5588 = vadd.f32 0.0, %v5587
      %5589 = vmatmul.f32.gmra.mxu0 %v5475
      %v5590 = vpop.f32.mrf.mxu0
      %v5591 = vadd.f32 0.0, %v5590
      %5592 = vmatmul.f32.gmra.mxu0 %v5478
      %v5593 = vpop.f32.mrf.mxu0
      %v5594 = vadd.f32 0.0, %v5593
      %5595 = vmatmul.f32.gmra.mxu0 %v5481
      %v5596 = vpop.f32.mrf.mxu0
      %v5597 = vadd.f32 0.0, %v5596
      %5598 = vmatmul.f32.gmra.mxu0 %v5484
      %v5599 = vpop.f32.mrf.mxu0
      %v5600 = vadd.f32 0.0, %v5599
      %5601 = vmatmul.f32.gmra.mxu0 %v5487
      %v5602 = vpop.f32.mrf.mxu0
      %v5603 = vadd.f32 0.0, %v5602
      %5604 = vmatmul.f32.gmra.mxu0 %v5490
      %v5605 = vpop.f32.mrf.mxu0
      %v5606 = vadd.f32 0.0, %v5605
      %5607 = vmatmul.f32.gmra.mxu0 %v5493
      %v5608 = vpop.f32.mrf.mxu0
      %v5609 = vadd.f32 0.0, %v5608
      %5610 = vmatmul.f32.gmra.mxu0 %v5496
      %v5611 = vpop.f32.mrf.mxu0
      %v5612 = vadd.f32 0.0, %v5611
      %5613 = vmatmul.f32.gmra.mxu0 %v5499
      %v5614 = vpop.f32.mrf.mxu0
      %v5615 = vadd.f32 0.0, %v5614
      %5616 = vmatmul.f32.gmra.mxu0 %v5502
      %v5617 = vpop.f32.mrf.mxu0
      %v5618 = vadd.f32 0.0, %v5617
      %5619 = vmatmul.f32.gmra.mxu0 %v5505
      %v5620 = vpop.f32.mrf.mxu0
      %v5621 = vadd.f32 0.0, %v5620
      %5622 = vmatmul.f32.gmra.mxu0 %v5508
      %v5623 = vpop.f32.mrf.mxu0
      %v5624 = vadd.f32 0.0, %v5623
      %5625 = vmatmul.f32.gmra.mxu0 %v5511
      %v5626 = vpop.f32.mrf.mxu0
      %v5627 = vadd.f32 0.0, %v5626
      %5628 = vmatmul.f32.gmra.mxu0 %v5514
      %v5629 = vpop.f32.mrf.mxu0
      %v5630 = vadd.f32 0.0, %v5629
      %5631 = vmatmul.f32.gmra.mxu0 %v5517
      %v5632 = vpop.f32.mrf.mxu0
      %v5633 = vadd.f32 0.0, %v5632
      %5634 = vmatmul.f32.gmra.mxu0 %v5520
      %v5635 = vpop.f32.mrf.mxu0
      %v5636 = vadd.f32 0.0, %v5635
      %5637 = vmatmul.f32.gmra.mxu0 %v5523
      %v5638 = vpop.f32.mrf.mxu0
      %v5639 = vadd.f32 0.0, %v5638
      %5640 = vmatmul.f32.gmra.mxu0 %v5526
      %v5641 = vpop.f32.mrf.mxu0
      %v5642 = vadd.f32 0.0, %v5641
      %5643 = vmatmul.f32.gmra.mxu0 %v5529
      %v5644 = vpop.f32.mrf.mxu0
      %v5645 = vadd.f32 0.0, %v5644
      %5646 = vmatmul.f32.gmra.mxu0 %v5532
      %v5647 = vpop.f32.mrf.mxu0
      %v5648 = vadd.f32 0.0, %v5647
      %5649 = vmatmul.f32.gmra.mxu0 %v5535
      %v5650 = vpop.f32.mrf.mxu0
      %v5651 = vadd.f32 0.0, %v5650
      %5652 = vmatmul.f32.gmra.mxu0 %v5538
      %v5653 = vpop.f32.mrf.mxu0
      %v5654 = vadd.f32 0.0, %v5653
      %5655 = vdwg.mxu0
      %v5656 = vadd.f32 %v5410, %v5561
      %v5657 = vadd.f32 %v5411, %v5564
      %v5658 = vadd.f32 %v5412, %v5567
      %v5659 = vadd.f32 %v5413, %v5570
      %v5660 = vadd.f32 %v5414, %v5573
      %v5661 = vadd.f32 %v5415, %v5576
      %v5662 = vadd.f32 %v5416, %v5579
      %v5663 = vadd.f32 %v5417, %v5582
      %v5664 = vadd.f32 %v5418, %v5585
      %v5665 = vadd.f32 %v5419, %v5588
      %v5666 = vadd.f32 %v5420, %v5591
      %v5667 = vadd.f32 %v5421, %v5594
      %v5668 = vadd.f32 %v5422, %v5597
      %v5669 = vadd.f32 %v5423, %v5600
      %v5670 = vadd.f32 %v5424, %v5603
      %v5671 = vadd.f32 %v5425, %v5606
      %v5672 = vadd.f32 %v5426, %v5609
      %v5673 = vadd.f32 %v5427, %v5612
      %v5674 = vadd.f32 %v5428, %v5615
      %v5675 = vadd.f32 %v5429, %v5618
      %v5676 = vadd.f32 %v5430, %v5621
      %v5677 = vadd.f32 %v5431, %v5624
      %v5678 = vadd.f32 %v5432, %v5627
      %v5679 = vadd.f32 %v5433, %v5630
      %v5680 = vadd.f32 %v5434, %v5633
      %v5681 = vadd.f32 %v5435, %v5636
      %v5682 = vadd.f32 %v5436, %v5639
      %v5683 = vadd.f32 %v5437, %v5642
      %v5684 = vadd.f32 %v5438, %v5645
      %v5685 = vadd.f32 %v5439, %v5648
      %v5686 = vadd.f32 %v5440, %v5651
      %v5687 = vadd.f32 %v5441, %v5654
      %s5688 = scalar_lea.vmem %s314, 64
      %v5689 = vld [vmem:[%s5688] sm:$0xf]
      %v5691 = vsel %vm1085, %v4062, 0
      %v5694 = vsel %vm1085, %v4063, 0
      %v5697 = vsel %vm1085, %v4064, 0
      %v5700 = vsel %vm1085, %v4065, 0
      %v5703 = vsel %vm1085, %v4066, 0
      %v5706 = vsel %vm1085, %v4067, 0
      %v5709 = vsel %vm1085, %v4068, 0
      %v5712 = vsel %vm1085, %v4069, 0
      %v5715 = vsel %vm1085, %v4070, 0
      %v5718 = vsel %vm1085, %v4071, 0
      %v5721 = vsel %vm1085, %v4072, 0
      %v5724 = vsel %vm1085, %v4073, 0
      %v5727 = vsel %vm1085, %v4074, 0
      %v5730 = vsel %vm1085, %v4075, 0
      %v5733 = vsel %vm1085, %v4076, 0
      %v5736 = vsel %vm1085, %v4077, 0
      %v5739 = vsel %vm1085, %v4078, 0
      %v5742 = vsel %vm1085, %v4079, 0
      %v5745 = vsel %vm1085, %v4080, 0
      %v5748 = vsel %vm1085, %v4081, 0
      %v5751 = vsel %vm1085, %v4082, 0
      %v5754 = vsel %vm1085, %v4083, 0
      %v5757 = vsel %vm1085, %v4084, 0
      %v5760 = vsel %vm1085, %v4085, 0
      %v5763 = vsel %vm1085, %v4086, 0
      %v5766 = vsel %vm1085, %v4087, 0
      %v5769 = vsel %vm1085, %v4088, 0
      %v5772 = vsel %vm1085, %v4089, 0
      %v5775 = vsel %vm1085, %v4090, 0
      %v5778 = vsel %vm1085, %v4091, 0
      %v5781 = vsel %vm1085, %v4092, 0
      %v5784 = vsel %vm1085, %v4093, 0
      %v5787 = vsel %vm1279, %v5689, 0
      %5789 = vmatpush.msra.mxu0 0.0
      %5790 = vmatpush.msra.mxu0 0.0
      %5791 = vmatpush.msra.mxu0 0.0
      %5792 = vmatpush.msra.mxu0 0.0
      %5793 = vmatpush.msra.mxu0 0.0
      %5794 = vmatpush.msra.mxu0 0.0
      %5795 = vmatpush.msra.mxu0 0.0
      %5796 = vmatpush.msra.mxu0 0.0
      %5797 = vmatpush.msra.mxu0 0.0
      %5798 = vmatpush.msra.mxu0 0.0
      %5799 = vmatpush.msra.mxu0 0.0
      %5800 = vmatpush.msra.mxu0 0.0
      %5801 = vmatpush.msra.mxu0 0.0
      %5802 = vmatpush.msra.mxu0 0.0
      %5803 = vmatpush.msra.mxu0 0.0
      %5804 = vmatpush.msra.mxu0 %v5787
      %5805 = vmatmul.f32.gmra.mxu0 %v5691
      %v5806 = vpop.f32.mrf.mxu0
      %v5807 = vadd.f32 0.0, %v5806
      %5808 = vmatmul.f32.gmra.mxu0 %v5694
      %v5809 = vpop.f32.mrf.mxu0
      %v5810 = vadd.f32 0.0, %v5809
      %5811 = vmatmul.f32.gmra.mxu0 %v5697
      %v5812 = vpop.f32.mrf.mxu0
      %v5813 = vadd.f32 0.0, %v5812
      %5814 = vmatmul.f32.gmra.mxu0 %v5700
      %v5815 = vpop.f32.mrf.mxu0
      %v5816 = vadd.f32 0.0, %v5815
      %5817 = vmatmul.f32.gmra.mxu0 %v5703
      %v5818 = vpop.f32.mrf.mxu0
      %v5819 = vadd.f32 0.0, %v5818
      %5820 = vmatmul.f32.gmra.mxu0 %v5706
      %v5821 = vpop.f32.mrf.mxu0
      %v5822 = vadd.f32 0.0, %v5821
      %5823 = vmatmul.f32.gmra.mxu0 %v5709
      %v5824 = vpop.f32.mrf.mxu0
      %v5825 = vadd.f32 0.0, %v5824
      %5826 = vmatmul.f32.gmra.mxu0 %v5712
      %v5827 = vpop.f32.mrf.mxu0
      %v5828 = vadd.f32 0.0, %v5827
      %5829 = vmatmul.f32.gmra.mxu0 %v5715
      %v5830 = vpop.f32.mrf.mxu0
      %v5831 = vadd.f32 0.0, %v5830
      %5832 = vmatmul.f32.gmra.mxu0 %v5718
      %v5833 = vpop.f32.mrf.mxu0
      %v5834 = vadd.f32 0.0, %v5833
      %5835 = vmatmul.f32.gmra.mxu0 %v5721
      %v5836 = vpop.f32.mrf.mxu0
      %v5837 = vadd.f32 0.0, %v5836
      %5838 = vmatmul.f32.gmra.mxu0 %v5724
      %v5839 = vpop.f32.mrf.mxu0
      %v5840 = vadd.f32 0.0, %v5839
      %5841 = vmatmul.f32.gmra.mxu0 %v5727
      %v5842 = vpop.f32.mrf.mxu0
      %v5843 = vadd.f32 0.0, %v5842
      %5844 = vmatmul.f32.gmra.mxu0 %v5730
      %v5845 = vpop.f32.mrf.mxu0
      %v5846 = vadd.f32 0.0, %v5845
      %5847 = vmatmul.f32.gmra.mxu0 %v5733
      %v5848 = vpop.f32.mrf.mxu0
      %v5849 = vadd.f32 0.0, %v5848
      %5850 = vmatmul.f32.gmra.mxu0 %v5736
      %v5851 = vpop.f32.mrf.mxu0
      %v5852 = vadd.f32 0.0, %v5851
      %5853 = vmatmul.f32.gmra.mxu0 %v5739
      %v5854 = vpop.f32.mrf.mxu0
      %v5855 = vadd.f32 0.0, %v5854
      %5856 = vmatmul.f32.gmra.mxu0 %v5742
      %v5857 = vpop.f32.mrf.mxu0
      %v5858 = vadd.f32 0.0, %v5857
      %5859 = vmatmul.f32.gmra.mxu0 %v5745
      %v5860 = vpop.f32.mrf.mxu0
      %v5861 = vadd.f32 0.0, %v5860
      %5862 = vmatmul.f32.gmra.mxu0 %v5748
      %v5863 = vpop.f32.mrf.mxu0
      %v5864 = vadd.f32 0.0, %v5863
      %5865 = vmatmul.f32.gmra.mxu0 %v5751
      %v5866 = vpop.f32.mrf.mxu0
      %v5867 = vadd.f32 0.0, %v5866
      %5868 = vmatmul.f32.gmra.mxu0 %v5754
      %v5869 = vpop.f32.mrf.mxu0
      %v5870 = vadd.f32 0.0, %v5869
      %5871 = vmatmul.f32.gmra.mxu0 %v5757
      %v5872 = vpop.f32.mrf.mxu0
      %v5873 = vadd.f32 0.0, %v5872
      %5874 = vmatmul.f32.gmra.mxu0 %v5760
      %v5875 = vpop.f32.mrf.mxu0
      %v5876 = vadd.f32 0.0, %v5875
      %5877 = vmatmul.f32.gmra.mxu0 %v5763
      %v5878 = vpop.f32.mrf.mxu0
      %v5879 = vadd.f32 0.0, %v5878
      %5880 = vmatmul.f32.gmra.mxu0 %v5766
      %v5881 = vpop.f32.mrf.mxu0
      %v5882 = vadd.f32 0.0, %v5881
      %5883 = vmatmul.f32.gmra.mxu0 %v5769
      %v5884 = vpop.f32.mrf.mxu0
      %v5885 = vadd.f32 0.0, %v5884
      %5886 = vmatmul.f32.gmra.mxu0 %v5772
      %v5887 = vpop.f32.mrf.mxu0
      %v5888 = vadd.f32 0.0, %v5887
      %5889 = vmatmul.f32.gmra.mxu0 %v5775
      %v5890 = vpop.f32.mrf.mxu0
      %v5891 = vadd.f32 0.0, %v5890
      %5892 = vmatmul.f32.gmra.mxu0 %v5778
      %v5893 = vpop.f32.mrf.mxu0
      %v5894 = vadd.f32 0.0, %v5893
      %5895 = vmatmul.f32.gmra.mxu0 %v5781
      %v5896 = vpop.f32.mrf.mxu0
      %v5897 = vadd.f32 0.0, %v5896
      %5898 = vmatmul.f32.gmra.mxu0 %v5784
      %v5899 = vpop.f32.mrf.mxu0
      %v5900 = vadd.f32 0.0, %v5899
      %5901 = vdwg.mxu0
      %v5902 = vadd.f32 %v5656, %v5807
      %v5903 = vadd.f32 %v5657, %v5810
      %v5904 = vadd.f32 %v5658, %v5813
      %v5905 = vadd.f32 %v5659, %v5816
      %v5906 = vadd.f32 %v5660, %v5819
      %v5907 = vadd.f32 %v5661, %v5822
      %v5908 = vadd.f32 %v5662, %v5825
      %v5909 = vadd.f32 %v5663, %v5828
      %v5910 = vadd.f32 %v5664, %v5831
      %v5911 = vadd.f32 %v5665, %v5834
      %v5912 = vadd.f32 %v5666, %v5837
      %v5913 = vadd.f32 %v5667, %v5840
      %v5914 = vadd.f32 %v5668, %v5843
      %v5915 = vadd.f32 %v5669, %v5846
      %v5916 = vadd.f32 %v5670, %v5849
      %v5917 = vadd.f32 %v5671, %v5852
      %v5918 = vadd.f32 %v5672, %v5855
      %v5919 = vadd.f32 %v5673, %v5858
      %v5920 = vadd.f32 %v5674, %v5861
      %v5921 = vadd.f32 %v5675, %v5864
      %v5922 = vadd.f32 %v5676, %v5867
      %v5923 = vadd.f32 %v5677, %v5870
      %v5924 = vadd.f32 %v5678, %v5873
      %v5925 = vadd.f32 %v5679, %v5876
      %v5926 = vadd.f32 %v5680, %v5879
      %v5927 = vadd.f32 %v5681, %v5882
      %v5928 = vadd.f32 %v5682, %v5885
      %v5929 = vadd.f32 %v5683, %v5888
      %v5930 = vadd.f32 %v5684, %v5891
      %v5931 = vadd.f32 %v5685, %v5894
      %v5932 = vadd.f32 %v5686, %v5897
      %v5933 = vadd.f32 %v5687, %v5900
      %s5934 = scalar_lea.vmem %s314, 68
      %v5935 = vld [vmem:[%s5934] sm:$0xf]
      %v5937 = vsel %vm1085, %v4094, 0
      %v5940 = vsel %vm1085, %v4095, 0
      %v5943 = vsel %vm1085, %v4096, 0
      %v5946 = vsel %vm1085, %v4097, 0
      %v5949 = vsel %vm1085, %v4098, 0
      %v5952 = vsel %vm1085, %v4099, 0
      %v5955 = vsel %vm1085, %v4100, 0
      %v5958 = vsel %vm1085, %v4101, 0
      %v5961 = vsel %vm1085, %v4102, 0
      %v5964 = vsel %vm1085, %v4103, 0
      %v5967 = vsel %vm1085, %v4104, 0
      %v5970 = vsel %vm1085, %v4105, 0
      %v5973 = vsel %vm1085, %v4106, 0
      %v5976 = vsel %vm1085, %v4107, 0
      %v5979 = vsel %vm1085, %v4108, 0
      %v5982 = vsel %vm1085, %v4109, 0
      %v5985 = vsel %vm1085, %v4110, 0
      %v5988 = vsel %vm1085, %v4111, 0
      %v5991 = vsel %vm1085, %v4112, 0
      %v5994 = vsel %vm1085, %v4113, 0
      %v5997 = vsel %vm1085, %v4114, 0
      %v6000 = vsel %vm1085, %v4115, 0
      %v6003 = vsel %vm1085, %v4116, 0
      %v6006 = vsel %vm1085, %v4117, 0
      %v6009 = vsel %vm1085, %v4118, 0
      %v6012 = vsel %vm1085, %v4119, 0
      %v6015 = vsel %vm1085, %v4120, 0
      %v6018 = vsel %vm1085, %v4121, 0
      %v6021 = vsel %vm1085, %v4122, 0
      %v6024 = vsel %vm1085, %v4123, 0
      %v6027 = vsel %vm1085, %v4124, 0
      %v6030 = vsel %vm1085, %v4125, 0
      %v6033 = vsel %vm1279, %v5935, 0
      %6035 = vmatpush.msra.mxu0 0.0
      %6036 = vmatpush.msra.mxu0 0.0
      %6037 = vmatpush.msra.mxu0 0.0
      %6038 = vmatpush.msra.mxu0 0.0
      %6039 = vmatpush.msra.mxu0 0.0
      %6040 = vmatpush.msra.mxu0 0.0
      %6041 = vmatpush.msra.mxu0 0.0
      %6042 = vmatpush.msra.mxu0 0.0
      %6043 = vmatpush.msra.mxu0 0.0
      %6044 = vmatpush.msra.mxu0 0.0
      %6045 = vmatpush.msra.mxu0 0.0
      %6046 = vmatpush.msra.mxu0 0.0
      %6047 = vmatpush.msra.mxu0 0.0
      %6048 = vmatpush.msra.mxu0 0.0
      %6049 = vmatpush.msra.mxu0 0.0
      %6050 = vmatpush.msra.mxu0 %v6033
      %6051 = vmatmul.f32.gmra.mxu0 %v5937
      %v6052 = vpop.f32.mrf.mxu0
      %v6053 = vadd.f32 0.0, %v6052
      %6054 = vmatmul.f32.gmra.mxu0 %v5940
      %v6055 = vpop.f32.mrf.mxu0
      %v6056 = vadd.f32 0.0, %v6055
      %6057 = vmatmul.f32.gmra.mxu0 %v5943
      %v6058 = vpop.f32.mrf.mxu0
      %v6059 = vadd.f32 0.0, %v6058
      %6060 = vmatmul.f32.gmra.mxu0 %v5946
      %v6061 = vpop.f32.mrf.mxu0
      %v6062 = vadd.f32 0.0, %v6061
      %6063 = vmatmul.f32.gmra.mxu0 %v5949
      %v6064 = vpop.f32.mrf.mxu0
      %v6065 = vadd.f32 0.0, %v6064
      %6066 = vmatmul.f32.gmra.mxu0 %v5952
      %v6067 = vpop.f32.mrf.mxu0
      %v6068 = vadd.f32 0.0, %v6067
      %6069 = vmatmul.f32.gmra.mxu0 %v5955
      %v6070 = vpop.f32.mrf.mxu0
      %v6071 = vadd.f32 0.0, %v6070
      %6072 = vmatmul.f32.gmra.mxu0 %v5958
      %v6073 = vpop.f32.mrf.mxu0
      %v6074 = vadd.f32 0.0, %v6073
      %6075 = vmatmul.f32.gmra.mxu0 %v5961
      %v6076 = vpop.f32.mrf.mxu0
      %v6077 = vadd.f32 0.0, %v6076
      %6078 = vmatmul.f32.gmra.mxu0 %v5964
      %v6079 = vpop.f32.mrf.mxu0
      %v6080 = vadd.f32 0.0, %v6079
      %6081 = vmatmul.f32.gmra.mxu0 %v5967
      %v6082 = vpop.f32.mrf.mxu0
      %v6083 = vadd.f32 0.0, %v6082
      %6084 = vmatmul.f32.gmra.mxu0 %v5970
      %v6085 = vpop.f32.mrf.mxu0
      %v6086 = vadd.f32 0.0, %v6085
      %6087 = vmatmul.f32.gmra.mxu0 %v5973
      %v6088 = vpop.f32.mrf.mxu0
      %v6089 = vadd.f32 0.0, %v6088
      %6090 = vmatmul.f32.gmra.mxu0 %v5976
      %v6091 = vpop.f32.mrf.mxu0
      %v6092 = vadd.f32 0.0, %v6091
      %6093 = vmatmul.f32.gmra.mxu0 %v5979
      %v6094 = vpop.f32.mrf.mxu0
      %v6095 = vadd.f32 0.0, %v6094
      %6096 = vmatmul.f32.gmra.mxu0 %v5982
      %v6097 = vpop.f32.mrf.mxu0
      %v6098 = vadd.f32 0.0, %v6097
      %6099 = vmatmul.f32.gmra.mxu0 %v5985
      %v6100 = vpop.f32.mrf.mxu0
      %v6101 = vadd.f32 0.0, %v6100
      %6102 = vmatmul.f32.gmra.mxu0 %v5988
      %v6103 = vpop.f32.mrf.mxu0
      %v6104 = vadd.f32 0.0, %v6103
      %6105 = vmatmul.f32.gmra.mxu0 %v5991
      %v6106 = vpop.f32.mrf.mxu0
      %v6107 = vadd.f32 0.0, %v6106
      %6108 = vmatmul.f32.gmra.mxu0 %v5994
      %v6109 = vpop.f32.mrf.mxu0
      %v6110 = vadd.f32 0.0, %v6109
      %6111 = vmatmul.f32.gmra.mxu0 %v5997
      %v6112 = vpop.f32.mrf.mxu0
      %v6113 = vadd.f32 0.0, %v6112
      %6114 = vmatmul.f32.gmra.mxu0 %v6000
      %v6115 = vpop.f32.mrf.mxu0
      %v6116 = vadd.f32 0.0, %v6115
      %6117 = vmatmul.f32.gmra.mxu0 %v6003
      %v6118 = vpop.f32.mrf.mxu0
      %v6119 = vadd.f32 0.0, %v6118
      %6120 = vmatmul.f32.gmra.mxu0 %v6006
      %v6121 = vpop.f32.mrf.mxu0
      %v6122 = vadd.f32 0.0, %v6121
      %6123 = vmatmul.f32.gmra.mxu0 %v6009
      %v6124 = vpop.f32.mrf.mxu0
      %v6125 = vadd.f32 0.0, %v6124
      %6126 = vmatmul.f32.gmra.mxu0 %v6012
      %v6127 = vpop.f32.mrf.mxu0
      %v6128 = vadd.f32 0.0, %v6127
      %6129 = vmatmul.f32.gmra.mxu0 %v6015
      %v6130 = vpop.f32.mrf.mxu0
      %v6131 = vadd.f32 0.0, %v6130
      %6132 = vmatmul.f32.gmra.mxu0 %v6018
      %v6133 = vpop.f32.mrf.mxu0
      %v6134 = vadd.f32 0.0, %v6133
      %6135 = vmatmul.f32.gmra.mxu0 %v6021
      %v6136 = vpop.f32.mrf.mxu0
      %v6137 = vadd.f32 0.0, %v6136
      %6138 = vmatmul.f32.gmra.mxu0 %v6024
      %v6139 = vpop.f32.mrf.mxu0
      %v6140 = vadd.f32 0.0, %v6139
      %6141 = vmatmul.f32.gmra.mxu0 %v6027
      %v6142 = vpop.f32.mrf.mxu0
      %v6143 = vadd.f32 0.0, %v6142
      %6144 = vmatmul.f32.gmra.mxu0 %v6030
      %v6145 = vpop.f32.mrf.mxu0
      %v6146 = vadd.f32 0.0, %v6145
      %6147 = vdwg.mxu0
      %v6148 = vadd.f32 %v5902, %v6053
      %v6149 = vadd.f32 %v5903, %v6056
      %v6150 = vadd.f32 %v5904, %v6059
      %v6151 = vadd.f32 %v5905, %v6062
      %v6152 = vadd.f32 %v5906, %v6065
      %v6153 = vadd.f32 %v5907, %v6068
      %v6154 = vadd.f32 %v5908, %v6071
      %v6155 = vadd.f32 %v5909, %v6074
      %v6156 = vadd.f32 %v5910, %v6077
      %v6157 = vadd.f32 %v5911, %v6080
      %v6158 = vadd.f32 %v5912, %v6083
      %v6159 = vadd.f32 %v5913, %v6086
      %v6160 = vadd.f32 %v5914, %v6089
      %v6161 = vadd.f32 %v5915, %v6092
      %v6162 = vadd.f32 %v5916, %v6095
      %v6163 = vadd.f32 %v5917, %v6098
      %v6164 = vadd.f32 %v5918, %v6101
      %v6165 = vadd.f32 %v5919, %v6104
      %v6166 = vadd.f32 %v5920, %v6107
      %v6167 = vadd.f32 %v5921, %v6110
      %v6168 = vadd.f32 %v5922, %v6113
      %v6169 = vadd.f32 %v5923, %v6116
      %v6170 = vadd.f32 %v5924, %v6119
      %v6171 = vadd.f32 %v5925, %v6122
      %v6172 = vadd.f32 %v5926, %v6125
      %v6173 = vadd.f32 %v5927, %v6128
      %v6174 = vadd.f32 %v5928, %v6131
      %v6175 = vadd.f32 %v5929, %v6134
      %v6176 = vadd.f32 %v5930, %v6137
      %v6177 = vadd.f32 %v5931, %v6140
      %v6178 = vadd.f32 %v5932, %v6143
      %v6179 = vadd.f32 %v5933, %v6146
      %v6180 = vld [vmem:[#allocation5] sm:$0xff]
      %v6181 = vld [vmem:[#allocation5 + $0x8] sm:$0xff]
      %v6182 = vld [vmem:[#allocation5 + $0x10] sm:$0xff]
      %v6183 = vld [vmem:[#allocation5 + $0x18] sm:$0xff]
      %v6184 = vld [vmem:[#allocation5 + $0x20] sm:$0xff]
      %v6185 = vld [vmem:[#allocation5 + $0x28] sm:$0xff]
      %v6186 = vld [vmem:[#allocation5 + $0x30] sm:$0xff]
      %v6187 = vld [vmem:[#allocation5 + $0x38] sm:$0xff]
      %v6188 = vld [vmem:[#allocation5 + $0x40] sm:$0xff]
      %v6189 = vld [vmem:[#allocation5 + $0x48] sm:$0xff]
      %v6190 = vld [vmem:[#allocation5 + $0x50] sm:$0xff]
      %v6191 = vld [vmem:[#allocation5 + $0x58] sm:$0xff]
      %v6192 = vld [vmem:[#allocation5 + $0x60] sm:$0xff]
      %v6193 = vld [vmem:[#allocation5 + $0x68] sm:$0xff]
      %v6194 = vld [vmem:[#allocation5 + $0x70] sm:$0xff]
      %v6195 = vld [vmem:[#allocation5 + $0x78] sm:$0xff]
      %v6196 = vld [vmem:[#allocation5 + $0x80] sm:$0xff]
      %v6197 = vld [vmem:[#allocation5 + $0x88] sm:$0xff]
      %v6198 = vld [vmem:[#allocation5 + $0x90] sm:$0xff]
      %v6199 = vld [vmem:[#allocation5 + $0x98] sm:$0xff]
      %v6200 = vld [vmem:[#allocation5 + $0xa0] sm:$0xff]
      %v6201 = vld [vmem:[#allocation5 + $0xa8] sm:$0xff]
      %v6202 = vld [vmem:[#allocation5 + $0xb0] sm:$0xff]
      %v6203 = vld [vmem:[#allocation5 + $0xb8] sm:$0xff]
      %v6204 = vld [vmem:[#allocation5 + $0xc0] sm:$0xff]
      %v6205 = vld [vmem:[#allocation5 + $0xc8] sm:$0xff]
      %v6206 = vld [vmem:[#allocation5 + $0xd0] sm:$0xff]
      %v6207 = vld [vmem:[#allocation5 + $0xd8] sm:$0xff]
      %v6208 = vld [vmem:[#allocation5 + $0xe0] sm:$0xff]
      %v6209 = vld [vmem:[#allocation5 + $0xe8] sm:$0xff]
      %v6210 = vld [vmem:[#allocation5 + $0xf0] sm:$0xff]
      %v6211 = vld [vmem:[#allocation5 + $0xf8] sm:$0xff]
      %v6212 = vadd.f32 %v6180, %v6148
      %v6213 = vadd.f32 %v6181, %v6149
      %v6214 = vadd.f32 %v6182, %v6150
      %v6215 = vadd.f32 %v6183, %v6151
      %v6216 = vadd.f32 %v6184, %v6152
      %v6217 = vadd.f32 %v6185, %v6153
      %v6218 = vadd.f32 %v6186, %v6154
      %v6219 = vadd.f32 %v6187, %v6155
      %v6220 = vadd.f32 %v6188, %v6156
      %v6221 = vadd.f32 %v6189, %v6157
      %v6222 = vadd.f32 %v6190, %v6158
      %v6223 = vadd.f32 %v6191, %v6159
      %v6224 = vadd.f32 %v6192, %v6160
      %v6225 = vadd.f32 %v6193, %v6161
      %v6226 = vadd.f32 %v6194, %v6162
      %v6227 = vadd.f32 %v6195, %v6163
      %v6228 = vadd.f32 %v6196, %v6164
      %v6229 = vadd.f32 %v6197, %v6165
      %v6230 = vadd.f32 %v6198, %v6166
      %v6231 = vadd.f32 %v6199, %v6167
      %v6232 = vadd.f32 %v6200, %v6168
      %v6233 = vadd.f32 %v6201, %v6169
      %v6234 = vadd.f32 %v6202, %v6170
      %v6235 = vadd.f32 %v6203, %v6171
      %v6236 = vadd.f32 %v6204, %v6172
      %v6237 = vadd.f32 %v6205, %v6173
      %v6238 = vadd.f32 %v6206, %v6174
      %v6239 = vadd.f32 %v6207, %v6175
      %v6240 = vadd.f32 %v6208, %v6176
      %v6241 = vadd.f32 %v6209, %v6177
      %v6242 = vadd.f32 %v6210, %v6178
      %v6243 = vadd.f32 %v6211, %v6179
      %6244 = vst.msk [vmem:[#allocation5] sm:$0xff] %vm1428, %v6212
      %6245 = vst.msk [vmem:[#allocation5 + $0x8] sm:$0xff] %vm1428, %v6213
      %6246 = vst.msk [vmem:[#allocation5 + $0x10] sm:$0xff] %vm1428, %v6214
      %6247 = vst.msk [vmem:[#allocation5 + $0x18] sm:$0xff] %vm1428, %v6215
      %6248 = vst.msk [vmem:[#allocation5 + $0x20] sm:$0xff] %vm1428, %v6216
      %6249 = vst.msk [vmem:[#allocation5 + $0x28] sm:$0xff] %vm1428, %v6217
      %6250 = vst.msk [vmem:[#allocation5 + $0x30] sm:$0xff] %vm1428, %v6218
      %6251 = vst.msk [vmem:[#allocation5 + $0x38] sm:$0xff] %vm1428, %v6219
      %6252 = vst.msk [vmem:[#allocation5 + $0x40] sm:$0xff] %vm1428, %v6220
      %6253 = vst.msk [vmem:[#allocation5 + $0x48] sm:$0xff] %vm1428, %v6221
      %6254 = vst.msk [vmem:[#allocation5 + $0x50] sm:$0xff] %vm1428, %v6222
      %6255 = vst.msk [vmem:[#allocation5 + $0x58] sm:$0xff] %vm1428, %v6223
      %6256 = vst.msk [vmem:[#allocation5 + $0x60] sm:$0xff] %vm1428, %v6224
      %6257 = vst.msk [vmem:[#allocation5 + $0x68] sm:$0xff] %vm1428, %v6225
      %6258 = vst.msk [vmem:[#allocation5 + $0x70] sm:$0xff] %vm1428, %v6226
      %6259 = vst.msk [vmem:[#allocation5 + $0x78] sm:$0xff] %vm1428, %v6227
      %6260 = vst.msk [vmem:[#allocation5 + $0x80] sm:$0xff] %vm1428, %v6228
      %6261 = vst.msk [vmem:[#allocation5 + $0x88] sm:$0xff] %vm1428, %v6229
      %6262 = vst.msk [vmem:[#allocation5 + $0x90] sm:$0xff] %vm1428, %v6230
      %6263 = vst.msk [vmem:[#allocation5 + $0x98] sm:$0xff] %vm1428, %v6231
      %6264 = vst.msk [vmem:[#allocation5 + $0xa0] sm:$0xff] %vm1428, %v6232
      %6265 = vst.msk [vmem:[#allocation5 + $0xa8] sm:$0xff] %vm1428, %v6233
      %6266 = vst.msk [vmem:[#allocation5 + $0xb0] sm:$0xff] %vm1428, %v6234
      %6267 = vst.msk [vmem:[#allocation5 + $0xb8] sm:$0xff] %vm1428, %v6235
      %6268 = vst.msk [vmem:[#allocation5 + $0xc0] sm:$0xff] %vm1428, %v6236
      %6269 = vst.msk [vmem:[#allocation5 + $0xc8] sm:$0xff] %vm1428, %v6237
      %6270 = vst.msk [vmem:[#allocation5 + $0xd0] sm:$0xff] %vm1428, %v6238
      %6271 = vst.msk [vmem:[#allocation5 + $0xd8] sm:$0xff] %vm1428, %v6239
      %6272 = vst.msk [vmem:[#allocation5 + $0xe0] sm:$0xff] %vm1428, %v6240
      %6273 = vst.msk [vmem:[#allocation5 + $0xe8] sm:$0xff] %vm1428, %v6241
      %6274 = vst.msk [vmem:[#allocation5 + $0xf0] sm:$0xff] %vm1428, %v6242
      %6275 = vst.msk [vmem:[#allocation5 + $0xf8] sm:$0xff] %vm1428, %v6243
      %s6276 = scalar_lea.vmem [#allocation2], 1008
      %v6277 = vld [vmem:[%s6276 + $0xe] sm:$0xff]
      %v6278 = vld [vmem:[%s6276 + $0x16] sm:$0xff]
      %v6279 = vld [vmem:[%s6276 + $0x56] sm:$0xff]
      %v6280 = vld [vmem:[%s6276 + $0x5e] sm:$0xff]
      %v6281 = vld [vmem:[%s6276 + $0x9e] sm:$0xff]
      %v6282 = vld [vmem:[%s6276 + $0xa6] sm:$0xff]
      %v6283 = vld [vmem:[%s6276 + $0xe6] sm:$0xff]
      %v6284 = vld [vmem:[%s6276 + $0xee] sm:$0xff]
      %v6285 = vld [vmem:[%s6276 + $0x12e] sm:$0xff]
      %v6286 = vld [vmem:[%s6276 + $0x136] sm:$0xff]
      %v6287 = vld [vmem:[%s6276 + $0x176] sm:$0xff]
      %v6288 = vld [vmem:[%s6276 + $0x17e] sm:$0xff]
      %v6289 = vld [vmem:[%s6276 + $0x1be] sm:$0xff]
      %v6290 = vld [vmem:[%s6276 + $0x1c6] sm:$0xff]
      %v6291 = vld [vmem:[%s6276 + $0x206] sm:$0xff]
      %v6292 = vld [vmem:[%s6276 + $0x20e] sm:$0xff]
      %v6293 = vld [vmem:[%s6276 + $0x24e] sm:$0xff]
      %v6294 = vld [vmem:[%s6276 + $0x256] sm:$0xff]
      %v6295 = vld [vmem:[%s6276 + $0x296] sm:$0xff]
      %v6296 = vld [vmem:[%s6276 + $0x29e] sm:$0xff]
      %v6297 = vld [vmem:[%s6276 + $0x2de] sm:$0xff]
      %v6298 = vld [vmem:[%s6276 + $0x2e6] sm:$0xff]
      %v6299 = vld [vmem:[%s6276 + $0x326] sm:$0xff]
      %v6300 = vld [vmem:[%s6276 + $0x32e] sm:$0xff]
      %v6301 = vld [vmem:[%s6276 + $0x36e] sm:$0xff]
      %v6302 = vld [vmem:[%s6276 + $0x376] sm:$0xff]
      %v6303 = vld [vmem:[%s6276 + $0x3b6] sm:$0xff]
      %v6304 = vld [vmem:[%s6276 + $0x3be] sm:$0xff]
      %v6305 = vld [vmem:[%s6276 + $0x3fe] sm:$0xff]
      %v6306 = vld [vmem:[%s6276 + $0x406] sm:$0xff]
      %v6307 = vld [vmem:[%s6276 + $0x446] sm:$0xff]
      %v6308 = vld [vmem:[%s6276 + $0x44e] sm:$0xff]
      %v6309 = vld [vmem:[%s6276 + $0x20] sm:$0xff]
      %v6310 = vld [vmem:[%s6276 + $0x28] sm:$0xff]
      %v6311 = vld [vmem:[%s6276 + $0x68] sm:$0xff]
      %v6312 = vld [vmem:[%s6276 + $0x70] sm:$0xff]
      %v6313 = vld [vmem:[%s6276 + $0xb0] sm:$0xff]
      %v6314 = vld [vmem:[%s6276 + $0xb8] sm:$0xff]
      %v6315 = vld [vmem:[%s6276 + $0xf8] sm:$0xff]
      %v6316 = vld [vmem:[%s6276 + $0x100] sm:$0xff]
      %v6317 = vld [vmem:[%s6276 + $0x140] sm:$0xff]
      %v6318 = vld [vmem:[%s6276 + $0x148] sm:$0xff]
      %v6319 = vld [vmem:[%s6276 + $0x188] sm:$0xff]
      %v6320 = vld [vmem:[%s6276 + $0x190] sm:$0xff]
      %v6321 = vld [vmem:[%s6276 + $0x1d0] sm:$0xff]
      %v6322 = vld [vmem:[%s6276 + $0x1d8] sm:$0xff]
      %v6323 = vld [vmem:[%s6276 + $0x218] sm:$0xff]
      %v6324 = vld [vmem:[%s6276 + $0x220] sm:$0xff]
      %v6325 = vld [vmem:[%s6276 + $0x260] sm:$0xff]
      %v6326 = vld [vmem:[%s6276 + $0x268] sm:$0xff]
      %v6327 = vld [vmem:[%s6276 + $0x2a8] sm:$0xff]
      %v6328 = vld [vmem:[%s6276 + $0x2b0] sm:$0xff]
      %v6329 = vld [vmem:[%s6276 + $0x2f0] sm:$0xff]
      %v6330 = vld [vmem:[%s6276 + $0x2f8] sm:$0xff]
      %v6331 = vld [vmem:[%s6276 + $0x338] sm:$0xff]
      %v6332 = vld [vmem:[%s6276 + $0x340] sm:$0xff]
      %v6333 = vld [vmem:[%s6276 + $0x380] sm:$0xff]
      %v6334 = vld [vmem:[%s6276 + $0x388] sm:$0xff]
      %v6335 = vld [vmem:[%s6276 + $0x3c8] sm:$0xff]
      %v6336 = vld [vmem:[%s6276 + $0x3d0] sm:$0xff]
      %v6337 = vld [vmem:[%s6276 + $0x410] sm:$0xff]
      %v6338 = vld [vmem:[%s6276 + $0x418] sm:$0xff]
      %v6339 = vld [vmem:[%s6276 + $0x458] sm:$0xff]
      %v6340 = vld [vmem:[%s6276 + $0x460] sm:$0xff]
      %v6341 = vld [vmem:[%s6276 + $0x32] sm:$0xff]
      %v6342 = vld [vmem:[%s6276 + $0x3a] sm:$0xff]
      %v6343 = vld [vmem:[%s6276 + $0x7a] sm:$0xff]
      %v6344 = vld [vmem:[%s6276 + $0x82] sm:$0xff]
      %v6345 = vld [vmem:[%s6276 + $0xc2] sm:$0xff]
      %v6346 = vld [vmem:[%s6276 + $0xca] sm:$0xff]
      %v6347 = vld [vmem:[%s6276 + $0x10a] sm:$0xff]
      %v6348 = vld [vmem:[%s6276 + $0x112] sm:$0xff]
      %v6349 = vld [vmem:[%s6276 + $0x152] sm:$0xff]
      %v6350 = vld [vmem:[%s6276 + $0x15a] sm:$0xff]
      %v6351 = vld [vmem:[%s6276 + $0x19a] sm:$0xff]
      %v6352 = vld [vmem:[%s6276 + $0x1a2] sm:$0xff]
      %v6353 = vld [vmem:[%s6276 + $0x1e2] sm:$0xff]
      %v6354 = vld [vmem:[%s6276 + $0x1ea] sm:$0xff]
      %v6355 = vld [vmem:[%s6276 + $0x22a] sm:$0xff]
      %v6356 = vld [vmem:[%s6276 + $0x232] sm:$0xff]
      %v6357 = vld [vmem:[%s6276 + $0x272] sm:$0xff]
      %v6358 = vld [vmem:[%s6276 + $0x27a] sm:$0xff]
      %v6359 = vld [vmem:[%s6276 + $0x2ba] sm:$0xff]
      %v6360 = vld [vmem:[%s6276 + $0x2c2] sm:$0xff]
      %v6361 = vld [vmem:[%s6276 + $0x302] sm:$0xff]
      %v6362 = vld [vmem:[%s6276 + $0x30a] sm:$0xff]
      %v6363 = vld [vmem:[%s6276 + $0x34a] sm:$0xff]
      %v6364 = vld [vmem:[%s6276 + $0x352] sm:$0xff]
      %v6365 = vld [vmem:[%s6276 + $0x392] sm:$0xff]
      %v6366 = vld [vmem:[%s6276 + $0x39a] sm:$0xff]
      %v6367 = vld [vmem:[%s6276 + $0x3da] sm:$0xff]
      %v6368 = vld [vmem:[%s6276 + $0x3e2] sm:$0xff]
      %v6369 = vld [vmem:[%s6276 + $0x422] sm:$0xff]
      %v6370 = vld [vmem:[%s6276 + $0x42a] sm:$0xff]
      %v6371 = vld [vmem:[%s6276 + $0x46a] sm:$0xff]
      %v6372 = vld [vmem:[%s6276 + $0x472] sm:$0xff]
      %v6373 = vld [vmem:[%s1084 + $0xe] sm:$0xff]
      %v6374 = vld [vmem:[%s1084 + $0x16] sm:$0xff]
      %v6375 = vld [vmem:[%s1084 + $0x56] sm:$0xff]
      %v6376 = vld [vmem:[%s1084 + $0x5e] sm:$0xff]
      %v6377 = vld [vmem:[%s1084 + $0x9e] sm:$0xff]
      %v6378 = vld [vmem:[%s1084 + $0xa6] sm:$0xff]
      %v6379 = vld [vmem:[%s1084 + $0xe6] sm:$0xff]
      %v6380 = vld [vmem:[%s1084 + $0xee] sm:$0xff]
      %v6381 = vld [vmem:[%s1084 + $0x12e] sm:$0xff]
      %v6382 = vld [vmem:[%s1084 + $0x136] sm:$0xff]
      %v6383 = vld [vmem:[%s1084 + $0x176] sm:$0xff]
      %v6384 = vld [vmem:[%s1084 + $0x17e] sm:$0xff]
      %v6385 = vld [vmem:[%s1084 + $0x1be] sm:$0xff]
      %v6386 = vld [vmem:[%s1084 + $0x1c6] sm:$0xff]
      %v6387 = vld [vmem:[%s1084 + $0x206] sm:$0xff]
      %v6388 = vld [vmem:[%s1084 + $0x20e] sm:$0xff]
      %v6389 = vld [vmem:[%s1084 + $0x24e] sm:$0xff]
      %v6390 = vld [vmem:[%s1084 + $0x256] sm:$0xff]
      %v6391 = vld [vmem:[%s1084 + $0x296] sm:$0xff]
      %v6392 = vld [vmem:[%s1084 + $0x29e] sm:$0xff]
      %v6393 = vld [vmem:[%s1084 + $0x2de] sm:$0xff]
      %v6394 = vld [vmem:[%s1084 + $0x2e6] sm:$0xff]
      %v6395 = vld [vmem:[%s1084 + $0x326] sm:$0xff]
      %v6396 = vld [vmem:[%s1084 + $0x32e] sm:$0xff]
      %v6397 = vld [vmem:[%s1084 + $0x36e] sm:$0xff]
      %v6398 = vld [vmem:[%s1084 + $0x376] sm:$0xff]
      %v6399 = vld [vmem:[%s1084 + $0x3b6] sm:$0xff]
      %v6400 = vld [vmem:[%s1084 + $0x3be] sm:$0xff]
      %v6401 = vld [vmem:[%s1084 + $0x3fe] sm:$0xff]
      %v6402 = vld [vmem:[%s1084 + $0x406] sm:$0xff]
      %v6403 = vld [vmem:[%s1084 + $0x446] sm:$0xff]
      %v6404 = vld [vmem:[%s1084 + $0x44e] sm:$0xff]
      %v6405 = vld [vmem:[%s1084 + $0x32] sm:$0xff]
      %v6406 = vld [vmem:[%s1084 + $0x3a] sm:$0xff]
      %v6407 = vld [vmem:[%s1084 + $0x7a] sm:$0xff]
      %v6408 = vld [vmem:[%s1084 + $0x82] sm:$0xff]
      %v6409 = vld [vmem:[%s1084 + $0xc2] sm:$0xff]
      %v6410 = vld [vmem:[%s1084 + $0xca] sm:$0xff]
      %v6411 = vld [vmem:[%s1084 + $0x10a] sm:$0xff]
      %v6412 = vld [vmem:[%s1084 + $0x112] sm:$0xff]
      %v6413 = vld [vmem:[%s1084 + $0x152] sm:$0xff]
      %v6414 = vld [vmem:[%s1084 + $0x15a] sm:$0xff]
      %v6415 = vld [vmem:[%s1084 + $0x19a] sm:$0xff]
      %v6416 = vld [vmem:[%s1084 + $0x1a2] sm:$0xff]
      %v6417 = vld [vmem:[%s1084 + $0x1e2] sm:$0xff]
      %v6418 = vld [vmem:[%s1084 + $0x1ea] sm:$0xff]
      %v6419 = vld [vmem:[%s1084 + $0x22a] sm:$0xff]
      %v6420 = vld [vmem:[%s1084 + $0x232] sm:$0xff]
      %v6421 = vld [vmem:[%s1084 + $0x272] sm:$0xff]
      %v6422 = vld [vmem:[%s1084 + $0x27a] sm:$0xff]
      %v6423 = vld [vmem:[%s1084 + $0x2ba] sm:$0xff]
      %v6424 = vld [vmem:[%s1084 + $0x2c2] sm:$0xff]
      %v6425 = vld [vmem:[%s1084 + $0x302] sm:$0xff]
      %v6426 = vld [vmem:[%s1084 + $0x30a] sm:$0xff]
      %v6427 = vld [vmem:[%s1084 + $0x34a] sm:$0xff]
      %v6428 = vld [vmem:[%s1084 + $0x352] sm:$0xff]
      %v6429 = vld [vmem:[%s1084 + $0x392] sm:$0xff]
      %v6430 = vld [vmem:[%s1084 + $0x39a] sm:$0xff]
      %v6431 = vld [vmem:[%s1084 + $0x3da] sm:$0xff]
      %v6432 = vld [vmem:[%s1084 + $0x3e2] sm:$0xff]
      %v6433 = vld [vmem:[%s1084 + $0x422] sm:$0xff]
      %v6434 = vld [vmem:[%s1084 + $0x42a] sm:$0xff]
      %v6435 = vld [vmem:[%s1084 + $0x46a] sm:$0xff]
      %v6436 = vld [vmem:[%s1084 + $0x472] sm:$0xff]
      %s6437 = scalar_lea.vmem [#allocation2], 3600
      %v6438 = vld [vmem:[%s6437 + $0xe] sm:$0xff]
      %v6439 = vld [vmem:[%s6437 + $0x16] sm:$0xff]
      %v6440 = vld [vmem:[%s6437 + $0x56] sm:$0xff]
      %v6441 = vld [vmem:[%s6437 + $0x5e] sm:$0xff]
      %v6442 = vld [vmem:[%s6437 + $0x9e] sm:$0xff]
      %v6443 = vld [vmem:[%s6437 + $0xa6] sm:$0xff]
      %v6444 = vld [vmem:[%s6437 + $0xe6] sm:$0xff]
      %v6445 = vld [vmem:[%s6437 + $0xee] sm:$0xff]
      %v6446 = vld [vmem:[%s6437 + $0x12e] sm:$0xff]
      %v6447 = vld [vmem:[%s6437 + $0x136] sm:$0xff]
      %v6448 = vld [vmem:[%s6437 + $0x176] sm:$0xff]
      %v6449 = vld [vmem:[%s6437 + $0x17e] sm:$0xff]
      %v6450 = vld [vmem:[%s6437 + $0x1be] sm:$0xff]
      %v6451 = vld [vmem:[%s6437 + $0x1c6] sm:$0xff]
      %v6452 = vld [vmem:[%s6437 + $0x206] sm:$0xff]
      %v6453 = vld [vmem:[%s6437 + $0x20e] sm:$0xff]
      %v6454 = vld [vmem:[%s6437 + $0x24e] sm:$0xff]
      %v6455 = vld [vmem:[%s6437 + $0x256] sm:$0xff]
      %v6456 = vld [vmem:[%s6437 + $0x296] sm:$0xff]
      %v6457 = vld [vmem:[%s6437 + $0x29e] sm:$0xff]
      %v6458 = vld [vmem:[%s6437 + $0x2de] sm:$0xff]
      %v6459 = vld [vmem:[%s6437 + $0x2e6] sm:$0xff]
      %v6460 = vld [vmem:[%s6437 + $0x326] sm:$0xff]
      %v6461 = vld [vmem:[%s6437 + $0x32e] sm:$0xff]
      %v6462 = vld [vmem:[%s6437 + $0x36e] sm:$0xff]
      %v6463 = vld [vmem:[%s6437 + $0x376] sm:$0xff]
      %v6464 = vld [vmem:[%s6437 + $0x3b6] sm:$0xff]
      %v6465 = vld [vmem:[%s6437 + $0x3be] sm:$0xff]
      %v6466 = vld [vmem:[%s6437 + $0x3fe] sm:$0xff]
      %v6467 = vld [vmem:[%s6437 + $0x406] sm:$0xff]
      %v6468 = vld [vmem:[%s6437 + $0x446] sm:$0xff]
      %v6469 = vld [vmem:[%s6437 + $0x44e] sm:$0xff]
      %v6470 = vld [vmem:[%s6437 + $0x20] sm:$0xff]
      %v6471 = vld [vmem:[%s6437 + $0x28] sm:$0xff]
      %v6472 = vld [vmem:[%s6437 + $0x68] sm:$0xff]
      %v6473 = vld [vmem:[%s6437 + $0x70] sm:$0xff]
      %v6474 = vld [vmem:[%s6437 + $0xb0] sm:$0xff]
      %v6475 = vld [vmem:[%s6437 + $0xb8] sm:$0xff]
      %v6476 = vld [vmem:[%s6437 + $0xf8] sm:$0xff]
      %v6477 = vld [vmem:[%s6437 + $0x100] sm:$0xff]
      %v6478 = vld [vmem:[%s6437 + $0x140] sm:$0xff]
      %v6479 = vld [vmem:[%s6437 + $0x148] sm:$0xff]
      %v6480 = vld [vmem:[%s6437 + $0x188] sm:$0xff]
      %v6481 = vld [vmem:[%s6437 + $0x190] sm:$0xff]
      %v6482 = vld [vmem:[%s6437 + $0x1d0] sm:$0xff]
      %v6483 = vld [vmem:[%s6437 + $0x1d8] sm:$0xff]
      %v6484 = vld [vmem:[%s6437 + $0x218] sm:$0xff]
      %v6485 = vld [vmem:[%s6437 + $0x220] sm:$0xff]
      %v6486 = vld [vmem:[%s6437 + $0x260] sm:$0xff]
      %v6487 = vld [vmem:[%s6437 + $0x268] sm:$0xff]
      %v6488 = vld [vmem:[%s6437 + $0x2a8] sm:$0xff]
      %v6489 = vld [vmem:[%s6437 + $0x2b0] sm:$0xff]
      %v6490 = vld [vmem:[%s6437 + $0x2f0] sm:$0xff]
      %v6491 = vld [vmem:[%s6437 + $0x2f8] sm:$0xff]
      %v6492 = vld [vmem:[%s6437 + $0x338] sm:$0xff]
      %v6493 = vld [vmem:[%s6437 + $0x340] sm:$0xff]
      %v6494 = vld [vmem:[%s6437 + $0x380] sm:$0xff]
      %v6495 = vld [vmem:[%s6437 + $0x388] sm:$0xff]
      %v6496 = vld [vmem:[%s6437 + $0x3c8] sm:$0xff]
      %v6497 = vld [vmem:[%s6437 + $0x3d0] sm:$0xff]
      %v6498 = vld [vmem:[%s6437 + $0x410] sm:$0xff]
      %v6499 = vld [vmem:[%s6437 + $0x418] sm:$0xff]
      %v6500 = vld [vmem:[%s6437 + $0x458] sm:$0xff]
      %v6501 = vld [vmem:[%s6437 + $0x460] sm:$0xff]
      %v6502 = vld [vmem:[%s6437 + $0x32] sm:$0xff]
      %v6503 = vld [vmem:[%s6437 + $0x3a] sm:$0xff]
      %v6504 = vld [vmem:[%s6437 + $0x7a] sm:$0xff]
      %v6505 = vld [vmem:[%s6437 + $0x82] sm:$0xff]
      %v6506 = vld [vmem:[%s6437 + $0xc2] sm:$0xff]
      %v6507 = vld [vmem:[%s6437 + $0xca] sm:$0xff]
      %v6508 = vld [vmem:[%s6437 + $0x10a] sm:$0xff]
      %v6509 = vld [vmem:[%s6437 + $0x112] sm:$0xff]
      %v6510 = vld [vmem:[%s6437 + $0x152] sm:$0xff]
      %v6511 = vld [vmem:[%s6437 + $0x15a] sm:$0xff]
      %v6512 = vld [vmem:[%s6437 + $0x19a] sm:$0xff]
      %v6513 = vld [vmem:[%s6437 + $0x1a2] sm:$0xff]
      %v6514 = vld [vmem:[%s6437 + $0x1e2] sm:$0xff]
      %v6515 = vld [vmem:[%s6437 + $0x1ea] sm:$0xff]
      %v6516 = vld [vmem:[%s6437 + $0x22a] sm:$0xff]
      %v6517 = vld [vmem:[%s6437 + $0x232] sm:$0xff]
      %v6518 = vld [vmem:[%s6437 + $0x272] sm:$0xff]
      %v6519 = vld [vmem:[%s6437 + $0x27a] sm:$0xff]
      %v6520 = vld [vmem:[%s6437 + $0x2ba] sm:$0xff]
      %v6521 = vld [vmem:[%s6437 + $0x2c2] sm:$0xff]
      %v6522 = vld [vmem:[%s6437 + $0x302] sm:$0xff]
      %v6523 = vld [vmem:[%s6437 + $0x30a] sm:$0xff]
      %v6524 = vld [vmem:[%s6437 + $0x34a] sm:$0xff]
      %v6525 = vld [vmem:[%s6437 + $0x352] sm:$0xff]
      %v6526 = vld [vmem:[%s6437 + $0x392] sm:$0xff]
      %v6527 = vld [vmem:[%s6437 + $0x39a] sm:$0xff]
      %v6528 = vld [vmem:[%s6437 + $0x3da] sm:$0xff]
      %v6529 = vld [vmem:[%s6437 + $0x3e2] sm:$0xff]
      %v6530 = vld [vmem:[%s6437 + $0x422] sm:$0xff]
      %v6531 = vld [vmem:[%s6437 + $0x42a] sm:$0xff]
      %v6532 = vld [vmem:[%s6437 + $0x46a] sm:$0xff]
      %v6533 = vld [vmem:[%s6437 + $0x472] sm:$0xff]
      %s6534 = scalar_lea.vmem %s314, 72
      %v6535 = vld [vmem:[%s6534] sm:$0xf]
      %s6536 = scalar_lea.vmem %s314, 76
      %v6537 = vld [vmem:[%s6536] sm:$0xf]
      %v6539 = vsel %vm1085, %v6309, 0
      %v6542 = vsel %vm1085, %v6310, 0
      %v6545 = vsel %vm1085, %v6311, 0
      %v6548 = vsel %vm1085, %v6312, 0
      %v6551 = vsel %vm1085, %v6313, 0
      %v6554 = vsel %vm1085, %v6314, 0
      %v6557 = vsel %vm1085, %v6315, 0
      %v6560 = vsel %vm1085, %v6316, 0
      %v6563 = vsel %vm1085, %v6317, 0
      %v6566 = vsel %vm1085, %v6318, 0
      %v6569 = vsel %vm1085, %v6319, 0
      %v6572 = vsel %vm1085, %v6320, 0
      %v6575 = vsel %vm1085, %v6321, 0
      %v6578 = vsel %vm1085, %v6322, 0
      %v6581 = vsel %vm1085, %v6323, 0
      %v6584 = vsel %vm1085, %v6324, 0
      %v6587 = vsel %vm1085, %v6325, 0
      %v6590 = vsel %vm1085, %v6326, 0
      %v6593 = vsel %vm1085, %v6327, 0
      %v6596 = vsel %vm1085, %v6328, 0
      %v6599 = vsel %vm1085, %v6329, 0
      %v6602 = vsel %vm1085, %v6330, 0
      %v6605 = vsel %vm1085, %v6331, 0
      %v6608 = vsel %vm1085, %v6332, 0
      %v6611 = vsel %vm1085, %v6333, 0
      %v6614 = vsel %vm1085, %v6334, 0
      %v6617 = vsel %vm1085, %v6335, 0
      %v6620 = vsel %vm1085, %v6336, 0
      %v6623 = vsel %vm1085, %v6337, 0
      %v6626 = vsel %vm1085, %v6338, 0
      %v6629 = vsel %vm1085, %v6339, 0
      %v6632 = vsel %vm1085, %v6340, 0
      %v6635 = vsel %vm1279, %v6537, 0
      %6637 = vmatpush.msra.mxu0 0.0
      %6638 = vmatpush.msra.mxu0 0.0
      %6639 = vmatpush.msra.mxu0 0.0
      %6640 = vmatpush.msra.mxu0 0.0
      %6641 = vmatpush.msra.mxu0 0.0
      %6642 = vmatpush.msra.mxu0 0.0
      %6643 = vmatpush.msra.mxu0 0.0
      %6644 = vmatpush.msra.mxu0 0.0
      %6645 = vmatpush.msra.mxu0 0.0
      %6646 = vmatpush.msra.mxu0 0.0
      %6647 = vmatpush.msra.mxu0 0.0
      %6648 = vmatpush.msra.mxu0 0.0
      %6649 = vmatpush.msra.mxu0 0.0
      %6650 = vmatpush.msra.mxu0 0.0
      %6651 = vmatpush.msra.mxu0 0.0
      %6652 = vmatpush.msra.mxu0 %v6635
      %6653 = vmatmul.f32.gmra.mxu0 %v6539
      %v6654 = vpop.f32.mrf.mxu0
      %v6655 = vadd.f32 0.0, %v6654
      %6656 = vmatmul.f32.gmra.mxu0 %v6542
      %v6657 = vpop.f32.mrf.mxu0
      %v6658 = vadd.f32 0.0, %v6657
      %6659 = vmatmul.f32.gmra.mxu0 %v6545
      %v6660 = vpop.f32.mrf.mxu0
      %v6661 = vadd.f32 0.0, %v6660
      %6662 = vmatmul.f32.gmra.mxu0 %v6548
      %v6663 = vpop.f32.mrf.mxu0
      %v6664 = vadd.f32 0.0, %v6663
      %6665 = vmatmul.f32.gmra.mxu0 %v6551
      %v6666 = vpop.f32.mrf.mxu0
      %v6667 = vadd.f32 0.0, %v6666
      %6668 = vmatmul.f32.gmra.mxu0 %v6554
      %v6669 = vpop.f32.mrf.mxu0
      %v6670 = vadd.f32 0.0, %v6669
      %6671 = vmatmul.f32.gmra.mxu0 %v6557
      %v6672 = vpop.f32.mrf.mxu0
      %v6673 = vadd.f32 0.0, %v6672
      %6674 = vmatmul.f32.gmra.mxu0 %v6560
      %v6675 = vpop.f32.mrf.mxu0
      %v6676 = vadd.f32 0.0, %v6675
      %6677 = vmatmul.f32.gmra.mxu0 %v6563
      %v6678 = vpop.f32.mrf.mxu0
      %v6679 = vadd.f32 0.0, %v6678
      %6680 = vmatmul.f32.gmra.mxu0 %v6566
      %v6681 = vpop.f32.mrf.mxu0
      %v6682 = vadd.f32 0.0, %v6681
      %6683 = vmatmul.f32.gmra.mxu0 %v6569
      %v6684 = vpop.f32.mrf.mxu0
      %v6685 = vadd.f32 0.0, %v6684
      %6686 = vmatmul.f32.gmra.mxu0 %v6572
      %v6687 = vpop.f32.mrf.mxu0
      %v6688 = vadd.f32 0.0, %v6687
      %6689 = vmatmul.f32.gmra.mxu0 %v6575
      %v6690 = vpop.f32.mrf.mxu0
      %v6691 = vadd.f32 0.0, %v6690
      %6692 = vmatmul.f32.gmra.mxu0 %v6578
      %v6693 = vpop.f32.mrf.mxu0
      %v6694 = vadd.f32 0.0, %v6693
      %6695 = vmatmul.f32.gmra.mxu0 %v6581
      %v6696 = vpop.f32.mrf.mxu0
      %v6697 = vadd.f32 0.0, %v6696
      %6698 = vmatmul.f32.gmra.mxu0 %v6584
      %v6699 = vpop.f32.mrf.mxu0
      %v6700 = vadd.f32 0.0, %v6699
      %6701 = vmatmul.f32.gmra.mxu0 %v6587
      %v6702 = vpop.f32.mrf.mxu0
      %v6703 = vadd.f32 0.0, %v6702
      %6704 = vmatmul.f32.gmra.mxu0 %v6590
      %v6705 = vpop.f32.mrf.mxu0
      %v6706 = vadd.f32 0.0, %v6705
      %6707 = vmatmul.f32.gmra.mxu0 %v6593
      %v6708 = vpop.f32.mrf.mxu0
      %v6709 = vadd.f32 0.0, %v6708
      %6710 = vmatmul.f32.gmra.mxu0 %v6596
      %v6711 = vpop.f32.mrf.mxu0
      %v6712 = vadd.f32 0.0, %v6711
      %6713 = vmatmul.f32.gmra.mxu0 %v6599
      %v6714 = vpop.f32.mrf.mxu0
      %v6715 = vadd.f32 0.0, %v6714
      %6716 = vmatmul.f32.gmra.mxu0 %v6602
      %v6717 = vpop.f32.mrf.mxu0
      %v6718 = vadd.f32 0.0, %v6717
      %6719 = vmatmul.f32.gmra.mxu0 %v6605
      %v6720 = vpop.f32.mrf.mxu0
      %v6721 = vadd.f32 0.0, %v6720
      %6722 = vmatmul.f32.gmra.mxu0 %v6608
      %v6723 = vpop.f32.mrf.mxu0
      %v6724 = vadd.f32 0.0, %v6723
      %6725 = vmatmul.f32.gmra.mxu0 %v6611
      %v6726 = vpop.f32.mrf.mxu0
      %v6727 = vadd.f32 0.0, %v6726
      %6728 = vmatmul.f32.gmra.mxu0 %v6614
      %v6729 = vpop.f32.mrf.mxu0
      %v6730 = vadd.f32 0.0, %v6729
      %6731 = vmatmul.f32.gmra.mxu0 %v6617
      %v6732 = vpop.f32.mrf.mxu0
      %v6733 = vadd.f32 0.0, %v6732
      %6734 = vmatmul.f32.gmra.mxu0 %v6620
      %v6735 = vpop.f32.mrf.mxu0
      %v6736 = vadd.f32 0.0, %v6735
      %6737 = vmatmul.f32.gmra.mxu0 %v6623
      %v6738 = vpop.f32.mrf.mxu0
      %v6739 = vadd.f32 0.0, %v6738
      %6740 = vmatmul.f32.gmra.mxu0 %v6626
      %v6741 = vpop.f32.mrf.mxu0
      %v6742 = vadd.f32 0.0, %v6741
      %6743 = vmatmul.f32.gmra.mxu0 %v6629
      %v6744 = vpop.f32.mrf.mxu0
      %v6745 = vadd.f32 0.0, %v6744
      %6746 = vmatmul.f32.gmra.mxu0 %v6632
      %v6747 = vpop.f32.mrf.mxu0
      %v6748 = vadd.f32 0.0, %v6747
      %6749 = vdwg.mxu0
      %v6751 = vsel %vm1085, %v6277, 0
      %v6754 = vsel %vm1085, %v6278, 0
      %v6757 = vsel %vm1085, %v6279, 0
      %v6760 = vsel %vm1085, %v6280, 0
      %v6763 = vsel %vm1085, %v6281, 0
      %v6766 = vsel %vm1085, %v6282, 0
      %v6769 = vsel %vm1085, %v6283, 0
      %v6772 = vsel %vm1085, %v6284, 0
      %v6775 = vsel %vm1085, %v6285, 0
      %v6778 = vsel %vm1085, %v6286, 0
      %v6781 = vsel %vm1085, %v6287, 0
      %v6784 = vsel %vm1085, %v6288, 0
      %v6787 = vsel %vm1085, %v6289, 0
      %v6790 = vsel %vm1085, %v6290, 0
      %v6793 = vsel %vm1085, %v6291, 0
      %v6796 = vsel %vm1085, %v6292, 0
      %v6799 = vsel %vm1085, %v6293, 0
      %v6802 = vsel %vm1085, %v6294, 0
      %v6805 = vsel %vm1085, %v6295, 0
      %v6808 = vsel %vm1085, %v6296, 0
      %v6811 = vsel %vm1085, %v6297, 0
      %v6814 = vsel %vm1085, %v6298, 0
      %v6817 = vsel %vm1085, %v6299, 0
      %v6820 = vsel %vm1085, %v6300, 0
      %v6823 = vsel %vm1085, %v6301, 0
      %v6826 = vsel %vm1085, %v6302, 0
      %v6829 = vsel %vm1085, %v6303, 0
      %v6832 = vsel %vm1085, %v6304, 0
      %v6835 = vsel %vm1085, %v6305, 0
      %v6838 = vsel %vm1085, %v6306, 0
      %v6841 = vsel %vm1085, %v6307, 0
      %v6844 = vsel %vm1085, %v6308, 0
      %v6847 = vsel %vm1279, %v6535, 0
      %6849 = vmatpush.msra.mxu0 0.0
      %6850 = vmatpush.msra.mxu0 0.0
      %6851 = vmatpush.msra.mxu0 0.0
      %6852 = vmatpush.msra.mxu0 0.0
      %6853 = vmatpush.msra.mxu0 0.0
      %6854 = vmatpush.msra.mxu0 0.0
      %6855 = vmatpush.msra.mxu0 0.0
      %6856 = vmatpush.msra.mxu0 0.0
      %6857 = vmatpush.msra.mxu0 0.0
      %6858 = vmatpush.msra.mxu0 0.0
      %6859 = vmatpush.msra.mxu0 0.0
      %6860 = vmatpush.msra.mxu0 0.0
      %6861 = vmatpush.msra.mxu0 0.0
      %6862 = vmatpush.msra.mxu0 0.0
      %6863 = vmatpush.msra.mxu0 0.0
      %6864 = vmatpush.msra.mxu0 %v6847
      %6865 = vmatmul.f32.gmra.mxu0 %v6751
      %v6866 = vpop.f32.mrf.mxu0
      %v6867 = vadd.f32 %v6655, %v6866
      %6868 = vmatmul.f32.gmra.mxu0 %v6754
      %v6869 = vpop.f32.mrf.mxu0
      %v6870 = vadd.f32 %v6658, %v6869
      %6871 = vmatmul.f32.gmra.mxu0 %v6757
      %v6872 = vpop.f32.mrf.mxu0
      %v6873 = vadd.f32 %v6661, %v6872
      %6874 = vmatmul.f32.gmra.mxu0 %v6760
      %v6875 = vpop.f32.mrf.mxu0
      %v6876 = vadd.f32 %v6664, %v6875
      %6877 = vmatmul.f32.gmra.mxu0 %v6763
      %v6878 = vpop.f32.mrf.mxu0
      %v6879 = vadd.f32 %v6667, %v6878
      %6880 = vmatmul.f32.gmra.mxu0 %v6766
      %v6881 = vpop.f32.mrf.mxu0
      %v6882 = vadd.f32 %v6670, %v6881
      %6883 = vmatmul.f32.gmra.mxu0 %v6769
      %v6884 = vpop.f32.mrf.mxu0
      %v6885 = vadd.f32 %v6673, %v6884
      %6886 = vmatmul.f32.gmra.mxu0 %v6772
      %v6887 = vpop.f32.mrf.mxu0
      %v6888 = vadd.f32 %v6676, %v6887
      %6889 = vmatmul.f32.gmra.mxu0 %v6775
      %v6890 = vpop.f32.mrf.mxu0
      %v6891 = vadd.f32 %v6679, %v6890
      %6892 = vmatmul.f32.gmra.mxu0 %v6778
      %v6893 = vpop.f32.mrf.mxu0
      %v6894 = vadd.f32 %v6682, %v6893
      %6895 = vmatmul.f32.gmra.mxu0 %v6781
      %v6896 = vpop.f32.mrf.mxu0
      %v6897 = vadd.f32 %v6685, %v6896
      %6898 = vmatmul.f32.gmra.mxu0 %v6784
      %v6899 = vpop.f32.mrf.mxu0
      %v6900 = vadd.f32 %v6688, %v6899
      %6901 = vmatmul.f32.gmra.mxu0 %v6787
      %v6902 = vpop.f32.mrf.mxu0
      %v6903 = vadd.f32 %v6691, %v6902
      %6904 = vmatmul.f32.gmra.mxu0 %v6790
      %v6905 = vpop.f32.mrf.mxu0
      %v6906 = vadd.f32 %v6694, %v6905
      %6907 = vmatmul.f32.gmra.mxu0 %v6793
      %v6908 = vpop.f32.mrf.mxu0
      %v6909 = vadd.f32 %v6697, %v6908
      %6910 = vmatmul.f32.gmra.mxu0 %v6796
      %v6911 = vpop.f32.mrf.mxu0
      %v6912 = vadd.f32 %v6700, %v6911
      %6913 = vmatmul.f32.gmra.mxu0 %v6799
      %v6914 = vpop.f32.mrf.mxu0
      %v6915 = vadd.f32 %v6703, %v6914
      %6916 = vmatmul.f32.gmra.mxu0 %v6802
      %v6917 = vpop.f32.mrf.mxu0
      %v6918 = vadd.f32 %v6706, %v6917
      %6919 = vmatmul.f32.gmra.mxu0 %v6805
      %v6920 = vpop.f32.mrf.mxu0
      %v6921 = vadd.f32 %v6709, %v6920
      %6922 = vmatmul.f32.gmra.mxu0 %v6808
      %v6923 = vpop.f32.mrf.mxu0
      %v6924 = vadd.f32 %v6712, %v6923
      %6925 = vmatmul.f32.gmra.mxu0 %v6811
      %v6926 = vpop.f32.mrf.mxu0
      %v6927 = vadd.f32 %v6715, %v6926
      %6928 = vmatmul.f32.gmra.mxu0 %v6814
      %v6929 = vpop.f32.mrf.mxu0
      %v6930 = vadd.f32 %v6718, %v6929
      %6931 = vmatmul.f32.gmra.mxu0 %v6817
      %v6932 = vpop.f32.mrf.mxu0
      %v6933 = vadd.f32 %v6721, %v6932
      %6934 = vmatmul.f32.gmra.mxu0 %v6820
      %v6935 = vpop.f32.mrf.mxu0
      %v6936 = vadd.f32 %v6724, %v6935
      %6937 = vmatmul.f32.gmra.mxu0 %v6823
      %v6938 = vpop.f32.mrf.mxu0
      %v6939 = vadd.f32 %v6727, %v6938
      %6940 = vmatmul.f32.gmra.mxu0 %v6826
      %v6941 = vpop.f32.mrf.mxu0
      %v6942 = vadd.f32 %v6730, %v6941
      %6943 = vmatmul.f32.gmra.mxu0 %v6829
      %v6944 = vpop.f32.mrf.mxu0
      %v6945 = vadd.f32 %v6733, %v6944
      %6946 = vmatmul.f32.gmra.mxu0 %v6832
      %v6947 = vpop.f32.mrf.mxu0
      %v6948 = vadd.f32 %v6736, %v6947
      %6949 = vmatmul.f32.gmra.mxu0 %v6835
      %v6950 = vpop.f32.mrf.mxu0
      %v6951 = vadd.f32 %v6739, %v6950
      %6952 = vmatmul.f32.gmra.mxu0 %v6838
      %v6953 = vpop.f32.mrf.mxu0
      %v6954 = vadd.f32 %v6742, %v6953
      %6955 = vmatmul.f32.gmra.mxu0 %v6841
      %v6956 = vpop.f32.mrf.mxu0
      %v6957 = vadd.f32 %v6745, %v6956
      %6958 = vmatmul.f32.gmra.mxu0 %v6844
      %v6959 = vpop.f32.mrf.mxu0
      %v6960 = vadd.f32 %v6748, %v6959
      %6961 = vdwg.mxu0
      %s6962 = scalar_lea.vmem %s314, 80
      %v6963 = vld [vmem:[%s6962] sm:$0xf]
      %v6965 = vsel %vm1085, %v6341, 0
      %v6968 = vsel %vm1085, %v6342, 0
      %v6971 = vsel %vm1085, %v6343, 0
      %v6974 = vsel %vm1085, %v6344, 0
      %v6977 = vsel %vm1085, %v6345, 0
      %v6980 = vsel %vm1085, %v6346, 0
      %v6983 = vsel %vm1085, %v6347, 0
      %v6986 = vsel %vm1085, %v6348, 0
      %v6989 = vsel %vm1085, %v6349, 0
      %v6992 = vsel %vm1085, %v6350, 0
      %v6995 = vsel %vm1085, %v6351, 0
      %v6998 = vsel %vm1085, %v6352, 0
      %v7001 = vsel %vm1085, %v6353, 0
      %v7004 = vsel %vm1085, %v6354, 0
      %v7007 = vsel %vm1085, %v6355, 0
      %v7010 = vsel %vm1085, %v6356, 0
      %v7013 = vsel %vm1085, %v6357, 0
      %v7016 = vsel %vm1085, %v6358, 0
      %v7019 = vsel %vm1085, %v6359, 0
      %v7022 = vsel %vm1085, %v6360, 0
      %v7025 = vsel %vm1085, %v6361, 0
      %v7028 = vsel %vm1085, %v6362, 0
      %v7031 = vsel %vm1085, %v6363, 0
      %v7034 = vsel %vm1085, %v6364, 0
      %v7037 = vsel %vm1085, %v6365, 0
      %v7040 = vsel %vm1085, %v6366, 0
      %v7043 = vsel %vm1085, %v6367, 0
      %v7046 = vsel %vm1085, %v6368, 0
      %v7049 = vsel %vm1085, %v6369, 0
      %v7052 = vsel %vm1085, %v6370, 0
      %v7055 = vsel %vm1085, %v6371, 0
      %v7058 = vsel %vm1085, %v6372, 0
      %v7061 = vsel %vm1279, %v6963, 0
      %7063 = vmatpush.msra.mxu0 0.0
      %7064 = vmatpush.msra.mxu0 0.0
      %7065 = vmatpush.msra.mxu0 0.0
      %7066 = vmatpush.msra.mxu0 0.0
      %7067 = vmatpush.msra.mxu0 0.0
      %7068 = vmatpush.msra.mxu0 0.0
      %7069 = vmatpush.msra.mxu0 0.0
      %7070 = vmatpush.msra.mxu0 0.0
      %7071 = vmatpush.msra.mxu0 0.0
      %7072 = vmatpush.msra.mxu0 0.0
      %7073 = vmatpush.msra.mxu0 0.0
      %7074 = vmatpush.msra.mxu0 0.0
      %7075 = vmatpush.msra.mxu0 0.0
      %7076 = vmatpush.msra.mxu0 0.0
      %7077 = vmatpush.msra.mxu0 0.0
      %7078 = vmatpush.msra.mxu0 %v7061
      %7079 = vmatmul.f32.gmra.mxu0 %v6965
      %v7080 = vpop.f32.mrf.mxu0
      %v7081 = vadd.f32 0.0, %v7080
      %7082 = vmatmul.f32.gmra.mxu0 %v6968
      %v7083 = vpop.f32.mrf.mxu0
      %v7084 = vadd.f32 0.0, %v7083
      %7085 = vmatmul.f32.gmra.mxu0 %v6971
      %v7086 = vpop.f32.mrf.mxu0
      %v7087 = vadd.f32 0.0, %v7086
      %7088 = vmatmul.f32.gmra.mxu0 %v6974
      %v7089 = vpop.f32.mrf.mxu0
      %v7090 = vadd.f32 0.0, %v7089
      %7091 = vmatmul.f32.gmra.mxu0 %v6977
      %v7092 = vpop.f32.mrf.mxu0
      %v7093 = vadd.f32 0.0, %v7092
      %7094 = vmatmul.f32.gmra.mxu0 %v6980
      %v7095 = vpop.f32.mrf.mxu0
      %v7096 = vadd.f32 0.0, %v7095
      %7097 = vmatmul.f32.gmra.mxu0 %v6983
      %v7098 = vpop.f32.mrf.mxu0
      %v7099 = vadd.f32 0.0, %v7098
      %7100 = vmatmul.f32.gmra.mxu0 %v6986
      %v7101 = vpop.f32.mrf.mxu0
      %v7102 = vadd.f32 0.0, %v7101
      %7103 = vmatmul.f32.gmra.mxu0 %v6989
      %v7104 = vpop.f32.mrf.mxu0
      %v7105 = vadd.f32 0.0, %v7104
      %7106 = vmatmul.f32.gmra.mxu0 %v6992
      %v7107 = vpop.f32.mrf.mxu0
      %v7108 = vadd.f32 0.0, %v7107
      %7109 = vmatmul.f32.gmra.mxu0 %v6995
      %v7110 = vpop.f32.mrf.mxu0
      %v7111 = vadd.f32 0.0, %v7110
      %7112 = vmatmul.f32.gmra.mxu0 %v6998
      %v7113 = vpop.f32.mrf.mxu0
      %v7114 = vadd.f32 0.0, %v7113
      %7115 = vmatmul.f32.gmra.mxu0 %v7001
      %v7116 = vpop.f32.mrf.mxu0
      %v7117 = vadd.f32 0.0, %v7116
      %7118 = vmatmul.f32.gmra.mxu0 %v7004
      %v7119 = vpop.f32.mrf.mxu0
      %v7120 = vadd.f32 0.0, %v7119
      %7121 = vmatmul.f32.gmra.mxu0 %v7007
      %v7122 = vpop.f32.mrf.mxu0
      %v7123 = vadd.f32 0.0, %v7122
      %7124 = vmatmul.f32.gmra.mxu0 %v7010
      %v7125 = vpop.f32.mrf.mxu0
      %v7126 = vadd.f32 0.0, %v7125
      %7127 = vmatmul.f32.gmra.mxu0 %v7013
      %v7128 = vpop.f32.mrf.mxu0
      %v7129 = vadd.f32 0.0, %v7128
      %7130 = vmatmul.f32.gmra.mxu0 %v7016
      %v7131 = vpop.f32.mrf.mxu0
      %v7132 = vadd.f32 0.0, %v7131
      %7133 = vmatmul.f32.gmra.mxu0 %v7019
      %v7134 = vpop.f32.mrf.mxu0
      %v7135 = vadd.f32 0.0, %v7134
      %7136 = vmatmul.f32.gmra.mxu0 %v7022
      %v7137 = vpop.f32.mrf.mxu0
      %v7138 = vadd.f32 0.0, %v7137
      %7139 = vmatmul.f32.gmra.mxu0 %v7025
      %v7140 = vpop.f32.mrf.mxu0
      %v7141 = vadd.f32 0.0, %v7140
      %7142 = vmatmul.f32.gmra.mxu0 %v7028
      %v7143 = vpop.f32.mrf.mxu0
      %v7144 = vadd.f32 0.0, %v7143
      %7145 = vmatmul.f32.gmra.mxu0 %v7031
      %v7146 = vpop.f32.mrf.mxu0
      %v7147 = vadd.f32 0.0, %v7146
      %7148 = vmatmul.f32.gmra.mxu0 %v7034
      %v7149 = vpop.f32.mrf.mxu0
      %v7150 = vadd.f32 0.0, %v7149
      %7151 = vmatmul.f32.gmra.mxu0 %v7037
      %v7152 = vpop.f32.mrf.mxu0
      %v7153 = vadd.f32 0.0, %v7152
      %7154 = vmatmul.f32.gmra.mxu0 %v7040
      %v7155 = vpop.f32.mrf.mxu0
      %v7156 = vadd.f32 0.0, %v7155
      %7157 = vmatmul.f32.gmra.mxu0 %v7043
      %v7158 = vpop.f32.mrf.mxu0
      %v7159 = vadd.f32 0.0, %v7158
      %7160 = vmatmul.f32.gmra.mxu0 %v7046
      %v7161 = vpop.f32.mrf.mxu0
      %v7162 = vadd.f32 0.0, %v7161
      %7163 = vmatmul.f32.gmra.mxu0 %v7049
      %v7164 = vpop.f32.mrf.mxu0
      %v7165 = vadd.f32 0.0, %v7164
      %7166 = vmatmul.f32.gmra.mxu0 %v7052
      %v7167 = vpop.f32.mrf.mxu0
      %v7168 = vadd.f32 0.0, %v7167
      %7169 = vmatmul.f32.gmra.mxu0 %v7055
      %v7170 = vpop.f32.mrf.mxu0
      %v7171 = vadd.f32 0.0, %v7170
      %7172 = vmatmul.f32.gmra.mxu0 %v7058
      %v7173 = vpop.f32.mrf.mxu0
      %v7174 = vadd.f32 0.0, %v7173
      %7175 = vdwg.mxu0
      %v7176 = vadd.f32 %v6867, %v7081
      %v7177 = vadd.f32 %v6870, %v7084
      %v7178 = vadd.f32 %v6873, %v7087
      %v7179 = vadd.f32 %v6876, %v7090
      %v7180 = vadd.f32 %v6879, %v7093
      %v7181 = vadd.f32 %v6882, %v7096
      %v7182 = vadd.f32 %v6885, %v7099
      %v7183 = vadd.f32 %v6888, %v7102
      %v7184 = vadd.f32 %v6891, %v7105
      %v7185 = vadd.f32 %v6894, %v7108
      %v7186 = vadd.f32 %v6897, %v7111
      %v7187 = vadd.f32 %v6900, %v7114
      %v7188 = vadd.f32 %v6903, %v7117
      %v7189 = vadd.f32 %v6906, %v7120
      %v7190 = vadd.f32 %v6909, %v7123
      %v7191 = vadd.f32 %v6912, %v7126
      %v7192 = vadd.f32 %v6915, %v7129
      %v7193 = vadd.f32 %v6918, %v7132
      %v7194 = vadd.f32 %v6921, %v7135
      %v7195 = vadd.f32 %v6924, %v7138
      %v7196 = vadd.f32 %v6927, %v7141
      %v7197 = vadd.f32 %v6930, %v7144
      %v7198 = vadd.f32 %v6933, %v7147
      %v7199 = vadd.f32 %v6936, %v7150
      %v7200 = vadd.f32 %v6939, %v7153
      %v7201 = vadd.f32 %v6942, %v7156
      %v7202 = vadd.f32 %v6945, %v7159
      %v7203 = vadd.f32 %v6948, %v7162
      %v7204 = vadd.f32 %v6951, %v7165
      %v7205 = vadd.f32 %v6954, %v7168
      %v7206 = vadd.f32 %v6957, %v7171
      %v7207 = vadd.f32 %v6960, %v7174
      %s7208 = scalar_lea.vmem %s314, 84
      %v7209 = vld [vmem:[%s7208] sm:$0xf]
      %v7211 = vsel %vm1085, %v6373, 0
      %v7214 = vsel %vm1085, %v6374, 0
      %v7217 = vsel %vm1085, %v6375, 0
      %v7220 = vsel %vm1085, %v6376, 0
      %v7223 = vsel %vm1085, %v6377, 0
      %v7226 = vsel %vm1085, %v6378, 0
      %v7229 = vsel %vm1085, %v6379, 0
      %v7232 = vsel %vm1085, %v6380, 0
      %v7235 = vsel %vm1085, %v6381, 0
      %v7238 = vsel %vm1085, %v6382, 0
      %v7241 = vsel %vm1085, %v6383, 0
      %v7244 = vsel %vm1085, %v6384, 0
      %v7247 = vsel %vm1085, %v6385, 0
      %v7250 = vsel %vm1085, %v6386, 0
      %v7253 = vsel %vm1085, %v6387, 0
      %v7256 = vsel %vm1085, %v6388, 0
      %v7259 = vsel %vm1085, %v6389, 0
      %v7262 = vsel %vm1085, %v6390, 0
      %v7265 = vsel %vm1085, %v6391, 0
      %v7268 = vsel %vm1085, %v6392, 0
      %v7271 = vsel %vm1085, %v6393, 0
      %v7274 = vsel %vm1085, %v6394, 0
      %v7277 = vsel %vm1085, %v6395, 0
      %v7280 = vsel %vm1085, %v6396, 0
      %v7283 = vsel %vm1085, %v6397, 0
      %v7286 = vsel %vm1085, %v6398, 0
      %v7289 = vsel %vm1085, %v6399, 0
      %v7292 = vsel %vm1085, %v6400, 0
      %v7295 = vsel %vm1085, %v6401, 0
      %v7298 = vsel %vm1085, %v6402, 0
      %v7301 = vsel %vm1085, %v6403, 0
      %v7304 = vsel %vm1085, %v6404, 0
      %v7307 = vsel %vm1279, %v7209, 0
      %7309 = vmatpush.msra.mxu0 0.0
      %7310 = vmatpush.msra.mxu0 0.0
      %7311 = vmatpush.msra.mxu0 0.0
      %7312 = vmatpush.msra.mxu0 0.0
      %7313 = vmatpush.msra.mxu0 0.0
      %7314 = vmatpush.msra.mxu0 0.0
      %7315 = vmatpush.msra.mxu0 0.0
      %7316 = vmatpush.msra.mxu0 0.0
      %7317 = vmatpush.msra.mxu0 0.0
      %7318 = vmatpush.msra.mxu0 0.0
      %7319 = vmatpush.msra.mxu0 0.0
      %7320 = vmatpush.msra.mxu0 0.0
      %7321 = vmatpush.msra.mxu0 0.0
      %7322 = vmatpush.msra.mxu0 0.0
      %7323 = vmatpush.msra.mxu0 0.0
      %7324 = vmatpush.msra.mxu0 %v7307
      %7325 = vmatmul.f32.gmra.mxu0 %v7211
      %v7326 = vpop.f32.mrf.mxu0
      %v7327 = vadd.f32 0.0, %v7326
      %7328 = vmatmul.f32.gmra.mxu0 %v7214
      %v7329 = vpop.f32.mrf.mxu0
      %v7330 = vadd.f32 0.0, %v7329
      %7331 = vmatmul.f32.gmra.mxu0 %v7217
      %v7332 = vpop.f32.mrf.mxu0
      %v7333 = vadd.f32 0.0, %v7332
      %7334 = vmatmul.f32.gmra.mxu0 %v7220
      %v7335 = vpop.f32.mrf.mxu0
      %v7336 = vadd.f32 0.0, %v7335
      %7337 = vmatmul.f32.gmra.mxu0 %v7223
      %v7338 = vpop.f32.mrf.mxu0
      %v7339 = vadd.f32 0.0, %v7338
      %7340 = vmatmul.f32.gmra.mxu0 %v7226
      %v7341 = vpop.f32.mrf.mxu0
      %v7342 = vadd.f32 0.0, %v7341
      %7343 = vmatmul.f32.gmra.mxu0 %v7229
      %v7344 = vpop.f32.mrf.mxu0
      %v7345 = vadd.f32 0.0, %v7344
      %7346 = vmatmul.f32.gmra.mxu0 %v7232
      %v7347 = vpop.f32.mrf.mxu0
      %v7348 = vadd.f32 0.0, %v7347
      %7349 = vmatmul.f32.gmra.mxu0 %v7235
      %v7350 = vpop.f32.mrf.mxu0
      %v7351 = vadd.f32 0.0, %v7350
      %7352 = vmatmul.f32.gmra.mxu0 %v7238
      %v7353 = vpop.f32.mrf.mxu0
      %v7354 = vadd.f32 0.0, %v7353
      %7355 = vmatmul.f32.gmra.mxu0 %v7241
      %v7356 = vpop.f32.mrf.mxu0
      %v7357 = vadd.f32 0.0, %v7356
      %7358 = vmatmul.f32.gmra.mxu0 %v7244
      %v7359 = vpop.f32.mrf.mxu0
      %v7360 = vadd.f32 0.0, %v7359
      %7361 = vmatmul.f32.gmra.mxu0 %v7247
      %v7362 = vpop.f32.mrf.mxu0
      %v7363 = vadd.f32 0.0, %v7362
      %7364 = vmatmul.f32.gmra.mxu0 %v7250
      %v7365 = vpop.f32.mrf.mxu0
      %v7366 = vadd.f32 0.0, %v7365
      %7367 = vmatmul.f32.gmra.mxu0 %v7253
      %v7368 = vpop.f32.mrf.mxu0
      %v7369 = vadd.f32 0.0, %v7368
      %7370 = vmatmul.f32.gmra.mxu0 %v7256
      %v7371 = vpop.f32.mrf.mxu0
      %v7372 = vadd.f32 0.0, %v7371
      %7373 = vmatmul.f32.gmra.mxu0 %v7259
      %v7374 = vpop.f32.mrf.mxu0
      %v7375 = vadd.f32 0.0, %v7374
      %7376 = vmatmul.f32.gmra.mxu0 %v7262
      %v7377 = vpop.f32.mrf.mxu0
      %v7378 = vadd.f32 0.0, %v7377
      %7379 = vmatmul.f32.gmra.mxu0 %v7265
      %v7380 = vpop.f32.mrf.mxu0
      %v7381 = vadd.f32 0.0, %v7380
      %7382 = vmatmul.f32.gmra.mxu0 %v7268
      %v7383 = vpop.f32.mrf.mxu0
      %v7384 = vadd.f32 0.0, %v7383
      %7385 = vmatmul.f32.gmra.mxu0 %v7271
      %v7386 = vpop.f32.mrf.mxu0
      %v7387 = vadd.f32 0.0, %v7386
      %7388 = vmatmul.f32.gmra.mxu0 %v7274
      %v7389 = vpop.f32.mrf.mxu0
      %v7390 = vadd.f32 0.0, %v7389
      %7391 = vmatmul.f32.gmra.mxu0 %v7277
      %v7392 = vpop.f32.mrf.mxu0
      %v7393 = vadd.f32 0.0, %v7392
      %7394 = vmatmul.f32.gmra.mxu0 %v7280
      %v7395 = vpop.f32.mrf.mxu0
      %v7396 = vadd.f32 0.0, %v7395
      %7397 = vmatmul.f32.gmra.mxu0 %v7283
      %v7398 = vpop.f32.mrf.mxu0
      %v7399 = vadd.f32 0.0, %v7398
      %7400 = vmatmul.f32.gmra.mxu0 %v7286
      %v7401 = vpop.f32.mrf.mxu0
      %v7402 = vadd.f32 0.0, %v7401
      %7403 = vmatmul.f32.gmra.mxu0 %v7289
      %v7404 = vpop.f32.mrf.mxu0
      %v7405 = vadd.f32 0.0, %v7404
      %7406 = vmatmul.f32.gmra.mxu0 %v7292
      %v7407 = vpop.f32.mrf.mxu0
      %v7408 = vadd.f32 0.0, %v7407
      %7409 = vmatmul.f32.gmra.mxu0 %v7295
      %v7410 = vpop.f32.mrf.mxu0
      %v7411 = vadd.f32 0.0, %v7410
      %7412 = vmatmul.f32.gmra.mxu0 %v7298
      %v7413 = vpop.f32.mrf.mxu0
      %v7414 = vadd.f32 0.0, %v7413
      %7415 = vmatmul.f32.gmra.mxu0 %v7301
      %v7416 = vpop.f32.mrf.mxu0
      %v7417 = vadd.f32 0.0, %v7416
      %7418 = vmatmul.f32.gmra.mxu0 %v7304
      %v7419 = vpop.f32.mrf.mxu0
      %v7420 = vadd.f32 0.0, %v7419
      %7421 = vdwg.mxu0
      %v7422 = vadd.f32 %v7176, %v7327
      %v7423 = vadd.f32 %v7177, %v7330
      %v7424 = vadd.f32 %v7178, %v7333
      %v7425 = vadd.f32 %v7179, %v7336
      %v7426 = vadd.f32 %v7180, %v7339
      %v7427 = vadd.f32 %v7181, %v7342
      %v7428 = vadd.f32 %v7182, %v7345
      %v7429 = vadd.f32 %v7183, %v7348
      %v7430 = vadd.f32 %v7184, %v7351
      %v7431 = vadd.f32 %v7185, %v7354
      %v7432 = vadd.f32 %v7186, %v7357
      %v7433 = vadd.f32 %v7187, %v7360
      %v7434 = vadd.f32 %v7188, %v7363
      %v7435 = vadd.f32 %v7189, %v7366
      %v7436 = vadd.f32 %v7190, %v7369
      %v7437 = vadd.f32 %v7191, %v7372
      %v7438 = vadd.f32 %v7192, %v7375
      %v7439 = vadd.f32 %v7193, %v7378
      %v7440 = vadd.f32 %v7194, %v7381
      %v7441 = vadd.f32 %v7195, %v7384
      %v7442 = vadd.f32 %v7196, %v7387
      %v7443 = vadd.f32 %v7197, %v7390
      %v7444 = vadd.f32 %v7198, %v7393
      %v7445 = vadd.f32 %v7199, %v7396
      %v7446 = vadd.f32 %v7200, %v7399
      %v7447 = vadd.f32 %v7201, %v7402
      %v7448 = vadd.f32 %v7202, %v7405
      %v7449 = vadd.f32 %v7203, %v7408
      %v7450 = vadd.f32 %v7204, %v7411
      %v7451 = vadd.f32 %v7205, %v7414
      %v7452 = vadd.f32 %v7206, %v7417
      %v7453 = vadd.f32 %v7207, %v7420
      %s7454 = scalar_lea.vmem %s314, 88
      %v7455 = vld [vmem:[%s7454] sm:$0xf]
      %v7457 = vsel %vm1279, %v7455, 0
      %7459 = vmatpush.msra.mxu0 0.0
      %7460 = vmatpush.msra.mxu0 0.0
      %7461 = vmatpush.msra.mxu0 0.0
      %7462 = vmatpush.msra.mxu0 0.0
      %7463 = vmatpush.msra.mxu0 0.0
      %7464 = vmatpush.msra.mxu0 0.0
      %7465 = vmatpush.msra.mxu0 0.0
      %7466 = vmatpush.msra.mxu0 0.0
      %7467 = vmatpush.msra.mxu0 0.0
      %7468 = vmatpush.msra.mxu0 0.0
      %7469 = vmatpush.msra.mxu0 0.0
      %7470 = vmatpush.msra.mxu0 0.0
      %7471 = vmatpush.msra.mxu0 0.0
      %7472 = vmatpush.msra.mxu0 0.0
      %7473 = vmatpush.msra.mxu0 0.0
      %7474 = vmatpush.msra.mxu0 %v7457
      %7475 = vmatmul.f32.gmra.mxu0 %v1184
      %v7476 = vpop.f32.mrf.mxu0
      %v7477 = vadd.f32 0.0, %v7476
      %7478 = vmatmul.f32.gmra.mxu0 %v1187
      %v7479 = vpop.f32.mrf.mxu0
      %v7480 = vadd.f32 0.0, %v7479
      %7481 = vmatmul.f32.gmra.mxu0 %v1190
      %v7482 = vpop.f32.mrf.mxu0
      %v7483 = vadd.f32 0.0, %v7482
      %7484 = vmatmul.f32.gmra.mxu0 %v1193
      %v7485 = vpop.f32.mrf.mxu0
      %v7486 = vadd.f32 0.0, %v7485
      %7487 = vmatmul.f32.gmra.mxu0 %v1196
      %v7488 = vpop.f32.mrf.mxu0
      %v7489 = vadd.f32 0.0, %v7488
      %7490 = vmatmul.f32.gmra.mxu0 %v1199
      %v7491 = vpop.f32.mrf.mxu0
      %v7492 = vadd.f32 0.0, %v7491
      %7493 = vmatmul.f32.gmra.mxu0 %v1202
      %v7494 = vpop.f32.mrf.mxu0
      %v7495 = vadd.f32 0.0, %v7494
      %7496 = vmatmul.f32.gmra.mxu0 %v1205
      %v7497 = vpop.f32.mrf.mxu0
      %v7498 = vadd.f32 0.0, %v7497
      %7499 = vmatmul.f32.gmra.mxu0 %v1208
      %v7500 = vpop.f32.mrf.mxu0
      %v7501 = vadd.f32 0.0, %v7500
      %7502 = vmatmul.f32.gmra.mxu0 %v1211
      %v7503 = vpop.f32.mrf.mxu0
      %v7504 = vadd.f32 0.0, %v7503
      %7505 = vmatmul.f32.gmra.mxu0 %v1214
      %v7506 = vpop.f32.mrf.mxu0
      %v7507 = vadd.f32 0.0, %v7506
      %7508 = vmatmul.f32.gmra.mxu0 %v1217
      %v7509 = vpop.f32.mrf.mxu0
      %v7510 = vadd.f32 0.0, %v7509
      %7511 = vmatmul.f32.gmra.mxu0 %v1220
      %v7512 = vpop.f32.mrf.mxu0
      %v7513 = vadd.f32 0.0, %v7512
      %7514 = vmatmul.f32.gmra.mxu0 %v1223
      %v7515 = vpop.f32.mrf.mxu0
      %v7516 = vadd.f32 0.0, %v7515
      %7517 = vmatmul.f32.gmra.mxu0 %v1226
      %v7518 = vpop.f32.mrf.mxu0
      %v7519 = vadd.f32 0.0, %v7518
      %7520 = vmatmul.f32.gmra.mxu0 %v1229
      %v7521 = vpop.f32.mrf.mxu0
      %v7522 = vadd.f32 0.0, %v7521
      %7523 = vmatmul.f32.gmra.mxu0 %v1232
      %v7524 = vpop.f32.mrf.mxu0
      %v7525 = vadd.f32 0.0, %v7524
      %7526 = vmatmul.f32.gmra.mxu0 %v1235
      %v7527 = vpop.f32.mrf.mxu0
      %v7528 = vadd.f32 0.0, %v7527
      %7529 = vmatmul.f32.gmra.mxu0 %v1238
      %v7530 = vpop.f32.mrf.mxu0
      %v7531 = vadd.f32 0.0, %v7530
      %7532 = vmatmul.f32.gmra.mxu0 %v1241
      %v7533 = vpop.f32.mrf.mxu0
      %v7534 = vadd.f32 0.0, %v7533
      %7535 = vmatmul.f32.gmra.mxu0 %v1244
      %v7536 = vpop.f32.mrf.mxu0
      %v7537 = vadd.f32 0.0, %v7536
      %7538 = vmatmul.f32.gmra.mxu0 %v1247
      %v7539 = vpop.f32.mrf.mxu0
      %v7540 = vadd.f32 0.0, %v7539
      %7541 = vmatmul.f32.gmra.mxu0 %v1250
      %v7542 = vpop.f32.mrf.mxu0
      %v7543 = vadd.f32 0.0, %v7542
      %7544 = vmatmul.f32.gmra.mxu0 %v1253
      %v7545 = vpop.f32.mrf.mxu0
      %v7546 = vadd.f32 0.0, %v7545
      %7547 = vmatmul.f32.gmra.mxu0 %v1256
      %v7548 = vpop.f32.mrf.mxu0
      %v7549 = vadd.f32 0.0, %v7548
      %7550 = vmatmul.f32.gmra.mxu0 %v1259
      %v7551 = vpop.f32.mrf.mxu0
      %v7552 = vadd.f32 0.0, %v7551
      %7553 = vmatmul.f32.gmra.mxu0 %v1262
      %v7554 = vpop.f32.mrf.mxu0
      %v7555 = vadd.f32 0.0, %v7554
      %7556 = vmatmul.f32.gmra.mxu0 %v1265
      %v7557 = vpop.f32.mrf.mxu0
      %v7558 = vadd.f32 0.0, %v7557
      %7559 = vmatmul.f32.gmra.mxu0 %v1268
      %v7560 = vpop.f32.mrf.mxu0
      %v7561 = vadd.f32 0.0, %v7560
      %7562 = vmatmul.f32.gmra.mxu0 %v1271
      %v7563 = vpop.f32.mrf.mxu0
      %v7564 = vadd.f32 0.0, %v7563
      %7565 = vmatmul.f32.gmra.mxu0 %v1274
      %v7566 = vpop.f32.mrf.mxu0
      %v7567 = vadd.f32 0.0, %v7566
      %7568 = vmatmul.f32.gmra.mxu0 %v1277
      %v7569 = vpop.f32.mrf.mxu0
      %v7570 = vadd.f32 0.0, %v7569
      %7571 = vdwg.mxu0
      %v7572 = vadd.f32 %v7422, %v7477
      %v7573 = vadd.f32 %v7423, %v7480
      %v7574 = vadd.f32 %v7424, %v7483
      %v7575 = vadd.f32 %v7425, %v7486
      %v7576 = vadd.f32 %v7426, %v7489
      %v7577 = vadd.f32 %v7427, %v7492
      %v7578 = vadd.f32 %v7428, %v7495
      %v7579 = vadd.f32 %v7429, %v7498
      %v7580 = vadd.f32 %v7430, %v7501
      %v7581 = vadd.f32 %v7431, %v7504
      %v7582 = vadd.f32 %v7432, %v7507
      %v7583 = vadd.f32 %v7433, %v7510
      %v7584 = vadd.f32 %v7434, %v7513
      %v7585 = vadd.f32 %v7435, %v7516
      %v7586 = vadd.f32 %v7436, %v7519
      %v7587 = vadd.f32 %v7437, %v7522
      %v7588 = vadd.f32 %v7438, %v7525
      %v7589 = vadd.f32 %v7439, %v7528
      %v7590 = vadd.f32 %v7440, %v7531
      %v7591 = vadd.f32 %v7441, %v7534
      %v7592 = vadd.f32 %v7442, %v7537
      %v7593 = vadd.f32 %v7443, %v7540
      %v7594 = vadd.f32 %v7444, %v7543
      %v7595 = vadd.f32 %v7445, %v7546
      %v7596 = vadd.f32 %v7446, %v7549
      %v7597 = vadd.f32 %v7447, %v7552
      %v7598 = vadd.f32 %v7448, %v7555
      %v7599 = vadd.f32 %v7449, %v7558
      %v7600 = vadd.f32 %v7450, %v7561
      %v7601 = vadd.f32 %v7451, %v7564
      %v7602 = vadd.f32 %v7452, %v7567
      %v7603 = vadd.f32 %v7453, %v7570
      %s7604 = scalar_lea.vmem %s314, 92
      %v7605 = vld [vmem:[%s7604] sm:$0xf]
      %v7607 = vsel %vm1085, %v6405, 0
      %v7610 = vsel %vm1085, %v6406, 0
      %v7613 = vsel %vm1085, %v6407, 0
      %v7616 = vsel %vm1085, %v6408, 0
      %v7619 = vsel %vm1085, %v6409, 0
      %v7622 = vsel %vm1085, %v6410, 0
      %v7625 = vsel %vm1085, %v6411, 0
      %v7628 = vsel %vm1085, %v6412, 0
      %v7631 = vsel %vm1085, %v6413, 0
      %v7634 = vsel %vm1085, %v6414, 0
      %v7637 = vsel %vm1085, %v6415, 0
      %v7640 = vsel %vm1085, %v6416, 0
      %v7643 = vsel %vm1085, %v6417, 0
      %v7646 = vsel %vm1085, %v6418, 0
      %v7649 = vsel %vm1085, %v6419, 0
      %v7652 = vsel %vm1085, %v6420, 0
      %v7655 = vsel %vm1085, %v6421, 0
      %v7658 = vsel %vm1085, %v6422, 0
      %v7661 = vsel %vm1085, %v6423, 0
      %v7664 = vsel %vm1085, %v6424, 0
      %v7667 = vsel %vm1085, %v6425, 0
      %v7670 = vsel %vm1085, %v6426, 0
      %v7673 = vsel %vm1085, %v6427, 0
      %v7676 = vsel %vm1085, %v6428, 0
      %v7679 = vsel %vm1085, %v6429, 0
      %v7682 = vsel %vm1085, %v6430, 0
      %v7685 = vsel %vm1085, %v6431, 0
      %v7688 = vsel %vm1085, %v6432, 0
      %v7691 = vsel %vm1085, %v6433, 0
      %v7694 = vsel %vm1085, %v6434, 0
      %v7697 = vsel %vm1085, %v6435, 0
      %v7700 = vsel %vm1085, %v6436, 0
      %v7703 = vsel %vm1279, %v7605, 0
      %7705 = vmatpush.msra.mxu0 0.0
      %7706 = vmatpush.msra.mxu0 0.0
      %7707 = vmatpush.msra.mxu0 0.0
      %7708 = vmatpush.msra.mxu0 0.0
      %7709 = vmatpush.msra.mxu0 0.0
      %7710 = vmatpush.msra.mxu0 0.0
      %7711 = vmatpush.msra.mxu0 0.0
      %7712 = vmatpush.msra.mxu0 0.0
      %7713 = vmatpush.msra.mxu0 0.0
      %7714 = vmatpush.msra.mxu0 0.0
      %7715 = vmatpush.msra.mxu0 0.0
      %7716 = vmatpush.msra.mxu0 0.0
      %7717 = vmatpush.msra.mxu0 0.0
      %7718 = vmatpush.msra.mxu0 0.0
      %7719 = vmatpush.msra.mxu0 0.0
      %7720 = vmatpush.msra.mxu0 %v7703
      %7721 = vmatmul.f32.gmra.mxu0 %v7607
      %v7722 = vpop.f32.mrf.mxu0
      %v7723 = vadd.f32 0.0, %v7722
      %7724 = vmatmul.f32.gmra.mxu0 %v7610
      %v7725 = vpop.f32.mrf.mxu0
      %v7726 = vadd.f32 0.0, %v7725
      %7727 = vmatmul.f32.gmra.mxu0 %v7613
      %v7728 = vpop.f32.mrf.mxu0
      %v7729 = vadd.f32 0.0, %v7728
      %7730 = vmatmul.f32.gmra.mxu0 %v7616
      %v7731 = vpop.f32.mrf.mxu0
      %v7732 = vadd.f32 0.0, %v7731
      %7733 = vmatmul.f32.gmra.mxu0 %v7619
      %v7734 = vpop.f32.mrf.mxu0
      %v7735 = vadd.f32 0.0, %v7734
      %7736 = vmatmul.f32.gmra.mxu0 %v7622
      %v7737 = vpop.f32.mrf.mxu0
      %v7738 = vadd.f32 0.0, %v7737
      %7739 = vmatmul.f32.gmra.mxu0 %v7625
      %v7740 = vpop.f32.mrf.mxu0
      %v7741 = vadd.f32 0.0, %v7740
      %7742 = vmatmul.f32.gmra.mxu0 %v7628
      %v7743 = vpop.f32.mrf.mxu0
      %v7744 = vadd.f32 0.0, %v7743
      %7745 = vmatmul.f32.gmra.mxu0 %v7631
      %v7746 = vpop.f32.mrf.mxu0
      %v7747 = vadd.f32 0.0, %v7746
      %7748 = vmatmul.f32.gmra.mxu0 %v7634
      %v7749 = vpop.f32.mrf.mxu0
      %v7750 = vadd.f32 0.0, %v7749
      %7751 = vmatmul.f32.gmra.mxu0 %v7637
      %v7752 = vpop.f32.mrf.mxu0
      %v7753 = vadd.f32 0.0, %v7752
      %7754 = vmatmul.f32.gmra.mxu0 %v7640
      %v7755 = vpop.f32.mrf.mxu0
      %v7756 = vadd.f32 0.0, %v7755
      %7757 = vmatmul.f32.gmra.mxu0 %v7643
      %v7758 = vpop.f32.mrf.mxu0
      %v7759 = vadd.f32 0.0, %v7758
      %7760 = vmatmul.f32.gmra.mxu0 %v7646
      %v7761 = vpop.f32.mrf.mxu0
      %v7762 = vadd.f32 0.0, %v7761
      %7763 = vmatmul.f32.gmra.mxu0 %v7649
      %v7764 = vpop.f32.mrf.mxu0
      %v7765 = vadd.f32 0.0, %v7764
      %7766 = vmatmul.f32.gmra.mxu0 %v7652
      %v7767 = vpop.f32.mrf.mxu0
      %v7768 = vadd.f32 0.0, %v7767
      %7769 = vmatmul.f32.gmra.mxu0 %v7655
      %v7770 = vpop.f32.mrf.mxu0
      %v7771 = vadd.f32 0.0, %v7770
      %7772 = vmatmul.f32.gmra.mxu0 %v7658
      %v7773 = vpop.f32.mrf.mxu0
      %v7774 = vadd.f32 0.0, %v7773
      %7775 = vmatmul.f32.gmra.mxu0 %v7661
      %v7776 = vpop.f32.mrf.mxu0
      %v7777 = vadd.f32 0.0, %v7776
      %7778 = vmatmul.f32.gmra.mxu0 %v7664
      %v7779 = vpop.f32.mrf.mxu0
      %v7780 = vadd.f32 0.0, %v7779
      %7781 = vmatmul.f32.gmra.mxu0 %v7667
      %v7782 = vpop.f32.mrf.mxu0
      %v7783 = vadd.f32 0.0, %v7782
      %7784 = vmatmul.f32.gmra.mxu0 %v7670
      %v7785 = vpop.f32.mrf.mxu0
      %v7786 = vadd.f32 0.0, %v7785
      %7787 = vmatmul.f32.gmra.mxu0 %v7673
      %v7788 = vpop.f32.mrf.mxu0
      %v7789 = vadd.f32 0.0, %v7788
      %7790 = vmatmul.f32.gmra.mxu0 %v7676
      %v7791 = vpop.f32.mrf.mxu0
      %v7792 = vadd.f32 0.0, %v7791
      %7793 = vmatmul.f32.gmra.mxu0 %v7679
      %v7794 = vpop.f32.mrf.mxu0
      %v7795 = vadd.f32 0.0, %v7794
      %7796 = vmatmul.f32.gmra.mxu0 %v7682
      %v7797 = vpop.f32.mrf.mxu0
      %v7798 = vadd.f32 0.0, %v7797
      %7799 = vmatmul.f32.gmra.mxu0 %v7685
      %v7800 = vpop.f32.mrf.mxu0
      %v7801 = vadd.f32 0.0, %v7800
      %7802 = vmatmul.f32.gmra.mxu0 %v7688
      %v7803 = vpop.f32.mrf.mxu0
      %v7804 = vadd.f32 0.0, %v7803
      %7805 = vmatmul.f32.gmra.mxu0 %v7691
      %v7806 = vpop.f32.mrf.mxu0
      %v7807 = vadd.f32 0.0, %v7806
      %7808 = vmatmul.f32.gmra.mxu0 %v7694
      %v7809 = vpop.f32.mrf.mxu0
      %v7810 = vadd.f32 0.0, %v7809
      %7811 = vmatmul.f32.gmra.mxu0 %v7697
      %v7812 = vpop.f32.mrf.mxu0
      %v7813 = vadd.f32 0.0, %v7812
      %7814 = vmatmul.f32.gmra.mxu0 %v7700
      %v7815 = vpop.f32.mrf.mxu0
      %v7816 = vadd.f32 0.0, %v7815
      %7817 = vdwg.mxu0
      %v7818 = vadd.f32 %v7572, %v7723
      %v7819 = vadd.f32 %v7573, %v7726
      %v7820 = vadd.f32 %v7574, %v7729
      %v7821 = vadd.f32 %v7575, %v7732
      %v7822 = vadd.f32 %v7576, %v7735
      %v7823 = vadd.f32 %v7577, %v7738
      %v7824 = vadd.f32 %v7578, %v7741
      %v7825 = vadd.f32 %v7579, %v7744
      %v7826 = vadd.f32 %v7580, %v7747
      %v7827 = vadd.f32 %v7581, %v7750
      %v7828 = vadd.f32 %v7582, %v7753
      %v7829 = vadd.f32 %v7583, %v7756
      %v7830 = vadd.f32 %v7584, %v7759
      %v7831 = vadd.f32 %v7585, %v7762
      %v7832 = vadd.f32 %v7586, %v7765
      %v7833 = vadd.f32 %v7587, %v7768
      %v7834 = vadd.f32 %v7588, %v7771
      %v7835 = vadd.f32 %v7589, %v7774
      %v7836 = vadd.f32 %v7590, %v7777
      %v7837 = vadd.f32 %v7591, %v7780
      %v7838 = vadd.f32 %v7592, %v7783
      %v7839 = vadd.f32 %v7593, %v7786
      %v7840 = vadd.f32 %v7594, %v7789
      %v7841 = vadd.f32 %v7595, %v7792
      %v7842 = vadd.f32 %v7596, %v7795
      %v7843 = vadd.f32 %v7597, %v7798
      %v7844 = vadd.f32 %v7598, %v7801
      %v7845 = vadd.f32 %v7599, %v7804
      %v7846 = vadd.f32 %v7600, %v7807
      %v7847 = vadd.f32 %v7601, %v7810
      %v7848 = vadd.f32 %v7602, %v7813
      %v7849 = vadd.f32 %v7603, %v7816
      %s7850 = scalar_lea.vmem %s314, 96
      %v7851 = vld [vmem:[%s7850] sm:$0xf]
      %v7853 = vsel %vm1085, %v6438, 0
      %v7856 = vsel %vm1085, %v6439, 0
      %v7859 = vsel %vm1085, %v6440, 0
      %v7862 = vsel %vm1085, %v6441, 0
      %v7865 = vsel %vm1085, %v6442, 0
      %v7868 = vsel %vm1085, %v6443, 0
      %v7871 = vsel %vm1085, %v6444, 0
      %v7874 = vsel %vm1085, %v6445, 0
      %v7877 = vsel %vm1085, %v6446, 0
      %v7880 = vsel %vm1085, %v6447, 0
      %v7883 = vsel %vm1085, %v6448, 0
      %v7886 = vsel %vm1085, %v6449, 0
      %v7889 = vsel %vm1085, %v6450, 0
      %v7892 = vsel %vm1085, %v6451, 0
      %v7895 = vsel %vm1085, %v6452, 0
      %v7898 = vsel %vm1085, %v6453, 0
      %v7901 = vsel %vm1085, %v6454, 0
      %v7904 = vsel %vm1085, %v6455, 0
      %v7907 = vsel %vm1085, %v6456, 0
      %v7910 = vsel %vm1085, %v6457, 0
      %v7913 = vsel %vm1085, %v6458, 0
      %v7916 = vsel %vm1085, %v6459, 0
      %v7919 = vsel %vm1085, %v6460, 0
      %v7922 = vsel %vm1085, %v6461, 0
      %v7925 = vsel %vm1085, %v6462, 0
      %v7928 = vsel %vm1085, %v6463, 0
      %v7931 = vsel %vm1085, %v6464, 0
      %v7934 = vsel %vm1085, %v6465, 0
      %v7937 = vsel %vm1085, %v6466, 0
      %v7940 = vsel %vm1085, %v6467, 0
      %v7943 = vsel %vm1085, %v6468, 0
      %v7946 = vsel %vm1085, %v6469, 0
      %v7949 = vsel %vm1279, %v7851, 0
      %7951 = vmatpush.msra.mxu0 0.0
      %7952 = vmatpush.msra.mxu0 0.0
      %7953 = vmatpush.msra.mxu0 0.0
      %7954 = vmatpush.msra.mxu0 0.0
      %7955 = vmatpush.msra.mxu0 0.0
      %7956 = vmatpush.msra.mxu0 0.0
      %7957 = vmatpush.msra.mxu0 0.0
      %7958 = vmatpush.msra.mxu0 0.0
      %7959 = vmatpush.msra.mxu0 0.0
      %7960 = vmatpush.msra.mxu0 0.0
      %7961 = vmatpush.msra.mxu0 0.0
      %7962 = vmatpush.msra.mxu0 0.0
      %7963 = vmatpush.msra.mxu0 0.0
      %7964 = vmatpush.msra.mxu0 0.0
      %7965 = vmatpush.msra.mxu0 0.0
      %7966 = vmatpush.msra.mxu0 %v7949
      %7967 = vmatmul.f32.gmra.mxu0 %v7853
      %v7968 = vpop.f32.mrf.mxu0
      %v7969 = vadd.f32 0.0, %v7968
      %7970 = vmatmul.f32.gmra.mxu0 %v7856
      %v7971 = vpop.f32.mrf.mxu0
      %v7972 = vadd.f32 0.0, %v7971
      %7973 = vmatmul.f32.gmra.mxu0 %v7859
      %v7974 = vpop.f32.mrf.mxu0
      %v7975 = vadd.f32 0.0, %v7974
      %7976 = vmatmul.f32.gmra.mxu0 %v7862
      %v7977 = vpop.f32.mrf.mxu0
      %v7978 = vadd.f32 0.0, %v7977
      %7979 = vmatmul.f32.gmra.mxu0 %v7865
      %v7980 = vpop.f32.mrf.mxu0
      %v7981 = vadd.f32 0.0, %v7980
      %7982 = vmatmul.f32.gmra.mxu0 %v7868
      %v7983 = vpop.f32.mrf.mxu0
      %v7984 = vadd.f32 0.0, %v7983
      %7985 = vmatmul.f32.gmra.mxu0 %v7871
      %v7986 = vpop.f32.mrf.mxu0
      %v7987 = vadd.f32 0.0, %v7986
      %7988 = vmatmul.f32.gmra.mxu0 %v7874
      %v7989 = vpop.f32.mrf.mxu0
      %v7990 = vadd.f32 0.0, %v7989
      %7991 = vmatmul.f32.gmra.mxu0 %v7877
      %v7992 = vpop.f32.mrf.mxu0
      %v7993 = vadd.f32 0.0, %v7992
      %7994 = vmatmul.f32.gmra.mxu0 %v7880
      %v7995 = vpop.f32.mrf.mxu0
      %v7996 = vadd.f32 0.0, %v7995
      %7997 = vmatmul.f32.gmra.mxu0 %v7883
      %v7998 = vpop.f32.mrf.mxu0
      %v7999 = vadd.f32 0.0, %v7998
      %8000 = vmatmul.f32.gmra.mxu0 %v7886
      %v8001 = vpop.f32.mrf.mxu0
      %v8002 = vadd.f32 0.0, %v8001
      %8003 = vmatmul.f32.gmra.mxu0 %v7889
      %v8004 = vpop.f32.mrf.mxu0
      %v8005 = vadd.f32 0.0, %v8004
      %8006 = vmatmul.f32.gmra.mxu0 %v7892
      %v8007 = vpop.f32.mrf.mxu0
      %v8008 = vadd.f32 0.0, %v8007
      %8009 = vmatmul.f32.gmra.mxu0 %v7895
      %v8010 = vpop.f32.mrf.mxu0
      %v8011 = vadd.f32 0.0, %v8010
      %8012 = vmatmul.f32.gmra.mxu0 %v7898
      %v8013 = vpop.f32.mrf.mxu0
      %v8014 = vadd.f32 0.0, %v8013
      %8015 = vmatmul.f32.gmra.mxu0 %v7901
      %v8016 = vpop.f32.mrf.mxu0
      %v8017 = vadd.f32 0.0, %v8016
      %8018 = vmatmul.f32.gmra.mxu0 %v7904
      %v8019 = vpop.f32.mrf.mxu0
      %v8020 = vadd.f32 0.0, %v8019
      %8021 = vmatmul.f32.gmra.mxu0 %v7907
      %v8022 = vpop.f32.mrf.mxu0
      %v8023 = vadd.f32 0.0, %v8022
      %8024 = vmatmul.f32.gmra.mxu0 %v7910
      %v8025 = vpop.f32.mrf.mxu0
      %v8026 = vadd.f32 0.0, %v8025
      %8027 = vmatmul.f32.gmra.mxu0 %v7913
      %v8028 = vpop.f32.mrf.mxu0
      %v8029 = vadd.f32 0.0, %v8028
      %8030 = vmatmul.f32.gmra.mxu0 %v7916
      %v8031 = vpop.f32.mrf.mxu0
      %v8032 = vadd.f32 0.0, %v8031
      %8033 = vmatmul.f32.gmra.mxu0 %v7919
      %v8034 = vpop.f32.mrf.mxu0
      %v8035 = vadd.f32 0.0, %v8034
      %8036 = vmatmul.f32.gmra.mxu0 %v7922
      %v8037 = vpop.f32.mrf.mxu0
      %v8038 = vadd.f32 0.0, %v8037
      %8039 = vmatmul.f32.gmra.mxu0 %v7925
      %v8040 = vpop.f32.mrf.mxu0
      %v8041 = vadd.f32 0.0, %v8040
      %8042 = vmatmul.f32.gmra.mxu0 %v7928
      %v8043 = vpop.f32.mrf.mxu0
      %v8044 = vadd.f32 0.0, %v8043
      %8045 = vmatmul.f32.gmra.mxu0 %v7931
      %v8046 = vpop.f32.mrf.mxu0
      %v8047 = vadd.f32 0.0, %v8046
      %8048 = vmatmul.f32.gmra.mxu0 %v7934
      %v8049 = vpop.f32.mrf.mxu0
      %v8050 = vadd.f32 0.0, %v8049
      %8051 = vmatmul.f32.gmra.mxu0 %v7937
      %v8052 = vpop.f32.mrf.mxu0
      %v8053 = vadd.f32 0.0, %v8052
      %8054 = vmatmul.f32.gmra.mxu0 %v7940
      %v8055 = vpop.f32.mrf.mxu0
      %v8056 = vadd.f32 0.0, %v8055
      %8057 = vmatmul.f32.gmra.mxu0 %v7943
      %v8058 = vpop.f32.mrf.mxu0
      %v8059 = vadd.f32 0.0, %v8058
      %8060 = vmatmul.f32.gmra.mxu0 %v7946
      %v8061 = vpop.f32.mrf.mxu0
      %v8062 = vadd.f32 0.0, %v8061
      %8063 = vdwg.mxu0
      %v8064 = vadd.f32 %v7818, %v7969
      %v8065 = vadd.f32 %v7819, %v7972
      %v8066 = vadd.f32 %v7820, %v7975
      %v8067 = vadd.f32 %v7821, %v7978
      %v8068 = vadd.f32 %v7822, %v7981
      %v8069 = vadd.f32 %v7823, %v7984
      %v8070 = vadd.f32 %v7824, %v7987
      %v8071 = vadd.f32 %v7825, %v7990
      %v8072 = vadd.f32 %v7826, %v7993
      %v8073 = vadd.f32 %v7827, %v7996
      %v8074 = vadd.f32 %v7828, %v7999
      %v8075 = vadd.f32 %v7829, %v8002
      %v8076 = vadd.f32 %v7830, %v8005
      %v8077 = vadd.f32 %v7831, %v8008
      %v8078 = vadd.f32 %v7832, %v8011
      %v8079 = vadd.f32 %v7833, %v8014
      %v8080 = vadd.f32 %v7834, %v8017
      %v8081 = vadd.f32 %v7835, %v8020
      %v8082 = vadd.f32 %v7836, %v8023
      %v8083 = vadd.f32 %v7837, %v8026
      %v8084 = vadd.f32 %v7838, %v8029
      %v8085 = vadd.f32 %v7839, %v8032
      %v8086 = vadd.f32 %v7840, %v8035
      %v8087 = vadd.f32 %v7841, %v8038
      %v8088 = vadd.f32 %v7842, %v8041
      %v8089 = vadd.f32 %v7843, %v8044
      %v8090 = vadd.f32 %v7844, %v8047
      %v8091 = vadd.f32 %v7845, %v8050
      %v8092 = vadd.f32 %v7846, %v8053
      %v8093 = vadd.f32 %v7847, %v8056
      %v8094 = vadd.f32 %v7848, %v8059
      %v8095 = vadd.f32 %v7849, %v8062
      %s8096 = scalar_lea.vmem %s314, 100
      %v8097 = vld [vmem:[%s8096] sm:$0xf]
      %v8099 = vsel %vm1085, %v6470, 0
      %v8102 = vsel %vm1085, %v6471, 0
      %v8105 = vsel %vm1085, %v6472, 0
      %v8108 = vsel %vm1085, %v6473, 0
      %v8111 = vsel %vm1085, %v6474, 0
      %v8114 = vsel %vm1085, %v6475, 0
      %v8117 = vsel %vm1085, %v6476, 0
      %v8120 = vsel %vm1085, %v6477, 0
      %v8123 = vsel %vm1085, %v6478, 0
      %v8126 = vsel %vm1085, %v6479, 0
      %v8129 = vsel %vm1085, %v6480, 0
      %v8132 = vsel %vm1085, %v6481, 0
      %v8135 = vsel %vm1085, %v6482, 0
      %v8138 = vsel %vm1085, %v6483, 0
      %v8141 = vsel %vm1085, %v6484, 0
      %v8144 = vsel %vm1085, %v6485, 0
      %v8147 = vsel %vm1085, %v6486, 0
      %v8150 = vsel %vm1085, %v6487, 0
      %v8153 = vsel %vm1085, %v6488, 0
      %v8156 = vsel %vm1085, %v6489, 0
      %v8159 = vsel %vm1085, %v6490, 0
      %v8162 = vsel %vm1085, %v6491, 0
      %v8165 = vsel %vm1085, %v6492, 0
      %v8168 = vsel %vm1085, %v6493, 0
      %v8171 = vsel %vm1085, %v6494, 0
      %v8174 = vsel %vm1085, %v6495, 0
      %v8177 = vsel %vm1085, %v6496, 0
      %v8180 = vsel %vm1085, %v6497, 0
      %v8183 = vsel %vm1085, %v6498, 0
      %v8186 = vsel %vm1085, %v6499, 0
      %v8189 = vsel %vm1085, %v6500, 0
      %v8192 = vsel %vm1085, %v6501, 0
      %v8195 = vsel %vm1279, %v8097, 0
      %8197 = vmatpush.msra.mxu0 0.0
      %8198 = vmatpush.msra.mxu0 0.0
      %8199 = vmatpush.msra.mxu0 0.0
      %8200 = vmatpush.msra.mxu0 0.0
      %8201 = vmatpush.msra.mxu0 0.0
      %8202 = vmatpush.msra.mxu0 0.0
      %8203 = vmatpush.msra.mxu0 0.0
      %8204 = vmatpush.msra.mxu0 0.0
      %8205 = vmatpush.msra.mxu0 0.0
      %8206 = vmatpush.msra.mxu0 0.0
      %8207 = vmatpush.msra.mxu0 0.0
      %8208 = vmatpush.msra.mxu0 0.0
      %8209 = vmatpush.msra.mxu0 0.0
      %8210 = vmatpush.msra.mxu0 0.0
      %8211 = vmatpush.msra.mxu0 0.0
      %8212 = vmatpush.msra.mxu0 %v8195
      %8213 = vmatmul.f32.gmra.mxu0 %v8099
      %v8214 = vpop.f32.mrf.mxu0
      %v8215 = vadd.f32 0.0, %v8214
      %8216 = vmatmul.f32.gmra.mxu0 %v8102
      %v8217 = vpop.f32.mrf.mxu0
      %v8218 = vadd.f32 0.0, %v8217
      %8219 = vmatmul.f32.gmra.mxu0 %v8105
      %v8220 = vpop.f32.mrf.mxu0
      %v8221 = vadd.f32 0.0, %v8220
      %8222 = vmatmul.f32.gmra.mxu0 %v8108
      %v8223 = vpop.f32.mrf.mxu0
      %v8224 = vadd.f32 0.0, %v8223
      %8225 = vmatmul.f32.gmra.mxu0 %v8111
      %v8226 = vpop.f32.mrf.mxu0
      %v8227 = vadd.f32 0.0, %v8226
      %8228 = vmatmul.f32.gmra.mxu0 %v8114
      %v8229 = vpop.f32.mrf.mxu0
      %v8230 = vadd.f32 0.0, %v8229
      %8231 = vmatmul.f32.gmra.mxu0 %v8117
      %v8232 = vpop.f32.mrf.mxu0
      %v8233 = vadd.f32 0.0, %v8232
      %8234 = vmatmul.f32.gmra.mxu0 %v8120
      %v8235 = vpop.f32.mrf.mxu0
      %v8236 = vadd.f32 0.0, %v8235
      %8237 = vmatmul.f32.gmra.mxu0 %v8123
      %v8238 = vpop.f32.mrf.mxu0
      %v8239 = vadd.f32 0.0, %v8238
      %8240 = vmatmul.f32.gmra.mxu0 %v8126
      %v8241 = vpop.f32.mrf.mxu0
      %v8242 = vadd.f32 0.0, %v8241
      %8243 = vmatmul.f32.gmra.mxu0 %v8129
      %v8244 = vpop.f32.mrf.mxu0
      %v8245 = vadd.f32 0.0, %v8244
      %8246 = vmatmul.f32.gmra.mxu0 %v8132
      %v8247 = vpop.f32.mrf.mxu0
      %v8248 = vadd.f32 0.0, %v8247
      %8249 = vmatmul.f32.gmra.mxu0 %v8135
      %v8250 = vpop.f32.mrf.mxu0
      %v8251 = vadd.f32 0.0, %v8250
      %8252 = vmatmul.f32.gmra.mxu0 %v8138
      %v8253 = vpop.f32.mrf.mxu0
      %v8254 = vadd.f32 0.0, %v8253
      %8255 = vmatmul.f32.gmra.mxu0 %v8141
      %v8256 = vpop.f32.mrf.mxu0
      %v8257 = vadd.f32 0.0, %v8256
      %8258 = vmatmul.f32.gmra.mxu0 %v8144
      %v8259 = vpop.f32.mrf.mxu0
      %v8260 = vadd.f32 0.0, %v8259
      %8261 = vmatmul.f32.gmra.mxu0 %v8147
      %v8262 = vpop.f32.mrf.mxu0
      %v8263 = vadd.f32 0.0, %v8262
      %8264 = vmatmul.f32.gmra.mxu0 %v8150
      %v8265 = vpop.f32.mrf.mxu0
      %v8266 = vadd.f32 0.0, %v8265
      %8267 = vmatmul.f32.gmra.mxu0 %v8153
      %v8268 = vpop.f32.mrf.mxu0
      %v8269 = vadd.f32 0.0, %v8268
      %8270 = vmatmul.f32.gmra.mxu0 %v8156
      %v8271 = vpop.f32.mrf.mxu0
      %v8272 = vadd.f32 0.0, %v8271
      %8273 = vmatmul.f32.gmra.mxu0 %v8159
      %v8274 = vpop.f32.mrf.mxu0
      %v8275 = vadd.f32 0.0, %v8274
      %8276 = vmatmul.f32.gmra.mxu0 %v8162
      %v8277 = vpop.f32.mrf.mxu0
      %v8278 = vadd.f32 0.0, %v8277
      %8279 = vmatmul.f32.gmra.mxu0 %v8165
      %v8280 = vpop.f32.mrf.mxu0
      %v8281 = vadd.f32 0.0, %v8280
      %8282 = vmatmul.f32.gmra.mxu0 %v8168
      %v8283 = vpop.f32.mrf.mxu0
      %v8284 = vadd.f32 0.0, %v8283
      %8285 = vmatmul.f32.gmra.mxu0 %v8171
      %v8286 = vpop.f32.mrf.mxu0
      %v8287 = vadd.f32 0.0, %v8286
      %8288 = vmatmul.f32.gmra.mxu0 %v8174
      %v8289 = vpop.f32.mrf.mxu0
      %v8290 = vadd.f32 0.0, %v8289
      %8291 = vmatmul.f32.gmra.mxu0 %v8177
      %v8292 = vpop.f32.mrf.mxu0
      %v8293 = vadd.f32 0.0, %v8292
      %8294 = vmatmul.f32.gmra.mxu0 %v8180
      %v8295 = vpop.f32.mrf.mxu0
      %v8296 = vadd.f32 0.0, %v8295
      %8297 = vmatmul.f32.gmra.mxu0 %v8183
      %v8298 = vpop.f32.mrf.mxu0
      %v8299 = vadd.f32 0.0, %v8298
      %8300 = vmatmul.f32.gmra.mxu0 %v8186
      %v8301 = vpop.f32.mrf.mxu0
      %v8302 = vadd.f32 0.0, %v8301
      %8303 = vmatmul.f32.gmra.mxu0 %v8189
      %v8304 = vpop.f32.mrf.mxu0
      %v8305 = vadd.f32 0.0, %v8304
      %8306 = vmatmul.f32.gmra.mxu0 %v8192
      %v8307 = vpop.f32.mrf.mxu0
      %v8308 = vadd.f32 0.0, %v8307
      %8309 = vdwg.mxu0
      %v8310 = vadd.f32 %v8064, %v8215
      %v8311 = vadd.f32 %v8065, %v8218
      %v8312 = vadd.f32 %v8066, %v8221
      %v8313 = vadd.f32 %v8067, %v8224
      %v8314 = vadd.f32 %v8068, %v8227
      %v8315 = vadd.f32 %v8069, %v8230
      %v8316 = vadd.f32 %v8070, %v8233
      %v8317 = vadd.f32 %v8071, %v8236
      %v8318 = vadd.f32 %v8072, %v8239
      %v8319 = vadd.f32 %v8073, %v8242
      %v8320 = vadd.f32 %v8074, %v8245
      %v8321 = vadd.f32 %v8075, %v8248
      %v8322 = vadd.f32 %v8076, %v8251
      %v8323 = vadd.f32 %v8077, %v8254
      %v8324 = vadd.f32 %v8078, %v8257
      %v8325 = vadd.f32 %v8079, %v8260
      %v8326 = vadd.f32 %v8080, %v8263
      %v8327 = vadd.f32 %v8081, %v8266
      %v8328 = vadd.f32 %v8082, %v8269
      %v8329 = vadd.f32 %v8083, %v8272
      %v8330 = vadd.f32 %v8084, %v8275
      %v8331 = vadd.f32 %v8085, %v8278
      %v8332 = vadd.f32 %v8086, %v8281
      %v8333 = vadd.f32 %v8087, %v8284
      %v8334 = vadd.f32 %v8088, %v8287
      %v8335 = vadd.f32 %v8089, %v8290
      %v8336 = vadd.f32 %v8090, %v8293
      %v8337 = vadd.f32 %v8091, %v8296
      %v8338 = vadd.f32 %v8092, %v8299
      %v8339 = vadd.f32 %v8093, %v8302
      %v8340 = vadd.f32 %v8094, %v8305
      %v8341 = vadd.f32 %v8095, %v8308
      %s8342 = scalar_lea.vmem %s314, 104
      %v8343 = vld [vmem:[%s8342] sm:$0xf]
      %v8345 = vsel %vm1085, %v6502, 0
      %v8348 = vsel %vm1085, %v6503, 0
      %v8351 = vsel %vm1085, %v6504, 0
      %v8354 = vsel %vm1085, %v6505, 0
      %v8357 = vsel %vm1085, %v6506, 0
      %v8360 = vsel %vm1085, %v6507, 0
      %v8363 = vsel %vm1085, %v6508, 0
      %v8366 = vsel %vm1085, %v6509, 0
      %v8369 = vsel %vm1085, %v6510, 0
      %v8372 = vsel %vm1085, %v6511, 0
      %v8375 = vsel %vm1085, %v6512, 0
      %v8378 = vsel %vm1085, %v6513, 0
      %v8381 = vsel %vm1085, %v6514, 0
      %v8384 = vsel %vm1085, %v6515, 0
      %v8387 = vsel %vm1085, %v6516, 0
      %v8390 = vsel %vm1085, %v6517, 0
      %v8393 = vsel %vm1085, %v6518, 0
      %v8396 = vsel %vm1085, %v6519, 0
      %v8399 = vsel %vm1085, %v6520, 0
      %v8402 = vsel %vm1085, %v6521, 0
      %v8405 = vsel %vm1085, %v6522, 0
      %v8408 = vsel %vm1085, %v6523, 0
      %v8411 = vsel %vm1085, %v6524, 0
      %v8414 = vsel %vm1085, %v6525, 0
      %v8417 = vsel %vm1085, %v6526, 0
      %v8420 = vsel %vm1085, %v6527, 0
      %v8423 = vsel %vm1085, %v6528, 0
      %v8426 = vsel %vm1085, %v6529, 0
      %v8429 = vsel %vm1085, %v6530, 0
      %v8432 = vsel %vm1085, %v6531, 0
      %v8435 = vsel %vm1085, %v6532, 0
      %v8438 = vsel %vm1085, %v6533, 0
      %v8441 = vsel %vm1279, %v8343, 0
      %8443 = vmatpush.msra.mxu0 0.0
      %8444 = vmatpush.msra.mxu0 0.0
      %8445 = vmatpush.msra.mxu0 0.0
      %8446 = vmatpush.msra.mxu0 0.0
      %8447 = vmatpush.msra.mxu0 0.0
      %8448 = vmatpush.msra.mxu0 0.0
      %8449 = vmatpush.msra.mxu0 0.0
      %8450 = vmatpush.msra.mxu0 0.0
      %8451 = vmatpush.msra.mxu0 0.0
      %8452 = vmatpush.msra.mxu0 0.0
      %8453 = vmatpush.msra.mxu0 0.0
      %8454 = vmatpush.msra.mxu0 0.0
      %8455 = vmatpush.msra.mxu0 0.0
      %8456 = vmatpush.msra.mxu0 0.0
      %8457 = vmatpush.msra.mxu0 0.0
      %8458 = vmatpush.msra.mxu0 %v8441
      %8459 = vmatmul.f32.gmra.mxu0 %v8345
      %v8460 = vpop.f32.mrf.mxu0
      %v8461 = vadd.f32 0.0, %v8460
      %8462 = vmatmul.f32.gmra.mxu0 %v8348
      %v8463 = vpop.f32.mrf.mxu0
      %v8464 = vadd.f32 0.0, %v8463
      %8465 = vmatmul.f32.gmra.mxu0 %v8351
      %v8466 = vpop.f32.mrf.mxu0
      %v8467 = vadd.f32 0.0, %v8466
      %8468 = vmatmul.f32.gmra.mxu0 %v8354
      %v8469 = vpop.f32.mrf.mxu0
      %v8470 = vadd.f32 0.0, %v8469
      %8471 = vmatmul.f32.gmra.mxu0 %v8357
      %v8472 = vpop.f32.mrf.mxu0
      %v8473 = vadd.f32 0.0, %v8472
      %8474 = vmatmul.f32.gmra.mxu0 %v8360
      %v8475 = vpop.f32.mrf.mxu0
      %v8476 = vadd.f32 0.0, %v8475
      %8477 = vmatmul.f32.gmra.mxu0 %v8363
      %v8478 = vpop.f32.mrf.mxu0
      %v8479 = vadd.f32 0.0, %v8478
      %8480 = vmatmul.f32.gmra.mxu0 %v8366
      %v8481 = vpop.f32.mrf.mxu0
      %v8482 = vadd.f32 0.0, %v8481
      %8483 = vmatmul.f32.gmra.mxu0 %v8369
      %v8484 = vpop.f32.mrf.mxu0
      %v8485 = vadd.f32 0.0, %v8484
      %8486 = vmatmul.f32.gmra.mxu0 %v8372
      %v8487 = vpop.f32.mrf.mxu0
      %v8488 = vadd.f32 0.0, %v8487
      %8489 = vmatmul.f32.gmra.mxu0 %v8375
      %v8490 = vpop.f32.mrf.mxu0
      %v8491 = vadd.f32 0.0, %v8490
      %8492 = vmatmul.f32.gmra.mxu0 %v8378
      %v8493 = vpop.f32.mrf.mxu0
      %v8494 = vadd.f32 0.0, %v8493
      %8495 = vmatmul.f32.gmra.mxu0 %v8381
      %v8496 = vpop.f32.mrf.mxu0
      %v8497 = vadd.f32 0.0, %v8496
      %8498 = vmatmul.f32.gmra.mxu0 %v8384
      %v8499 = vpop.f32.mrf.mxu0
      %v8500 = vadd.f32 0.0, %v8499
      %8501 = vmatmul.f32.gmra.mxu0 %v8387
      %v8502 = vpop.f32.mrf.mxu0
      %v8503 = vadd.f32 0.0, %v8502
      %8504 = vmatmul.f32.gmra.mxu0 %v8390
      %v8505 = vpop.f32.mrf.mxu0
      %v8506 = vadd.f32 0.0, %v8505
      %8507 = vmatmul.f32.gmra.mxu0 %v8393
      %v8508 = vpop.f32.mrf.mxu0
      %v8509 = vadd.f32 0.0, %v8508
      %8510 = vmatmul.f32.gmra.mxu0 %v8396
      %v8511 = vpop.f32.mrf.mxu0
      %v8512 = vadd.f32 0.0, %v8511
      %8513 = vmatmul.f32.gmra.mxu0 %v8399
      %v8514 = vpop.f32.mrf.mxu0
      %v8515 = vadd.f32 0.0, %v8514
      %8516 = vmatmul.f32.gmra.mxu0 %v8402
      %v8517 = vpop.f32.mrf.mxu0
      %v8518 = vadd.f32 0.0, %v8517
      %8519 = vmatmul.f32.gmra.mxu0 %v8405
      %v8520 = vpop.f32.mrf.mxu0
      %v8521 = vadd.f32 0.0, %v8520
      %8522 = vmatmul.f32.gmra.mxu0 %v8408
      %v8523 = vpop.f32.mrf.mxu0
      %v8524 = vadd.f32 0.0, %v8523
      %8525 = vmatmul.f32.gmra.mxu0 %v8411
      %v8526 = vpop.f32.mrf.mxu0
      %v8527 = vadd.f32 0.0, %v8526
      %8528 = vmatmul.f32.gmra.mxu0 %v8414
      %v8529 = vpop.f32.mrf.mxu0
      %v8530 = vadd.f32 0.0, %v8529
      %8531 = vmatmul.f32.gmra.mxu0 %v8417
      %v8532 = vpop.f32.mrf.mxu0
      %v8533 = vadd.f32 0.0, %v8532
      %8534 = vmatmul.f32.gmra.mxu0 %v8420
      %v8535 = vpop.f32.mrf.mxu0
      %v8536 = vadd.f32 0.0, %v8535
      %8537 = vmatmul.f32.gmra.mxu0 %v8423
      %v8538 = vpop.f32.mrf.mxu0
      %v8539 = vadd.f32 0.0, %v8538
      %8540 = vmatmul.f32.gmra.mxu0 %v8426
      %v8541 = vpop.f32.mrf.mxu0
      %v8542 = vadd.f32 0.0, %v8541
      %8543 = vmatmul.f32.gmra.mxu0 %v8429
      %v8544 = vpop.f32.mrf.mxu0
      %v8545 = vadd.f32 0.0, %v8544
      %8546 = vmatmul.f32.gmra.mxu0 %v8432
      %v8547 = vpop.f32.mrf.mxu0
      %v8548 = vadd.f32 0.0, %v8547
      %8549 = vmatmul.f32.gmra.mxu0 %v8435
      %v8550 = vpop.f32.mrf.mxu0
      %v8551 = vadd.f32 0.0, %v8550
      %8552 = vmatmul.f32.gmra.mxu0 %v8438
      %v8553 = vpop.f32.mrf.mxu0
      %v8554 = vadd.f32 0.0, %v8553
      %8555 = vdwg.mxu0
      %v8556 = vadd.f32 %v8310, %v8461
      %v8557 = vadd.f32 %v8311, %v8464
      %v8558 = vadd.f32 %v8312, %v8467
      %v8559 = vadd.f32 %v8313, %v8470
      %v8560 = vadd.f32 %v8314, %v8473
      %v8561 = vadd.f32 %v8315, %v8476
      %v8562 = vadd.f32 %v8316, %v8479
      %v8563 = vadd.f32 %v8317, %v8482
      %v8564 = vadd.f32 %v8318, %v8485
      %v8565 = vadd.f32 %v8319, %v8488
      %v8566 = vadd.f32 %v8320, %v8491
      %v8567 = vadd.f32 %v8321, %v8494
      %v8568 = vadd.f32 %v8322, %v8497
      %v8569 = vadd.f32 %v8323, %v8500
      %v8570 = vadd.f32 %v8324, %v8503
      %v8571 = vadd.f32 %v8325, %v8506
      %v8572 = vadd.f32 %v8326, %v8509
      %v8573 = vadd.f32 %v8327, %v8512
      %v8574 = vadd.f32 %v8328, %v8515
      %v8575 = vadd.f32 %v8329, %v8518
      %v8576 = vadd.f32 %v8330, %v8521
      %v8577 = vadd.f32 %v8331, %v8524
      %v8578 = vadd.f32 %v8332, %v8527
      %v8579 = vadd.f32 %v8333, %v8530
      %v8580 = vadd.f32 %v8334, %v8533
      %v8581 = vadd.f32 %v8335, %v8536
      %v8582 = vadd.f32 %v8336, %v8539
      %v8583 = vadd.f32 %v8337, %v8542
      %v8584 = vadd.f32 %v8338, %v8545
      %v8585 = vadd.f32 %v8339, %v8548
      %v8586 = vadd.f32 %v8340, %v8551
      %v8587 = vadd.f32 %v8341, %v8554
      %v8588 = vld [vmem:[#allocation6] sm:$0xff]
      %v8589 = vld [vmem:[#allocation6 + $0x8] sm:$0xff]
      %v8590 = vld [vmem:[#allocation6 + $0x10] sm:$0xff]
      %v8591 = vld [vmem:[#allocation6 + $0x18] sm:$0xff]
      %v8592 = vld [vmem:[#allocation6 + $0x20] sm:$0xff]
      %v8593 = vld [vmem:[#allocation6 + $0x28] sm:$0xff]
      %v8594 = vld [vmem:[#allocation6 + $0x30] sm:$0xff]
      %v8595 = vld [vmem:[#allocation6 + $0x38] sm:$0xff]
      %v8596 = vld [vmem:[#allocation6 + $0x40] sm:$0xff]
      %v8597 = vld [vmem:[#allocation6 + $0x48] sm:$0xff]
      %v8598 = vld [vmem:[#allocation6 + $0x50] sm:$0xff]
      %v8599 = vld [vmem:[#allocation6 + $0x58] sm:$0xff]
      %v8600 = vld [vmem:[#allocation6 + $0x60] sm:$0xff]
      %v8601 = vld [vmem:[#allocation6 + $0x68] sm:$0xff]
      %v8602 = vld [vmem:[#allocation6 + $0x70] sm:$0xff]
      %v8603 = vld [vmem:[#allocation6 + $0x78] sm:$0xff]
      %v8604 = vld [vmem:[#allocation6 + $0x80] sm:$0xff]
      %v8605 = vld [vmem:[#allocation6 + $0x88] sm:$0xff]
      %v8606 = vld [vmem:[#allocation6 + $0x90] sm:$0xff]
      %v8607 = vld [vmem:[#allocation6 + $0x98] sm:$0xff]
      %v8608 = vld [vmem:[#allocation6 + $0xa0] sm:$0xff]
      %v8609 = vld [vmem:[#allocation6 + $0xa8] sm:$0xff]
      %v8610 = vld [vmem:[#allocation6 + $0xb0] sm:$0xff]
      %v8611 = vld [vmem:[#allocation6 + $0xb8] sm:$0xff]
      %v8612 = vld [vmem:[#allocation6 + $0xc0] sm:$0xff]
      %v8613 = vld [vmem:[#allocation6 + $0xc8] sm:$0xff]
      %v8614 = vld [vmem:[#allocation6 + $0xd0] sm:$0xff]
      %v8615 = vld [vmem:[#allocation6 + $0xd8] sm:$0xff]
      %v8616 = vld [vmem:[#allocation6 + $0xe0] sm:$0xff]
      %v8617 = vld [vmem:[#allocation6 + $0xe8] sm:$0xff]
      %v8618 = vld [vmem:[#allocation6 + $0xf0] sm:$0xff]
      %v8619 = vld [vmem:[#allocation6 + $0xf8] sm:$0xff]
      %v8620 = vadd.f32 %v8588, %v8556
      %v8621 = vadd.f32 %v8589, %v8557
      %v8622 = vadd.f32 %v8590, %v8558
      %v8623 = vadd.f32 %v8591, %v8559
      %v8624 = vadd.f32 %v8592, %v8560
      %v8625 = vadd.f32 %v8593, %v8561
      %v8626 = vadd.f32 %v8594, %v8562
      %v8627 = vadd.f32 %v8595, %v8563
      %v8628 = vadd.f32 %v8596, %v8564
      %v8629 = vadd.f32 %v8597, %v8565
      %v8630 = vadd.f32 %v8598, %v8566
      %v8631 = vadd.f32 %v8599, %v8567
      %v8632 = vadd.f32 %v8600, %v8568
      %v8633 = vadd.f32 %v8601, %v8569
      %v8634 = vadd.f32 %v8602, %v8570
      %v8635 = vadd.f32 %v8603, %v8571
      %v8636 = vadd.f32 %v8604, %v8572
      %v8637 = vadd.f32 %v8605, %v8573
      %v8638 = vadd.f32 %v8606, %v8574
      %v8639 = vadd.f32 %v8607, %v8575
      %v8640 = vadd.f32 %v8608, %v8576
      %v8641 = vadd.f32 %v8609, %v8577
      %v8642 = vadd.f32 %v8610, %v8578
      %v8643 = vadd.f32 %v8611, %v8579
      %v8644 = vadd.f32 %v8612, %v8580
      %v8645 = vadd.f32 %v8613, %v8581
      %v8646 = vadd.f32 %v8614, %v8582
      %v8647 = vadd.f32 %v8615, %v8583
      %v8648 = vadd.f32 %v8616, %v8584
      %v8649 = vadd.f32 %v8617, %v8585
      %v8650 = vadd.f32 %v8618, %v8586
      %v8651 = vadd.f32 %v8619, %v8587
      %8652 = vst.msk [vmem:[#allocation6] sm:$0xff] %vm1428, %v8620
      %8653 = vst.msk [vmem:[#allocation6 + $0x8] sm:$0xff] %vm1428, %v8621
      %8654 = vst.msk [vmem:[#allocation6 + $0x10] sm:$0xff] %vm1428, %v8622
      %8655 = vst.msk [vmem:[#allocation6 + $0x18] sm:$0xff] %vm1428, %v8623
      %8656 = vst.msk [vmem:[#allocation6 + $0x20] sm:$0xff] %vm1428, %v8624
      %8657 = vst.msk [vmem:[#allocation6 + $0x28] sm:$0xff] %vm1428, %v8625
      %8658 = vst.msk [vmem:[#allocation6 + $0x30] sm:$0xff] %vm1428, %v8626
      %8659 = vst.msk [vmem:[#allocation6 + $0x38] sm:$0xff] %vm1428, %v8627
      %8660 = vst.msk [vmem:[#allocation6 + $0x40] sm:$0xff] %vm1428, %v8628
      %8661 = vst.msk [vmem:[#allocation6 + $0x48] sm:$0xff] %vm1428, %v8629
      %8662 = vst.msk [vmem:[#allocation6 + $0x50] sm:$0xff] %vm1428, %v8630
      %8663 = vst.msk [vmem:[#allocation6 + $0x58] sm:$0xff] %vm1428, %v8631
      %8664 = vst.msk [vmem:[#allocation6 + $0x60] sm:$0xff] %vm1428, %v8632
      %8665 = vst.msk [vmem:[#allocation6 + $0x68] sm:$0xff] %vm1428, %v8633
      %8666 = vst.msk [vmem:[#allocation6 + $0x70] sm:$0xff] %vm1428, %v8634
      %8667 = vst.msk [vmem:[#allocation6 + $0x78] sm:$0xff] %vm1428, %v8635
      %8668 = vst.msk [vmem:[#allocation6 + $0x80] sm:$0xff] %vm1428, %v8636
      %8669 = vst.msk [vmem:[#allocation6 + $0x88] sm:$0xff] %vm1428, %v8637
      %8670 = vst.msk [vmem:[#allocation6 + $0x90] sm:$0xff] %vm1428, %v8638
      %8671 = vst.msk [vmem:[#allocation6 + $0x98] sm:$0xff] %vm1428, %v8639
      %8672 = vst.msk [vmem:[#allocation6 + $0xa0] sm:$0xff] %vm1428, %v8640
      %8673 = vst.msk [vmem:[#allocation6 + $0xa8] sm:$0xff] %vm1428, %v8641
      %8674 = vst.msk [vmem:[#allocation6 + $0xb0] sm:$0xff] %vm1428, %v8642
      %8675 = vst.msk [vmem:[#allocation6 + $0xb8] sm:$0xff] %vm1428, %v8643
      %8676 = vst.msk [vmem:[#allocation6 + $0xc0] sm:$0xff] %vm1428, %v8644
      %8677 = vst.msk [vmem:[#allocation6 + $0xc8] sm:$0xff] %vm1428, %v8645
      %8678 = vst.msk [vmem:[#allocation6 + $0xd0] sm:$0xff] %vm1428, %v8646
      %8679 = vst.msk [vmem:[#allocation6 + $0xd8] sm:$0xff] %vm1428, %v8647
      %8680 = vst.msk [vmem:[#allocation6 + $0xe0] sm:$0xff] %vm1428, %v8648
      %8681 = vst.msk [vmem:[#allocation6 + $0xe8] sm:$0xff] %vm1428, %v8649
      %8682 = vst.msk [vmem:[#allocation6 + $0xf0] sm:$0xff] %vm1428, %v8650
      %8683 = vst.msk [vmem:[#allocation6 + $0xf8] sm:$0xff] %vm1428, %v8651
      // Predicated region
      $region49: #{aspp_forward.1} parent=43 // pred_check
        %p8684 = pneg %p323
      $region50: #{aspp_forward.1} parent=43 // pred_check_branch
        %8686 = sbr.rel (%p8684) target = $region52
      $region51: #{aspp_forward.1} parent=43 // pred_region
        %v8687 = vld [vmem:[%s3] sm:$0xf]
        %v8688 = vld [vmem:[#allocation3] sm:$0xff]
        %v8689 = vld [vmem:[#allocation3 + $0x8] sm:$0xff]
        %v8690 = vld [vmem:[#allocation3 + $0x10] sm:$0xff]
        %v8691 = vld [vmem:[#allocation3 + $0x18] sm:$0xff]
        %v8692 = vld [vmem:[#allocation3 + $0x20] sm:$0xff]
        %v8693 = vld [vmem:[#allocation3 + $0x28] sm:$0xff]
        %v8694 = vld [vmem:[#allocation3 + $0x30] sm:$0xff]
        %v8695 = vld [vmem:[#allocation3 + $0x38] sm:$0xff]
        %v8696 = vld [vmem:[#allocation3 + $0x40] sm:$0xff]
        %v8697 = vld [vmem:[#allocation3 + $0x48] sm:$0xff]
        %v8698 = vld [vmem:[#allocation3 + $0x50] sm:$0xff]
        %v8699 = vld [vmem:[#allocation3 + $0x58] sm:$0xff]
        %v8700 = vld [vmem:[#allocation3 + $0x60] sm:$0xff]
        %v8701 = vld [vmem:[#allocation3 + $0x68] sm:$0xff]
        %v8702 = vld [vmem:[#allocation3 + $0x70] sm:$0xff]
        %v8703 = vld [vmem:[#allocation3 + $0x78] sm:$0xff]
        %v8704 = vld [vmem:[#allocation3 + $0x80] sm:$0xff]
        %v8705 = vld [vmem:[#allocation3 + $0x88] sm:$0xff]
        %v8706 = vld [vmem:[#allocation3 + $0x90] sm:$0xff]
        %v8707 = vld [vmem:[#allocation3 + $0x98] sm:$0xff]
        %v8708 = vld [vmem:[#allocation3 + $0xa0] sm:$0xff]
        %v8709 = vld [vmem:[#allocation3 + $0xa8] sm:$0xff]
        %v8710 = vld [vmem:[#allocation3 + $0xb0] sm:$0xff]
        %v8711 = vld [vmem:[#allocation3 + $0xb8] sm:$0xff]
        %v8712 = vld [vmem:[#allocation3 + $0xc0] sm:$0xff]
        %v8713 = vld [vmem:[#allocation3 + $0xc8] sm:$0xff]
        %v8714 = vld [vmem:[#allocation3 + $0xd0] sm:$0xff]
        %v8715 = vld [vmem:[#allocation3 + $0xd8] sm:$0xff]
        %v8716 = vld [vmem:[#allocation3 + $0xe0] sm:$0xff]
        %v8717 = vld [vmem:[#allocation3 + $0xe8] sm:$0xff]
        %v8718 = vld [vmem:[#allocation3 + $0xf0] sm:$0xff]
        %v8719 = vld [vmem:[#allocation3 + $0xf8] sm:$0xff]
        %v8720 = vperm.slane %v8687, 0
        %v8721 = vadd.f32 %v8688, %v8720
        %v8722 = vadd.f32 %v8689, %v8720
        %v8723 = vadd.f32 %v8690, %v8720
        %v8724 = vadd.f32 %v8691, %v8720
        %v8725 = vadd.f32 %v8692, %v8720
        %v8726 = vadd.f32 %v8693, %v8720
        %v8727 = vadd.f32 %v8694, %v8720
        %v8728 = vadd.f32 %v8695, %v8720
        %v8729 = vadd.f32 %v8696, %v8720
        %v8730 = vadd.f32 %v8697, %v8720
        %v8731 = vadd.f32 %v8698, %v8720
        %v8732 = vadd.f32 %v8699, %v8720
        %v8733 = vadd.f32 %v8700, %v8720
        %v8734 = vadd.f32 %v8701, %v8720
        %v8735 = vadd.f32 %v8702, %v8720
        %v8736 = vadd.f32 %v8703, %v8720
        %v8737 = vadd.f32 %v8704, %v8720
        %v8738 = vadd.f32 %v8705, %v8720
        %v8739 = vadd.f32 %v8706, %v8720
        %v8740 = vadd.f32 %v8707, %v8720
        %v8741 = vadd.f32 %v8708, %v8720
        %v8742 = vadd.f32 %v8709, %v8720
        %v8743 = vadd.f32 %v8710, %v8720
        %v8744 = vadd.f32 %v8711, %v8720
        %v8745 = vadd.f32 %v8712, %v8720
        %v8746 = vadd.f32 %v8713, %v8720
        %v8747 = vadd.f32 %v8714, %v8720
        %v8748 = vadd.f32 %v8715, %v8720
        %v8749 = vadd.f32 %v8716, %v8720
        %v8750 = vadd.f32 %v8717, %v8720
        %v8751 = vadd.f32 %v8718, %v8720
        %v8752 = vadd.f32 %v8719, %v8720
        %v8753 = vmax.f32 %v8721, 0.0
        %v8754 = vmax.f32 %v8722, 0.0
        %v8755 = vmax.f32 %v8723, 0.0
        %v8756 = vmax.f32 %v8724, 0.0
        %v8757 = vmax.f32 %v8725, 0.0
        %v8758 = vmax.f32 %v8726, 0.0
        %v8759 = vmax.f32 %v8727, 0.0
        %v8760 = vmax.f32 %v8728, 0.0
        %v8761 = vmax.f32 %v8729, 0.0
        %v8762 = vmax.f32 %v8730, 0.0
        %v8763 = vmax.f32 %v8731, 0.0
        %v8764 = vmax.f32 %v8732, 0.0
        %v8765 = vmax.f32 %v8733, 0.0
        %v8766 = vmax.f32 %v8734, 0.0
        %v8767 = vmax.f32 %v8735, 0.0
        %v8768 = vmax.f32 %v8736, 0.0
        %v8769 = vmax.f32 %v8737, 0.0
        %v8770 = vmax.f32 %v8738, 0.0
        %v8771 = vmax.f32 %v8739, 0.0
        %v8772 = vmax.f32 %v8740, 0.0
        %v8773 = vmax.f32 %v8741, 0.0
        %v8774 = vmax.f32 %v8742, 0.0
        %v8775 = vmax.f32 %v8743, 0.0
        %v8776 = vmax.f32 %v8744, 0.0
        %v8777 = vmax.f32 %v8745, 0.0
        %v8778 = vmax.f32 %v8746, 0.0
        %v8779 = vmax.f32 %v8747, 0.0
        %v8780 = vmax.f32 %v8748, 0.0
        %v8781 = vmax.f32 %v8749, 0.0
        %v8782 = vmax.f32 %v8750, 0.0
        %v8783 = vmax.f32 %v8751, 0.0
        %v8784 = vmax.f32 %v8752, 0.0
        %v8785 = vld [vmem:[%s4] sm:$0xff]
        %v8786 = vld [vmem:[%s317] sm:$0x1]
        %v8788 = vperm.slane %v8786, 0
        %v8791 = vsel %vm1428, %v8753, 0
        %v8794 = vsel %vm1428, %v8754, 0
        %v8797 = vsel %vm1428, %v8755, 0
        %v8800 = vsel %vm1428, %v8756, 0
        %v8803 = vsel %vm1428, %v8757, 0
        %v8806 = vsel %vm1428, %v8758, 0
        %v8809 = vsel %vm1428, %v8759, 0
        %v8812 = vsel %vm1428, %v8760, 0
        %v8815 = vsel %vm1428, %v8761, 0
        %v8818 = vsel %vm1428, %v8762, 0
        %v8821 = vsel %vm1428, %v8763, 0
        %v8824 = vsel %vm1428, %v8764, 0
        %v8827 = vsel %vm1428, %v8765, 0
        %v8830 = vsel %vm1428, %v8766, 0
        %v8833 = vsel %vm1428, %v8767, 0
        %v8836 = vsel %vm1428, %v8768, 0
        %v8839 = vsel %vm1428, %v8769, 0
        %v8842 = vsel %vm1428, %v8770, 0
        %v8845 = vsel %vm1428, %v8771, 0
        %v8848 = vsel %vm1428, %v8772, 0
        %v8851 = vsel %vm1428, %v8773, 0
        %v8854 = vsel %vm1428, %v8774, 0
        %v8857 = vsel %vm1428, %v8775, 0
        %v8860 = vsel %vm1428, %v8776, 0
        %v8863 = vsel %vm1428, %v8777, 0
        %v8866 = vsel %vm1428, %v8778, 0
        %v8869 = vsel %vm1428, %v8779, 0
        %v8872 = vsel %vm1428, %v8780, 0
        %v8875 = vsel %vm1428, %v8781, 0
        %v8878 = vsel %vm1428, %v8782, 0
        %v8881 = vsel %vm1428, %v8783, 0
        %v8884 = vsel %vm1428, %v8784, 0
        %8886 = vmatpush.msra.mxu0 0.0
        %8887 = vmatpush.msra.mxu0 0.0
        %8888 = vmatpush.msra.mxu0 0.0
        %8889 = vmatpush.msra.mxu0 0.0
        %8890 = vmatpush.msra.mxu0 0.0
        %8891 = vmatpush.msra.mxu0 0.0
        %8892 = vmatpush.msra.mxu0 0.0
        %8893 = vmatpush.msra.mxu0 0.0
        %8894 = vmatpush.msra.mxu0 0.0
        %8895 = vmatpush.msra.mxu0 0.0
        %8896 = vmatpush.msra.mxu0 0.0
        %8897 = vmatpush.msra.mxu0 0.0
        %8898 = vmatpush.msra.mxu0 0.0
        %8899 = vmatpush.msra.mxu0 0.0
        %8900 = vmatpush.msra.mxu0 0.0
        %8901 = vmatpush.msra.mxu0 %v8785
        %8902 = vmatmul.f32.gmra.mxu0 %v8791
        %v8903 = vpop.f32.mrf.mxu0
        %v8904 = vadd.f32 %v8788, %v8903
        %8905 = vmatmul.f32.gmra.mxu0 %v8794
        %v8906 = vpop.f32.mrf.mxu0
        %v8907 = vadd.f32 %v8788, %v8906
        %8908 = vmatmul.f32.gmra.mxu0 %v8797
        %v8909 = vpop.f32.mrf.mxu0
        %v8910 = vadd.f32 %v8788, %v8909
        %8911 = vmatmul.f32.gmra.mxu0 %v8800
        %v8912 = vpop.f32.mrf.mxu0
        %v8913 = vadd.f32 %v8788, %v8912
        %8914 = vmatmul.f32.gmra.mxu0 %v8803
        %v8915 = vpop.f32.mrf.mxu0
        %v8916 = vadd.f32 %v8788, %v8915
        %8917 = vmatmul.f32.gmra.mxu0 %v8806
        %v8918 = vpop.f32.mrf.mxu0
        %v8919 = vadd.f32 %v8788, %v8918
        %8920 = vmatmul.f32.gmra.mxu0 %v8809
        %v8921 = vpop.f32.mrf.mxu0
        %v8922 = vadd.f32 %v8788, %v8921
        %8923 = vmatmul.f32.gmra.mxu0 %v8812
        %v8924 = vpop.f32.mrf.mxu0
        %v8925 = vadd.f32 %v8788, %v8924
        %8926 = vmatmul.f32.gmra.mxu0 %v8815
        %v8927 = vpop.f32.mrf.mxu0
        %v8928 = vadd.f32 %v8788, %v8927
        %8929 = vmatmul.f32.gmra.mxu0 %v8818
        %v8930 = vpop.f32.mrf.mxu0
        %v8931 = vadd.f32 %v8788, %v8930
        %8932 = vmatmul.f32.gmra.mxu0 %v8821
        %v8933 = vpop.f32.mrf.mxu0
        %v8934 = vadd.f32 %v8788, %v8933
        %8935 = vmatmul.f32.gmra.mxu0 %v8824
        %v8936 = vpop.f32.mrf.mxu0
        %v8937 = vadd.f32 %v8788, %v8936
        %8938 = vmatmul.f32.gmra.mxu0 %v8827
        %v8939 = vpop.f32.mrf.mxu0
        %v8940 = vadd.f32 %v8788, %v8939
        %8941 = vmatmul.f32.gmra.mxu0 %v8830
        %v8942 = vpop.f32.mrf.mxu0
        %v8943 = vadd.f32 %v8788, %v8942
        %8944 = vmatmul.f32.gmra.mxu0 %v8833
        %v8945 = vpop.f32.mrf.mxu0
        %v8946 = vadd.f32 %v8788, %v8945
        %8947 = vmatmul.f32.gmra.mxu0 %v8836
        %v8948 = vpop.f32.mrf.mxu0
        %v8949 = vadd.f32 %v8788, %v8948
        %8950 = vmatmul.f32.gmra.mxu0 %v8839
        %v8951 = vpop.f32.mrf.mxu0
        %v8952 = vadd.f32 %v8788, %v8951
        %8953 = vmatmul.f32.gmra.mxu0 %v8842
        %v8954 = vpop.f32.mrf.mxu0
        %v8955 = vadd.f32 %v8788, %v8954
        %8956 = vmatmul.f32.gmra.mxu0 %v8845
        %v8957 = vpop.f32.mrf.mxu0
        %v8958 = vadd.f32 %v8788, %v8957
        %8959 = vmatmul.f32.gmra.mxu0 %v8848
        %v8960 = vpop.f32.mrf.mxu0
        %v8961 = vadd.f32 %v8788, %v8960
        %8962 = vmatmul.f32.gmra.mxu0 %v8851
        %v8963 = vpop.f32.mrf.mxu0
        %v8964 = vadd.f32 %v8788, %v8963
        %8965 = vmatmul.f32.gmra.mxu0 %v8854
        %v8966 = vpop.f32.mrf.mxu0
        %v8967 = vadd.f32 %v8788, %v8966
        %8968 = vmatmul.f32.gmra.mxu0 %v8857
        %v8969 = vpop.f32.mrf.mxu0
        %v8970 = vadd.f32 %v8788, %v8969
        %8971 = vmatmul.f32.gmra.mxu0 %v8860
        %v8972 = vpop.f32.mrf.mxu0
        %v8973 = vadd.f32 %v8788, %v8972
        %8974 = vmatmul.f32.gmra.mxu0 %v8863
        %v8975 = vpop.f32.mrf.mxu0
        %v8976 = vadd.f32 %v8788, %v8975
        %8977 = vmatmul.f32.gmra.mxu0 %v8866
        %v8978 = vpop.f32.mrf.mxu0
        %v8979 = vadd.f32 %v8788, %v8978
        %8980 = vmatmul.f32.gmra.mxu0 %v8869
        %v8981 = vpop.f32.mrf.mxu0
        %v8982 = vadd.f32 %v8788, %v8981
        %8983 = vmatmul.f32.gmra.mxu0 %v8872
        %v8984 = vpop.f32.mrf.mxu0
        %v8985 = vadd.f32 %v8788, %v8984
        %8986 = vmatmul.f32.gmra.mxu0 %v8875
        %v8987 = vpop.f32.mrf.mxu0
        %v8988 = vadd.f32 %v8788, %v8987
        %8989 = vmatmul.f32.gmra.mxu0 %v8878
        %v8990 = vpop.f32.mrf.mxu0
        %v8991 = vadd.f32 %v8788, %v8990
        %8992 = vmatmul.f32.gmra.mxu0 %v8881
        %v8993 = vpop.f32.mrf.mxu0
        %v8994 = vadd.f32 %v8788, %v8993
        %8995 = vmatmul.f32.gmra.mxu0 %v8884
        %v8996 = vpop.f32.mrf.mxu0
        %v8997 = vadd.f32 %v8788, %v8996
        %8998 = vdwg.mxu0
        %v8999 = vld [vmem:[#allocation4] sm:$0xff]
        %v9000 = vld [vmem:[#allocation4 + $0x8] sm:$0xff]
        %v9001 = vld [vmem:[#allocation4 + $0x10] sm:$0xff]
        %v9002 = vld [vmem:[#allocation4 + $0x18] sm:$0xff]
        %v9003 = vld [vmem:[#allocation4 + $0x20] sm:$0xff]
        %v9004 = vld [vmem:[#allocation4 + $0x28] sm:$0xff]
        %v9005 = vld [vmem:[#allocation4 + $0x30] sm:$0xff]
        %v9006 = vld [vmem:[#allocation4 + $0x38] sm:$0xff]
        %v9007 = vld [vmem:[#allocation4 + $0x40] sm:$0xff]
        %v9008 = vld [vmem:[#allocation4 + $0x48] sm:$0xff]
        %v9009 = vld [vmem:[#allocation4 + $0x50] sm:$0xff]
        %v9010 = vld [vmem:[#allocation4 + $0x58] sm:$0xff]
        %v9011 = vld [vmem:[#allocation4 + $0x60] sm:$0xff]
        %v9012 = vld [vmem:[#allocation4 + $0x68] sm:$0xff]
        %v9013 = vld [vmem:[#allocation4 + $0x70] sm:$0xff]
        %v9014 = vld [vmem:[#allocation4 + $0x78] sm:$0xff]
        %v9015 = vld [vmem:[#allocation4 + $0x80] sm:$0xff]
        %v9016 = vld [vmem:[#allocation4 + $0x88] sm:$0xff]
        %v9017 = vld [vmem:[#allocation4 + $0x90] sm:$0xff]
        %v9018 = vld [vmem:[#allocation4 + $0x98] sm:$0xff]
        %v9019 = vld [vmem:[#allocation4 + $0xa0] sm:$0xff]
        %v9020 = vld [vmem:[#allocation4 + $0xa8] sm:$0xff]
        %v9021 = vld [vmem:[#allocation4 + $0xb0] sm:$0xff]
        %v9022 = vld [vmem:[#allocation4 + $0xb8] sm:$0xff]
        %v9023 = vld [vmem:[#allocation4 + $0xc0] sm:$0xff]
        %v9024 = vld [vmem:[#allocation4 + $0xc8] sm:$0xff]
        %v9025 = vld [vmem:[#allocation4 + $0xd0] sm:$0xff]
        %v9026 = vld [vmem:[#allocation4 + $0xd8] sm:$0xff]
        %v9027 = vld [vmem:[#allocation4 + $0xe0] sm:$0xff]
        %v9028 = vld [vmem:[#allocation4 + $0xe8] sm:$0xff]
        %v9029 = vld [vmem:[#allocation4 + $0xf0] sm:$0xff]
        %v9030 = vld [vmem:[#allocation4 + $0xf8] sm:$0xff]
        %v9031 = vperm.slane %v8687, 1
        %v9032 = vadd.f32 %v8999, %v9031
        %v9033 = vadd.f32 %v9000, %v9031
        %v9034 = vadd.f32 %v9001, %v9031
        %v9035 = vadd.f32 %v9002, %v9031
        %v9036 = vadd.f32 %v9003, %v9031
        %v9037 = vadd.f32 %v9004, %v9031
        %v9038 = vadd.f32 %v9005, %v9031
        %v9039 = vadd.f32 %v9006, %v9031
        %v9040 = vadd.f32 %v9007, %v9031
        %v9041 = vadd.f32 %v9008, %v9031
        %v9042 = vadd.f32 %v9009, %v9031
        %v9043 = vadd.f32 %v9010, %v9031
        %v9044 = vadd.f32 %v9011, %v9031
        %v9045 = vadd.f32 %v9012, %v9031
        %v9046 = vadd.f32 %v9013, %v9031
        %v9047 = vadd.f32 %v9014, %v9031
        %v9048 = vadd.f32 %v9015, %v9031
        %v9049 = vadd.f32 %v9016, %v9031
        %v9050 = vadd.f32 %v9017, %v9031
        %v9051 = vadd.f32 %v9018, %v9031
        %v9052 = vadd.f32 %v9019, %v9031
        %v9053 = vadd.f32 %v9020, %v9031
        %v9054 = vadd.f32 %v9021, %v9031
        %v9055 = vadd.f32 %v9022, %v9031
        %v9056 = vadd.f32 %v9023, %v9031
        %v9057 = vadd.f32 %v9024, %v9031
        %v9058 = vadd.f32 %v9025, %v9031
        %v9059 = vadd.f32 %v9026, %v9031
        %v9060 = vadd.f32 %v9027, %v9031
        %v9061 = vadd.f32 %v9028, %v9031
        %v9062 = vadd.f32 %v9029, %v9031
        %v9063 = vadd.f32 %v9030, %v9031
        %v9064 = vmax.f32 %v9032, 0.0
        %v9065 = vmax.f32 %v9033, 0.0
        %v9066 = vmax.f32 %v9034, 0.0
        %v9067 = vmax.f32 %v9035, 0.0
        %v9068 = vmax.f32 %v9036, 0.0
        %v9069 = vmax.f32 %v9037, 0.0
        %v9070 = vmax.f32 %v9038, 0.0
        %v9071 = vmax.f32 %v9039, 0.0
        %v9072 = vmax.f32 %v9040, 0.0
        %v9073 = vmax.f32 %v9041, 0.0
        %v9074 = vmax.f32 %v9042, 0.0
        %v9075 = vmax.f32 %v9043, 0.0
        %v9076 = vmax.f32 %v9044, 0.0
        %v9077 = vmax.f32 %v9045, 0.0
        %v9078 = vmax.f32 %v9046, 0.0
        %v9079 = vmax.f32 %v9047, 0.0
        %v9080 = vmax.f32 %v9048, 0.0
        %v9081 = vmax.f32 %v9049, 0.0
        %v9082 = vmax.f32 %v9050, 0.0
        %v9083 = vmax.f32 %v9051, 0.0
        %v9084 = vmax.f32 %v9052, 0.0
        %v9085 = vmax.f32 %v9053, 0.0
        %v9086 = vmax.f32 %v9054, 0.0
        %v9087 = vmax.f32 %v9055, 0.0
        %v9088 = vmax.f32 %v9056, 0.0
        %v9089 = vmax.f32 %v9057, 0.0
        %v9090 = vmax.f32 %v9058, 0.0
        %v9091 = vmax.f32 %v9059, 0.0
        %v9092 = vmax.f32 %v9060, 0.0
        %v9093 = vmax.f32 %v9061, 0.0
        %v9094 = vmax.f32 %v9062, 0.0
        %v9095 = vmax.f32 %v9063, 0.0
        %s9096 = scalar_lea.vmem %s4, 8
        %v9097 = vld [vmem:[%s9096] sm:$0xff]
        %v9099 = vsel %vm1428, %v9064, 0
        %v9102 = vsel %vm1428, %v9065, 0
        %v9105 = vsel %vm1428, %v9066, 0
        %v9108 = vsel %vm1428, %v9067, 0
        %v9111 = vsel %vm1428, %v9068, 0
        %v9114 = vsel %vm1428, %v9069, 0
        %v9117 = vsel %vm1428, %v9070, 0
        %v9120 = vsel %vm1428, %v9071, 0
        %v9123 = vsel %vm1428, %v9072, 0
        %v9126 = vsel %vm1428, %v9073, 0
        %v9129 = vsel %vm1428, %v9074, 0
        %v9132 = vsel %vm1428, %v9075, 0
        %v9135 = vsel %vm1428, %v9076, 0
        %v9138 = vsel %vm1428, %v9077, 0
        %v9141 = vsel %vm1428, %v9078, 0
        %v9144 = vsel %vm1428, %v9079, 0
        %v9147 = vsel %vm1428, %v9080, 0
        %v9150 = vsel %vm1428, %v9081, 0
        %v9153 = vsel %vm1428, %v9082, 0
        %v9156 = vsel %vm1428, %v9083, 0
        %v9159 = vsel %vm1428, %v9084, 0
        %v9162 = vsel %vm1428, %v9085, 0
        %v9165 = vsel %vm1428, %v9086, 0
        %v9168 = vsel %vm1428, %v9087, 0
        %v9171 = vsel %vm1428, %v9088, 0
        %v9174 = vsel %vm1428, %v9089, 0
        %v9177 = vsel %vm1428, %v9090, 0
        %v9180 = vsel %vm1428, %v9091, 0
        %v9183 = vsel %vm1428, %v9092, 0
        %v9186 = vsel %vm1428, %v9093, 0
        %v9189 = vsel %vm1428, %v9094, 0
        %v9192 = vsel %vm1428, %v9095, 0
        %9194 = vmatpush.msra.mxu0 0.0
        %9195 = vmatpush.msra.mxu0 0.0
        %9196 = vmatpush.msra.mxu0 0.0
        %9197 = vmatpush.msra.mxu0 0.0
        %9198 = vmatpush.msra.mxu0 0.0
        %9199 = vmatpush.msra.mxu0 0.0
        %9200 = vmatpush.msra.mxu0 0.0
        %9201 = vmatpush.msra.mxu0 0.0
        %9202 = vmatpush.msra.mxu0 0.0
        %9203 = vmatpush.msra.mxu0 0.0
        %9204 = vmatpush.msra.mxu0 0.0
        %9205 = vmatpush.msra.mxu0 0.0
        %9206 = vmatpush.msra.mxu0 0.0
        %9207 = vmatpush.msra.mxu0 0.0
        %9208 = vmatpush.msra.mxu0 0.0
        %9209 = vmatpush.msra.mxu0 %v9097
        %9210 = vmatmul.f32.gmra.mxu0 %v9099
        %v9211 = vpop.f32.mrf.mxu0
        %v9212 = vadd.f32 0.0, %v9211
        %9213 = vmatmul.f32.gmra.mxu0 %v9102
        %v9214 = vpop.f32.mrf.mxu0
        %v9215 = vadd.f32 0.0, %v9214
        %9216 = vmatmul.f32.gmra.mxu0 %v9105
        %v9217 = vpop.f32.mrf.mxu0
        %v9218 = vadd.f32 0.0, %v9217
        %9219 = vmatmul.f32.gmra.mxu0 %v9108
        %v9220 = vpop.f32.mrf.mxu0
        %v9221 = vadd.f32 0.0, %v9220
        %9222 = vmatmul.f32.gmra.mxu0 %v9111
        %v9223 = vpop.f32.mrf.mxu0
        %v9224 = vadd.f32 0.0, %v9223
        %9225 = vmatmul.f32.gmra.mxu0 %v9114
        %v9226 = vpop.f32.mrf.mxu0
        %v9227 = vadd.f32 0.0, %v9226
        %9228 = vmatmul.f32.gmra.mxu0 %v9117
        %v9229 = vpop.f32.mrf.mxu0
        %v9230 = vadd.f32 0.0, %v9229
        %9231 = vmatmul.f32.gmra.mxu0 %v9120
        %v9232 = vpop.f32.mrf.mxu0
        %v9233 = vadd.f32 0.0, %v9232
        %9234 = vmatmul.f32.gmra.mxu0 %v9123
        %v9235 = vpop.f32.mrf.mxu0
        %v9236 = vadd.f32 0.0, %v9235
        %9237 = vmatmul.f32.gmra.mxu0 %v9126
        %v9238 = vpop.f32.mrf.mxu0
        %v9239 = vadd.f32 0.0, %v9238
        %9240 = vmatmul.f32.gmra.mxu0 %v9129
        %v9241 = vpop.f32.mrf.mxu0
        %v9242 = vadd.f32 0.0, %v9241
        %9243 = vmatmul.f32.gmra.mxu0 %v9132
        %v9244 = vpop.f32.mrf.mxu0
        %v9245 = vadd.f32 0.0, %v9244
        %9246 = vmatmul.f32.gmra.mxu0 %v9135
        %v9247 = vpop.f32.mrf.mxu0
        %v9248 = vadd.f32 0.0, %v9247
        %9249 = vmatmul.f32.gmra.mxu0 %v9138
        %v9250 = vpop.f32.mrf.mxu0
        %v9251 = vadd.f32 0.0, %v9250
        %9252 = vmatmul.f32.gmra.mxu0 %v9141
        %v9253 = vpop.f32.mrf.mxu0
        %v9254 = vadd.f32 0.0, %v9253
        %9255 = vmatmul.f32.gmra.mxu0 %v9144
        %v9256 = vpop.f32.mrf.mxu0
        %v9257 = vadd.f32 0.0, %v9256
        %9258 = vmatmul.f32.gmra.mxu0 %v9147
        %v9259 = vpop.f32.mrf.mxu0
        %v9260 = vadd.f32 0.0, %v9259
        %9261 = vmatmul.f32.gmra.mxu0 %v9150
        %v9262 = vpop.f32.mrf.mxu0
        %v9263 = vadd.f32 0.0, %v9262
        %9264 = vmatmul.f32.gmra.mxu0 %v9153
        %v9265 = vpop.f32.mrf.mxu0
        %v9266 = vadd.f32 0.0, %v9265
        %9267 = vmatmul.f32.gmra.mxu0 %v9156
        %v9268 = vpop.f32.mrf.mxu0
        %v9269 = vadd.f32 0.0, %v9268
        %9270 = vmatmul.f32.gmra.mxu0 %v9159
        %v9271 = vpop.f32.mrf.mxu0
        %v9272 = vadd.f32 0.0, %v9271
        %9273 = vmatmul.f32.gmra.mxu0 %v9162
        %v9274 = vpop.f32.mrf.mxu0
        %v9275 = vadd.f32 0.0, %v9274
        %9276 = vmatmul.f32.gmra.mxu0 %v9165
        %v9277 = vpop.f32.mrf.mxu0
        %v9278 = vadd.f32 0.0, %v9277
        %9279 = vmatmul.f32.gmra.mxu0 %v9168
        %v9280 = vpop.f32.mrf.mxu0
        %v9281 = vadd.f32 0.0, %v9280
        %9282 = vmatmul.f32.gmra.mxu0 %v9171
        %v9283 = vpop.f32.mrf.mxu0
        %v9284 = vadd.f32 0.0, %v9283
        %9285 = vmatmul.f32.gmra.mxu0 %v9174
        %v9286 = vpop.f32.mrf.mxu0
        %v9287 = vadd.f32 0.0, %v9286
        %9288 = vmatmul.f32.gmra.mxu0 %v9177
        %v9289 = vpop.f32.mrf.mxu0
        %v9290 = vadd.f32 0.0, %v9289
        %9291 = vmatmul.f32.gmra.mxu0 %v9180
        %v9292 = vpop.f32.mrf.mxu0
        %v9293 = vadd.f32 0.0, %v9292
        %9294 = vmatmul.f32.gmra.mxu0 %v9183
        %v9295 = vpop.f32.mrf.mxu0
        %v9296 = vadd.f32 0.0, %v9295
        %9297 = vmatmul.f32.gmra.mxu0 %v9186
        %v9298 = vpop.f32.mrf.mxu0
        %v9299 = vadd.f32 0.0, %v9298
        %9300 = vmatmul.f32.gmra.mxu0 %v9189
        %v9301 = vpop.f32.mrf.mxu0
        %v9302 = vadd.f32 0.0, %v9301
        %9303 = vmatmul.f32.gmra.mxu0 %v9192
        %v9304 = vpop.f32.mrf.mxu0
        %v9305 = vadd.f32 0.0, %v9304
        %9306 = vdwg.mxu0
        %v9307 = vadd.f32 %v8904, %v9212
        %v9308 = vadd.f32 %v8907, %v9215
        %v9309 = vadd.f32 %v8910, %v9218
        %v9310 = vadd.f32 %v8913, %v9221
        %v9311 = vadd.f32 %v8916, %v9224
        %v9312 = vadd.f32 %v8919, %v9227
        %v9313 = vadd.f32 %v8922, %v9230
        %v9314 = vadd.f32 %v8925, %v9233
        %v9315 = vadd.f32 %v8928, %v9236
        %v9316 = vadd.f32 %v8931, %v9239
        %v9317 = vadd.f32 %v8934, %v9242
        %v9318 = vadd.f32 %v8937, %v9245
        %v9319 = vadd.f32 %v8940, %v9248
        %v9320 = vadd.f32 %v8943, %v9251
        %v9321 = vadd.f32 %v8946, %v9254
        %v9322 = vadd.f32 %v8949, %v9257
        %v9323 = vadd.f32 %v8952, %v9260
        %v9324 = vadd.f32 %v8955, %v9263
        %v9325 = vadd.f32 %v8958, %v9266
        %v9326 = vadd.f32 %v8961, %v9269
        %v9327 = vadd.f32 %v8964, %v9272
        %v9328 = vadd.f32 %v8967, %v9275
        %v9329 = vadd.f32 %v8970, %v9278
        %v9330 = vadd.f32 %v8973, %v9281
        %v9331 = vadd.f32 %v8976, %v9284
        %v9332 = vadd.f32 %v8979, %v9287
        %v9333 = vadd.f32 %v8982, %v9290
        %v9334 = vadd.f32 %v8985, %v9293
        %v9335 = vadd.f32 %v8988, %v9296
        %v9336 = vadd.f32 %v8991, %v9299
        %v9337 = vadd.f32 %v8994, %v9302
        %v9338 = vadd.f32 %v8997, %v9305
        %v9339 = vld [vmem:[#allocation5] sm:$0xff]
        %v9340 = vld [vmem:[#allocation5 + $0x8] sm:$0xff]
        %v9341 = vld [vmem:[#allocation5 + $0x10] sm:$0xff]
        %v9342 = vld [vmem:[#allocation5 + $0x18] sm:$0xff]
        %v9343 = vld [vmem:[#allocation5 + $0x20] sm:$0xff]
        %v9344 = vld [vmem:[#allocation5 + $0x28] sm:$0xff]
        %v9345 = vld [vmem:[#allocation5 + $0x30] sm:$0xff]
        %v9346 = vld [vmem:[#allocation5 + $0x38] sm:$0xff]
        %v9347 = vld [vmem:[#allocation5 + $0x40] sm:$0xff]
        %v9348 = vld [vmem:[#allocation5 + $0x48] sm:$0xff]
        %v9349 = vld [vmem:[#allocation5 + $0x50] sm:$0xff]
        %v9350 = vld [vmem:[#allocation5 + $0x58] sm:$0xff]
        %v9351 = vld [vmem:[#allocation5 + $0x60] sm:$0xff]
        %v9352 = vld [vmem:[#allocation5 + $0x68] sm:$0xff]
        %v9353 = vld [vmem:[#allocation5 + $0x70] sm:$0xff]
        %v9354 = vld [vmem:[#allocation5 + $0x78] sm:$0xff]
        %v9355 = vld [vmem:[#allocation5 + $0x80] sm:$0xff]
        %v9356 = vld [vmem:[#allocation5 + $0x88] sm:$0xff]
        %v9357 = vld [vmem:[#allocation5 + $0x90] sm:$0xff]
        %v9358 = vld [vmem:[#allocation5 + $0x98] sm:$0xff]
        %v9359 = vld [vmem:[#allocation5 + $0xa0] sm:$0xff]
        %v9360 = vld [vmem:[#allocation5 + $0xa8] sm:$0xff]
        %v9361 = vld [vmem:[#allocation5 + $0xb0] sm:$0xff]
        %v9362 = vld [vmem:[#allocation5 + $0xb8] sm:$0xff]
        %v9363 = vld [vmem:[#allocation5 + $0xc0] sm:$0xff]
        %v9364 = vld [vmem:[#allocation5 + $0xc8] sm:$0xff]
        %v9365 = vld [vmem:[#allocation5 + $0xd0] sm:$0xff]
        %v9366 = vld [vmem:[#allocation5 + $0xd8] sm:$0xff]
        %v9367 = vld [vmem:[#allocation5 + $0xe0] sm:$0xff]
        %v9368 = vld [vmem:[#allocation5 + $0xe8] sm:$0xff]
        %v9369 = vld [vmem:[#allocation5 + $0xf0] sm:$0xff]
        %v9370 = vld [vmem:[#allocation5 + $0xf8] sm:$0xff]
        %v9371 = vperm.slane %v8687, 2
        %v9372 = vadd.f32 %v9339, %v9371
        %v9373 = vadd.f32 %v9340, %v9371
        %v9374 = vadd.f32 %v9341, %v9371
        %v9375 = vadd.f32 %v9342, %v9371
        %v9376 = vadd.f32 %v9343, %v9371
        %v9377 = vadd.f32 %v9344, %v9371
        %v9378 = vadd.f32 %v9345, %v9371
        %v9379 = vadd.f32 %v9346, %v9371
        %v9380 = vadd.f32 %v9347, %v9371
        %v9381 = vadd.f32 %v9348, %v9371
        %v9382 = vadd.f32 %v9349, %v9371
        %v9383 = vadd.f32 %v9350, %v9371
        %v9384 = vadd.f32 %v9351, %v9371
        %v9385 = vadd.f32 %v9352, %v9371
        %v9386 = vadd.f32 %v9353, %v9371
        %v9387 = vadd.f32 %v9354, %v9371
        %v9388 = vadd.f32 %v9355, %v9371
        %v9389 = vadd.f32 %v9356, %v9371
        %v9390 = vadd.f32 %v9357, %v9371
        %v9391 = vadd.f32 %v9358, %v9371
        %v9392 = vadd.f32 %v9359, %v9371
        %v9393 = vadd.f32 %v9360, %v9371
        %v9394 = vadd.f32 %v9361, %v9371
        %v9395 = vadd.f32 %v9362, %v9371
        %v9396 = vadd.f32 %v9363, %v9371
        %v9397 = vadd.f32 %v9364, %v9371
        %v9398 = vadd.f32 %v9365, %v9371
        %v9399 = vadd.f32 %v9366, %v9371
        %v9400 = vadd.f32 %v9367, %v9371
        %v9401 = vadd.f32 %v9368, %v9371
        %v9402 = vadd.f32 %v9369, %v9371
        %v9403 = vadd.f32 %v9370, %v9371
        %v9404 = vmax.f32 %v9372, 0.0
        %v9405 = vmax.f32 %v9373, 0.0
        %v9406 = vmax.f32 %v9374, 0.0
        %v9407 = vmax.f32 %v9375, 0.0
        %v9408 = vmax.f32 %v9376, 0.0
        %v9409 = vmax.f32 %v9377, 0.0
        %v9410 = vmax.f32 %v9378, 0.0
        %v9411 = vmax.f32 %v9379, 0.0
        %v9412 = vmax.f32 %v9380, 0.0
        %v9413 = vmax.f32 %v9381, 0.0
        %v9414 = vmax.f32 %v9382, 0.0
        %v9415 = vmax.f32 %v9383, 0.0
        %v9416 = vmax.f32 %v9384, 0.0
        %v9417 = vmax.f32 %v9385, 0.0
        %v9418 = vmax.f32 %v9386, 0.0
        %v9419 = vmax.f32 %v9387, 0.0
        %v9420 = vmax.f32 %v9388, 0.0
        %v9421 = vmax.f32 %v9389, 0.0
        %v9422 = vmax.f32 %v9390, 0.0
        %v9423 = vmax.f32 %v9391, 0.0
        %v9424 = vmax.f32 %v9392, 0.0
        %v9425 = vmax.f32 %v9393, 0.0
        %v9426 = vmax.f32 %v9394, 0.0
        %v9427 = vmax.f32 %v9395, 0.0
        %v9428 = vmax.f32 %v9396, 0.0
        %v9429 = vmax.f32 %v9397, 0.0
        %v9430 = vmax.f32 %v9398, 0.0
        %v9431 = vmax.f32 %v9399, 0.0
        %v9432 = vmax.f32 %v9400, 0.0
        %v9433 = vmax.f32 %v9401, 0.0
        %v9434 = vmax.f32 %v9402, 0.0
        %v9435 = vmax.f32 %v9403, 0.0
        %s9436 = scalar_lea.vmem %s4, 16
        %v9437 = vld [vmem:[%s9436] sm:$0xff]
        %v9439 = vsel %vm1428, %v9404, 0
        %v9442 = vsel %vm1428, %v9405, 0
        %v9445 = vsel %vm1428, %v9406, 0
        %v9448 = vsel %vm1428, %v9407, 0
        %v9451 = vsel %vm1428, %v9408, 0
        %v9454 = vsel %vm1428, %v9409, 0
        %v9457 = vsel %vm1428, %v9410, 0
        %v9460 = vsel %vm1428, %v9411, 0
        %v9463 = vsel %vm1428, %v9412, 0
        %v9466 = vsel %vm1428, %v9413, 0
        %v9469 = vsel %vm1428, %v9414, 0
        %v9472 = vsel %vm1428, %v9415, 0
        %v9475 = vsel %vm1428, %v9416, 0
        %v9478 = vsel %vm1428, %v9417, 0
        %v9481 = vsel %vm1428, %v9418, 0
        %v9484 = vsel %vm1428, %v9419, 0
        %v9487 = vsel %vm1428, %v9420, 0
        %v9490 = vsel %vm1428, %v9421, 0
        %v9493 = vsel %vm1428, %v9422, 0
        %v9496 = vsel %vm1428, %v9423, 0
        %v9499 = vsel %vm1428, %v9424, 0
        %v9502 = vsel %vm1428, %v9425, 0
        %v9505 = vsel %vm1428, %v9426, 0
        %v9508 = vsel %vm1428, %v9427, 0
        %v9511 = vsel %vm1428, %v9428, 0
        %v9514 = vsel %vm1428, %v9429, 0
        %v9517 = vsel %vm1428, %v9430, 0
        %v9520 = vsel %vm1428, %v9431, 0
        %v9523 = vsel %vm1428, %v9432, 0
        %v9526 = vsel %vm1428, %v9433, 0
        %v9529 = vsel %vm1428, %v9434, 0
        %v9532 = vsel %vm1428, %v9435, 0
        %9534 = vmatpush.msra.mxu0 0.0
        %9535 = vmatpush.msra.mxu0 0.0
        %9536 = vmatpush.msra.mxu0 0.0
        %9537 = vmatpush.msra.mxu0 0.0
        %9538 = vmatpush.msra.mxu0 0.0
        %9539 = vmatpush.msra.mxu0 0.0
        %9540 = vmatpush.msra.mxu0 0.0
        %9541 = vmatpush.msra.mxu0 0.0
        %9542 = vmatpush.msra.mxu0 0.0
        %9543 = vmatpush.msra.mxu0 0.0
        %9544 = vmatpush.msra.mxu0 0.0
        %9545 = vmatpush.msra.mxu0 0.0
        %9546 = vmatpush.msra.mxu0 0.0
        %9547 = vmatpush.msra.mxu0 0.0
        %9548 = vmatpush.msra.mxu0 0.0
        %9549 = vmatpush.msra.mxu0 %v9437
        %9550 = vmatmul.f32.gmra.mxu0 %v9439
        %v9551 = vpop.f32.mrf.mxu0
        %v9552 = vadd.f32 0.0, %v9551
        %9553 = vmatmul.f32.gmra.mxu0 %v9442
        %v9554 = vpop.f32.mrf.mxu0
        %v9555 = vadd.f32 0.0, %v9554
        %9556 = vmatmul.f32.gmra.mxu0 %v9445
        %v9557 = vpop.f32.mrf.mxu0
        %v9558 = vadd.f32 0.0, %v9557
        %9559 = vmatmul.f32.gmra.mxu0 %v9448
        %v9560 = vpop.f32.mrf.mxu0
        %v9561 = vadd.f32 0.0, %v9560
        %9562 = vmatmul.f32.gmra.mxu0 %v9451
        %v9563 = vpop.f32.mrf.mxu0
        %v9564 = vadd.f32 0.0, %v9563
        %9565 = vmatmul.f32.gmra.mxu0 %v9454
        %v9566 = vpop.f32.mrf.mxu0
        %v9567 = vadd.f32 0.0, %v9566
        %9568 = vmatmul.f32.gmra.mxu0 %v9457
        %v9569 = vpop.f32.mrf.mxu0
        %v9570 = vadd.f32 0.0, %v9569
        %9571 = vmatmul.f32.gmra.mxu0 %v9460
        %v9572 = vpop.f32.mrf.mxu0
        %v9573 = vadd.f32 0.0, %v9572
        %9574 = vmatmul.f32.gmra.mxu0 %v9463
        %v9575 = vpop.f32.mrf.mxu0
        %v9576 = vadd.f32 0.0, %v9575
        %9577 = vmatmul.f32.gmra.mxu0 %v9466
        %v9578 = vpop.f32.mrf.mxu0
        %v9579 = vadd.f32 0.0, %v9578
        %9580 = vmatmul.f32.gmra.mxu0 %v9469
        %v9581 = vpop.f32.mrf.mxu0
        %v9582 = vadd.f32 0.0, %v9581
        %9583 = vmatmul.f32.gmra.mxu0 %v9472
        %v9584 = vpop.f32.mrf.mxu0
        %v9585 = vadd.f32 0.0, %v9584
        %9586 = vmatmul.f32.gmra.mxu0 %v9475
        %v9587 = vpop.f32.mrf.mxu0
        %v9588 = vadd.f32 0.0, %v9587
        %9589 = vmatmul.f32.gmra.mxu0 %v9478
        %v9590 = vpop.f32.mrf.mxu0
        %v9591 = vadd.f32 0.0, %v9590
        %9592 = vmatmul.f32.gmra.mxu0 %v9481
        %v9593 = vpop.f32.mrf.mxu0
        %v9594 = vadd.f32 0.0, %v9593
        %9595 = vmatmul.f32.gmra.mxu0 %v9484
        %v9596 = vpop.f32.mrf.mxu0
        %v9597 = vadd.f32 0.0, %v9596
        %9598 = vmatmul.f32.gmra.mxu0 %v9487
        %v9599 = vpop.f32.mrf.mxu0
        %v9600 = vadd.f32 0.0, %v9599
        %9601 = vmatmul.f32.gmra.mxu0 %v9490
        %v9602 = vpop.f32.mrf.mxu0
        %v9603 = vadd.f32 0.0, %v9602
        %9604 = vmatmul.f32.gmra.mxu0 %v9493
        %v9605 = vpop.f32.mrf.mxu0
        %v9606 = vadd.f32 0.0, %v9605
        %9607 = vmatmul.f32.gmra.mxu0 %v9496
        %v9608 = vpop.f32.mrf.mxu0
        %v9609 = vadd.f32 0.0, %v9608
        %9610 = vmatmul.f32.gmra.mxu0 %v9499
        %v9611 = vpop.f32.mrf.mxu0
        %v9612 = vadd.f32 0.0, %v9611
        %9613 = vmatmul.f32.gmra.mxu0 %v9502
        %v9614 = vpop.f32.mrf.mxu0
        %v9615 = vadd.f32 0.0, %v9614
        %9616 = vmatmul.f32.gmra.mxu0 %v9505
        %v9617 = vpop.f32.mrf.mxu0
        %v9618 = vadd.f32 0.0, %v9617
        %9619 = vmatmul.f32.gmra.mxu0 %v9508
        %v9620 = vpop.f32.mrf.mxu0
        %v9621 = vadd.f32 0.0, %v9620
        %9622 = vmatmul.f32.gmra.mxu0 %v9511
        %v9623 = vpop.f32.mrf.mxu0
        %v9624 = vadd.f32 0.0, %v9623
        %9625 = vmatmul.f32.gmra.mxu0 %v9514
        %v9626 = vpop.f32.mrf.mxu0
        %v9627 = vadd.f32 0.0, %v9626
        %9628 = vmatmul.f32.gmra.mxu0 %v9517
        %v9629 = vpop.f32.mrf.mxu0
        %v9630 = vadd.f32 0.0, %v9629
        %9631 = vmatmul.f32.gmra.mxu0 %v9520
        %v9632 = vpop.f32.mrf.mxu0
        %v9633 = vadd.f32 0.0, %v9632
        %9634 = vmatmul.f32.gmra.mxu0 %v9523
        %v9635 = vpop.f32.mrf.mxu0
        %v9636 = vadd.f32 0.0, %v9635
        %9637 = vmatmul.f32.gmra.mxu0 %v9526
        %v9638 = vpop.f32.mrf.mxu0
        %v9639 = vadd.f32 0.0, %v9638
        %9640 = vmatmul.f32.gmra.mxu0 %v9529
        %v9641 = vpop.f32.mrf.mxu0
        %v9642 = vadd.f32 0.0, %v9641
        %9643 = vmatmul.f32.gmra.mxu0 %v9532
        %v9644 = vpop.f32.mrf.mxu0
        %v9645 = vadd.f32 0.0, %v9644
        %9646 = vdwg.mxu0
        %v9647 = vadd.f32 %v9307, %v9552
        %v9648 = vadd.f32 %v9308, %v9555
        %v9649 = vadd.f32 %v9309, %v9558
        %v9650 = vadd.f32 %v9310, %v9561
        %v9651 = vadd.f32 %v9311, %v9564
        %v9652 = vadd.f32 %v9312, %v9567
        %v9653 = vadd.f32 %v9313, %v9570
        %v9654 = vadd.f32 %v9314, %v9573
        %v9655 = vadd.f32 %v9315, %v9576
        %v9656 = vadd.f32 %v9316, %v9579
        %v9657 = vadd.f32 %v9317, %v9582
        %v9658 = vadd.f32 %v9318, %v9585
        %v9659 = vadd.f32 %v9319, %v9588
        %v9660 = vadd.f32 %v9320, %v9591
        %v9661 = vadd.f32 %v9321, %v9594
        %v9662 = vadd.f32 %v9322, %v9597
        %v9663 = vadd.f32 %v9323, %v9600
        %v9664 = vadd.f32 %v9324, %v9603
        %v9665 = vadd.f32 %v9325, %v9606
        %v9666 = vadd.f32 %v9326, %v9609
        %v9667 = vadd.f32 %v9327, %v9612
        %v9668 = vadd.f32 %v9328, %v9615
        %v9669 = vadd.f32 %v9329, %v9618
        %v9670 = vadd.f32 %v9330, %v9621
        %v9671 = vadd.f32 %v9331, %v9624
        %v9672 = vadd.f32 %v9332, %v9627
        %v9673 = vadd.f32 %v9333, %v9630
        %v9674 = vadd.f32 %v9334, %v9633
        %v9675 = vadd.f32 %v9335, %v9636
        %v9676 = vadd.f32 %v9336, %v9639
        %v9677 = vadd.f32 %v9337, %v9642
        %v9678 = vadd.f32 %v9338, %v9645
        %v9679 = vld [vmem:[#allocation6] sm:$0xff]
        %v9680 = vld [vmem:[#allocation6 + $0x8] sm:$0xff]
        %v9681 = vld [vmem:[#allocation6 + $0x10] sm:$0xff]
        %v9682 = vld [vmem:[#allocation6 + $0x18] sm:$0xff]
        %v9683 = vld [vmem:[#allocation6 + $0x20] sm:$0xff]
        %v9684 = vld [vmem:[#allocation6 + $0x28] sm:$0xff]
        %v9685 = vld [vmem:[#allocation6 + $0x30] sm:$0xff]
        %v9686 = vld [vmem:[#allocation6 + $0x38] sm:$0xff]
        %v9687 = vld [vmem:[#allocation6 + $0x40] sm:$0xff]
        %v9688 = vld [vmem:[#allocation6 + $0x48] sm:$0xff]
        %v9689 = vld [vmem:[#allocation6 + $0x50] sm:$0xff]
        %v9690 = vld [vmem:[#allocation6 + $0x58] sm:$0xff]
        %v9691 = vld [vmem:[#allocation6 + $0x60] sm:$0xff]
        %v9692 = vld [vmem:[#allocation6 + $0x68] sm:$0xff]
        %v9693 = vld [vmem:[#allocation6 + $0x70] sm:$0xff]
        %v9694 = vld [vmem:[#allocation6 + $0x78] sm:$0xff]
        %v9695 = vld [vmem:[#allocation6 + $0x80] sm:$0xff]
        %v9696 = vld [vmem:[#allocation6 + $0x88] sm:$0xff]
        %v9697 = vld [vmem:[#allocation6 + $0x90] sm:$0xff]
        %v9698 = vld [vmem:[#allocation6 + $0x98] sm:$0xff]
        %v9699 = vld [vmem:[#allocation6 + $0xa0] sm:$0xff]
        %v9700 = vld [vmem:[#allocation6 + $0xa8] sm:$0xff]
        %v9701 = vld [vmem:[#allocation6 + $0xb0] sm:$0xff]
        %v9702 = vld [vmem:[#allocation6 + $0xb8] sm:$0xff]
        %v9703 = vld [vmem:[#allocation6 + $0xc0] sm:$0xff]
        %v9704 = vld [vmem:[#allocation6 + $0xc8] sm:$0xff]
        %v9705 = vld [vmem:[#allocation6 + $0xd0] sm:$0xff]
        %v9706 = vld [vmem:[#allocation6 + $0xd8] sm:$0xff]
        %v9707 = vld [vmem:[#allocation6 + $0xe0] sm:$0xff]
        %v9708 = vld [vmem:[#allocation6 + $0xe8] sm:$0xff]
        %v9709 = vld [vmem:[#allocation6 + $0xf0] sm:$0xff]
        %v9710 = vld [vmem:[#allocation6 + $0xf8] sm:$0xff]
        %v9711 = vperm.slane %v8687, 3
        %v9712 = vadd.f32 %v9679, %v9711
        %v9713 = vadd.f32 %v9680, %v9711
        %v9714 = vadd.f32 %v9681, %v9711
        %v9715 = vadd.f32 %v9682, %v9711
        %v9716 = vadd.f32 %v9683, %v9711
        %v9717 = vadd.f32 %v9684, %v9711
        %v9718 = vadd.f32 %v9685, %v9711
        %v9719 = vadd.f32 %v9686, %v9711
        %v9720 = vadd.f32 %v9687, %v9711
        %v9721 = vadd.f32 %v9688, %v9711
        %v9722 = vadd.f32 %v9689, %v9711
        %v9723 = vadd.f32 %v9690, %v9711
        %v9724 = vadd.f32 %v9691, %v9711
        %v9725 = vadd.f32 %v9692, %v9711
        %v9726 = vadd.f32 %v9693, %v9711
        %v9727 = vadd.f32 %v9694, %v9711
        %v9728 = vadd.f32 %v9695, %v9711
        %v9729 = vadd.f32 %v9696, %v9711
        %v9730 = vadd.f32 %v9697, %v9711
        %v9731 = vadd.f32 %v9698, %v9711
        %v9732 = vadd.f32 %v9699, %v9711
        %v9733 = vadd.f32 %v9700, %v9711
        %v9734 = vadd.f32 %v9701, %v9711
        %v9735 = vadd.f32 %v9702, %v9711
        %v9736 = vadd.f32 %v9703, %v9711
        %v9737 = vadd.f32 %v9704, %v9711
        %v9738 = vadd.f32 %v9705, %v9711
        %v9739 = vadd.f32 %v9706, %v9711
        %v9740 = vadd.f32 %v9707, %v9711
        %v9741 = vadd.f32 %v9708, %v9711
        %v9742 = vadd.f32 %v9709, %v9711
        %v9743 = vadd.f32 %v9710, %v9711
        %v9744 = vmax.f32 %v9712, 0.0
        %v9745 = vmax.f32 %v9713, 0.0
        %v9746 = vmax.f32 %v9714, 0.0
        %v9747 = vmax.f32 %v9715, 0.0
        %v9748 = vmax.f32 %v9716, 0.0
        %v9749 = vmax.f32 %v9717, 0.0
        %v9750 = vmax.f32 %v9718, 0.0
        %v9751 = vmax.f32 %v9719, 0.0
        %v9752 = vmax.f32 %v9720, 0.0
        %v9753 = vmax.f32 %v9721, 0.0
        %v9754 = vmax.f32 %v9722, 0.0
        %v9755 = vmax.f32 %v9723, 0.0
        %v9756 = vmax.f32 %v9724, 0.0
        %v9757 = vmax.f32 %v9725, 0.0
        %v9758 = vmax.f32 %v9726, 0.0
        %v9759 = vmax.f32 %v9727, 0.0
        %v9760 = vmax.f32 %v9728, 0.0
        %v9761 = vmax.f32 %v9729, 0.0
        %v9762 = vmax.f32 %v9730, 0.0
        %v9763 = vmax.f32 %v9731, 0.0
        %v9764 = vmax.f32 %v9732, 0.0
        %v9765 = vmax.f32 %v9733, 0.0
        %v9766 = vmax.f32 %v9734, 0.0
        %v9767 = vmax.f32 %v9735, 0.0
        %v9768 = vmax.f32 %v9736, 0.0
        %v9769 = vmax.f32 %v9737, 0.0
        %v9770 = vmax.f32 %v9738, 0.0
        %v9771 = vmax.f32 %v9739, 0.0
        %v9772 = vmax.f32 %v9740, 0.0
        %v9773 = vmax.f32 %v9741, 0.0
        %v9774 = vmax.f32 %v9742, 0.0
        %v9775 = vmax.f32 %v9743, 0.0
        %s9776 = scalar_lea.vmem %s4, 24
        %v9777 = vld [vmem:[%s9776] sm:$0xff]
        %v9779 = vsel %vm1428, %v9744, 0
        %v9782 = vsel %vm1428, %v9745, 0
        %v9785 = vsel %vm1428, %v9746, 0
        %v9788 = vsel %vm1428, %v9747, 0
        %v9791 = vsel %vm1428, %v9748, 0
        %v9794 = vsel %vm1428, %v9749, 0
        %v9797 = vsel %vm1428, %v9750, 0
        %v9800 = vsel %vm1428, %v9751, 0
        %v9803 = vsel %vm1428, %v9752, 0
        %v9806 = vsel %vm1428, %v9753, 0
        %v9809 = vsel %vm1428, %v9754, 0
        %v9812 = vsel %vm1428, %v9755, 0
        %v9815 = vsel %vm1428, %v9756, 0
        %v9818 = vsel %vm1428, %v9757, 0
        %v9821 = vsel %vm1428, %v9758, 0
        %v9824 = vsel %vm1428, %v9759, 0
        %v9827 = vsel %vm1428, %v9760, 0
        %v9830 = vsel %vm1428, %v9761, 0
        %v9833 = vsel %vm1428, %v9762, 0
        %v9836 = vsel %vm1428, %v9763, 0
        %v9839 = vsel %vm1428, %v9764, 0
        %v9842 = vsel %vm1428, %v9765, 0
        %v9845 = vsel %vm1428, %v9766, 0
        %v9848 = vsel %vm1428, %v9767, 0
        %v9851 = vsel %vm1428, %v9768, 0
        %v9854 = vsel %vm1428, %v9769, 0
        %v9857 = vsel %vm1428, %v9770, 0
        %v9860 = vsel %vm1428, %v9771, 0
        %v9863 = vsel %vm1428, %v9772, 0
        %v9866 = vsel %vm1428, %v9773, 0
        %v9869 = vsel %vm1428, %v9774, 0
        %v9872 = vsel %vm1428, %v9775, 0
        %9874 = vmatpush.msra.mxu0 0.0
        %9875 = vmatpush.msra.mxu0 0.0
        %9876 = vmatpush.msra.mxu0 0.0
        %9877 = vmatpush.msra.mxu0 0.0
        %9878 = vmatpush.msra.mxu0 0.0
        %9879 = vmatpush.msra.mxu0 0.0
        %9880 = vmatpush.msra.mxu0 0.0
        %9881 = vmatpush.msra.mxu0 0.0
        %9882 = vmatpush.msra.mxu0 0.0
        %9883 = vmatpush.msra.mxu0 0.0
        %9884 = vmatpush.msra.mxu0 0.0
        %9885 = vmatpush.msra.mxu0 0.0
        %9886 = vmatpush.msra.mxu0 0.0
        %9887 = vmatpush.msra.mxu0 0.0
        %9888 = vmatpush.msra.mxu0 0.0
        %9889 = vmatpush.msra.mxu0 %v9777
        %9890 = vmatmul.f32.gmra.mxu0 %v9779
        %v9891 = vpop.f32.mrf.mxu0
        %v9892 = vadd.f32 0.0, %v9891
        %9893 = vmatmul.f32.gmra.mxu0 %v9782
        %v9894 = vpop.f32.mrf.mxu0
        %v9895 = vadd.f32 0.0, %v9894
        %9896 = vmatmul.f32.gmra.mxu0 %v9785
        %v9897 = vpop.f32.mrf.mxu0
        %v9898 = vadd.f32 0.0, %v9897
        %9899 = vmatmul.f32.gmra.mxu0 %v9788
        %v9900 = vpop.f32.mrf.mxu0
        %v9901 = vadd.f32 0.0, %v9900
        %9902 = vmatmul.f32.gmra.mxu0 %v9791
        %v9903 = vpop.f32.mrf.mxu0
        %v9904 = vadd.f32 0.0, %v9903
        %9905 = vmatmul.f32.gmra.mxu0 %v9794
        %v9906 = vpop.f32.mrf.mxu0
        %v9907 = vadd.f32 0.0, %v9906
        %9908 = vmatmul.f32.gmra.mxu0 %v9797
        %v9909 = vpop.f32.mrf.mxu0
        %v9910 = vadd.f32 0.0, %v9909
        %9911 = vmatmul.f32.gmra.mxu0 %v9800
        %v9912 = vpop.f32.mrf.mxu0
        %v9913 = vadd.f32 0.0, %v9912
        %9914 = vmatmul.f32.gmra.mxu0 %v9803
        %v9915 = vpop.f32.mrf.mxu0
        %v9916 = vadd.f32 0.0, %v9915
        %9917 = vmatmul.f32.gmra.mxu0 %v9806
        %v9918 = vpop.f32.mrf.mxu0
        %v9919 = vadd.f32 0.0, %v9918
        %9920 = vmatmul.f32.gmra.mxu0 %v9809
        %v9921 = vpop.f32.mrf.mxu0
        %v9922 = vadd.f32 0.0, %v9921
        %9923 = vmatmul.f32.gmra.mxu0 %v9812
        %v9924 = vpop.f32.mrf.mxu0
        %v9925 = vadd.f32 0.0, %v9924
        %9926 = vmatmul.f32.gmra.mxu0 %v9815
        %v9927 = vpop.f32.mrf.mxu0
        %v9928 = vadd.f32 0.0, %v9927
        %9929 = vmatmul.f32.gmra.mxu0 %v9818
        %v9930 = vpop.f32.mrf.mxu0
        %v9931 = vadd.f32 0.0, %v9930
        %9932 = vmatmul.f32.gmra.mxu0 %v9821
        %v9933 = vpop.f32.mrf.mxu0
        %v9934 = vadd.f32 0.0, %v9933
        %9935 = vmatmul.f32.gmra.mxu0 %v9824
        %v9936 = vpop.f32.mrf.mxu0
        %v9937 = vadd.f32 0.0, %v9936
        %9938 = vmatmul.f32.gmra.mxu0 %v9827
        %v9939 = vpop.f32.mrf.mxu0
        %v9940 = vadd.f32 0.0, %v9939
        %9941 = vmatmul.f32.gmra.mxu0 %v9830
        %v9942 = vpop.f32.mrf.mxu0
        %v9943 = vadd.f32 0.0, %v9942
        %9944 = vmatmul.f32.gmra.mxu0 %v9833
        %v9945 = vpop.f32.mrf.mxu0
        %v9946 = vadd.f32 0.0, %v9945
        %9947 = vmatmul.f32.gmra.mxu0 %v9836
        %v9948 = vpop.f32.mrf.mxu0
        %v9949 = vadd.f32 0.0, %v9948
        %9950 = vmatmul.f32.gmra.mxu0 %v9839
        %v9951 = vpop.f32.mrf.mxu0
        %v9952 = vadd.f32 0.0, %v9951
        %9953 = vmatmul.f32.gmra.mxu0 %v9842
        %v9954 = vpop.f32.mrf.mxu0
        %v9955 = vadd.f32 0.0, %v9954
        %9956 = vmatmul.f32.gmra.mxu0 %v9845
        %v9957 = vpop.f32.mrf.mxu0
        %v9958 = vadd.f32 0.0, %v9957
        %9959 = vmatmul.f32.gmra.mxu0 %v9848
        %v9960 = vpop.f32.mrf.mxu0
        %v9961 = vadd.f32 0.0, %v9960
        %9962 = vmatmul.f32.gmra.mxu0 %v9851
        %v9963 = vpop.f32.mrf.mxu0
        %v9964 = vadd.f32 0.0, %v9963
        %9965 = vmatmul.f32.gmra.mxu0 %v9854
        %v9966 = vpop.f32.mrf.mxu0
        %v9967 = vadd.f32 0.0, %v9966
        %9968 = vmatmul.f32.gmra.mxu0 %v9857
        %v9969 = vpop.f32.mrf.mxu0
        %v9970 = vadd.f32 0.0, %v9969
        %9971 = vmatmul.f32.gmra.mxu0 %v9860
        %v9972 = vpop.f32.mrf.mxu0
        %v9973 = vadd.f32 0.0, %v9972
        %9974 = vmatmul.f32.gmra.mxu0 %v9863
        %v9975 = vpop.f32.mrf.mxu0
        %v9976 = vadd.f32 0.0, %v9975
        %9977 = vmatmul.f32.gmra.mxu0 %v9866
        %v9978 = vpop.f32.mrf.mxu0
        %v9979 = vadd.f32 0.0, %v9978
        %9980 = vmatmul.f32.gmra.mxu0 %v9869
        %v9981 = vpop.f32.mrf.mxu0
        %v9982 = vadd.f32 0.0, %v9981
        %9983 = vmatmul.f32.gmra.mxu0 %v9872
        %v9984 = vpop.f32.mrf.mxu0
        %v9985 = vadd.f32 0.0, %v9984
        %9986 = vdwg.mxu0
        %v9987 = vadd.f32 %v9647, %v9892
        %v9988 = vadd.f32 %v9648, %v9895
        %v9989 = vadd.f32 %v9649, %v9898
        %v9990 = vadd.f32 %v9650, %v9901
        %v9991 = vadd.f32 %v9651, %v9904
        %v9992 = vadd.f32 %v9652, %v9907
        %v9993 = vadd.f32 %v9653, %v9910
        %v9994 = vadd.f32 %v9654, %v9913
        %v9995 = vadd.f32 %v9655, %v9916
        %v9996 = vadd.f32 %v9656, %v9919
        %v9997 = vadd.f32 %v9657, %v9922
        %v9998 = vadd.f32 %v9658, %v9925
        %v9999 = vadd.f32 %v9659, %v9928
        %v10000 = vadd.f32 %v9660, %v9931
        %v10001 = vadd.f32 %v9661, %v9934
        %v10002 = vadd.f32 %v9662, %v9937
        %v10003 = vadd.f32 %v9663, %v9940
        %v10004 = vadd.f32 %v9664, %v9943
        %v10005 = vadd.f32 %v9665, %v9946
        %v10006 = vadd.f32 %v9666, %v9949
        %v10007 = vadd.f32 %v9667, %v9952
        %v10008 = vadd.f32 %v9668, %v9955
        %v10009 = vadd.f32 %v9669, %v9958
        %v10010 = vadd.f32 %v9670, %v9961
        %v10011 = vadd.f32 %v9671, %v9964
        %v10012 = vadd.f32 %v9672, %v9967
        %v10013 = vadd.f32 %v9673, %v9970
        %v10014 = vadd.f32 %v9674, %v9973
        %v10015 = vadd.f32 %v9675, %v9976
        %v10016 = vadd.f32 %v9676, %v9979
        %v10017 = vadd.f32 %v9677, %v9982
        %v10018 = vadd.f32 %v9678, %v9985
        %v10019 = vmax.f32 %v9987, 0.0
        %v10020 = vmax.f32 %v9988, 0.0
        %v10021 = vmax.f32 %v9989, 0.0
        %v10022 = vmax.f32 %v9990, 0.0
        %v10023 = vmax.f32 %v9991, 0.0
        %v10024 = vmax.f32 %v9992, 0.0
        %v10025 = vmax.f32 %v9993, 0.0
        %v10026 = vmax.f32 %v9994, 0.0
        %v10027 = vmax.f32 %v9995, 0.0
        %v10028 = vmax.f32 %v9996, 0.0
        %v10029 = vmax.f32 %v9997, 0.0
        %v10030 = vmax.f32 %v9998, 0.0
        %v10031 = vmax.f32 %v9999, 0.0
        %v10032 = vmax.f32 %v10000, 0.0
        %v10033 = vmax.f32 %v10001, 0.0
        %v10034 = vmax.f32 %v10002, 0.0
        %v10035 = vmax.f32 %v10003, 0.0
        %v10036 = vmax.f32 %v10004, 0.0
        %v10037 = vmax.f32 %v10005, 0.0
        %v10038 = vmax.f32 %v10006, 0.0
        %v10039 = vmax.f32 %v10007, 0.0
        %v10040 = vmax.f32 %v10008, 0.0
        %v10041 = vmax.f32 %v10009, 0.0
        %v10042 = vmax.f32 %v10010, 0.0
        %v10043 = vmax.f32 %v10011, 0.0
        %v10044 = vmax.f32 %v10012, 0.0
        %v10045 = vmax.f32 %v10013, 0.0
        %v10046 = vmax.f32 %v10014, 0.0
        %v10047 = vmax.f32 %v10015, 0.0
        %v10048 = vmax.f32 %v10016, 0.0
        %v10049 = vmax.f32 %v10017, 0.0
        %v10050 = vmax.f32 %v10018, 0.0
        %10051 = vst.msk [vmem:[%s322] sm:$0xff] %vm1428, %v10019
        %10052 = vst.msk [vmem:[%s322 + $0x8] sm:$0xff] %vm1428, %v10020
        %10053 = vst.msk [vmem:[%s322 + $0x10] sm:$0xff] %vm1428, %v10021
        %10054 = vst.msk [vmem:[%s322 + $0x18] sm:$0xff] %vm1428, %v10022
        %10055 = vst.msk [vmem:[%s322 + $0x20] sm:$0xff] %vm1428, %v10023
        %10056 = vst.msk [vmem:[%s322 + $0x28] sm:$0xff] %vm1428, %v10024
        %10057 = vst.msk [vmem:[%s322 + $0x30] sm:$0xff] %vm1428, %v10025
        %10058 = vst.msk [vmem:[%s322 + $0x38] sm:$0xff] %vm1428, %v10026
        %10059 = vst.msk [vmem:[%s322 + $0x40] sm:$0xff] %vm1428, %v10027
        %10060 = vst.msk [vmem:[%s322 + $0x48] sm:$0xff] %vm1428, %v10028
        %10061 = vst.msk [vmem:[%s322 + $0x50] sm:$0xff] %vm1428, %v10029
        %10062 = vst.msk [vmem:[%s322 + $0x58] sm:$0xff] %vm1428, %v10030
        %10063 = vst.msk [vmem:[%s322 + $0x60] sm:$0xff] %vm1428, %v10031
        %10064 = vst.msk [vmem:[%s322 + $0x68] sm:$0xff] %vm1428, %v10032
        %10065 = vst.msk [vmem:[%s322 + $0x70] sm:$0xff] %vm1428, %v10033
        %10066 = vst.msk [vmem:[%s322 + $0x78] sm:$0xff] %vm1428, %v10034
        %10067 = vst.msk [vmem:[%s322 + $0x80] sm:$0xff] %vm1428, %v10035
        %10068 = vst.msk [vmem:[%s322 + $0x88] sm:$0xff] %vm1428, %v10036
        %10069 = vst.msk [vmem:[%s322 + $0x90] sm:$0xff] %vm1428, %v10037
        %10070 = vst.msk [vmem:[%s322 + $0x98] sm:$0xff] %vm1428, %v10038
        %10071 = vst.msk [vmem:[%s322 + $0xa0] sm:$0xff] %vm1428, %v10039
        %10072 = vst.msk [vmem:[%s322 + $0xa8] sm:$0xff] %vm1428, %v10040
        %10073 = vst.msk [vmem:[%s322 + $0xb0] sm:$0xff] %vm1428, %v10041
        %10074 = vst.msk [vmem:[%s322 + $0xb8] sm:$0xff] %vm1428, %v10042
        %10075 = vst.msk [vmem:[%s322 + $0xc0] sm:$0xff] %vm1428, %v10043
        %10076 = vst.msk [vmem:[%s322 + $0xc8] sm:$0xff] %vm1428, %v10044
        %10077 = vst.msk [vmem:[%s322 + $0xd0] sm:$0xff] %vm1428, %v10045
        %10078 = vst.msk [vmem:[%s322 + $0xd8] sm:$0xff] %vm1428, %v10046
        %10079 = vst.msk [vmem:[%s322 + $0xe0] sm:$0xff] %vm1428, %v10047
        %10080 = vst.msk [vmem:[%s322 + $0xe8] sm:$0xff] %vm1428, %v10048
        %10081 = vst.msk [vmem:[%s322 + $0xf0] sm:$0xff] %vm1428, %v10049
        %10082 = vst.msk [vmem:[%s322 + $0xf8] sm:$0xff] %vm1428, %v10050
      $region52: #{aspp_forward.1} parent=43 // pred_fallthru
        _
      %p10083 = scmp.lt.s32.totalorder %s21, 1
      %s10084 = scalar_select %p10083, %s21, 1
      %s10085 = smul.addr %s10084, 32
      %s10086 = smul.addr %s10085, 8
      %s10087 = scalar_lea.vmem %s6, %s10086
      // Predicated region
      $region53: #{aspp_forward.1} parent=43 // pred_check
        %p10088 = pneg %p195
      $region54: #{aspp_forward.1} parent=43 // pred_check_branch
        %10090 = sbr.rel (%p10088) target = $region56
      $region55: #{aspp_forward.1} parent=43 // pred_region
        _
      $region56: #{aspp_forward.1} parent=43 // pred_fallthru
        _
    $region44: #{aspp_forward.1} parent=5 // pred_fallthru
      _
    %p10091 = scmp.le.s32.totalorder 2, %s12
    // Predicated region
    $region57: #{aspp_forward.1} parent=5 // pred_check
      %p10092 = pneg %p10091
    $region58: #{aspp_forward.1} parent=5 // pred_check_branch
      %10094 = sbr.rel (%p10092) target = $region60
    $region59: #{aspp_forward.1} parent=5 // pred_region
      %s10095 = ssub.s32 %s12, 2
      // Predicated region
      $region61: #{aspp_forward.1} parent=59 // pred_check
        %p10096 = pneg %p201
      $region62: #{aspp_forward.1} parent=59 // pred_check_branch
        %10098 = sbr.rel (%p10096) target = $region64
      $region63: #{aspp_forward.1} parent=59 // pred_region
        %p10099 = scmp.lt.s32.totalorder %s23, 1
        %s10100 = scalar_select %p10099, %s23, 1
        %s10101 = smul.addr %s10100, 32
        %s10102 = smul.addr %s10101, 8
        %s10103 = scalar_lea.vmem %s6, %s10102
      $region64: #{aspp_forward.1} parent=59 // pred_fallthru
        _
    $region60: #{aspp_forward.1} parent=5 // pred_fallthru
      _
  $region6: #{aspp_forward.1} parent=0 // loop_footer
    %s16 = sadd.s32 1, %s12
  $region7: #{aspp_forward.1} parent=0 // loop_footer_branch
    %11 = sbr.rel target = $region3
  $region8: #{aspp_forward.1} parent=0 // loop_exit
    _

</llo_original>
